<compile_context>
chip_gen: v7x
topology: tpu7x:2x2x1
jax: 0.10.0
libtpu: 0.0.40
codegen_flags: <defaults>
</compile_context>

<pallas_src>
import jax
import jax.numpy as jnp
from jax.experimental import pallas as pl
from jax.experimental.pallas import tpu as pltpu


def _reflect_pad(x, axis, pad, size):
    """ReflectionPad (edge excluded, PyTorch-style) along one axis of a value."""
    if pad == 0:
        return x

    def sl(lo, hi):
        return tuple(slice(lo, hi) if a == axis else slice(None)
                     for a in range(x.ndim))

    left = [x[sl(j, j + 1)] for j in range(pad, 0, -1)]
    right = [x[sl(size - 2 - j, size - 1 - j)] for j in range(pad)]
    return jnp.concatenate(left + [x] + right, axis=axis)


def _make_residual_kernel(H, W, C, KH, KW, eps, compute_dtype, full_im2col):
    """Fused kernel: (conv->IN->relu) -> (conv->IN) -> +residual, per batch-tile."""
    pad = KH // 2
    inv_m = 1.0 / float(H * W)

    def conv_in(xb, w_ref, g, b):
        """Reflect-pad KxK conv + InstanceNorm.  xb: (B,H,W,C) bf16 -> (B,H*W,C) f32.

        Conv bias is omitted on purpose: a per-channel constant added before
        InstanceNorm is exactly cancelled by the mean subtraction.
        """
        B = xb.shape[0]
        # 1) width reflection pad, then fuse the KW width taps into the
        #    channel (lane) axis: contraction length C -> KW*C.
        xw = _reflect_pad(xb, axis=2, pad=pad, size=W)              # (B,H,W+2p,C)
        slabw = jnp.concatenate(
            [xw[:, :, dw:dw + W, :] for dw in range(KW)], axis=-1)  # (B,H,W,KW*C)
        # 2) height reflection pad of the fused slab (untiled leading axis).
        slabh = _reflect_pad(slabw, axis=1, pad=pad, size=H)        # (B,H+2p,W,KW*C)

        if full_im2col:
            # One long-K matmul per conv: (B*H*W, KH*KW*C) x (KH*KW*C, C).
            slab = jnp.concatenate(
                [slabh[:, dh:dh + H] for dh in range(KH)], axis=-1)
            acc = jnp.dot(slab.reshape(B * H * W, KH * KW * C),
                          w_ref[...].reshape(KH * KW * C, C),
                          preferred_element_type=jnp.float32)
        else:
            # VMEM-friendlier fallback: KH dots with K = KW*C.
            acc = jnp.dot(slabh[:, 0:H].reshape(B * H * W, KW * C), w_ref[0],
                          preferred_element_type=jnp.float32)
            for dh in range(1, KH):
                acc = acc + jnp.dot(
                    slabh[:, dh:dh + H].reshape(B * H * W, KW * C), w_ref[dh],
                    preferred_element_type=jnp.float32)

        acc = acc.reshape(B, H * W, C)                              # f32
        # 3) InstanceNorm: single pass over acc (sum + sum of squares),
        #    biased variance, affine folded into per-channel scale/shift.
        s = jnp.sum(acc, axis=1, keepdims=True)                     # (B,1,C)
        s2 = jnp.sum(acc * acc, axis=1, keepdims=True)              # (B,1,C)
        mean = s * inv_m
        var = jnp.maximum(s2 * inv_m - mean * mean, 0.0)
        scale = g * jax.lax.rsqrt(var + eps)                        # (B,1,C)
        shift = b - mean * scale
        return acc * scale + shift                                  # (B,H*W,C)

    def kernel(x_ref, w1_ref, g1_ref, b1_ref, w2_ref, g2_ref, b2_ref, out_ref):
        B = x_ref.shape[0]
        x = x_ref[...]                                              # (B,H,W,C)
        xb = x.astype(compute_dtype)                                # bf16 once
        g1 = g1_ref[...].reshape(1, 1, C)
        b1 = b1_ref[...].reshape(1, 1, C)
        g2 = g2_ref[...].reshape(1, 1, C)
        b2 = b2_ref[...].reshape(1, 1, C)
        # conv1 -> IN1 -> ReLU   (h never leaves VMEM)
        h = jnp.maximum(conv_in(xb, w1_ref, g1, b1), 0.0)           # (B,H*W,C) f32
        # conv2 -> IN2
        y = conv_in(h.reshape(B, H, W, C).astype(compute_dtype), w2_ref, g2, b2)
        # residual add on the f32 identity path
        out = y + x.astype(jnp.float32).reshape(B, H * W, C)
        out_ref[...] = out.reshape(B, H, W, C).astype(out_ref.dtype)

    return kernel


def _vmem_limit_bytes():
    """Generation-aware VMEM limit (~108 MiB on v5e/v6e, ~54 MiB on v7x)."""
    cap = 128 * 1024 * 1024
    try:
        cap = int(pltpu.get_tpu_info().vmem_capacity_bytes)
    except Exception:
        pass
    return max(32 * 1024 * 1024, min(int(cap * 0.85), 110 * 1024 * 1024))


def _pick_batch_tile(N, H, W, C, KH, KW, budget_bytes):
    """Largest divisor of N whose rough per-block VMEM footprint fits budget."""
    # f32 in/out double-buffered pipeline blocks, f32 residual/acc/h temps,
    # bf16 activation + fused padded slabs (+ full im2col slab).
    per_img = H * W * C * (4 * 4 + 3 * 4 + 2 + 2 * KW + 2 * KH * KW)
    bt = 1
    for d in range(1, N + 1):
        if N % d == 0 and d * per_img <= budget_bytes:
            bt = d
    return bt


def residual_layer_pallas_nhwc(x_nhwc, params, *, eps=1e-5,
                               compute_dtype=jnp.bfloat16):
    """ResidualLayer forward, NHWC in / NHWC out (preferred entry point)."""
    N, H, W, C = x_nhwc.shape
    KH, KW, cin, cout = params["w1"].shape
    assert (cin, cout) == (C, C) and KH == KW and KH % 2 == 1
    assert KH // 2 < H and KW // 2 < W       # reflection-pad validity

    vmem_limit = _vmem_limit_bytes()
    bt = _pick_batch_tile(N, H, W, C, KH, KW, vmem_limit // 2)
    # Full im2col (single K = KH*KW*C dot per conv) when the bf16 slab is
    # comfortably small; otherwise KH dots with K = KW*C.
    full_im2col = bt * H * W * KH * KW * C * 2 <= vmem_limit // 6

    # Weights in bf16, reshaped so the KW taps are pre-fused along the
    # contraction axis: (KH, KW*C, C).  IN affine params stay f32.
    w1 = params["w1"].astype(compute_dtype).reshape(KH, KW * C, C)
    w2 = params["w2"].astype(compute_dtype).reshape(KH, KW * C, C)
    g1 = params["g1"].reshape(1, C).astype(jnp.float32)
    be1 = params["be1"].reshape(1, C).astype(jnp.float32)
    g2 = params["g2"].reshape(1, C).astype(jnp.float32)
    be2 = params["be2"].reshape(1, C).astype(jnp.float32)

    kernel = _make_residual_kernel(H, W, C, KH, KW, eps, compute_dtype,
                                   full_im2col)

    img_spec = pl.BlockSpec((bt, H, W, C), lambda n: (n, 0, 0, 0))
    wgt_spec = pl.BlockSpec((KH, KW * C, C), lambda n: (0, 0, 0))
    vec_spec = pl.BlockSpec((1, C), lambda n: (0, 0))

    return pl.pallas_call(
        kernel,
        grid=(N // bt,),
        in_specs=[img_spec, wgt_spec, vec_spec, vec_spec,
                  wgt_spec, vec_spec, vec_spec],
        out_specs=img_spec,
        out_shape=jax.ShapeDtypeStruct((N, H, W, C), x_nhwc.dtype),
        compiler_params=pltpu.CompilerParams(
            dimension_semantics=("parallel",),
            vmem_limit_bytes=vmem_limit,
        ),
    )(x_nhwc, w1, g1, be1, w2, g2, be2)


def residual_layer_pallas(x_nchw, params, **kw):
    """NCHW adapter matching the PyTorch module interface.

    Prefer residual_layer_pallas_nhwc in production: each transpose here moves
    the full tensor through HBM in XLA.
    """
    x = jnp.transpose(x_nchw, (0, 2, 3, 1))
    y = residual_layer_pallas_nhwc(x, params, **kw)
    return jnp.transpose(y, (0, 3, 1, 2))


# ---------------- pure-JAX reference (correctness check) -------------------
# Same precision choice (bf16 conv operands, f32 accumulation + f32 IN stats)
# and keeps the conv biases, so the assert also verifies that dropping the
# biases in the kernel is exact (IN cancels them).

def _ref_conv_in_layer(x, w, b_conv, gamma, beta, eps, compute_dtype):
    pad = w.shape[0] // 2
    xp = jnp.pad(x.astype(compute_dtype),
                 ((0, 0), (pad, pad), (pad, pad), (0, 0)), mode="reflect")
    y = jax.lax.conv_general_dilated(
        xp, w.astype(compute_dtype), window_strides=(1, 1), padding="VALID",
        dimension_numbers=("NHWC", "HWIO", "NHWC"),
        preferred_element_type=jnp.float32)
    y = y + b_conv                       # cancelled by IN mean subtraction
    mean = y.mean(axis=(1, 2), keepdims=True)
    var = ((y - mean) ** 2).mean(axis=(1, 2), keepdims=True)
    return (y - mean) * jax.lax.rsqrt(var + eps) * gamma + beta


def _ref_residual_layer_nhwc(x, p, eps=1e-5, compute_dtype=jnp.bfloat16):
    h = jnp.maximum(
        _ref_conv_in_layer(x, p["w1"], p["b1"], p["g1"], p["be1"],
                           eps, compute_dtype), 0.0)
    return _ref_conv_in_layer(h, p["w2"], p["b2"], p["g2"], p["be2"],
                              eps, compute_dtype) + x


if __name__ == "__main__":
    # Module default channels=128 (lane dense); keep spatial small.
    N, H, W, C = 2, 16, 16, 128
    K = 3

    key = jax.random.PRNGKey(0)
    ks = jax.random.split(key, 9)

    x = jax.random.normal(ks[0], (N, H, W, C), jnp.float32)   # NHWC entry point

    # Synthetic parameters; conv weights already in HWIO layout.
    params = {
        "w1": 0.1 * jax.random.normal(ks[1], (K, K, C, C), jnp.float32),
        "b1": 0.1 * jax.random.normal(ks[2], (C,), jnp.float32),
        "g1": 1.0 + 0.1 * jax.random.normal(ks[3], (C,), jnp.float32),
        "be1": 0.1 * jax.random.normal(ks[4], (C,), jnp.float32),
        "w2": 0.1 * jax.random.normal(ks[5], (K, K, C, C), jnp.float32),
        "b2": 0.1 * jax.random.normal(ks[6], (C,), jnp.float32),
        "g2": 1.0 + 0.1 * jax.random.normal(ks[7], (C,), jnp.float32),
        "be2": 0.1 * jax.random.normal(ks[8], (C,), jnp.float32),
    }

    out = jax.block_until_ready(jax.jit(residual_layer_pallas_nhwc)(x, params))
    ref = jax.block_until_ready(_ref_residual_layer_nhwc(x, params))

    assert out.shape == (N, H, W, C)
    err = float(jnp.max(jnp.abs(out - ref)))
    assert err < 5e-3, f"mismatch vs reference: max abs err = {err}"

    print("KERNEL_OK")
</pallas_src>

<mosaic_0001>
module attributes {stable_mosaic.version = 11 : i64} {
  func.func @kernel(%arg0: i32, %arg1: memref<2x16x16x128xf32, #tpu.memory_space<vmem>>, %arg2: memref<3x384x128xbf16, #tpu.memory_space<vmem>>, %arg3: memref<1x128xf32, #tpu.memory_space<vmem>>, %arg4: memref<1x128xf32, #tpu.memory_space<vmem>>, %arg5: memref<3x384x128xbf16, #tpu.memory_space<vmem>>, %arg6: memref<1x128xf32, #tpu.memory_space<vmem>>, %arg7: memref<1x128xf32, #tpu.memory_space<vmem>>, %arg8: memref<2x16x16x128xf32, #tpu.memory_space<vmem>>) attributes {dimension_semantics = [#tpu.dimension_semantics<parallel>], iteration_bounds = array<i64: 1>, scalar_prefetch = 0 : i64, scratch_operands = 0 : i64, tpu.core_type = #tpu.core_type<tc>, window_params = [{transform_indices = @transform_0, window_bounds = array<i64: 2, 16, 16, 128>}, {pipeline_mode = #tpu.pipeline_mode<synchronous>, transform_indices = @transform_1, window_bounds = array<i64: 3, 384, 128>}, {pipeline_mode = #tpu.pipeline_mode<synchronous>, transform_indices = @transform_2, window_bounds = array<i64: 1, 128>}, {pipeline_mode = #tpu.pipeline_mode<synchronous>, transform_indices = @transform_3, window_bounds = array<i64: 1, 128>}, {pipeline_mode = #tpu.pipeline_mode<synchronous>, transform_indices = @transform_4, window_bounds = array<i64: 3, 384, 128>}, {pipeline_mode = #tpu.pipeline_mode<synchronous>, transform_indices = @transform_5, window_bounds = array<i64: 1, 128>}, {pipeline_mode = #tpu.pipeline_mode<synchronous>, transform_indices = @transform_6, window_bounds = array<i64: 1, 128>}, {transform_indices = @transform_7, window_bounds = array<i64: 2, 16, 16, 128>}]} {
    %c0 = arith.constant 0 : index
    %c0_0 = arith.constant 0 : index
    %c0_1 = arith.constant 0 : index
    %c0_2 = arith.constant 0 : index
    %0 = vector.load %arg1[%c0, %c0_0, %c0_1, %c0_2] : memref<2x16x16x128xf32, #tpu.memory_space<vmem>>, vector<2x16x16x128xf32>
    %1 = arith.truncf %0 : vector<2x16x16x128xf32> to vector<2x16x16x128xbf16>
    %c0_3 = arith.constant 0 : index
    %c0_4 = arith.constant 0 : index
    %2 = vector.load %arg3[%c0_3, %c0_4] : memref<1x128xf32, #tpu.memory_space<vmem>>, vector<1x128xf32>
    %3 = vector.shape_cast %2 : vector<1x128xf32> to vector<1x1x128xf32>
    %c0_5 = arith.constant 0 : index
    %c0_6 = arith.constant 0 : index
    %4 = vector.load %arg4[%c0_5, %c0_6] : memref<1x128xf32, #tpu.memory_space<vmem>>, vector<1x128xf32>
    %5 = vector.shape_cast %4 : vector<1x128xf32> to vector<1x1x128xf32>
    %c0_7 = arith.constant 0 : index
    %c0_8 = arith.constant 0 : index
    %6 = vector.load %arg6[%c0_7, %c0_8] : memref<1x128xf32, #tpu.memory_space<vmem>>, vector<1x128xf32>
    %7 = vector.shape_cast %6 : vector<1x128xf32> to vector<1x1x128xf32>
    %c0_9 = arith.constant 0 : index
    %c0_10 = arith.constant 0 : index
    %8 = vector.load %arg7[%c0_9, %c0_10] : memref<1x128xf32, #tpu.memory_space<vmem>>, vector<1x128xf32>
    %9 = vector.shape_cast %8 : vector<1x128xf32> to vector<1x1x128xf32>
    %10 = vector.extract_strided_slice %1 {offsets = [0, 0, 1, 0], sizes = [2, 16, 1, 128], strides = [1, 1, 1, 1]} : vector<2x16x16x128xbf16> to vector<2x16x1x128xbf16>
    %11 = vector.extract_strided_slice %1 {offsets = [0, 0, 14, 0], sizes = [2, 16, 1, 128], strides = [1, 1, 1, 1]} : vector<2x16x16x128xbf16> to vector<2x16x1x128xbf16>
    %12 = tpu.concatenate %10, %1, %11 in 2 : vector<2x16x1x128xbf16>, vector<2x16x16x128xbf16>, vector<2x16x1x128xbf16> -> vector<2x16x18x128xbf16>
    %13 = vector.extract_strided_slice %12 {offsets = [0, 0, 0, 0], sizes = [2, 16, 16, 128], strides = [1, 1, 1, 1]} : vector<2x16x18x128xbf16> to vector<2x16x16x128xbf16>
    %14 = vector.extract_strided_slice %12 {offsets = [0, 0, 1, 0], sizes = [2, 16, 16, 128], strides = [1, 1, 1, 1]} : vector<2x16x18x128xbf16> to vector<2x16x16x128xbf16>
    %15 = vector.extract_strided_slice %12 {offsets = [0, 0, 2, 0], sizes = [2, 16, 16, 128], strides = [1, 1, 1, 1]} : vector<2x16x18x128xbf16> to vector<2x16x16x128xbf16>
    %16 = tpu.concatenate %13, %14, %15 in 3 : vector<2x16x16x128xbf16>, vector<2x16x16x128xbf16>, vector<2x16x16x128xbf16> -> vector<2x16x16x384xbf16>
    %17 = vector.extract_strided_slice %16 {offsets = [0, 1, 0, 0], sizes = [2, 1, 16, 384], strides = [1, 1, 1, 1]} : vector<2x16x16x384xbf16> to vector<2x1x16x384xbf16>
    %18 = vector.extract_strided_slice %16 {offsets = [0, 14, 0, 0], sizes = [2, 1, 16, 384], strides = [1, 1, 1, 1]} : vector<2x16x16x384xbf16> to vector<2x1x16x384xbf16>
    %19 = tpu.concatenate %17, %16, %18 in 1 : vector<2x1x16x384xbf16>, vector<2x16x16x384xbf16>, vector<2x1x16x384xbf16> -> vector<2x18x16x384xbf16>
    %20 = vector.extract_strided_slice %19 {offsets = [0, 0, 0, 0], sizes = [2, 16, 16, 384], strides = [1, 1, 1, 1]} : vector<2x18x16x384xbf16> to vector<2x16x16x384xbf16>
    %21 = vector.extract_strided_slice %19 {offsets = [0, 1, 0, 0], sizes = [2, 16, 16, 384], strides = [1, 1, 1, 1]} : vector<2x18x16x384xbf16> to vector<2x16x16x384xbf16>
    %22 = vector.extract_strided_slice %19 {offsets = [0, 2, 0, 0], sizes = [2, 16, 16, 384], strides = [1, 1, 1, 1]} : vector<2x18x16x384xbf16> to vector<2x16x16x384xbf16>
    %23 = tpu.concatenate %20, %21, %22 in 3 : vector<2x16x16x384xbf16>, vector<2x16x16x384xbf16>, vector<2x16x16x384xbf16> -> vector<2x16x16x1152xbf16>
    %24 = vector.shape_cast %23 : vector<2x16x16x1152xbf16> to vector<512x1152xbf16>
    %c0_11 = arith.constant 0 : index
    %c0_12 = arith.constant 0 : index
    %c0_13 = arith.constant 0 : index
    %25 = vector.load %arg2[%c0_11, %c0_12, %c0_13] : memref<3x384x128xbf16, #tpu.memory_space<vmem>>, vector<3x384x128xbf16>
    %26 = vector.shape_cast %25 : vector<3x384x128xbf16> to vector<1152x128xbf16>
    %cst = arith.constant dense<0.000000e+00> : vector<512x128xf32>
    %27 = tpu.matmul %24, %26, %cst {dimension_numbers = #tpu.dot_dimension_numbers<[1], [0], [0], [1], [0, 0, 1, 1], [], []>} : vector<512x1152xbf16>, vector<1152x128xbf16>, vector<512x128xf32> -> vector<512x128xf32>
    %28 = vector.shape_cast %27 : vector<512x128xf32> to vector<2x256x128xf32>
    %cst_14 = arith.constant dense<0.000000e+00> : vector<2x128xf32>
    %29 = vector.multi_reduction <add>, %28, %cst_14 [1] : vector<2x256x128xf32> to vector<2x128xf32>
    %30 = vector.shape_cast %29 : vector<2x128xf32> to vector<2x1x128xf32>
    %31 = arith.mulf %28, %28 : vector<2x256x128xf32>
    %cst_15 = arith.constant dense<0.000000e+00> : vector<2x128xf32>
    %32 = vector.multi_reduction <add>, %31, %cst_15 [1] : vector<2x256x128xf32> to vector<2x128xf32>
    %33 = vector.shape_cast %32 : vector<2x128xf32> to vector<2x1x128xf32>
    %cst_16 = arith.constant 3.906250e-03 : f32
    %34 = vector.broadcast %cst_16 : f32 to vector<2x1x128xf32>
    %35 = arith.mulf %30, %34 : vector<2x1x128xf32>
    %cst_17 = arith.constant 3.906250e-03 : f32
    %36 = vector.broadcast %cst_17 : f32 to vector<2x1x128xf32>
    %37 = arith.mulf %33, %36 : vector<2x1x128xf32>
    %38 = arith.mulf %35, %35 : vector<2x1x128xf32>
    %39 = arith.subf %37, %38 : vector<2x1x128xf32>
    %cst_18 = arith.constant 0.000000e+00 : f32
    %40 = vector.broadcast %cst_18 : f32 to vector<2x1x128xf32>
    %41 = arith.maximumf %39, %40 : vector<2x1x128xf32>
    %cst_19 = arith.constant 9.99999974E-6 : f32
    %42 = vector.broadcast %cst_19 : f32 to vector<2x1x128xf32>
    %43 = arith.addf %41, %42 : vector<2x1x128xf32>
    %44 = math.rsqrt %43 : vector<2x1x128xf32>
    %45 = vector.broadcast %3 : vector<1x1x128xf32> to vector<2x1x128xf32>
    %46 = arith.mulf %45, %44 : vector<2x1x128xf32>
    %47 = arith.mulf %35, %46 : vector<2x1x128xf32>
    %48 = vector.broadcast %5 : vector<1x1x128xf32> to vector<2x1x128xf32>
    %49 = arith.subf %48, %47 : vector<2x1x128xf32>
    %50 = vector.broadcast %46 : vector<2x1x128xf32> to vector<2x256x128xf32>
    %51 = arith.mulf %28, %50 : vector<2x256x128xf32>
    %52 = vector.broadcast %49 : vector<2x1x128xf32> to vector<2x256x128xf32>
    %53 = arith.addf %51, %52 : vector<2x256x128xf32>
    %cst_20 = arith.constant 0.000000e+00 : f32
    %54 = vector.broadcast %cst_20 : f32 to vector<2x256x128xf32>
    %55 = arith.maximumf %53, %54 : vector<2x256x128xf32>
    %56 = vector.shape_cast %55 : vector<2x256x128xf32> to vector<2x16x16x128xf32>
    %57 = arith.truncf %56 : vector<2x16x16x128xf32> to vector<2x16x16x128xbf16>
    %58 = vector.extract_strided_slice %57 {offsets = [0, 0, 1, 0], sizes = [2, 16, 1, 128], strides = [1, 1, 1, 1]} : vector<2x16x16x128xbf16> to vector<2x16x1x128xbf16>
    %59 = vector.extract_strided_slice %57 {offsets = [0, 0, 14, 0], sizes = [2, 16, 1, 128], strides = [1, 1, 1, 1]} : vector<2x16x16x128xbf16> to vector<2x16x1x128xbf16>
    %60 = tpu.concatenate %58, %57, %59 in 2 : vector<2x16x1x128xbf16>, vector<2x16x16x128xbf16>, vector<2x16x1x128xbf16> -> vector<2x16x18x128xbf16>
    %61 = vector.extract_strided_slice %60 {offsets = [0, 0, 0, 0], sizes = [2, 16, 16, 128], strides = [1, 1, 1, 1]} : vector<2x16x18x128xbf16> to vector<2x16x16x128xbf16>
    %62 = vector.extract_strided_slice %60 {offsets = [0, 0, 1, 0], sizes = [2, 16, 16, 128], strides = [1, 1, 1, 1]} : vector<2x16x18x128xbf16> to vector<2x16x16x128xbf16>
    %63 = vector.extract_strided_slice %60 {offsets = [0, 0, 2, 0], sizes = [2, 16, 16, 128], strides = [1, 1, 1, 1]} : vector<2x16x18x128xbf16> to vector<2x16x16x128xbf16>
    %64 = tpu.concatenate %61, %62, %63 in 3 : vector<2x16x16x128xbf16>, vector<2x16x16x128xbf16>, vector<2x16x16x128xbf16> -> vector<2x16x16x384xbf16>
    %65 = vector.extract_strided_slice %64 {offsets = [0, 1, 0, 0], sizes = [2, 1, 16, 384], strides = [1, 1, 1, 1]} : vector<2x16x16x384xbf16> to vector<2x1x16x384xbf16>
    %66 = vector.extract_strided_slice %64 {offsets = [0, 14, 0, 0], sizes = [2, 1, 16, 384], strides = [1, 1, 1, 1]} : vector<2x16x16x384xbf16> to vector<2x1x16x384xbf16>
    %67 = tpu.concatenate %65, %64, %66 in 1 : vector<2x1x16x384xbf16>, vector<2x16x16x384xbf16>, vector<2x1x16x384xbf16> -> vector<2x18x16x384xbf16>
    %68 = vector.extract_strided_slice %67 {offsets = [0, 0, 0, 0], sizes = [2, 16, 16, 384], strides = [1, 1, 1, 1]} : vector<2x18x16x384xbf16> to vector<2x16x16x384xbf16>
    %69 = vector.extract_strided_slice %67 {offsets = [0, 1, 0, 0], sizes = [2, 16, 16, 384], strides = [1, 1, 1, 1]} : vector<2x18x16x384xbf16> to vector<2x16x16x384xbf16>
    %70 = vector.extract_strided_slice %67 {offsets = [0, 2, 0, 0], sizes = [2, 16, 16, 384], strides = [1, 1, 1, 1]} : vector<2x18x16x384xbf16> to vector<2x16x16x384xbf16>
    %71 = tpu.concatenate %68, %69, %70 in 3 : vector<2x16x16x384xbf16>, vector<2x16x16x384xbf16>, vector<2x16x16x384xbf16> -> vector<2x16x16x1152xbf16>
    %72 = vector.shape_cast %71 : vector<2x16x16x1152xbf16> to vector<512x1152xbf16>
    %c0_21 = arith.constant 0 : index
    %c0_22 = arith.constant 0 : index
    %c0_23 = arith.constant 0 : index
    %73 = vector.load %arg5[%c0_21, %c0_22, %c0_23] : memref<3x384x128xbf16, #tpu.memory_space<vmem>>, vector<3x384x128xbf16>
    %74 = vector.shape_cast %73 : vector<3x384x128xbf16> to vector<1152x128xbf16>
    %cst_24 = arith.constant dense<0.000000e+00> : vector<512x128xf32>
    %75 = tpu.matmul %72, %74, %cst_24 {dimension_numbers = #tpu.dot_dimension_numbers<[1], [0], [0], [1], [0, 0, 1, 1], [], []>} : vector<512x1152xbf16>, vector<1152x128xbf16>, vector<512x128xf32> -> vector<512x128xf32>
    %76 = vector.shape_cast %75 : vector<512x128xf32> to vector<2x256x128xf32>
    %cst_25 = arith.constant dense<0.000000e+00> : vector<2x128xf32>
    %77 = vector.multi_reduction <add>, %76, %cst_25 [1] : vector<2x256x128xf32> to vector<2x128xf32>
    %78 = vector.shape_cast %77 : vector<2x128xf32> to vector<2x1x128xf32>
    %79 = arith.mulf %76, %76 : vector<2x256x128xf32>
    %cst_26 = arith.constant dense<0.000000e+00> : vector<2x128xf32>
    %80 = vector.multi_reduction <add>, %79, %cst_26 [1] : vector<2x256x128xf32> to vector<2x128xf32>
    %81 = vector.shape_cast %80 : vector<2x128xf32> to vector<2x1x128xf32>
    %cst_27 = arith.constant 3.906250e-03 : f32
    %82 = vector.broadcast %cst_27 : f32 to vector<2x1x128xf32>
    %83 = arith.mulf %78, %82 : vector<2x1x128xf32>
    %cst_28 = arith.constant 3.906250e-03 : f32
    %84 = vector.broadcast %cst_28 : f32 to vector<2x1x128xf32>
    %85 = arith.mulf %81, %84 : vector<2x1x128xf32>
    %86 = arith.mulf %83, %83 : vector<2x1x128xf32>
    %87 = arith.subf %85, %86 : vector<2x1x128xf32>
    %cst_29 = arith.constant 0.000000e+00 : f32
    %88 = vector.broadcast %cst_29 : f32 to vector<2x1x128xf32>
    %89 = arith.maximumf %87, %88 : vector<2x1x128xf32>
    %cst_30 = arith.constant 9.99999974E-6 : f32
    %90 = vector.broadcast %cst_30 : f32 to vector<2x1x128xf32>
    %91 = arith.addf %89, %90 : vector<2x1x128xf32>
    %92 = math.rsqrt %91 : vector<2x1x128xf32>
    %93 = vector.broadcast %7 : vector<1x1x128xf32> to vector<2x1x128xf32>
    %94 = arith.mulf %93, %92 : vector<2x1x128xf32>
    %95 = arith.mulf %83, %94 : vector<2x1x128xf32>
    %96 = vector.broadcast %9 : vector<1x1x128xf32> to vector<2x1x128xf32>
    %97 = arith.subf %96, %95 : vector<2x1x128xf32>
    %98 = vector.broadcast %94 : vector<2x1x128xf32> to vector<2x256x128xf32>
    %99 = arith.mulf %76, %98 : vector<2x256x128xf32>
    %100 = vector.broadcast %97 : vector<2x1x128xf32> to vector<2x256x128xf32>
    %101 = arith.addf %99, %100 : vector<2x256x128xf32>
    %102 = vector.shape_cast %0 : vector<2x16x16x128xf32> to vector<2x256x128xf32>
    %103 = arith.addf %101, %102 : vector<2x256x128xf32>
    %104 = vector.shape_cast %103 : vector<2x256x128xf32> to vector<2x16x16x128xf32>
    %c0_31 = arith.constant 0 : index
    %c0_32 = arith.constant 0 : index
    %c0_33 = arith.constant 0 : index
    %c0_34 = arith.constant 0 : index
    %105 = vector.load %arg8[%c0_31, %c0_32, %c0_33, %c0_34] : memref<2x16x16x128xf32, #tpu.memory_space<vmem>>, vector<2x16x16x128xf32>
    tpu.vector_store %arg8[%c0_31, %c0_32, %c0_33, %c0_34], %104 {strides = array<i32>} : memref<2x16x16x128xf32, #tpu.memory_space<vmem>>, vector<2x16x16x128xf32>,
    return
  }
  func.func @transform_0(%arg0: i32) -> (i32, i32, i32, i32) {
    %c0_i32 = arith.constant 0 : i32
    %c0_i32_0 = arith.constant 0 : i32
    %c0_i32_1 = arith.constant 0 : i32
    %c0_i32_2 = arith.constant 0 : i32
    return %arg0, %c0_i32, %c0_i32_0, %c0_i32_1 : i32, i32, i32, i32
  }
  func.func @transform_1(%arg0: i32) -> (i32, i32, i32) {
    %c0_i32 = arith.constant 0 : i32
    %c0_i32_0 = arith.constant 0 : i32
    %c0_i32_1 = arith.constant 0 : i32
    %c0_i32_2 = arith.constant 0 : i32
    return %c0_i32, %c0_i32_0, %c0_i32_1 : i32, i32, i32
  }
  func.func @transform_2(%arg0: i32) -> (i32, i32) {
    %c0_i32 = arith.constant 0 : i32
    %c0_i32_0 = arith.constant 0 : i32
    %c0_i32_1 = arith.constant 0 : i32
    return %c0_i32, %c0_i32_0 : i32, i32
  }
  func.func @transform_3(%arg0: i32) -> (i32, i32) {
    %c0_i32 = arith.constant 0 : i32
    %c0_i32_0 = arith.constant 0 : i32
    %c0_i32_1 = arith.constant 0 : i32
    return %c0_i32, %c0_i32_0 : i32, i32
  }
  func.func @transform_4(%arg0: i32) -> (i32, i32, i32) {
    %c0_i32 = arith.constant 0 : i32
    %c0_i32_0 = arith.constant 0 : i32
    %c0_i32_1 = arith.constant 0 : i32
    %c0_i32_2 = arith.constant 0 : i32
    return %c0_i32, %c0_i32_0, %c0_i32_1 : i32, i32, i32
  }
  func.func @transform_5(%arg0: i32) -> (i32, i32) {
    %c0_i32 = arith.constant 0 : i32
    %c0_i32_0 = arith.constant 0 : i32
    %c0_i32_1 = arith.constant 0 : i32
    return %c0_i32, %c0_i32_0 : i32, i32
  }
  func.func @transform_6(%arg0: i32) -> (i32, i32) {
    %c0_i32 = arith.constant 0 : i32
    %c0_i32_0 = arith.constant 0 : i32
    %c0_i32_1 = arith.constant 0 : i32
    return %c0_i32, %c0_i32_0 : i32, i32
  }
  func.func @transform_7(%arg0: i32) -> (i32, i32, i32, i32) {
    %c0_i32 = arith.constant 0 : i32
    %c0_i32_0 = arith.constant 0 : i32
    %c0_i32_1 = arith.constant 0 : i32
    %c0_i32_2 = arith.constant 0 : i32
    return %arg0, %c0_i32, %c0_i32_0, %c0_i32_1 : i32, i32, i32, i32
  }
}

</mosaic_0001>

<llo_original>
// kernel: residual_layer_pallas_nhwc.1
$region0: #{residual_layer_pallas_nhwc.1}
  #allocation0 [shape = 'u32[]', space=smem, size = 0x4, offset = 0x4, fixed_abs, tag = 'smem constant byte address 0x4 - core index']
  #allocation1 [shape = 'u32[144,128]{1,0:T(1,128)}', space=vmem, size = 0x12000, scoped, tag = 'internal scratch']
  %s0 = inlined_call_operand.hbm [shape: f32[2,16,16,128], index: 0, kind: input, shape index: {}]
  %s1 = inlined_call_operand.hbm [shape: bf16[3,384,128], index: 1, kind: input, shape index: {}]
  %s2 = inlined_call_operand.hbm [shape: f32[1,128], index: 2, kind: input, shape index: {}]
  %s3 = inlined_call_operand.hbm [shape: f32[1,128], index: 3, kind: input, shape index: {}]
  %s4 = inlined_call_operand.hbm [shape: bf16[3,384,128], index: 4, kind: input, shape index: {}]
  %s5 = inlined_call_operand.hbm [shape: f32[1,128], index: 5, kind: input, shape index: {}]
  %s6 = inlined_call_operand.hbm [shape: f32[1,128], index: 6, kind: input, shape index: {}]
  %s7 = inlined_call_operand.hbm [shape: f32[2,16,16,128], index: 7, kind: output, shape index: {}]
  %s8 = sld [smem:[#allocation0]]
  $region66: #{residual_layer_pallas_nhwc.1} parent=0
    _
  %s10 = ssub.s32 1, %s8
  %s11 = scalar_select 0, %s10, %s8
  $region1: #{residual_layer_pallas_nhwc.1} parent=0
    #allocation2 [shape = 'u8[262144]{0}', space=vmem, size = 0x40000, scoped, tag = 'input window, operand 0, single buffered']
    #allocation3 [shape = 's32[1]{0}', space=sflag, size = 0x4, scoped, tag = 'scoped memory for residual_layer_pallas_nhwc.1']
    #allocation4 [shape = 's32[1]{0}', space=sflag, size = 0x4, scoped, tag = 'scoped memory for residual_layer_pallas_nhwc.1']
    #allocation5 [shape = 'u8[294912]{0}', space=vmem, size = 0x48000, scoped, tag = 'input window, operand 1, single buffered']
    #allocation6 [shape = 's32[1]{0}', space=sflag, size = 0x4, scoped, tag = 'scoped memory for residual_layer_pallas_nhwc.1']
    #allocation7 [shape = 'u8[512]{0}', space=vmem, size = 0x400, scoped, tag = 'input window, operand 2, single buffered']
    #allocation8 [shape = 'u8[512]{0}', space=vmem, size = 0x400, scoped, tag = 'input window, operand 3, single buffered']
    #allocation9 [shape = 's32[1]{0}', space=sflag, size = 0x4, scoped, tag = 'scoped memory for residual_layer_pallas_nhwc.1']
    #allocation10 [shape = 'u8[294912]{0}', space=vmem, size = 0x48000, scoped, tag = 'input window, operand 4, single buffered']
    #allocation11 [shape = 'u8[512]{0}', space=vmem, size = 0x400, scoped, tag = 'input window, operand 5, single buffered']
    #allocation12 [shape = 's32[1]{0}', space=sflag, size = 0x4, scoped, tag = 'scoped memory for residual_layer_pallas_nhwc.1']
    #allocation13 [shape = 'u8[512]{0}', space=vmem, size = 0x400, scoped, tag = 'input window, operand 6, single buffered']
    #allocation14 [shape = 'u8[262144]{0}', space=vmem, size = 0x40000, scoped, tag = 'output window, operand 0, single buffered']
    %12 = vsyncpa [#allocation3], 0
    %13 = vsyncpa [#allocation6], 0
    %14 = vsyncpa [#allocation9], 0
    %15 = vsyncpa [#allocation12], 0
    %16 = vsyncpa [#allocation4], 0
    // Predicated region
    $region2: #{residual_layer_pallas_nhwc.1} parent=1 // pred_check
      _
    $region3: #{residual_layer_pallas_nhwc.1} parent=1 // pred_check_branch
      %18 = sbr.rel (0) target = $region5
    $region4: #{residual_layer_pallas_nhwc.1} parent=1 // pred_region
      %s20 = ssub.s32 8192, 8192
      %21 = vsyncadd [#allocation3], %s20
      %s22 = sshll.u32 [#allocation2], 4
      %s23 = int_to_ptr.vmem [resolvable:$true] %s22
      %28 = dma.hbm_to_vmem [thread:$0]  %s0, 8192, %s23, [#allocation3], 128, 128, 8
    $region5: #{residual_layer_pallas_nhwc.1} parent=1 // pred_fallthru
      _
    // Predicated region
    $region6: #{residual_layer_pallas_nhwc.1} parent=1 // pred_check
      _
    $region7: #{residual_layer_pallas_nhwc.1} parent=1 // pred_check_branch
      %30 = sbr.rel (0) target = $region9
    $region8: #{residual_layer_pallas_nhwc.1} parent=1 // pred_region
      %s32 = ssub.s32 9216, 9216
      %33 = vsyncadd [#allocation6], %s32
      %s34 = sshll.u32 [#allocation5], 4
      %s35 = int_to_ptr.vmem [resolvable:$true] %s34
      %40 = dma.hbm_to_vmem [thread:$0]  %s1, 9216, %s35, [#allocation6], 64, 64, 4
    $region9: #{residual_layer_pallas_nhwc.1} parent=1 // pred_fallthru
      _
    // Predicated region
    $region10: #{residual_layer_pallas_nhwc.1} parent=1 // pred_check
      _
    $region11: #{residual_layer_pallas_nhwc.1} parent=1 // pred_check_branch
      %42 = sbr.rel (0) target = $region13
    $region12: #{residual_layer_pallas_nhwc.1} parent=1 // pred_region
      %s44 = ssub.s32 16, 16
      %45 = vsyncadd [#allocation6], %s44
      %s47 = sshll.u32 [#allocation7], 4
      %s48 = int_to_ptr.vmem [resolvable:$true] %s47
      %50 = dma.hbm_to_vmem [thread:$0]  %s2, 16, %s48, [#allocation6]
    $region13: #{residual_layer_pallas_nhwc.1} parent=1 // pred_fallthru
      _
    // Predicated region
    $region14: #{residual_layer_pallas_nhwc.1} parent=1 // pred_check
      _
    $region15: #{residual_layer_pallas_nhwc.1} parent=1 // pred_check_branch
      %52 = sbr.rel (0) target = $region17
    $region16: #{residual_layer_pallas_nhwc.1} parent=1 // pred_region
      %s54 = ssub.s32 16, 16
      %55 = vsyncadd [#allocation9], %s54
      %s57 = sshll.u32 [#allocation8], 4
      %s58 = int_to_ptr.vmem [resolvable:$true] %s57
      %60 = dma.hbm_to_vmem [thread:$0]  %s3, 16, %s58, [#allocation9]
    $region17: #{residual_layer_pallas_nhwc.1} parent=1 // pred_fallthru
      _
    // Predicated region
    $region18: #{residual_layer_pallas_nhwc.1} parent=1 // pred_check
      _
    $region19: #{residual_layer_pallas_nhwc.1} parent=1 // pred_check_branch
      %62 = sbr.rel (0) target = $region21
    $region20: #{residual_layer_pallas_nhwc.1} parent=1 // pred_region
      %s64 = ssub.s32 9216, 9216
      %65 = vsyncadd [#allocation9], %s64
      %s66 = sshll.u32 [#allocation10], 4
      %s67 = int_to_ptr.vmem [resolvable:$true] %s66
      %72 = dma.hbm_to_vmem [thread:$0]  %s4, 9216, %s67, [#allocation9], 64, 64, 4
    $region21: #{residual_layer_pallas_nhwc.1} parent=1 // pred_fallthru
      _
    // Predicated region
    $region22: #{residual_layer_pallas_nhwc.1} parent=1 // pred_check
      _
    $region23: #{residual_layer_pallas_nhwc.1} parent=1 // pred_check_branch
      %74 = sbr.rel (0) target = $region25
    $region24: #{residual_layer_pallas_nhwc.1} parent=1 // pred_region
      %s76 = ssub.s32 16, 16
      %77 = vsyncadd [#allocation12], %s76
      %s79 = sshll.u32 [#allocation11], 4
      %s80 = int_to_ptr.vmem [resolvable:$true] %s79
      %82 = dma.hbm_to_vmem [thread:$0]  %s5, 16, %s80, [#allocation12]
    $region25: #{residual_layer_pallas_nhwc.1} parent=1 // pred_fallthru
      _
    // Predicated region
    $region26: #{residual_layer_pallas_nhwc.1} parent=1 // pred_check
      _
    $region27: #{residual_layer_pallas_nhwc.1} parent=1 // pred_check_branch
      %84 = sbr.rel (0) target = $region29
    $region28: #{residual_layer_pallas_nhwc.1} parent=1 // pred_region
      %s86 = ssub.s32 16, 16
      %87 = vsyncadd [#allocation12], %s86
      %s89 = sshll.u32 [#allocation13], 4
      %s90 = int_to_ptr.vmem [resolvable:$true] %s89
      %92 = dma.hbm_to_vmem [thread:$0]  %s6, 16, %s90, [#allocation12]
    $region29: #{residual_layer_pallas_nhwc.1} parent=1 // pred_fallthru
      _
    // Predicated region
    $region30: #{residual_layer_pallas_nhwc.1} parent=1 // pred_check
      _
    $region31: #{residual_layer_pallas_nhwc.1} parent=1 // pred_check_branch
      %94 = sbr.rel (0) target = $region33
    $region32: #{residual_layer_pallas_nhwc.1} parent=1 // pred_region
      %95 = dma.done [#allocation3], 8192
    $region33: #{residual_layer_pallas_nhwc.1} parent=1 // pred_fallthru
      _
    // Predicated region
    $region34: #{residual_layer_pallas_nhwc.1} parent=1 // pred_check
      _
    $region35: #{residual_layer_pallas_nhwc.1} parent=1 // pred_check_branch
      %97 = sbr.rel (0) target = $region37
    $region36: #{residual_layer_pallas_nhwc.1} parent=1 // pred_region
      %98 = dma.done [#allocation6], 9216
    $region37: #{residual_layer_pallas_nhwc.1} parent=1 // pred_fallthru
      _
    // Predicated region
    $region38: #{residual_layer_pallas_nhwc.1} parent=1 // pred_check
      _
    $region39: #{residual_layer_pallas_nhwc.1} parent=1 // pred_check_branch
      %100 = sbr.rel (0) target = $region41
    $region40: #{residual_layer_pallas_nhwc.1} parent=1 // pred_region
      %101 = dma.done [#allocation6], 16
    $region41: #{residual_layer_pallas_nhwc.1} parent=1 // pred_fallthru
      _
    // Predicated region
    $region42: #{residual_layer_pallas_nhwc.1} parent=1 // pred_check
      _
    $region43: #{residual_layer_pallas_nhwc.1} parent=1 // pred_check_branch
      %103 = sbr.rel (0) target = $region45
    $region44: #{residual_layer_pallas_nhwc.1} parent=1 // pred_region
      %104 = dma.done [#allocation9], 16
    $region45: #{residual_layer_pallas_nhwc.1} parent=1 // pred_fallthru
      _
    // Predicated region
    $region46: #{residual_layer_pallas_nhwc.1} parent=1 // pred_check
      _
    $region47: #{residual_layer_pallas_nhwc.1} parent=1 // pred_check_branch
      %106 = sbr.rel (0) target = $region49
    $region48: #{residual_layer_pallas_nhwc.1} parent=1 // pred_region
      %107 = dma.done [#allocation9], 9216
    $region49: #{residual_layer_pallas_nhwc.1} parent=1 // pred_fallthru
      _
    // Predicated region
    $region50: #{residual_layer_pallas_nhwc.1} parent=1 // pred_check
      _
    $region51: #{residual_layer_pallas_nhwc.1} parent=1 // pred_check_branch
      %109 = sbr.rel (0) target = $region53
    $region52: #{residual_layer_pallas_nhwc.1} parent=1 // pred_region
      %110 = dma.done [#allocation12], 16
    $region53: #{residual_layer_pallas_nhwc.1} parent=1 // pred_fallthru
      _
    // Predicated region
    $region54: #{residual_layer_pallas_nhwc.1} parent=1 // pred_check
      _
    $region55: #{residual_layer_pallas_nhwc.1} parent=1 // pred_check_branch
      %112 = sbr.rel (0) target = $region57
    $region56: #{residual_layer_pallas_nhwc.1} parent=1 // pred_region
      %113 = dma.done [#allocation12], 16
    $region57: #{residual_layer_pallas_nhwc.1} parent=1 // pred_fallthru
      _
    %v115 = vld [vmem:[#allocation2] sm:$0xff]
    %v116 = vld [vmem:[#allocation2 + $0x8] sm:$0xff]
    %v117 = vld [vmem:[#allocation2 + $0x10] sm:$0xff]
    %v118 = vld [vmem:[#allocation2 + $0x18] sm:$0xff]
    %v119 = vld [vmem:[#allocation2 + $0x20] sm:$0xff]
    %v120 = vld [vmem:[#allocation2 + $0x28] sm:$0xff]
    %v121 = vld [vmem:[#allocation2 + $0x30] sm:$0xff]
    %v122 = vld [vmem:[#allocation2 + $0x38] sm:$0xff]
    %v123 = vld [vmem:[#allocation2 + $0x40] sm:$0xff]
    %v124 = vld [vmem:[#allocation2 + $0x48] sm:$0xff]
    %v125 = vld [vmem:[#allocation2 + $0x50] sm:$0xff]
    %v126 = vld [vmem:[#allocation2 + $0x58] sm:$0xff]
    %v127 = vld [vmem:[#allocation2 + $0x60] sm:$0xff]
    %v128 = vld [vmem:[#allocation2 + $0x68] sm:$0xff]
    %v129 = vld [vmem:[#allocation2 + $0x70] sm:$0xff]
    %v130 = vld [vmem:[#allocation2 + $0x78] sm:$0xff]
    %v131 = vld [vmem:[#allocation2 + $0x80] sm:$0xff]
    %v132 = vld [vmem:[#allocation2 + $0x88] sm:$0xff]
    %v133 = vld [vmem:[#allocation2 + $0x90] sm:$0xff]
    %v134 = vld [vmem:[#allocation2 + $0x98] sm:$0xff]
    %v135 = vld [vmem:[#allocation2 + $0xa0] sm:$0xff]
    %v136 = vld [vmem:[#allocation2 + $0xa8] sm:$0xff]
    %v137 = vld [vmem:[#allocation2 + $0xb0] sm:$0xff]
    %v138 = vld [vmem:[#allocation2 + $0xb8] sm:$0xff]
    %v139 = vld [vmem:[#allocation2 + $0xc0] sm:$0xff]
    %v140 = vld [vmem:[#allocation2 + $0xc8] sm:$0xff]
    %v141 = vld [vmem:[#allocation2 + $0xd0] sm:$0xff]
    %v142 = vld [vmem:[#allocation2 + $0xd8] sm:$0xff]
    %v143 = vld [vmem:[#allocation2 + $0xe0] sm:$0xff]
    %v144 = vld [vmem:[#allocation2 + $0xe8] sm:$0xff]
    %v145 = vld [vmem:[#allocation2 + $0xf0] sm:$0xff]
    %v146 = vld [vmem:[#allocation2 + $0xf8] sm:$0xff]
    %v147 = vld [vmem:[#allocation2 + $0x100] sm:$0xff]
    %v148 = vld [vmem:[#allocation2 + $0x108] sm:$0xff]
    %v149 = vld [vmem:[#allocation2 + $0x110] sm:$0xff]
    %v150 = vld [vmem:[#allocation2 + $0x118] sm:$0xff]
    %v151 = vld [vmem:[#allocation2 + $0x120] sm:$0xff]
    %v152 = vld [vmem:[#allocation2 + $0x128] sm:$0xff]
    %v153 = vld [vmem:[#allocation2 + $0x130] sm:$0xff]
    %v154 = vld [vmem:[#allocation2 + $0x138] sm:$0xff]
    %v155 = vld [vmem:[#allocation2 + $0x140] sm:$0xff]
    %v156 = vld [vmem:[#allocation2 + $0x148] sm:$0xff]
    %v157 = vld [vmem:[#allocation2 + $0x150] sm:$0xff]
    %v158 = vld [vmem:[#allocation2 + $0x158] sm:$0xff]
    %v159 = vld [vmem:[#allocation2 + $0x160] sm:$0xff]
    %v160 = vld [vmem:[#allocation2 + $0x168] sm:$0xff]
    %v161 = vld [vmem:[#allocation2 + $0x170] sm:$0xff]
    %v162 = vld [vmem:[#allocation2 + $0x178] sm:$0xff]
    %v163 = vld [vmem:[#allocation2 + $0x180] sm:$0xff]
    %v164 = vld [vmem:[#allocation2 + $0x188] sm:$0xff]
    %v165 = vld [vmem:[#allocation2 + $0x190] sm:$0xff]
    %v166 = vld [vmem:[#allocation2 + $0x198] sm:$0xff]
    %v167 = vld [vmem:[#allocation2 + $0x1a0] sm:$0xff]
    %v168 = vld [vmem:[#allocation2 + $0x1a8] sm:$0xff]
    %v169 = vld [vmem:[#allocation2 + $0x1b0] sm:$0xff]
    %v170 = vld [vmem:[#allocation2 + $0x1b8] sm:$0xff]
    %v171 = vld [vmem:[#allocation2 + $0x1c0] sm:$0xff]
    %v172 = vld [vmem:[#allocation2 + $0x1c8] sm:$0xff]
    %v173 = vld [vmem:[#allocation2 + $0x1d0] sm:$0xff]
    %v174 = vld [vmem:[#allocation2 + $0x1d8] sm:$0xff]
    %v175 = vld [vmem:[#allocation2 + $0x1e0] sm:$0xff]
    %v176 = vld [vmem:[#allocation2 + $0x1e8] sm:$0xff]
    %v177 = vld [vmem:[#allocation2 + $0x1f0] sm:$0xff]
    %v178 = vld [vmem:[#allocation2 + $0x1f8] sm:$0xff]
    %v179 = vpack.c.bf16 %v116, %v115
    %v180 = vpack.c.bf16 %v118, %v117
    %v181 = vpack.c.bf16 %v120, %v119
    %v182 = vpack.c.bf16 %v122, %v121
    %v183 = vpack.c.bf16 %v124, %v123
    %v184 = vpack.c.bf16 %v126, %v125
    %v185 = vpack.c.bf16 %v128, %v127
    %v186 = vpack.c.bf16 %v130, %v129
    %v187 = vpack.c.bf16 %v132, %v131
    %v188 = vpack.c.bf16 %v134, %v133
    %v189 = vpack.c.bf16 %v136, %v135
    %v190 = vpack.c.bf16 %v138, %v137
    %v191 = vpack.c.bf16 %v140, %v139
    %v192 = vpack.c.bf16 %v142, %v141
    %v193 = vpack.c.bf16 %v144, %v143
    %v194 = vpack.c.bf16 %v146, %v145
    %v195 = vpack.c.bf16 %v148, %v147
    %v196 = vpack.c.bf16 %v150, %v149
    %v197 = vpack.c.bf16 %v152, %v151
    %v198 = vpack.c.bf16 %v154, %v153
    %v199 = vpack.c.bf16 %v156, %v155
    %v200 = vpack.c.bf16 %v158, %v157
    %v201 = vpack.c.bf16 %v160, %v159
    %v202 = vpack.c.bf16 %v162, %v161
    %v203 = vpack.c.bf16 %v164, %v163
    %v204 = vpack.c.bf16 %v166, %v165
    %v205 = vpack.c.bf16 %v168, %v167
    %v206 = vpack.c.bf16 %v170, %v169
    %v207 = vpack.c.bf16 %v172, %v171
    %v208 = vpack.c.bf16 %v174, %v173
    %v209 = vpack.c.bf16 %v176, %v175
    %v210 = vpack.c.bf16 %v178, %v177
    %v211 = vld [vmem:[#allocation7] sm:$0x1]
    %v212 = vld [vmem:[#allocation8] sm:$0x1]
    %v213 = vld [vmem:[#allocation11] sm:$0x1]
    %v214 = vld [vmem:[#allocation13] sm:$0x1]
    %v216 = vshrl.u32 %v179, 16
    %v219 = vshrl.u32 %v180, 16
    %v222 = vshrl.u32 %v181, 16
    %v225 = vshrl.u32 %v182, 16
    %v228 = vshrl.u32 %v183, 16
    %v231 = vshrl.u32 %v184, 16
    %v234 = vshrl.u32 %v185, 16
    %v237 = vshrl.u32 %v186, 16
    %v240 = vshrl.u32 %v187, 16
    %v243 = vshrl.u32 %v188, 16
    %v246 = vshrl.u32 %v189, 16
    %v249 = vshrl.u32 %v190, 16
    %v252 = vshrl.u32 %v191, 16
    %v255 = vshrl.u32 %v192, 16
    %v258 = vshrl.u32 %v193, 16
    %v261 = vshrl.u32 %v194, 16
    %v264 = vshrl.u32 %v195, 16
    %v267 = vshrl.u32 %v196, 16
    %v270 = vshrl.u32 %v197, 16
    %v273 = vshrl.u32 %v198, 16
    %v276 = vshrl.u32 %v199, 16
    %v279 = vshrl.u32 %v200, 16
    %v282 = vshrl.u32 %v201, 16
    %v285 = vshrl.u32 %v202, 16
    %v288 = vshrl.u32 %v203, 16
    %v291 = vshrl.u32 %v204, 16
    %v294 = vshrl.u32 %v205, 16
    %v297 = vshrl.u32 %v206, 16
    %v300 = vshrl.u32 %v207, 16
    %v303 = vshrl.u32 %v208, 16
    %v306 = vshrl.u32 %v209, 16
    %v309 = vshrl.u32 %v210, 16
    %v343 = vrot.slane %v216, 7
    %v344 = vshll.u32 %v179, 16
    %v346 = vor.u32 %v343, %v344
    %v347 = vrot.slane %v219, 7
    %v348 = vshll.u32 %v180, 16
    %v350 = vor.u32 %v347, %v348
    %v351 = vrot.slane %v222, 7
    %v352 = vshll.u32 %v181, 16
    %v354 = vor.u32 %v351, %v352
    %v355 = vrot.slane %v225, 7
    %v356 = vshll.u32 %v182, 16
    %v358 = vor.u32 %v355, %v356
    %v359 = vrot.slane %v228, 7
    %v360 = vshll.u32 %v183, 16
    %v362 = vor.u32 %v359, %v360
    %v363 = vrot.slane %v231, 7
    %v364 = vshll.u32 %v184, 16
    %v366 = vor.u32 %v363, %v364
    %v367 = vrot.slane %v234, 7
    %v368 = vshll.u32 %v185, 16
    %v370 = vor.u32 %v367, %v368
    %v371 = vrot.slane %v237, 7
    %v372 = vshll.u32 %v186, 16
    %v374 = vor.u32 %v371, %v372
    %v375 = vrot.slane %v240, 7
    %v376 = vshll.u32 %v187, 16
    %v378 = vor.u32 %v375, %v376
    %v379 = vrot.slane %v243, 7
    %v380 = vshll.u32 %v188, 16
    %v382 = vor.u32 %v379, %v380
    %v383 = vrot.slane %v246, 7
    %v384 = vshll.u32 %v189, 16
    %v386 = vor.u32 %v383, %v384
    %v387 = vrot.slane %v249, 7
    %v388 = vshll.u32 %v190, 16
    %v390 = vor.u32 %v387, %v388
    %v391 = vrot.slane %v252, 7
    %v392 = vshll.u32 %v191, 16
    %v394 = vor.u32 %v391, %v392
    %v395 = vrot.slane %v255, 7
    %v396 = vshll.u32 %v192, 16
    %v398 = vor.u32 %v395, %v396
    %v399 = vrot.slane %v258, 7
    %v400 = vshll.u32 %v193, 16
    %v402 = vor.u32 %v399, %v400
    %v403 = vrot.slane %v261, 7
    %v404 = vshll.u32 %v194, 16
    %v406 = vor.u32 %v403, %v404
    %v407 = vrot.slane %v264, 7
    %v408 = vshll.u32 %v195, 16
    %v410 = vor.u32 %v407, %v408
    %v411 = vrot.slane %v267, 7
    %v412 = vshll.u32 %v196, 16
    %v414 = vor.u32 %v411, %v412
    %v415 = vrot.slane %v270, 7
    %v416 = vshll.u32 %v197, 16
    %v418 = vor.u32 %v415, %v416
    %v419 = vrot.slane %v273, 7
    %v420 = vshll.u32 %v198, 16
    %v422 = vor.u32 %v419, %v420
    %v423 = vrot.slane %v276, 7
    %v424 = vshll.u32 %v199, 16
    %v426 = vor.u32 %v423, %v424
    %v427 = vrot.slane %v279, 7
    %v428 = vshll.u32 %v200, 16
    %v430 = vor.u32 %v427, %v428
    %v431 = vrot.slane %v282, 7
    %v432 = vshll.u32 %v201, 16
    %v434 = vor.u32 %v431, %v432
    %v435 = vrot.slane %v285, 7
    %v436 = vshll.u32 %v202, 16
    %v438 = vor.u32 %v435, %v436
    %v439 = vrot.slane %v288, 7
    %v440 = vshll.u32 %v203, 16
    %v442 = vor.u32 %v439, %v440
    %v443 = vrot.slane %v291, 7
    %v444 = vshll.u32 %v204, 16
    %v446 = vor.u32 %v443, %v444
    %v447 = vrot.slane %v294, 7
    %v448 = vshll.u32 %v205, 16
    %v450 = vor.u32 %v447, %v448
    %v451 = vrot.slane %v297, 7
    %v452 = vshll.u32 %v206, 16
    %v454 = vor.u32 %v451, %v452
    %v455 = vrot.slane %v300, 7
    %v456 = vshll.u32 %v207, 16
    %v458 = vor.u32 %v455, %v456
    %v459 = vrot.slane %v303, 7
    %v460 = vshll.u32 %v208, 16
    %v462 = vor.u32 %v459, %v460
    %v463 = vrot.slane %v306, 7
    %v464 = vshll.u32 %v209, 16
    %v466 = vor.u32 %v463, %v464
    %v467 = vrot.slane %v309, 7
    %v468 = vshll.u32 %v210, 16
    %v470 = vor.u32 %v467, %v468
    %v535 = vrot.slane %v344, 7
    %v536 = vrot.slane %v348, 7
    %v537 = vrot.slane %v352, 7
    %v538 = vrot.slane %v356, 7
    %v539 = vrot.slane %v360, 7
    %v540 = vrot.slane %v364, 7
    %v541 = vrot.slane %v368, 7
    %v542 = vrot.slane %v372, 7
    %v543 = vrot.slane %v376, 7
    %v544 = vrot.slane %v380, 7
    %v545 = vrot.slane %v384, 7
    %v546 = vrot.slane %v388, 7
    %v547 = vrot.slane %v392, 7
    %v548 = vrot.slane %v396, 7
    %v549 = vrot.slane %v400, 7
    %v550 = vrot.slane %v404, 7
    %v551 = vrot.slane %v408, 7
    %v552 = vrot.slane %v412, 7
    %v553 = vrot.slane %v416, 7
    %v554 = vrot.slane %v420, 7
    %v555 = vrot.slane %v424, 7
    %v556 = vrot.slane %v428, 7
    %v557 = vrot.slane %v432, 7
    %v558 = vrot.slane %v436, 7
    %v559 = vrot.slane %v440, 7
    %v560 = vrot.slane %v444, 7
    %v561 = vrot.slane %v448, 7
    %v562 = vrot.slane %v452, 7
    %v563 = vrot.slane %v456, 7
    %v564 = vrot.slane %v460, 7
    %v565 = vrot.slane %v464, 7
    %v566 = vrot.slane %v468, 7
    %vm599 = vcmask 1040384
    %vm600 = vsmask.f32 256
    %vm601 = vmand %vm599, %vm600
    %v602 = vsel %vm601, %v216, %v346
    %v603 = vsel %vm601, %v219, %v350
    %v604 = vsel %vm601, %v222, %v354
    %v605 = vsel %vm601, %v225, %v358
    %v606 = vsel %vm601, %v228, %v362
    %v607 = vsel %vm601, %v231, %v366
    %v608 = vsel %vm601, %v234, %v370
    %v609 = vsel %vm601, %v237, %v374
    %v610 = vsel %vm601, %v240, %v378
    %v611 = vsel %vm601, %v243, %v382
    %v612 = vsel %vm601, %v246, %v386
    %v613 = vsel %vm601, %v249, %v390
    %v614 = vsel %vm601, %v252, %v394
    %v615 = vsel %vm601, %v255, %v398
    %v616 = vsel %vm601, %v258, %v402
    %v617 = vsel %vm601, %v261, %v406
    %v618 = vsel %vm601, %v264, %v410
    %v619 = vsel %vm601, %v267, %v414
    %v620 = vsel %vm601, %v270, %v418
    %v621 = vsel %vm601, %v273, %v422
    %v622 = vsel %vm601, %v276, %v426
    %v623 = vsel %vm601, %v279, %v430
    %v624 = vsel %vm601, %v282, %v434
    %v625 = vsel %vm601, %v285, %v438
    %v626 = vsel %vm601, %v288, %v442
    %v627 = vsel %vm601, %v291, %v446
    %v628 = vsel %vm601, %v294, %v450
    %v629 = vsel %vm601, %v297, %v454
    %v630 = vsel %vm601, %v300, %v458
    %v631 = vsel %vm601, %v303, %v462
    %v632 = vsel %vm601, %v306, %v466
    %v633 = vsel %vm601, %v309, %v470
    %v634 = vsel %vm601, %v343, %v535
    %v635 = vsel %vm601, %v347, %v536
    %v636 = vsel %vm601, %v351, %v537
    %v637 = vsel %vm601, %v355, %v538
    %v638 = vsel %vm601, %v359, %v539
    %v639 = vsel %vm601, %v363, %v540
    %v640 = vsel %vm601, %v367, %v541
    %v641 = vsel %vm601, %v371, %v542
    %v642 = vsel %vm601, %v375, %v543
    %v643 = vsel %vm601, %v379, %v544
    %v644 = vsel %vm601, %v383, %v545
    %v645 = vsel %vm601, %v387, %v546
    %v646 = vsel %vm601, %v391, %v547
    %v647 = vsel %vm601, %v395, %v548
    %v648 = vsel %vm601, %v399, %v549
    %v649 = vsel %vm601, %v403, %v550
    %v650 = vsel %vm601, %v407, %v551
    %v651 = vsel %vm601, %v411, %v552
    %v652 = vsel %vm601, %v415, %v553
    %v653 = vsel %vm601, %v419, %v554
    %v654 = vsel %vm601, %v423, %v555
    %v655 = vsel %vm601, %v427, %v556
    %v656 = vsel %vm601, %v431, %v557
    %v657 = vsel %vm601, %v435, %v558
    %v658 = vsel %vm601, %v439, %v559
    %v659 = vsel %vm601, %v443, %v560
    %v660 = vsel %vm601, %v447, %v561
    %v661 = vsel %vm601, %v451, %v562
    %v662 = vsel %vm601, %v455, %v563
    %v663 = vsel %vm601, %v459, %v564
    %v664 = vsel %vm601, %v463, %v565
    %v665 = vsel %vm601, %v467, %v566
    %vm666 = vsmask.f32 7424
    %v668 = vshrl.u32 %v602, 16
    %v670 = vshll.u32 %v602, 16
    %v672 = vrot.slane %v670, 1
    %v673 = vor.u32 %v668, %v672
    %v675 = vshll.u32 %v634, 16
    %v677 = vrot.slane %v675, 1
    %v678 = vsel %vm666, %v673, %v677
    %v680 = vshrl.u32 %v603, 16
    %v682 = vshll.u32 %v603, 16
    %v684 = vrot.slane %v682, 1
    %v685 = vor.u32 %v680, %v684
    %v687 = vshll.u32 %v635, 16
    %v689 = vrot.slane %v687, 1
    %v690 = vsel %vm666, %v685, %v689
    %v692 = vshrl.u32 %v604, 16
    %v694 = vshll.u32 %v604, 16
    %v696 = vrot.slane %v694, 1
    %v697 = vor.u32 %v692, %v696
    %v699 = vshll.u32 %v636, 16
    %v701 = vrot.slane %v699, 1
    %v702 = vsel %vm666, %v697, %v701
    %v704 = vshrl.u32 %v605, 16
    %v706 = vshll.u32 %v605, 16
    %v708 = vrot.slane %v706, 1
    %v709 = vor.u32 %v704, %v708
    %v711 = vshll.u32 %v637, 16
    %v713 = vrot.slane %v711, 1
    %v714 = vsel %vm666, %v709, %v713
    %v716 = vshrl.u32 %v606, 16
    %v718 = vshll.u32 %v606, 16
    %v720 = vrot.slane %v718, 1
    %v721 = vor.u32 %v716, %v720
    %v723 = vshll.u32 %v638, 16
    %v725 = vrot.slane %v723, 1
    %v726 = vsel %vm666, %v721, %v725
    %v728 = vshrl.u32 %v607, 16
    %v730 = vshll.u32 %v607, 16
    %v732 = vrot.slane %v730, 1
    %v733 = vor.u32 %v728, %v732
    %v735 = vshll.u32 %v639, 16
    %v737 = vrot.slane %v735, 1
    %v738 = vsel %vm666, %v733, %v737
    %v740 = vshrl.u32 %v608, 16
    %v742 = vshll.u32 %v608, 16
    %v744 = vrot.slane %v742, 1
    %v745 = vor.u32 %v740, %v744
    %v747 = vshll.u32 %v640, 16
    %v749 = vrot.slane %v747, 1
    %v750 = vsel %vm666, %v745, %v749
    %v752 = vshrl.u32 %v609, 16
    %v754 = vshll.u32 %v609, 16
    %v756 = vrot.slane %v754, 1
    %v757 = vor.u32 %v752, %v756
    %v759 = vshll.u32 %v641, 16
    %v761 = vrot.slane %v759, 1
    %v762 = vsel %vm666, %v757, %v761
    %v764 = vshrl.u32 %v610, 16
    %v766 = vshll.u32 %v610, 16
    %v768 = vrot.slane %v766, 1
    %v769 = vor.u32 %v764, %v768
    %v771 = vshll.u32 %v642, 16
    %v773 = vrot.slane %v771, 1
    %v774 = vsel %vm666, %v769, %v773
    %v776 = vshrl.u32 %v611, 16
    %v778 = vshll.u32 %v611, 16
    %v780 = vrot.slane %v778, 1
    %v781 = vor.u32 %v776, %v780
    %v783 = vshll.u32 %v643, 16
    %v785 = vrot.slane %v783, 1
    %v786 = vsel %vm666, %v781, %v785
    %v788 = vshrl.u32 %v612, 16
    %v790 = vshll.u32 %v612, 16
    %v792 = vrot.slane %v790, 1
    %v793 = vor.u32 %v788, %v792
    %v795 = vshll.u32 %v644, 16
    %v797 = vrot.slane %v795, 1
    %v798 = vsel %vm666, %v793, %v797
    %v800 = vshrl.u32 %v613, 16
    %v802 = vshll.u32 %v613, 16
    %v804 = vrot.slane %v802, 1
    %v805 = vor.u32 %v800, %v804
    %v807 = vshll.u32 %v645, 16
    %v809 = vrot.slane %v807, 1
    %v810 = vsel %vm666, %v805, %v809
    %v812 = vshrl.u32 %v614, 16
    %v814 = vshll.u32 %v614, 16
    %v816 = vrot.slane %v814, 1
    %v817 = vor.u32 %v812, %v816
    %v819 = vshll.u32 %v646, 16
    %v821 = vrot.slane %v819, 1
    %v822 = vsel %vm666, %v817, %v821
    %v824 = vshrl.u32 %v615, 16
    %v826 = vshll.u32 %v615, 16
    %v828 = vrot.slane %v826, 1
    %v829 = vor.u32 %v824, %v828
    %v831 = vshll.u32 %v647, 16
    %v833 = vrot.slane %v831, 1
    %v834 = vsel %vm666, %v829, %v833
    %v836 = vshrl.u32 %v616, 16
    %v838 = vshll.u32 %v616, 16
    %v840 = vrot.slane %v838, 1
    %v841 = vor.u32 %v836, %v840
    %v843 = vshll.u32 %v648, 16
    %v845 = vrot.slane %v843, 1
    %v846 = vsel %vm666, %v841, %v845
    %v848 = vshrl.u32 %v617, 16
    %v850 = vshll.u32 %v617, 16
    %v852 = vrot.slane %v850, 1
    %v853 = vor.u32 %v848, %v852
    %v855 = vshll.u32 %v649, 16
    %v857 = vrot.slane %v855, 1
    %v858 = vsel %vm666, %v853, %v857
    %v860 = vshrl.u32 %v618, 16
    %v862 = vshll.u32 %v618, 16
    %v864 = vrot.slane %v862, 1
    %v865 = vor.u32 %v860, %v864
    %v867 = vshll.u32 %v650, 16
    %v869 = vrot.slane %v867, 1
    %v870 = vsel %vm666, %v865, %v869
    %v872 = vshrl.u32 %v619, 16
    %v874 = vshll.u32 %v619, 16
    %v876 = vrot.slane %v874, 1
    %v877 = vor.u32 %v872, %v876
    %v879 = vshll.u32 %v651, 16
    %v881 = vrot.slane %v879, 1
    %v882 = vsel %vm666, %v877, %v881
    %v884 = vshrl.u32 %v620, 16
    %v886 = vshll.u32 %v620, 16
    %v888 = vrot.slane %v886, 1
    %v889 = vor.u32 %v884, %v888
    %v891 = vshll.u32 %v652, 16
    %v893 = vrot.slane %v891, 1
    %v894 = vsel %vm666, %v889, %v893
    %v896 = vshrl.u32 %v621, 16
    %v898 = vshll.u32 %v621, 16
    %v900 = vrot.slane %v898, 1
    %v901 = vor.u32 %v896, %v900
    %v903 = vshll.u32 %v653, 16
    %v905 = vrot.slane %v903, 1
    %v906 = vsel %vm666, %v901, %v905
    %v908 = vshrl.u32 %v622, 16
    %v910 = vshll.u32 %v622, 16
    %v912 = vrot.slane %v910, 1
    %v913 = vor.u32 %v908, %v912
    %v915 = vshll.u32 %v654, 16
    %v917 = vrot.slane %v915, 1
    %v918 = vsel %vm666, %v913, %v917
    %v920 = vshrl.u32 %v623, 16
    %v922 = vshll.u32 %v623, 16
    %v924 = vrot.slane %v922, 1
    %v925 = vor.u32 %v920, %v924
    %v927 = vshll.u32 %v655, 16
    %v929 = vrot.slane %v927, 1
    %v930 = vsel %vm666, %v925, %v929
    %v932 = vshrl.u32 %v624, 16
    %v934 = vshll.u32 %v624, 16
    %v936 = vrot.slane %v934, 1
    %v937 = vor.u32 %v932, %v936
    %v939 = vshll.u32 %v656, 16
    %v941 = vrot.slane %v939, 1
    %v942 = vsel %vm666, %v937, %v941
    %v944 = vshrl.u32 %v625, 16
    %v946 = vshll.u32 %v625, 16
    %v948 = vrot.slane %v946, 1
    %v949 = vor.u32 %v944, %v948
    %v951 = vshll.u32 %v657, 16
    %v953 = vrot.slane %v951, 1
    %v954 = vsel %vm666, %v949, %v953
    %v956 = vshrl.u32 %v626, 16
    %v958 = vshll.u32 %v626, 16
    %v960 = vrot.slane %v958, 1
    %v961 = vor.u32 %v956, %v960
    %v963 = vshll.u32 %v658, 16
    %v965 = vrot.slane %v963, 1
    %v966 = vsel %vm666, %v961, %v965
    %v968 = vshrl.u32 %v627, 16
    %v970 = vshll.u32 %v627, 16
    %v972 = vrot.slane %v970, 1
    %v973 = vor.u32 %v968, %v972
    %v975 = vshll.u32 %v659, 16
    %v977 = vrot.slane %v975, 1
    %v978 = vsel %vm666, %v973, %v977
    %v980 = vshrl.u32 %v628, 16
    %v982 = vshll.u32 %v628, 16
    %v984 = vrot.slane %v982, 1
    %v985 = vor.u32 %v980, %v984
    %v987 = vshll.u32 %v660, 16
    %v989 = vrot.slane %v987, 1
    %v990 = vsel %vm666, %v985, %v989
    %v992 = vshrl.u32 %v629, 16
    %v994 = vshll.u32 %v629, 16
    %v996 = vrot.slane %v994, 1
    %v997 = vor.u32 %v992, %v996
    %v999 = vshll.u32 %v661, 16
    %v1001 = vrot.slane %v999, 1
    %v1002 = vsel %vm666, %v997, %v1001
    %v1004 = vshrl.u32 %v630, 16
    %v1006 = vshll.u32 %v630, 16
    %v1008 = vrot.slane %v1006, 1
    %v1009 = vor.u32 %v1004, %v1008
    %v1011 = vshll.u32 %v662, 16
    %v1013 = vrot.slane %v1011, 1
    %v1014 = vsel %vm666, %v1009, %v1013
    %v1016 = vshrl.u32 %v631, 16
    %v1018 = vshll.u32 %v631, 16
    %v1020 = vrot.slane %v1018, 1
    %v1021 = vor.u32 %v1016, %v1020
    %v1023 = vshll.u32 %v663, 16
    %v1025 = vrot.slane %v1023, 1
    %v1026 = vsel %vm666, %v1021, %v1025
    %v1028 = vshrl.u32 %v632, 16
    %v1030 = vshll.u32 %v632, 16
    %v1032 = vrot.slane %v1030, 1
    %v1033 = vor.u32 %v1028, %v1032
    %v1035 = vshll.u32 %v664, 16
    %v1037 = vrot.slane %v1035, 1
    %v1038 = vsel %vm666, %v1033, %v1037
    %v1040 = vshrl.u32 %v633, 16
    %v1042 = vshll.u32 %v633, 16
    %v1044 = vrot.slane %v1042, 1
    %v1045 = vor.u32 %v1040, %v1044
    %v1047 = vshll.u32 %v665, 16
    %v1049 = vrot.slane %v1047, 1
    %v1050 = vsel %vm666, %v1045, %v1049
    %vm1147 = vcmask 1046528
    %v1148 = vrot.slane %v602, 1
    %v1149 = vrot.slane %v634, 1
    %v1150 = vsel %vm1147, %v1148, %v1149
    %v1151 = vrot.slane %v603, 1
    %v1152 = vrot.slane %v635, 1
    %v1153 = vsel %vm1147, %v1151, %v1152
    %v1154 = vrot.slane %v604, 1
    %v1155 = vrot.slane %v636, 1
    %v1156 = vsel %vm1147, %v1154, %v1155
    %v1157 = vrot.slane %v605, 1
    %v1158 = vrot.slane %v637, 1
    %v1159 = vsel %vm1147, %v1157, %v1158
    %v1160 = vrot.slane %v606, 1
    %v1161 = vrot.slane %v638, 1
    %v1162 = vsel %vm1147, %v1160, %v1161
    %v1163 = vrot.slane %v607, 1
    %v1164 = vrot.slane %v639, 1
    %v1165 = vsel %vm1147, %v1163, %v1164
    %v1166 = vrot.slane %v608, 1
    %v1167 = vrot.slane %v640, 1
    %v1168 = vsel %vm1147, %v1166, %v1167
    %v1169 = vrot.slane %v609, 1
    %v1170 = vrot.slane %v641, 1
    %v1171 = vsel %vm1147, %v1169, %v1170
    %v1172 = vrot.slane %v610, 1
    %v1173 = vrot.slane %v642, 1
    %v1174 = vsel %vm1147, %v1172, %v1173
    %v1175 = vrot.slane %v611, 1
    %v1176 = vrot.slane %v643, 1
    %v1177 = vsel %vm1147, %v1175, %v1176
    %v1178 = vrot.slane %v612, 1
    %v1179 = vrot.slane %v644, 1
    %v1180 = vsel %vm1147, %v1178, %v1179
    %v1181 = vrot.slane %v613, 1
    %v1182 = vrot.slane %v645, 1
    %v1183 = vsel %vm1147, %v1181, %v1182
    %v1184 = vrot.slane %v614, 1
    %v1185 = vrot.slane %v646, 1
    %v1186 = vsel %vm1147, %v1184, %v1185
    %v1187 = vrot.slane %v615, 1
    %v1188 = vrot.slane %v647, 1
    %v1189 = vsel %vm1147, %v1187, %v1188
    %v1190 = vrot.slane %v616, 1
    %v1191 = vrot.slane %v648, 1
    %v1192 = vsel %vm1147, %v1190, %v1191
    %v1193 = vrot.slane %v617, 1
    %v1194 = vrot.slane %v649, 1
    %v1195 = vsel %vm1147, %v1193, %v1194
    %v1196 = vrot.slane %v618, 1
    %v1197 = vrot.slane %v650, 1
    %v1198 = vsel %vm1147, %v1196, %v1197
    %v1199 = vrot.slane %v619, 1
    %v1200 = vrot.slane %v651, 1
    %v1201 = vsel %vm1147, %v1199, %v1200
    %v1202 = vrot.slane %v620, 1
    %v1203 = vrot.slane %v652, 1
    %v1204 = vsel %vm1147, %v1202, %v1203
    %v1205 = vrot.slane %v621, 1
    %v1206 = vrot.slane %v653, 1
    %v1207 = vsel %vm1147, %v1205, %v1206
    %v1208 = vrot.slane %v622, 1
    %v1209 = vrot.slane %v654, 1
    %v1210 = vsel %vm1147, %v1208, %v1209
    %v1211 = vrot.slane %v623, 1
    %v1212 = vrot.slane %v655, 1
    %v1213 = vsel %vm1147, %v1211, %v1212
    %v1214 = vrot.slane %v624, 1
    %v1215 = vrot.slane %v656, 1
    %v1216 = vsel %vm1147, %v1214, %v1215
    %v1217 = vrot.slane %v625, 1
    %v1218 = vrot.slane %v657, 1
    %v1219 = vsel %vm1147, %v1217, %v1218
    %v1220 = vrot.slane %v626, 1
    %v1221 = vrot.slane %v658, 1
    %v1222 = vsel %vm1147, %v1220, %v1221
    %v1223 = vrot.slane %v627, 1
    %v1224 = vrot.slane %v659, 1
    %v1225 = vsel %vm1147, %v1223, %v1224
    %v1226 = vrot.slane %v628, 1
    %v1227 = vrot.slane %v660, 1
    %v1228 = vsel %vm1147, %v1226, %v1227
    %v1229 = vrot.slane %v629, 1
    %v1230 = vrot.slane %v661, 1
    %v1231 = vsel %vm1147, %v1229, %v1230
    %v1232 = vrot.slane %v630, 1
    %v1233 = vrot.slane %v662, 1
    %v1234 = vsel %vm1147, %v1232, %v1233
    %v1235 = vrot.slane %v631, 1
    %v1236 = vrot.slane %v663, 1
    %v1237 = vsel %vm1147, %v1235, %v1236
    %v1238 = vrot.slane %v632, 1
    %v1239 = vrot.slane %v664, 1
    %v1240 = vsel %vm1147, %v1238, %v1239
    %v1241 = vrot.slane %v633, 1
    %v1242 = vrot.slane %v665, 1
    %v1243 = vsel %vm1147, %v1241, %v1242
    %v1276 = vld [vmem:[#allocation5] sm:$0xf]
    %v1277 = vld [vmem:[#allocation5 + $0x4] sm:$0xf]
    %v1278 = vld [vmem:[#allocation5 + $0x8] sm:$0xf]
    %v1279 = vld [vmem:[#allocation5 + $0xc] sm:$0xf]
    %v1280 = vld [vmem:[#allocation5 + $0x10] sm:$0xf]
    %v1281 = vld [vmem:[#allocation5 + $0x14] sm:$0xf]
    %v1282 = vld [vmem:[#allocation5 + $0x18] sm:$0xf]
    %v1283 = vld [vmem:[#allocation5 + $0x1c] sm:$0xf]
    %v1284 = vld [vmem:[#allocation5 + $0x20] sm:$0xf]
    %v1285 = vld [vmem:[#allocation5 + $0x24] sm:$0xf]
    %v1286 = vld [vmem:[#allocation5 + $0x28] sm:$0xf]
    %v1287 = vld [vmem:[#allocation5 + $0x2c] sm:$0xf]
    %v1288 = vld [vmem:[#allocation5 + $0x30] sm:$0xf]
    %v1289 = vld [vmem:[#allocation5 + $0x34] sm:$0xf]
    %v1290 = vld [vmem:[#allocation5 + $0x38] sm:$0xf]
    %v1291 = vld [vmem:[#allocation5 + $0x3c] sm:$0xf]
    %v1292 = vld [vmem:[#allocation5 + $0x40] sm:$0xf]
    %v1293 = vld [vmem:[#allocation5 + $0x44] sm:$0xf]
    %v1294 = vld [vmem:[#allocation5 + $0x48] sm:$0xf]
    %v1295 = vld [vmem:[#allocation5 + $0x4c] sm:$0xf]
    %v1296 = vld [vmem:[#allocation5 + $0x50] sm:$0xf]
    %v1297 = vld [vmem:[#allocation5 + $0x54] sm:$0xf]
    %v1298 = vld [vmem:[#allocation5 + $0x58] sm:$0xf]
    %v1299 = vld [vmem:[#allocation5 + $0x5c] sm:$0xf]
    %v1300 = vld [vmem:[#allocation5 + $0x60] sm:$0xf]
    %v1301 = vld [vmem:[#allocation5 + $0x64] sm:$0xf]
    %v1302 = vld [vmem:[#allocation5 + $0x68] sm:$0xf]
    %v1303 = vld [vmem:[#allocation5 + $0x6c] sm:$0xf]
    %v1304 = vld [vmem:[#allocation5 + $0x70] sm:$0xf]
    %v1305 = vld [vmem:[#allocation5 + $0x74] sm:$0xf]
    %v1306 = vld [vmem:[#allocation5 + $0x78] sm:$0xf]
    %v1307 = vld [vmem:[#allocation5 + $0x7c] sm:$0xf]
    %v1308 = vld [vmem:[#allocation5 + $0x80] sm:$0xf]
    %v1309 = vld [vmem:[#allocation5 + $0x84] sm:$0xf]
    %v1310 = vld [vmem:[#allocation5 + $0x88] sm:$0xf]
    %v1311 = vld [vmem:[#allocation5 + $0x8c] sm:$0xf]
    %v1312 = vld [vmem:[#allocation5 + $0x90] sm:$0xf]
    %v1313 = vld [vmem:[#allocation5 + $0x94] sm:$0xf]
    %v1314 = vld [vmem:[#allocation5 + $0x98] sm:$0xf]
    %v1315 = vld [vmem:[#allocation5 + $0x9c] sm:$0xf]
    %v1316 = vld [vmem:[#allocation5 + $0xa0] sm:$0xf]
    %v1317 = vld [vmem:[#allocation5 + $0xa4] sm:$0xf]
    %v1318 = vld [vmem:[#allocation5 + $0xa8] sm:$0xf]
    %v1319 = vld [vmem:[#allocation5 + $0xac] sm:$0xf]
    %v1320 = vld [vmem:[#allocation5 + $0xb0] sm:$0xf]
    %v1321 = vld [vmem:[#allocation5 + $0xb4] sm:$0xf]
    %v1322 = vld [vmem:[#allocation5 + $0xb8] sm:$0xf]
    %v1323 = vld [vmem:[#allocation5 + $0xbc] sm:$0xf]
    %v1324 = vld [vmem:[#allocation5 + $0xc0] sm:$0xf]
    %v1325 = vld [vmem:[#allocation5 + $0xc4] sm:$0xf]
    %v1326 = vld [vmem:[#allocation5 + $0xc8] sm:$0xf]
    %v1327 = vld [vmem:[#allocation5 + $0xcc] sm:$0xf]
    %v1328 = vld [vmem:[#allocation5 + $0xd0] sm:$0xf]
    %v1329 = vld [vmem:[#allocation5 + $0xd4] sm:$0xf]
    %v1330 = vld [vmem:[#allocation5 + $0xd8] sm:$0xf]
    %v1331 = vld [vmem:[#allocation5 + $0xdc] sm:$0xf]
    %v1332 = vld [vmem:[#allocation5 + $0xe0] sm:$0xf]
    %v1333 = vld [vmem:[#allocation5 + $0xe4] sm:$0xf]
    %v1334 = vld [vmem:[#allocation5 + $0xe8] sm:$0xf]
    %v1335 = vld [vmem:[#allocation5 + $0xec] sm:$0xf]
    %v1336 = vld [vmem:[#allocation5 + $0xf0] sm:$0xf]
    %v1337 = vld [vmem:[#allocation5 + $0xf4] sm:$0xf]
    %v1338 = vld [vmem:[#allocation5 + $0xf8] sm:$0xf]
    %v1339 = vld [vmem:[#allocation5 + $0xfc] sm:$0xf]
    %v1340 = vld [vmem:[#allocation5 + $0x100] sm:$0xf]
    %v1341 = vld [vmem:[#allocation5 + $0x104] sm:$0xf]
    %v1342 = vld [vmem:[#allocation5 + $0x108] sm:$0xf]
    %v1343 = vld [vmem:[#allocation5 + $0x10c] sm:$0xf]
    %v1344 = vld [vmem:[#allocation5 + $0x110] sm:$0xf]
    %v1345 = vld [vmem:[#allocation5 + $0x114] sm:$0xf]
    %v1346 = vld [vmem:[#allocation5 + $0x118] sm:$0xf]
    %v1347 = vld [vmem:[#allocation5 + $0x11c] sm:$0xf]
    %v1348 = vld [vmem:[#allocation5 + $0x120] sm:$0xf]
    %v1349 = vld [vmem:[#allocation5 + $0x124] sm:$0xf]
    %v1350 = vld [vmem:[#allocation5 + $0x128] sm:$0xf]
    %v1351 = vld [vmem:[#allocation5 + $0x12c] sm:$0xf]
    %v1352 = vld [vmem:[#allocation5 + $0x130] sm:$0xf]
    %v1353 = vld [vmem:[#allocation5 + $0x134] sm:$0xf]
    %v1354 = vld [vmem:[#allocation5 + $0x138] sm:$0xf]
    %v1355 = vld [vmem:[#allocation5 + $0x13c] sm:$0xf]
    %v1356 = vld [vmem:[#allocation5 + $0x140] sm:$0xf]
    %v1357 = vld [vmem:[#allocation5 + $0x144] sm:$0xf]
    %v1358 = vld [vmem:[#allocation5 + $0x148] sm:$0xf]
    %v1359 = vld [vmem:[#allocation5 + $0x14c] sm:$0xf]
    %v1360 = vld [vmem:[#allocation5 + $0x150] sm:$0xf]
    %v1361 = vld [vmem:[#allocation5 + $0x154] sm:$0xf]
    %v1362 = vld [vmem:[#allocation5 + $0x158] sm:$0xf]
    %v1363 = vld [vmem:[#allocation5 + $0x15c] sm:$0xf]
    %v1364 = vld [vmem:[#allocation5 + $0x160] sm:$0xf]
    %v1365 = vld [vmem:[#allocation5 + $0x164] sm:$0xf]
    %v1366 = vld [vmem:[#allocation5 + $0x168] sm:$0xf]
    %v1367 = vld [vmem:[#allocation5 + $0x16c] sm:$0xf]
    %v1368 = vld [vmem:[#allocation5 + $0x170] sm:$0xf]
    %v1369 = vld [vmem:[#allocation5 + $0x174] sm:$0xf]
    %v1370 = vld [vmem:[#allocation5 + $0x178] sm:$0xf]
    %v1371 = vld [vmem:[#allocation5 + $0x17c] sm:$0xf]
    %v1372 = vld [vmem:[#allocation5 + $0x180] sm:$0xf]
    %v1373 = vld [vmem:[#allocation5 + $0x184] sm:$0xf]
    %v1374 = vld [vmem:[#allocation5 + $0x188] sm:$0xf]
    %v1375 = vld [vmem:[#allocation5 + $0x18c] sm:$0xf]
    %v1376 = vld [vmem:[#allocation5 + $0x190] sm:$0xf]
    %v1377 = vld [vmem:[#allocation5 + $0x194] sm:$0xf]
    %v1378 = vld [vmem:[#allocation5 + $0x198] sm:$0xf]
    %v1379 = vld [vmem:[#allocation5 + $0x19c] sm:$0xf]
    %v1380 = vld [vmem:[#allocation5 + $0x1a0] sm:$0xf]
    %v1381 = vld [vmem:[#allocation5 + $0x1a4] sm:$0xf]
    %v1382 = vld [vmem:[#allocation5 + $0x1a8] sm:$0xf]
    %v1383 = vld [vmem:[#allocation5 + $0x1ac] sm:$0xf]
    %v1384 = vld [vmem:[#allocation5 + $0x1b0] sm:$0xf]
    %v1385 = vld [vmem:[#allocation5 + $0x1b4] sm:$0xf]
    %v1386 = vld [vmem:[#allocation5 + $0x1b8] sm:$0xf]
    %v1387 = vld [vmem:[#allocation5 + $0x1bc] sm:$0xf]
    %v1388 = vld [vmem:[#allocation5 + $0x1c0] sm:$0xf]
    %v1389 = vld [vmem:[#allocation5 + $0x1c4] sm:$0xf]
    %v1390 = vld [vmem:[#allocation5 + $0x1c8] sm:$0xf]
    %v1391 = vld [vmem:[#allocation5 + $0x1cc] sm:$0xf]
    %v1392 = vld [vmem:[#allocation5 + $0x1d0] sm:$0xf]
    %v1393 = vld [vmem:[#allocation5 + $0x1d4] sm:$0xf]
    %v1394 = vld [vmem:[#allocation5 + $0x1d8] sm:$0xf]
    %v1395 = vld [vmem:[#allocation5 + $0x1dc] sm:$0xf]
    %v1396 = vld [vmem:[#allocation5 + $0x1e0] sm:$0xf]
    %v1397 = vld [vmem:[#allocation5 + $0x1e4] sm:$0xf]
    %v1398 = vld [vmem:[#allocation5 + $0x1e8] sm:$0xf]
    %v1399 = vld [vmem:[#allocation5 + $0x1ec] sm:$0xf]
    %v1400 = vld [vmem:[#allocation5 + $0x1f0] sm:$0xf]
    %v1401 = vld [vmem:[#allocation5 + $0x1f4] sm:$0xf]
    %v1402 = vld [vmem:[#allocation5 + $0x1f8] sm:$0xf]
    %v1403 = vld [vmem:[#allocation5 + $0x1fc] sm:$0xf]
    %v1404 = vld [vmem:[#allocation5 + $0x200] sm:$0xf]
    %v1405 = vld [vmem:[#allocation5 + $0x204] sm:$0xf]
    %v1406 = vld [vmem:[#allocation5 + $0x208] sm:$0xf]
    %v1407 = vld [vmem:[#allocation5 + $0x20c] sm:$0xf]
    %v1408 = vld [vmem:[#allocation5 + $0x210] sm:$0xf]
    %v1409 = vld [vmem:[#allocation5 + $0x214] sm:$0xf]
    %v1410 = vld [vmem:[#allocation5 + $0x218] sm:$0xf]
    %v1411 = vld [vmem:[#allocation5 + $0x21c] sm:$0xf]
    %v1412 = vld [vmem:[#allocation5 + $0x220] sm:$0xf]
    %v1413 = vld [vmem:[#allocation5 + $0x224] sm:$0xf]
    %v1414 = vld [vmem:[#allocation5 + $0x228] sm:$0xf]
    %v1415 = vld [vmem:[#allocation5 + $0x22c] sm:$0xf]
    %v1416 = vld [vmem:[#allocation5 + $0x230] sm:$0xf]
    %v1417 = vld [vmem:[#allocation5 + $0x234] sm:$0xf]
    %v1418 = vld [vmem:[#allocation5 + $0x238] sm:$0xf]
    %v1419 = vld [vmem:[#allocation5 + $0x23c] sm:$0xf]
    %v1564 = vunpack.c.l.b16 %v1276
    %v1565 = vunpack.c.l.b16 %v1277
    %v1566 = vunpack.c.l.b16 %v1278
    %v1567 = vunpack.c.l.b16 %v1279
    %v1568 = vunpack.c.l.b16 %v1280
    %v1569 = vunpack.c.l.b16 %v1281
    %v1570 = vunpack.c.l.b16 %v1282
    %v1571 = vunpack.c.l.b16 %v1283
    %v1572 = vunpack.c.l.b16 %v1284
    %v1573 = vunpack.c.l.b16 %v1285
    %v1574 = vunpack.c.l.b16 %v1286
    %v1575 = vunpack.c.l.b16 %v1287
    %v1576 = vunpack.c.l.b16 %v1288
    %v1577 = vunpack.c.l.b16 %v1289
    %v1578 = vunpack.c.l.b16 %v1290
    %v1579 = vunpack.c.l.b16 %v1291
    %v1580 = vunpack.c.l.b16 %v1292
    %v1581 = vunpack.c.l.b16 %v1293
    %v1582 = vunpack.c.l.b16 %v1294
    %v1583 = vunpack.c.l.b16 %v1295
    %v1584 = vunpack.c.l.b16 %v1296
    %v1585 = vunpack.c.l.b16 %v1297
    %v1586 = vunpack.c.l.b16 %v1298
    %v1587 = vunpack.c.l.b16 %v1299
    %v1588 = vunpack.c.l.b16 %v1300
    %v1589 = vunpack.c.l.b16 %v1301
    %v1590 = vunpack.c.l.b16 %v1302
    %v1591 = vunpack.c.l.b16 %v1303
    %v1592 = vunpack.c.l.b16 %v1304
    %v1593 = vunpack.c.l.b16 %v1305
    %v1594 = vunpack.c.l.b16 %v1306
    %v1595 = vunpack.c.l.b16 %v1307
    %v1596 = vunpack.c.l.b16 %v1308
    %v1597 = vunpack.c.l.b16 %v1309
    %v1598 = vunpack.c.l.b16 %v1310
    %v1599 = vunpack.c.l.b16 %v1311
    %v1600 = vunpack.c.l.b16 %v1312
    %v1601 = vunpack.c.l.b16 %v1313
    %v1602 = vunpack.c.l.b16 %v1314
    %v1603 = vunpack.c.l.b16 %v1315
    %v1604 = vunpack.c.l.b16 %v1316
    %v1605 = vunpack.c.l.b16 %v1317
    %v1606 = vunpack.c.l.b16 %v1318
    %v1607 = vunpack.c.l.b16 %v1319
    %v1608 = vunpack.c.l.b16 %v1320
    %v1609 = vunpack.c.l.b16 %v1321
    %v1610 = vunpack.c.l.b16 %v1322
    %v1611 = vunpack.c.l.b16 %v1323
    %v1612 = vunpack.c.l.b16 %v1324
    %v1613 = vunpack.c.l.b16 %v1325
    %v1614 = vunpack.c.l.b16 %v1326
    %v1615 = vunpack.c.l.b16 %v1327
    %v1616 = vunpack.c.l.b16 %v1328
    %v1617 = vunpack.c.l.b16 %v1329
    %v1618 = vunpack.c.l.b16 %v1330
    %v1619 = vunpack.c.l.b16 %v1331
    %v1620 = vunpack.c.l.b16 %v1332
    %v1621 = vunpack.c.l.b16 %v1333
    %v1622 = vunpack.c.l.b16 %v1334
    %v1623 = vunpack.c.l.b16 %v1335
    %v1624 = vunpack.c.l.b16 %v1336
    %v1625 = vunpack.c.l.b16 %v1337
    %v1626 = vunpack.c.l.b16 %v1338
    %v1627 = vunpack.c.l.b16 %v1339
    %v1628 = vunpack.c.l.b16 %v1340
    %v1629 = vunpack.c.l.b16 %v1341
    %v1630 = vunpack.c.l.b16 %v1342
    %v1631 = vunpack.c.l.b16 %v1343
    %v1632 = vunpack.c.l.b16 %v1344
    %v1633 = vunpack.c.l.b16 %v1345
    %v1634 = vunpack.c.l.b16 %v1346
    %v1635 = vunpack.c.l.b16 %v1347
    %v1636 = vunpack.c.l.b16 %v1348
    %v1637 = vunpack.c.l.b16 %v1349
    %v1638 = vunpack.c.l.b16 %v1350
    %v1639 = vunpack.c.l.b16 %v1351
    %v1640 = vunpack.c.l.b16 %v1352
    %v1641 = vunpack.c.l.b16 %v1353
    %v1642 = vunpack.c.l.b16 %v1354
    %v1643 = vunpack.c.l.b16 %v1355
    %v1644 = vunpack.c.l.b16 %v1356
    %v1645 = vunpack.c.l.b16 %v1357
    %v1646 = vunpack.c.l.b16 %v1358
    %v1647 = vunpack.c.l.b16 %v1359
    %v1648 = vunpack.c.l.b16 %v1360
    %v1649 = vunpack.c.l.b16 %v1361
    %v1650 = vunpack.c.l.b16 %v1362
    %v1651 = vunpack.c.l.b16 %v1363
    %v1652 = vunpack.c.l.b16 %v1364
    %v1653 = vunpack.c.l.b16 %v1365
    %v1654 = vunpack.c.l.b16 %v1366
    %v1655 = vunpack.c.l.b16 %v1367
    %v1656 = vunpack.c.l.b16 %v1368
    %v1657 = vunpack.c.l.b16 %v1369
    %v1658 = vunpack.c.l.b16 %v1370
    %v1659 = vunpack.c.l.b16 %v1371
    %v1660 = vunpack.c.l.b16 %v1372
    %v1661 = vunpack.c.l.b16 %v1373
    %v1662 = vunpack.c.l.b16 %v1374
    %v1663 = vunpack.c.l.b16 %v1375
    %v1664 = vunpack.c.l.b16 %v1376
    %v1665 = vunpack.c.l.b16 %v1377
    %v1666 = vunpack.c.l.b16 %v1378
    %v1667 = vunpack.c.l.b16 %v1379
    %v1668 = vunpack.c.l.b16 %v1380
    %v1669 = vunpack.c.l.b16 %v1381
    %v1670 = vunpack.c.l.b16 %v1382
    %v1671 = vunpack.c.l.b16 %v1383
    %v1672 = vunpack.c.l.b16 %v1384
    %v1673 = vunpack.c.l.b16 %v1385
    %v1674 = vunpack.c.l.b16 %v1386
    %v1675 = vunpack.c.l.b16 %v1387
    %v1676 = vunpack.c.l.b16 %v1388
    %v1677 = vunpack.c.l.b16 %v1389
    %v1678 = vunpack.c.l.b16 %v1390
    %v1679 = vunpack.c.l.b16 %v1391
    %v1680 = vunpack.c.l.b16 %v1392
    %v1681 = vunpack.c.l.b16 %v1393
    %v1682 = vunpack.c.l.b16 %v1394
    %v1683 = vunpack.c.l.b16 %v1395
    %v1684 = vunpack.c.l.b16 %v1396
    %v1685 = vunpack.c.l.b16 %v1397
    %v1686 = vunpack.c.l.b16 %v1398
    %v1687 = vunpack.c.l.b16 %v1399
    %v1688 = vunpack.c.l.b16 %v1400
    %v1689 = vunpack.c.l.b16 %v1401
    %v1690 = vunpack.c.l.b16 %v1402
    %v1691 = vunpack.c.l.b16 %v1403
    %v1692 = vunpack.c.l.b16 %v1404
    %v1693 = vunpack.c.l.b16 %v1405
    %v1694 = vunpack.c.l.b16 %v1406
    %v1695 = vunpack.c.l.b16 %v1407
    %v1696 = vunpack.c.l.b16 %v1408
    %v1697 = vunpack.c.l.b16 %v1409
    %v1698 = vunpack.c.l.b16 %v1410
    %v1699 = vunpack.c.l.b16 %v1411
    %v1700 = vunpack.c.l.b16 %v1412
    %v1701 = vunpack.c.l.b16 %v1413
    %v1702 = vunpack.c.l.b16 %v1414
    %v1703 = vunpack.c.l.b16 %v1415
    %v1704 = vunpack.c.l.b16 %v1416
    %v1705 = vunpack.c.l.b16 %v1417
    %v1706 = vunpack.c.l.b16 %v1418
    %v1707 = vunpack.c.l.b16 %v1419
    %v1708 = vpack.c.b16 %v1565, %v1564
    %v1709 = vpack.c.b16 %v1567, %v1566
    %v1710 = vpack.c.b16 %v1569, %v1568
    %v1711 = vpack.c.b16 %v1571, %v1570
    %v1712 = vpack.c.b16 %v1573, %v1572
    %v1713 = vpack.c.b16 %v1575, %v1574
    %v1714 = vpack.c.b16 %v1577, %v1576
    %v1715 = vpack.c.b16 %v1579, %v1578
    %v1716 = vpack.c.b16 %v1581, %v1580
    %v1717 = vpack.c.b16 %v1583, %v1582
    %v1718 = vpack.c.b16 %v1585, %v1584
    %v1719 = vpack.c.b16 %v1587, %v1586
    %v1720 = vpack.c.b16 %v1589, %v1588
    %v1721 = vpack.c.b16 %v1591, %v1590
    %v1722 = vpack.c.b16 %v1593, %v1592
    %v1723 = vpack.c.b16 %v1595, %v1594
    %v1724 = vpack.c.b16 %v1597, %v1596
    %v1725 = vpack.c.b16 %v1599, %v1598
    %v1726 = vpack.c.b16 %v1601, %v1600
    %v1727 = vpack.c.b16 %v1603, %v1602
    %v1728 = vpack.c.b16 %v1605, %v1604
    %v1729 = vpack.c.b16 %v1607, %v1606
    %v1730 = vpack.c.b16 %v1609, %v1608
    %v1731 = vpack.c.b16 %v1611, %v1610
    %v1732 = vpack.c.b16 %v1613, %v1612
    %v1733 = vpack.c.b16 %v1615, %v1614
    %v1734 = vpack.c.b16 %v1617, %v1616
    %v1735 = vpack.c.b16 %v1619, %v1618
    %v1736 = vpack.c.b16 %v1621, %v1620
    %v1737 = vpack.c.b16 %v1623, %v1622
    %v1738 = vpack.c.b16 %v1625, %v1624
    %v1739 = vpack.c.b16 %v1627, %v1626
    %v1740 = vpack.c.b16 %v1629, %v1628
    %v1741 = vpack.c.b16 %v1631, %v1630
    %v1742 = vpack.c.b16 %v1633, %v1632
    %v1743 = vpack.c.b16 %v1635, %v1634
    %v1744 = vpack.c.b16 %v1637, %v1636
    %v1745 = vpack.c.b16 %v1639, %v1638
    %v1746 = vpack.c.b16 %v1641, %v1640
    %v1747 = vpack.c.b16 %v1643, %v1642
    %v1748 = vpack.c.b16 %v1645, %v1644
    %v1749 = vpack.c.b16 %v1647, %v1646
    %v1750 = vpack.c.b16 %v1649, %v1648
    %v1751 = vpack.c.b16 %v1651, %v1650
    %v1752 = vpack.c.b16 %v1653, %v1652
    %v1753 = vpack.c.b16 %v1655, %v1654
    %v1754 = vpack.c.b16 %v1657, %v1656
    %v1755 = vpack.c.b16 %v1659, %v1658
    %v1756 = vpack.c.b16 %v1661, %v1660
    %v1757 = vpack.c.b16 %v1663, %v1662
    %v1758 = vpack.c.b16 %v1665, %v1664
    %v1759 = vpack.c.b16 %v1667, %v1666
    %v1760 = vpack.c.b16 %v1669, %v1668
    %v1761 = vpack.c.b16 %v1671, %v1670
    %v1762 = vpack.c.b16 %v1673, %v1672
    %v1763 = vpack.c.b16 %v1675, %v1674
    %v1764 = vpack.c.b16 %v1677, %v1676
    %v1765 = vpack.c.b16 %v1679, %v1678
    %v1766 = vpack.c.b16 %v1681, %v1680
    %v1767 = vpack.c.b16 %v1683, %v1682
    %v1768 = vpack.c.b16 %v1685, %v1684
    %v1769 = vpack.c.b16 %v1687, %v1686
    %v1770 = vpack.c.b16 %v1689, %v1688
    %v1771 = vpack.c.b16 %v1691, %v1690
    %v1772 = vpack.c.b16 %v1693, %v1692
    %v1773 = vpack.c.b16 %v1695, %v1694
    %v1774 = vpack.c.b16 %v1697, %v1696
    %v1775 = vpack.c.b16 %v1699, %v1698
    %v1776 = vpack.c.b16 %v1701, %v1700
    %v1777 = vpack.c.b16 %v1703, %v1702
    %v1778 = vpack.c.b16 %v1705, %v1704
    %v1779 = vpack.c.b16 %v1707, %v1706
    %1852 = vmatprep.subr.bf16.mxu0 0
    %1853 = vmatpush1.bf16.msra.mxu0 %v1708
    %1854 = vmatprep.subr.bf16.mxu0 0
    %1855 = vmatpush1.bf16.msra.mxu0 %v1709
    %1856 = vmatprep.subr.bf16.mxu0 0
    %1857 = vmatpush1.bf16.msra.mxu0 %v1710
    %1858 = vmatprep.subr.bf16.mxu0 0
    %1859 = vmatpush1.bf16.msra.mxu0 %v1711
    %1860 = vmatprep.subr.bf16.mxu0 0
    %1861 = vmatpush1.bf16.msra.mxu0 %v1712
    %1862 = vmatprep.subr.bf16.mxu0 0
    %1863 = vmatpush1.bf16.msra.mxu0 %v1713
    %1864 = vmatprep.subr.bf16.mxu0 0
    %1865 = vmatpush1.bf16.msra.mxu0 %v1714
    %1866 = vmatprep.subr.bf16.mxu0 0
    %1867 = vmatpush1.bf16.msra.mxu0 %v1715
    %1868 = vmatprep.subr.bf16.mxu0 0
    %1869 = vmatpush1.bf16.msra.mxu0 %v1716
    %1870 = vmatprep.subr.bf16.mxu0 0
    %1871 = vmatpush1.bf16.msra.mxu0 %v1717
    %1872 = vmatprep.subr.bf16.mxu0 0
    %1873 = vmatpush1.bf16.msra.mxu0 %v1718
    %1874 = vmatprep.subr.bf16.mxu0 0
    %1875 = vmatpush1.bf16.msra.mxu0 %v1719
    %1876 = vmatprep.subr.bf16.mxu0 0
    %1877 = vmatpush1.bf16.msra.mxu0 %v1720
    %1878 = vmatprep.subr.bf16.mxu0 0
    %1879 = vmatpush1.bf16.msra.mxu0 %v1721
    %1880 = vmatprep.subr.bf16.mxu0 0
    %1881 = vmatpush1.bf16.msra.mxu0 %v1722
    %1882 = vmatprep.subr.bf16.mxu0 0
    %1883 = vmatpush1.bf16.msra.mxu0 %v1723
    %1884 = vmatprep.mubr.bf16.mxu0 %v690
    %1885 = vmatmul.mubr.bf16.gmra.mrb[0].mxu0 %v603
    %v1886 = vpop.f32.mrb[0].mxu0
    %v1887 = vadd.f32 0.0, %v1886
    %v1888 = vpop.f32.mrb[0].mxu0
    %v1889 = vpop.f32.mrb[0].mxu0
    %v1890 = vadd.f32 0.0, %v1889
    %v1891 = vpop.f32.mrb[0].mxu0
    %1892 = vmatprep.mubr.bf16.mxu0 %v678
    %1893 = vmatmul.mubr.bf16.gmra.mrb[0].mxu0 %v602
    %v1894 = vpop.f32.mrb[0].mxu0
    %v1895 = vadd.f32 0.0, %v1894
    %v1896 = vpop.f32.mrb[0].mxu0
    %v1897 = vpop.f32.mrb[0].mxu0
    %v1898 = vadd.f32 0.0, %v1897
    %v1899 = vpop.f32.mrb[0].mxu0
    %1900 = vmatprep.mubr.bf16.mxu0 %v690
    %1901 = vmatmul.mubr.bf16.gmra.mrb[0].mxu0 %v603
    %v1902 = vpop.f32.mrb[0].mxu0
    %v1903 = vadd.f32 0.0, %v1902
    %v1904 = vpop.f32.mrb[0].mxu0
    %v1905 = vpop.f32.mrb[0].mxu0
    %v1906 = vadd.f32 0.0, %v1905
    %v1907 = vpop.f32.mrb[0].mxu0
    %1908 = vmatprep.mubr.bf16.mxu0 %v702
    %1909 = vmatmul.mubr.bf16.gmra.mrb[0].mxu0 %v604
    %v1910 = vpop.f32.mrb[0].mxu0
    %v1911 = vadd.f32 0.0, %v1910
    %v1912 = vpop.f32.mrb[0].mxu0
    %v1913 = vpop.f32.mrb[0].mxu0
    %v1914 = vadd.f32 0.0, %v1913
    %v1915 = vpop.f32.mrb[0].mxu0
    %1916 = vmatprep.mubr.bf16.mxu0 %v714
    %1917 = vmatmul.mubr.bf16.gmra.mrb[0].mxu0 %v605
    %v1918 = vpop.f32.mrb[0].mxu0
    %v1919 = vadd.f32 0.0, %v1918
    %v1920 = vpop.f32.mrb[0].mxu0
    %v1921 = vpop.f32.mrb[0].mxu0
    %v1922 = vadd.f32 0.0, %v1921
    %v1923 = vpop.f32.mrb[0].mxu0
    %1924 = vmatprep.mubr.bf16.mxu0 %v726
    %1925 = vmatmul.mubr.bf16.gmra.mrb[0].mxu0 %v606
    %v1926 = vpop.f32.mrb[0].mxu0
    %v1927 = vadd.f32 0.0, %v1926
    %v1928 = vpop.f32.mrb[0].mxu0
    %v1929 = vpop.f32.mrb[0].mxu0
    %v1930 = vadd.f32 0.0, %v1929
    %v1931 = vpop.f32.mrb[0].mxu0
    %1932 = vmatprep.mubr.bf16.mxu0 %v738
    %1933 = vmatmul.mubr.bf16.gmra.mrb[0].mxu0 %v607
    %v1934 = vpop.f32.mrb[0].mxu0
    %v1935 = vadd.f32 0.0, %v1934
    %v1936 = vpop.f32.mrb[0].mxu0
    %v1937 = vpop.f32.mrb[0].mxu0
    %v1938 = vadd.f32 0.0, %v1937
    %v1939 = vpop.f32.mrb[0].mxu0
    %1940 = vmatprep.mubr.bf16.mxu0 %v750
    %1941 = vmatmul.mubr.bf16.gmra.mrb[0].mxu0 %v608
    %v1942 = vpop.f32.mrb[0].mxu0
    %v1943 = vadd.f32 0.0, %v1942
    %v1944 = vpop.f32.mrb[0].mxu0
    %v1945 = vpop.f32.mrb[0].mxu0
    %v1946 = vadd.f32 0.0, %v1945
    %v1947 = vpop.f32.mrb[0].mxu0
    %1948 = vmatprep.mubr.bf16.mxu0 %v762
    %1949 = vmatmul.mubr.bf16.gmra.mrb[0].mxu0 %v609
    %v1950 = vpop.f32.mrb[0].mxu0
    %v1951 = vadd.f32 0.0, %v1950
    %v1952 = vpop.f32.mrb[0].mxu0
    %v1953 = vpop.f32.mrb[0].mxu0
    %v1954 = vadd.f32 0.0, %v1953
    %v1955 = vpop.f32.mrb[0].mxu0
    %1956 = vmatprep.mubr.bf16.mxu0 %v774
    %1957 = vmatmul.mubr.bf16.gmra.mrb[0].mxu0 %v610
    %v1958 = vpop.f32.mrb[0].mxu0
    %v1959 = vadd.f32 0.0, %v1958
    %v1960 = vpop.f32.mrb[0].mxu0
    %v1961 = vpop.f32.mrb[0].mxu0
    %v1962 = vadd.f32 0.0, %v1961
    %v1963 = vpop.f32.mrb[0].mxu0
    %1964 = vmatprep.mubr.bf16.mxu0 %v786
    %1965 = vmatmul.mubr.bf16.gmra.mrb[0].mxu0 %v611
    %v1966 = vpop.f32.mrb[0].mxu0
    %v1967 = vadd.f32 0.0, %v1966
    %v1968 = vpop.f32.mrb[0].mxu0
    %v1969 = vpop.f32.mrb[0].mxu0
    %v1970 = vadd.f32 0.0, %v1969
    %v1971 = vpop.f32.mrb[0].mxu0
    %1972 = vmatprep.mubr.bf16.mxu0 %v798
    %1973 = vmatmul.mubr.bf16.gmra.mrb[0].mxu0 %v612
    %v1974 = vpop.f32.mrb[0].mxu0
    %v1975 = vadd.f32 0.0, %v1974
    %v1976 = vpop.f32.mrb[0].mxu0
    %v1977 = vpop.f32.mrb[0].mxu0
    %v1978 = vadd.f32 0.0, %v1977
    %v1979 = vpop.f32.mrb[0].mxu0
    %1980 = vmatprep.mubr.bf16.mxu0 %v810
    %1981 = vmatmul.mubr.bf16.gmra.mrb[0].mxu0 %v613
    %v1982 = vpop.f32.mrb[0].mxu0
    %v1983 = vadd.f32 0.0, %v1982
    %v1984 = vpop.f32.mrb[0].mxu0
    %v1985 = vpop.f32.mrb[0].mxu0
    %v1986 = vadd.f32 0.0, %v1985
    %v1987 = vpop.f32.mrb[0].mxu0
    %1988 = vmatprep.mubr.bf16.mxu0 %v822
    %1989 = vmatmul.mubr.bf16.gmra.mrb[0].mxu0 %v614
    %v1990 = vpop.f32.mrb[0].mxu0
    %v1991 = vadd.f32 0.0, %v1990
    %v1992 = vpop.f32.mrb[0].mxu0
    %v1993 = vpop.f32.mrb[0].mxu0
    %v1994 = vadd.f32 0.0, %v1993
    %v1995 = vpop.f32.mrb[0].mxu0
    %1996 = vmatprep.mubr.bf16.mxu0 %v834
    %1997 = vmatmul.mubr.bf16.gmra.mrb[0].mxu0 %v615
    %v1998 = vpop.f32.mrb[0].mxu0
    %v1999 = vadd.f32 0.0, %v1998
    %v2000 = vpop.f32.mrb[0].mxu0
    %v2001 = vpop.f32.mrb[0].mxu0
    %v2002 = vadd.f32 0.0, %v2001
    %v2003 = vpop.f32.mrb[0].mxu0
    %2004 = vmatprep.mubr.bf16.mxu0 %v846
    %2005 = vmatmul.mubr.bf16.gmra.mrb[0].mxu0 %v616
    %v2006 = vpop.f32.mrb[0].mxu0
    %v2007 = vadd.f32 0.0, %v2006
    %v2008 = vpop.f32.mrb[0].mxu0
    %v2009 = vpop.f32.mrb[0].mxu0
    %v2010 = vadd.f32 0.0, %v2009
    %v2011 = vpop.f32.mrb[0].mxu0
    %2012 = vmatprep.mubr.bf16.mxu0 %v882
    %2013 = vmatmul.mubr.bf16.gmra.mrb[0].mxu0 %v619
    %v2014 = vpop.f32.mrb[0].mxu0
    %v2015 = vadd.f32 0.0, %v2014
    %v2016 = vpop.f32.mrb[0].mxu0
    %v2017 = vpop.f32.mrb[0].mxu0
    %v2018 = vadd.f32 0.0, %v2017
    %v2019 = vpop.f32.mrb[0].mxu0
    %2020 = vmatprep.mubr.bf16.mxu0 %v870
    %2021 = vmatmul.mubr.bf16.gmra.mrb[0].mxu0 %v618
    %v2022 = vpop.f32.mrb[0].mxu0
    %v2023 = vadd.f32 0.0, %v2022
    %v2024 = vpop.f32.mrb[0].mxu0
    %v2025 = vpop.f32.mrb[0].mxu0
    %v2026 = vadd.f32 0.0, %v2025
    %v2027 = vpop.f32.mrb[0].mxu0
    %2028 = vmatprep.mubr.bf16.mxu0 %v882
    %2029 = vmatmul.mubr.bf16.gmra.mrb[0].mxu0 %v619
    %v2030 = vpop.f32.mrb[0].mxu0
    %v2031 = vadd.f32 0.0, %v2030
    %v2032 = vpop.f32.mrb[0].mxu0
    %v2033 = vpop.f32.mrb[0].mxu0
    %v2034 = vadd.f32 0.0, %v2033
    %v2035 = vpop.f32.mrb[0].mxu0
    %2036 = vmatprep.mubr.bf16.mxu0 %v894
    %2037 = vmatmul.mubr.bf16.gmra.mrb[0].mxu0 %v620
    %v2038 = vpop.f32.mrb[0].mxu0
    %v2039 = vadd.f32 0.0, %v2038
    %v2040 = vpop.f32.mrb[0].mxu0
    %v2041 = vpop.f32.mrb[0].mxu0
    %v2042 = vadd.f32 0.0, %v2041
    %v2043 = vpop.f32.mrb[0].mxu0
    %2044 = vmatprep.mubr.bf16.mxu0 %v906
    %2045 = vmatmul.mubr.bf16.gmra.mrb[0].mxu0 %v621
    %v2046 = vpop.f32.mrb[0].mxu0
    %v2047 = vadd.f32 0.0, %v2046
    %v2048 = vpop.f32.mrb[0].mxu0
    %v2049 = vpop.f32.mrb[0].mxu0
    %v2050 = vadd.f32 0.0, %v2049
    %v2051 = vpop.f32.mrb[0].mxu0
    %2052 = vmatprep.mubr.bf16.mxu0 %v918
    %2053 = vmatmul.mubr.bf16.gmra.mrb[0].mxu0 %v622
    %v2054 = vpop.f32.mrb[0].mxu0
    %v2055 = vadd.f32 0.0, %v2054
    %v2056 = vpop.f32.mrb[0].mxu0
    %v2057 = vpop.f32.mrb[0].mxu0
    %v2058 = vadd.f32 0.0, %v2057
    %v2059 = vpop.f32.mrb[0].mxu0
    %2060 = vmatprep.mubr.bf16.mxu0 %v930
    %2061 = vmatmul.mubr.bf16.gmra.mrb[0].mxu0 %v623
    %v2062 = vpop.f32.mrb[0].mxu0
    %v2063 = vadd.f32 0.0, %v2062
    %v2064 = vpop.f32.mrb[0].mxu0
    %v2065 = vpop.f32.mrb[0].mxu0
    %v2066 = vadd.f32 0.0, %v2065
    %v2067 = vpop.f32.mrb[0].mxu0
    %2068 = vmatprep.mubr.bf16.mxu0 %v942
    %2069 = vmatmul.mubr.bf16.gmra.mrb[0].mxu0 %v624
    %v2070 = vpop.f32.mrb[0].mxu0
    %v2071 = vadd.f32 0.0, %v2070
    %v2072 = vpop.f32.mrb[0].mxu0
    %v2073 = vpop.f32.mrb[0].mxu0
    %v2074 = vadd.f32 0.0, %v2073
    %v2075 = vpop.f32.mrb[0].mxu0
    %2076 = vmatprep.mubr.bf16.mxu0 %v954
    %2077 = vmatmul.mubr.bf16.gmra.mrb[0].mxu0 %v625
    %v2078 = vpop.f32.mrb[0].mxu0
    %v2079 = vadd.f32 0.0, %v2078
    %v2080 = vpop.f32.mrb[0].mxu0
    %v2081 = vpop.f32.mrb[0].mxu0
    %v2082 = vadd.f32 0.0, %v2081
    %v2083 = vpop.f32.mrb[0].mxu0
    %2084 = vmatprep.mubr.bf16.mxu0 %v966
    %2085 = vmatmul.mubr.bf16.gmra.mrb[0].mxu0 %v626
    %v2086 = vpop.f32.mrb[0].mxu0
    %v2087 = vadd.f32 0.0, %v2086
    %v2088 = vpop.f32.mrb[0].mxu0
    %v2089 = vpop.f32.mrb[0].mxu0
    %v2090 = vadd.f32 0.0, %v2089
    %v2091 = vpop.f32.mrb[0].mxu0
    %2092 = vmatprep.mubr.bf16.mxu0 %v978
    %2093 = vmatmul.mubr.bf16.gmra.mrb[0].mxu0 %v627
    %v2094 = vpop.f32.mrb[0].mxu0
    %v2095 = vadd.f32 0.0, %v2094
    %v2096 = vpop.f32.mrb[0].mxu0
    %v2097 = vpop.f32.mrb[0].mxu0
    %v2098 = vadd.f32 0.0, %v2097
    %v2099 = vpop.f32.mrb[0].mxu0
    %2100 = vmatprep.mubr.bf16.mxu0 %v990
    %2101 = vmatmul.mubr.bf16.gmra.mrb[0].mxu0 %v628
    %v2102 = vpop.f32.mrb[0].mxu0
    %v2103 = vadd.f32 0.0, %v2102
    %v2104 = vpop.f32.mrb[0].mxu0
    %v2105 = vpop.f32.mrb[0].mxu0
    %v2106 = vadd.f32 0.0, %v2105
    %v2107 = vpop.f32.mrb[0].mxu0
    %2108 = vmatprep.mubr.bf16.mxu0 %v1002
    %2109 = vmatmul.mubr.bf16.gmra.mrb[0].mxu0 %v629
    %v2110 = vpop.f32.mrb[0].mxu0
    %v2111 = vadd.f32 0.0, %v2110
    %v2112 = vpop.f32.mrb[0].mxu0
    %v2113 = vpop.f32.mrb[0].mxu0
    %v2114 = vadd.f32 0.0, %v2113
    %v2115 = vpop.f32.mrb[0].mxu0
    %2116 = vmatprep.mubr.bf16.mxu0 %v1014
    %2117 = vmatmul.mubr.bf16.gmra.mrb[0].mxu0 %v630
    %v2118 = vpop.f32.mrb[0].mxu0
    %v2119 = vadd.f32 0.0, %v2118
    %v2120 = vpop.f32.mrb[0].mxu0
    %v2121 = vpop.f32.mrb[0].mxu0
    %v2122 = vadd.f32 0.0, %v2121
    %v2123 = vpop.f32.mrb[0].mxu0
    %2124 = vmatprep.mubr.bf16.mxu0 %v1026
    %2125 = vmatmul.mubr.bf16.gmra.mrb[0].mxu0 %v631
    %v2126 = vpop.f32.mrb[0].mxu0
    %v2127 = vadd.f32 0.0, %v2126
    %v2128 = vpop.f32.mrb[0].mxu0
    %v2129 = vpop.f32.mrb[0].mxu0
    %v2130 = vadd.f32 0.0, %v2129
    %v2131 = vpop.f32.mrb[0].mxu0
    %2132 = vmatprep.mubr.bf16.mxu0 %v1038
    %2133 = vmatmul.mubr.bf16.gmra.mrb[0].mxu0 %v632
    %v2134 = vpop.f32.mrb[0].mxu0
    %v2135 = vadd.f32 0.0, %v2134
    %v2136 = vpop.f32.mrb[0].mxu0
    %v2137 = vpop.f32.mrb[0].mxu0
    %v2138 = vadd.f32 0.0, %v2137
    %v2139 = vpop.f32.mrb[0].mxu0
    %2140 = vdwg.mxu0
    %2141 = vmatprep.subr.bf16.mxu0 0
    %2142 = vmatpush1.bf16.msra.mxu0 %v1724
    %2143 = vmatprep.subr.bf16.mxu0 0
    %2144 = vmatpush1.bf16.msra.mxu0 %v1725
    %2145 = vmatprep.subr.bf16.mxu0 0
    %2146 = vmatpush1.bf16.msra.mxu0 %v1726
    %2147 = vmatprep.subr.bf16.mxu0 0
    %2148 = vmatpush1.bf16.msra.mxu0 %v1727
    %2149 = vmatprep.subr.bf16.mxu0 0
    %2150 = vmatpush1.bf16.msra.mxu0 %v1728
    %2151 = vmatprep.subr.bf16.mxu0 0
    %2152 = vmatpush1.bf16.msra.mxu0 %v1729
    %2153 = vmatprep.subr.bf16.mxu0 0
    %2154 = vmatpush1.bf16.msra.mxu0 %v1730
    %2155 = vmatprep.subr.bf16.mxu0 0
    %2156 = vmatpush1.bf16.msra.mxu0 %v1731
    %2157 = vmatprep.subr.bf16.mxu0 0
    %2158 = vmatpush1.bf16.msra.mxu0 %v1732
    %2159 = vmatprep.subr.bf16.mxu0 0
    %2160 = vmatpush1.bf16.msra.mxu0 %v1733
    %2161 = vmatprep.subr.bf16.mxu0 0
    %2162 = vmatpush1.bf16.msra.mxu0 %v1734
    %2163 = vmatprep.subr.bf16.mxu0 0
    %2164 = vmatpush1.bf16.msra.mxu0 %v1735
    %2165 = vmatprep.subr.bf16.mxu0 0
    %2166 = vmatpush1.bf16.msra.mxu0 %v1736
    %2167 = vmatprep.subr.bf16.mxu0 0
    %2168 = vmatpush1.bf16.msra.mxu0 %v1737
    %2169 = vmatprep.subr.bf16.mxu0 0
    %2170 = vmatpush1.bf16.msra.mxu0 %v1738
    %2171 = vmatprep.subr.bf16.mxu0 0
    %2172 = vmatpush1.bf16.msra.mxu0 %v1739
    %2173 = vmatprep.mubr.bf16.mxu0 %v602
    %2174 = vmatmul.mubr.bf16.gmra.mrb[0].mxu0 %v1153
    %v2175 = vpop.f32.mrb[0].mxu0
    %v2176 = vadd.f32 %v1887, %v2175
    %v2177 = vpop.f32.mrb[0].mxu0
    %v2178 = vpop.f32.mrb[0].mxu0
    %v2179 = vadd.f32 %v1890, %v2178
    %v2180 = vpop.f32.mrb[0].mxu0
    %2181 = vmatprep.mubr.bf16.mxu0 %v603
    %2182 = vmatmul.mubr.bf16.gmra.mrb[0].mxu0 %v1150
    %v2183 = vpop.f32.mrb[0].mxu0
    %v2184 = vadd.f32 %v1895, %v2183
    %v2185 = vpop.f32.mrb[0].mxu0
    %v2186 = vpop.f32.mrb[0].mxu0
    %v2187 = vadd.f32 %v1898, %v2186
    %v2188 = vpop.f32.mrb[0].mxu0
    %2189 = vmatprep.mubr.bf16.mxu0 %v604
    %2190 = vmatmul.mubr.bf16.gmra.mrb[0].mxu0 %v1153
    %v2191 = vpop.f32.mrb[0].mxu0
    %v2192 = vadd.f32 %v1903, %v2191
    %v2193 = vpop.f32.mrb[0].mxu0
    %v2194 = vpop.f32.mrb[0].mxu0
    %v2195 = vadd.f32 %v1906, %v2194
    %v2196 = vpop.f32.mrb[0].mxu0
    %2197 = vmatprep.mubr.bf16.mxu0 %v605
    %2198 = vmatmul.mubr.bf16.gmra.mrb[0].mxu0 %v1156
    %v2199 = vpop.f32.mrb[0].mxu0
    %v2200 = vadd.f32 %v1911, %v2199
    %v2201 = vpop.f32.mrb[0].mxu0
    %v2202 = vpop.f32.mrb[0].mxu0
    %v2203 = vadd.f32 %v1914, %v2202
    %v2204 = vpop.f32.mrb[0].mxu0
    %2205 = vmatprep.mubr.bf16.mxu0 %v606
    %2206 = vmatmul.mubr.bf16.gmra.mrb[0].mxu0 %v1159
    %v2207 = vpop.f32.mrb[0].mxu0
    %v2208 = vadd.f32 %v1919, %v2207
    %v2209 = vpop.f32.mrb[0].mxu0
    %v2210 = vpop.f32.mrb[0].mxu0
    %v2211 = vadd.f32 %v1922, %v2210
    %v2212 = vpop.f32.mrb[0].mxu0
    %2213 = vmatprep.mubr.bf16.mxu0 %v607
    %2214 = vmatmul.mubr.bf16.gmra.mrb[0].mxu0 %v1162
    %v2215 = vpop.f32.mrb[0].mxu0
    %v2216 = vadd.f32 %v1927, %v2215
    %v2217 = vpop.f32.mrb[0].mxu0
    %v2218 = vpop.f32.mrb[0].mxu0
    %v2219 = vadd.f32 %v1930, %v2218
    %v2220 = vpop.f32.mrb[0].mxu0
    %2221 = vmatprep.mubr.bf16.mxu0 %v608
    %2222 = vmatmul.mubr.bf16.gmra.mrb[0].mxu0 %v1165
    %v2223 = vpop.f32.mrb[0].mxu0
    %v2224 = vadd.f32 %v1935, %v2223
    %v2225 = vpop.f32.mrb[0].mxu0
    %v2226 = vpop.f32.mrb[0].mxu0
    %v2227 = vadd.f32 %v1938, %v2226
    %v2228 = vpop.f32.mrb[0].mxu0
    %2229 = vmatprep.mubr.bf16.mxu0 %v609
    %2230 = vmatmul.mubr.bf16.gmra.mrb[0].mxu0 %v1168
    %v2231 = vpop.f32.mrb[0].mxu0
    %v2232 = vadd.f32 %v1943, %v2231
    %v2233 = vpop.f32.mrb[0].mxu0
    %v2234 = vpop.f32.mrb[0].mxu0
    %v2235 = vadd.f32 %v1946, %v2234
    %v2236 = vpop.f32.mrb[0].mxu0
    %2237 = vmatprep.mubr.bf16.mxu0 %v610
    %2238 = vmatmul.mubr.bf16.gmra.mrb[0].mxu0 %v1171
    %v2239 = vpop.f32.mrb[0].mxu0
    %v2240 = vadd.f32 %v1951, %v2239
    %v2241 = vpop.f32.mrb[0].mxu0
    %v2242 = vpop.f32.mrb[0].mxu0
    %v2243 = vadd.f32 %v1954, %v2242
    %v2244 = vpop.f32.mrb[0].mxu0
    %2245 = vmatprep.mubr.bf16.mxu0 %v611
    %2246 = vmatmul.mubr.bf16.gmra.mrb[0].mxu0 %v1174
    %v2247 = vpop.f32.mrb[0].mxu0
    %v2248 = vadd.f32 %v1959, %v2247
    %v2249 = vpop.f32.mrb[0].mxu0
    %v2250 = vpop.f32.mrb[0].mxu0
    %v2251 = vadd.f32 %v1962, %v2250
    %v2252 = vpop.f32.mrb[0].mxu0
    %2253 = vmatprep.mubr.bf16.mxu0 %v612
    %2254 = vmatmul.mubr.bf16.gmra.mrb[0].mxu0 %v1177
    %v2255 = vpop.f32.mrb[0].mxu0
    %v2256 = vadd.f32 %v1967, %v2255
    %v2257 = vpop.f32.mrb[0].mxu0
    %v2258 = vpop.f32.mrb[0].mxu0
    %v2259 = vadd.f32 %v1970, %v2258
    %v2260 = vpop.f32.mrb[0].mxu0
    %2261 = vmatprep.mubr.bf16.mxu0 %v613
    %2262 = vmatmul.mubr.bf16.gmra.mrb[0].mxu0 %v1180
    %v2263 = vpop.f32.mrb[0].mxu0
    %v2264 = vadd.f32 %v1975, %v2263
    %v2265 = vpop.f32.mrb[0].mxu0
    %v2266 = vpop.f32.mrb[0].mxu0
    %v2267 = vadd.f32 %v1978, %v2266
    %v2268 = vpop.f32.mrb[0].mxu0
    %2269 = vmatprep.mubr.bf16.mxu0 %v614
    %2270 = vmatmul.mubr.bf16.gmra.mrb[0].mxu0 %v1183
    %v2271 = vpop.f32.mrb[0].mxu0
    %v2272 = vadd.f32 %v1983, %v2271
    %v2273 = vpop.f32.mrb[0].mxu0
    %v2274 = vpop.f32.mrb[0].mxu0
    %v2275 = vadd.f32 %v1986, %v2274
    %v2276 = vpop.f32.mrb[0].mxu0
    %2277 = vmatprep.mubr.bf16.mxu0 %v615
    %2278 = vmatmul.mubr.bf16.gmra.mrb[0].mxu0 %v1186
    %v2279 = vpop.f32.mrb[0].mxu0
    %v2280 = vadd.f32 %v1991, %v2279
    %v2281 = vpop.f32.mrb[0].mxu0
    %v2282 = vpop.f32.mrb[0].mxu0
    %v2283 = vadd.f32 %v1994, %v2282
    %v2284 = vpop.f32.mrb[0].mxu0
    %2285 = vmatprep.mubr.bf16.mxu0 %v616
    %2286 = vmatmul.mubr.bf16.gmra.mrb[0].mxu0 %v1189
    %v2287 = vpop.f32.mrb[0].mxu0
    %v2288 = vadd.f32 %v1999, %v2287
    %v2289 = vpop.f32.mrb[0].mxu0
    %v2290 = vpop.f32.mrb[0].mxu0
    %v2291 = vadd.f32 %v2002, %v2290
    %v2292 = vpop.f32.mrb[0].mxu0
    %2293 = vmatprep.mubr.bf16.mxu0 %v617
    %2294 = vmatmul.mubr.bf16.gmra.mrb[0].mxu0 %v1192
    %v2295 = vpop.f32.mrb[0].mxu0
    %v2296 = vadd.f32 %v2007, %v2295
    %v2297 = vpop.f32.mrb[0].mxu0
    %v2298 = vpop.f32.mrb[0].mxu0
    %v2299 = vadd.f32 %v2010, %v2298
    %v2300 = vpop.f32.mrb[0].mxu0
    %2301 = vmatprep.mubr.bf16.mxu0 %v618
    %2302 = vmatmul.mubr.bf16.gmra.mrb[0].mxu0 %v1201
    %v2303 = vpop.f32.mrb[0].mxu0
    %v2304 = vadd.f32 %v2015, %v2303
    %v2305 = vpop.f32.mrb[0].mxu0
    %v2306 = vpop.f32.mrb[0].mxu0
    %v2307 = vadd.f32 %v2018, %v2306
    %v2308 = vpop.f32.mrb[0].mxu0
    %2309 = vmatprep.mubr.bf16.mxu0 %v619
    %2310 = vmatmul.mubr.bf16.gmra.mrb[0].mxu0 %v1198
    %v2311 = vpop.f32.mrb[0].mxu0
    %v2312 = vadd.f32 %v2023, %v2311
    %v2313 = vpop.f32.mrb[0].mxu0
    %v2314 = vpop.f32.mrb[0].mxu0
    %v2315 = vadd.f32 %v2026, %v2314
    %v2316 = vpop.f32.mrb[0].mxu0
    %2317 = vmatprep.mubr.bf16.mxu0 %v620
    %2318 = vmatmul.mubr.bf16.gmra.mrb[0].mxu0 %v1201
    %v2319 = vpop.f32.mrb[0].mxu0
    %v2320 = vadd.f32 %v2031, %v2319
    %v2321 = vpop.f32.mrb[0].mxu0
    %v2322 = vpop.f32.mrb[0].mxu0
    %v2323 = vadd.f32 %v2034, %v2322
    %v2324 = vpop.f32.mrb[0].mxu0
    %2325 = vmatprep.mubr.bf16.mxu0 %v621
    %2326 = vmatmul.mubr.bf16.gmra.mrb[0].mxu0 %v1204
    %v2327 = vpop.f32.mrb[0].mxu0
    %v2328 = vadd.f32 %v2039, %v2327
    %v2329 = vpop.f32.mrb[0].mxu0
    %v2330 = vpop.f32.mrb[0].mxu0
    %v2331 = vadd.f32 %v2042, %v2330
    %v2332 = vpop.f32.mrb[0].mxu0
    %2333 = vmatprep.mubr.bf16.mxu0 %v622
    %2334 = vmatmul.mubr.bf16.gmra.mrb[0].mxu0 %v1207
    %v2335 = vpop.f32.mrb[0].mxu0
    %v2336 = vadd.f32 %v2047, %v2335
    %v2337 = vpop.f32.mrb[0].mxu0
    %v2338 = vpop.f32.mrb[0].mxu0
    %v2339 = vadd.f32 %v2050, %v2338
    %v2340 = vpop.f32.mrb[0].mxu0
    %2341 = vmatprep.mubr.bf16.mxu0 %v623
    %2342 = vmatmul.mubr.bf16.gmra.mrb[0].mxu0 %v1210
    %v2343 = vpop.f32.mrb[0].mxu0
    %v2344 = vadd.f32 %v2055, %v2343
    %v2345 = vpop.f32.mrb[0].mxu0
    %v2346 = vpop.f32.mrb[0].mxu0
    %v2347 = vadd.f32 %v2058, %v2346
    %v2348 = vpop.f32.mrb[0].mxu0
    %2349 = vmatprep.mubr.bf16.mxu0 %v624
    %2350 = vmatmul.mubr.bf16.gmra.mrb[0].mxu0 %v1213
    %v2351 = vpop.f32.mrb[0].mxu0
    %v2352 = vadd.f32 %v2063, %v2351
    %v2353 = vpop.f32.mrb[0].mxu0
    %v2354 = vpop.f32.mrb[0].mxu0
    %v2355 = vadd.f32 %v2066, %v2354
    %v2356 = vpop.f32.mrb[0].mxu0
    %2357 = vmatprep.mubr.bf16.mxu0 %v625
    %2358 = vmatmul.mubr.bf16.gmra.mrb[0].mxu0 %v1216
    %v2359 = vpop.f32.mrb[0].mxu0
    %v2360 = vadd.f32 %v2071, %v2359
    %v2361 = vpop.f32.mrb[0].mxu0
    %v2362 = vpop.f32.mrb[0].mxu0
    %v2363 = vadd.f32 %v2074, %v2362
    %v2364 = vpop.f32.mrb[0].mxu0
    %2365 = vmatprep.mubr.bf16.mxu0 %v626
    %2366 = vmatmul.mubr.bf16.gmra.mrb[0].mxu0 %v1219
    %v2367 = vpop.f32.mrb[0].mxu0
    %v2368 = vadd.f32 %v2079, %v2367
    %v2369 = vpop.f32.mrb[0].mxu0
    %v2370 = vpop.f32.mrb[0].mxu0
    %v2371 = vadd.f32 %v2082, %v2370
    %v2372 = vpop.f32.mrb[0].mxu0
    %2373 = vmatprep.mubr.bf16.mxu0 %v627
    %2374 = vmatmul.mubr.bf16.gmra.mrb[0].mxu0 %v1222
    %v2375 = vpop.f32.mrb[0].mxu0
    %v2376 = vadd.f32 %v2087, %v2375
    %v2377 = vpop.f32.mrb[0].mxu0
    %v2378 = vpop.f32.mrb[0].mxu0
    %v2379 = vadd.f32 %v2090, %v2378
    %v2380 = vpop.f32.mrb[0].mxu0
    %2381 = vmatprep.mubr.bf16.mxu0 %v628
    %2382 = vmatmul.mubr.bf16.gmra.mrb[0].mxu0 %v1225
    %v2383 = vpop.f32.mrb[0].mxu0
    %v2384 = vadd.f32 %v2095, %v2383
    %v2385 = vpop.f32.mrb[0].mxu0
    %v2386 = vpop.f32.mrb[0].mxu0
    %v2387 = vadd.f32 %v2098, %v2386
    %v2388 = vpop.f32.mrb[0].mxu0
    %2389 = vmatprep.mubr.bf16.mxu0 %v629
    %2390 = vmatmul.mubr.bf16.gmra.mrb[0].mxu0 %v1228
    %v2391 = vpop.f32.mrb[0].mxu0
    %v2392 = vadd.f32 %v2103, %v2391
    %v2393 = vpop.f32.mrb[0].mxu0
    %v2394 = vpop.f32.mrb[0].mxu0
    %v2395 = vadd.f32 %v2106, %v2394
    %v2396 = vpop.f32.mrb[0].mxu0
    %2397 = vmatprep.mubr.bf16.mxu0 %v630
    %2398 = vmatmul.mubr.bf16.gmra.mrb[0].mxu0 %v1231
    %v2399 = vpop.f32.mrb[0].mxu0
    %v2400 = vadd.f32 %v2111, %v2399
    %v2401 = vpop.f32.mrb[0].mxu0
    %v2402 = vpop.f32.mrb[0].mxu0
    %v2403 = vadd.f32 %v2114, %v2402
    %v2404 = vpop.f32.mrb[0].mxu0
    %2405 = vmatprep.mubr.bf16.mxu0 %v631
    %2406 = vmatmul.mubr.bf16.gmra.mrb[0].mxu0 %v1234
    %v2407 = vpop.f32.mrb[0].mxu0
    %v2408 = vadd.f32 %v2119, %v2407
    %v2409 = vpop.f32.mrb[0].mxu0
    %v2410 = vpop.f32.mrb[0].mxu0
    %v2411 = vadd.f32 %v2122, %v2410
    %v2412 = vpop.f32.mrb[0].mxu0
    %2413 = vmatprep.mubr.bf16.mxu0 %v632
    %2414 = vmatmul.mubr.bf16.gmra.mrb[0].mxu0 %v1237
    %v2415 = vpop.f32.mrb[0].mxu0
    %v2416 = vadd.f32 %v2127, %v2415
    %v2417 = vpop.f32.mrb[0].mxu0
    %v2418 = vpop.f32.mrb[0].mxu0
    %v2419 = vadd.f32 %v2130, %v2418
    %v2420 = vpop.f32.mrb[0].mxu0
    %2421 = vmatprep.mubr.bf16.mxu0 %v633
    %2422 = vmatmul.mubr.bf16.gmra.mrb[0].mxu0 %v1240
    %v2423 = vpop.f32.mrb[0].mxu0
    %v2424 = vadd.f32 %v2135, %v2423
    %v2425 = vpop.f32.mrb[0].mxu0
    %v2426 = vpop.f32.mrb[0].mxu0
    %v2427 = vadd.f32 %v2138, %v2426
    %v2428 = vpop.f32.mrb[0].mxu0
    %2429 = vdwg.mxu0
    %2430 = vmatprep.subr.bf16.mxu0 0
    %2431 = vmatpush1.bf16.msra.mxu0 %v1740
    %2432 = vmatprep.subr.bf16.mxu0 0
    %2433 = vmatpush1.bf16.msra.mxu0 %v1741
    %2434 = vmatprep.subr.bf16.mxu0 0
    %2435 = vmatpush1.bf16.msra.mxu0 %v1742
    %2436 = vmatprep.subr.bf16.mxu0 0
    %2437 = vmatpush1.bf16.msra.mxu0 %v1743
    %2438 = vmatprep.subr.bf16.mxu0 0
    %2439 = vmatpush1.bf16.msra.mxu0 %v1744
    %2440 = vmatprep.subr.bf16.mxu0 0
    %2441 = vmatpush1.bf16.msra.mxu0 %v1745
    %2442 = vmatprep.subr.bf16.mxu0 0
    %2443 = vmatpush1.bf16.msra.mxu0 %v1746
    %2444 = vmatprep.subr.bf16.mxu0 0
    %2445 = vmatpush1.bf16.msra.mxu0 %v1747
    %2446 = vmatprep.subr.bf16.mxu0 0
    %2447 = vmatpush1.bf16.msra.mxu0 %v1748
    %2448 = vmatprep.subr.bf16.mxu0 0
    %2449 = vmatpush1.bf16.msra.mxu0 %v1749
    %2450 = vmatprep.subr.bf16.mxu0 0
    %2451 = vmatpush1.bf16.msra.mxu0 %v1750
    %2452 = vmatprep.subr.bf16.mxu0 0
    %2453 = vmatpush1.bf16.msra.mxu0 %v1751
    %2454 = vmatprep.subr.bf16.mxu0 0
    %2455 = vmatpush1.bf16.msra.mxu0 %v1752
    %2456 = vmatprep.subr.bf16.mxu0 0
    %2457 = vmatpush1.bf16.msra.mxu0 %v1753
    %2458 = vmatprep.subr.bf16.mxu0 0
    %2459 = vmatpush1.bf16.msra.mxu0 %v1754
    %2460 = vmatprep.subr.bf16.mxu0 0
    %2461 = vmatpush1.bf16.msra.mxu0 %v1755
    %2462 = vmatprep.mubr.bf16.mxu0 %v1150
    %2463 = vmatmul.mubr.bf16.gmra.mrb[0].mxu0 %v678
    %v2464 = vpop.f32.mrb[0].mxu0
    %v2465 = vadd.f32 %v2176, %v2464
    %v2466 = vpop.f32.mrb[0].mxu0
    %v2467 = vpop.f32.mrb[0].mxu0
    %v2468 = vadd.f32 %v2179, %v2467
    %v2469 = vpop.f32.mrb[0].mxu0
    %2470 = vmatprep.mubr.bf16.mxu0 %v1153
    %2471 = vmatmul.mubr.bf16.gmra.mrb[0].mxu0 %v690
    %v2472 = vpop.f32.mrb[0].mxu0
    %v2473 = vadd.f32 %v2184, %v2472
    %v2474 = vpop.f32.mrb[0].mxu0
    %v2475 = vpop.f32.mrb[0].mxu0
    %v2476 = vadd.f32 %v2187, %v2475
    %v2477 = vpop.f32.mrb[0].mxu0
    %2478 = vmatprep.mubr.bf16.mxu0 %v1156
    %2479 = vmatmul.mubr.bf16.gmra.mrb[0].mxu0 %v702
    %v2480 = vpop.f32.mrb[0].mxu0
    %v2481 = vadd.f32 %v2192, %v2480
    %v2482 = vpop.f32.mrb[0].mxu0
    %v2483 = vpop.f32.mrb[0].mxu0
    %v2484 = vadd.f32 %v2195, %v2483
    %v2485 = vpop.f32.mrb[0].mxu0
    %2486 = vmatprep.mubr.bf16.mxu0 %v1159
    %2487 = vmatmul.mubr.bf16.gmra.mrb[0].mxu0 %v714
    %v2488 = vpop.f32.mrb[0].mxu0
    %v2489 = vadd.f32 %v2200, %v2488
    %v2490 = vpop.f32.mrb[0].mxu0
    %v2491 = vpop.f32.mrb[0].mxu0
    %v2492 = vadd.f32 %v2203, %v2491
    %v2493 = vpop.f32.mrb[0].mxu0
    %2494 = vmatprep.mubr.bf16.mxu0 %v1162
    %2495 = vmatmul.mubr.bf16.gmra.mrb[0].mxu0 %v726
    %v2496 = vpop.f32.mrb[0].mxu0
    %v2497 = vadd.f32 %v2208, %v2496
    %v2498 = vpop.f32.mrb[0].mxu0
    %v2499 = vpop.f32.mrb[0].mxu0
    %v2500 = vadd.f32 %v2211, %v2499
    %v2501 = vpop.f32.mrb[0].mxu0
    %2502 = vmatprep.mubr.bf16.mxu0 %v1165
    %2503 = vmatmul.mubr.bf16.gmra.mrb[0].mxu0 %v738
    %v2504 = vpop.f32.mrb[0].mxu0
    %v2505 = vadd.f32 %v2216, %v2504
    %v2506 = vpop.f32.mrb[0].mxu0
    %v2507 = vpop.f32.mrb[0].mxu0
    %v2508 = vadd.f32 %v2219, %v2507
    %v2509 = vpop.f32.mrb[0].mxu0
    %2510 = vmatprep.mubr.bf16.mxu0 %v1168
    %2511 = vmatmul.mubr.bf16.gmra.mrb[0].mxu0 %v750
    %v2512 = vpop.f32.mrb[0].mxu0
    %v2513 = vadd.f32 %v2224, %v2512
    %v2514 = vpop.f32.mrb[0].mxu0
    %v2515 = vpop.f32.mrb[0].mxu0
    %v2516 = vadd.f32 %v2227, %v2515
    %v2517 = vpop.f32.mrb[0].mxu0
    %2518 = vmatprep.mubr.bf16.mxu0 %v1171
    %2519 = vmatmul.mubr.bf16.gmra.mrb[0].mxu0 %v762
    %v2520 = vpop.f32.mrb[0].mxu0
    %v2521 = vadd.f32 %v2232, %v2520
    %v2522 = vpop.f32.mrb[0].mxu0
    %v2523 = vpop.f32.mrb[0].mxu0
    %v2524 = vadd.f32 %v2235, %v2523
    %v2525 = vpop.f32.mrb[0].mxu0
    %2526 = vmatprep.mubr.bf16.mxu0 %v1174
    %2527 = vmatmul.mubr.bf16.gmra.mrb[0].mxu0 %v774
    %v2528 = vpop.f32.mrb[0].mxu0
    %v2529 = vadd.f32 %v2240, %v2528
    %v2530 = vpop.f32.mrb[0].mxu0
    %v2531 = vpop.f32.mrb[0].mxu0
    %v2532 = vadd.f32 %v2243, %v2531
    %v2533 = vpop.f32.mrb[0].mxu0
    %2534 = vmatprep.mubr.bf16.mxu0 %v1177
    %2535 = vmatmul.mubr.bf16.gmra.mrb[0].mxu0 %v786
    %v2536 = vpop.f32.mrb[0].mxu0
    %v2537 = vadd.f32 %v2248, %v2536
    %v2538 = vpop.f32.mrb[0].mxu0
    %v2539 = vpop.f32.mrb[0].mxu0
    %v2540 = vadd.f32 %v2251, %v2539
    %v2541 = vpop.f32.mrb[0].mxu0
    %2542 = vmatprep.mubr.bf16.mxu0 %v1180
    %2543 = vmatmul.mubr.bf16.gmra.mrb[0].mxu0 %v798
    %v2544 = vpop.f32.mrb[0].mxu0
    %v2545 = vadd.f32 %v2256, %v2544
    %v2546 = vpop.f32.mrb[0].mxu0
    %v2547 = vpop.f32.mrb[0].mxu0
    %v2548 = vadd.f32 %v2259, %v2547
    %v2549 = vpop.f32.mrb[0].mxu0
    %2550 = vmatprep.mubr.bf16.mxu0 %v1183
    %2551 = vmatmul.mubr.bf16.gmra.mrb[0].mxu0 %v810
    %v2552 = vpop.f32.mrb[0].mxu0
    %v2553 = vadd.f32 %v2264, %v2552
    %v2554 = vpop.f32.mrb[0].mxu0
    %v2555 = vpop.f32.mrb[0].mxu0
    %v2556 = vadd.f32 %v2267, %v2555
    %v2557 = vpop.f32.mrb[0].mxu0
    %2558 = vmatprep.mubr.bf16.mxu0 %v1186
    %2559 = vmatmul.mubr.bf16.gmra.mrb[0].mxu0 %v822
    %v2560 = vpop.f32.mrb[0].mxu0
    %v2561 = vadd.f32 %v2272, %v2560
    %v2562 = vpop.f32.mrb[0].mxu0
    %v2563 = vpop.f32.mrb[0].mxu0
    %v2564 = vadd.f32 %v2275, %v2563
    %v2565 = vpop.f32.mrb[0].mxu0
    %2566 = vmatprep.mubr.bf16.mxu0 %v1189
    %2567 = vmatmul.mubr.bf16.gmra.mrb[0].mxu0 %v834
    %v2568 = vpop.f32.mrb[0].mxu0
    %v2569 = vadd.f32 %v2280, %v2568
    %v2570 = vpop.f32.mrb[0].mxu0
    %v2571 = vpop.f32.mrb[0].mxu0
    %v2572 = vadd.f32 %v2283, %v2571
    %v2573 = vpop.f32.mrb[0].mxu0
    %2574 = vmatprep.mubr.bf16.mxu0 %v1192
    %2575 = vmatmul.mubr.bf16.gmra.mrb[0].mxu0 %v846
    %v2576 = vpop.f32.mrb[0].mxu0
    %v2577 = vadd.f32 %v2288, %v2576
    %v2578 = vpop.f32.mrb[0].mxu0
    %v2579 = vpop.f32.mrb[0].mxu0
    %v2580 = vadd.f32 %v2291, %v2579
    %v2581 = vpop.f32.mrb[0].mxu0
    %2582 = vmatprep.mubr.bf16.mxu0 %v1195
    %2583 = vmatmul.mubr.bf16.gmra.mrb[0].mxu0 %v858
    %v2584 = vpop.f32.mrb[0].mxu0
    %v2585 = vadd.f32 %v2296, %v2584
    %v2586 = vpop.f32.mrb[0].mxu0
    %v2587 = vpop.f32.mrb[0].mxu0
    %v2588 = vadd.f32 %v2299, %v2587
    %v2589 = vpop.f32.mrb[0].mxu0
    %2590 = vmatprep.mubr.bf16.mxu0 %v1198
    %2591 = vmatmul.mubr.bf16.gmra.mrb[0].mxu0 %v870
    %v2592 = vpop.f32.mrb[0].mxu0
    %v2593 = vadd.f32 %v2304, %v2592
    %v2594 = vpop.f32.mrb[0].mxu0
    %v2595 = vpop.f32.mrb[0].mxu0
    %v2596 = vadd.f32 %v2307, %v2595
    %v2597 = vpop.f32.mrb[0].mxu0
    %2598 = vmatprep.mubr.bf16.mxu0 %v1201
    %2599 = vmatmul.mubr.bf16.gmra.mrb[0].mxu0 %v882
    %v2600 = vpop.f32.mrb[0].mxu0
    %v2601 = vadd.f32 %v2312, %v2600
    %v2602 = vpop.f32.mrb[0].mxu0
    %v2603 = vpop.f32.mrb[0].mxu0
    %v2604 = vadd.f32 %v2315, %v2603
    %v2605 = vpop.f32.mrb[0].mxu0
    %2606 = vmatprep.mubr.bf16.mxu0 %v1204
    %2607 = vmatmul.mubr.bf16.gmra.mrb[0].mxu0 %v894
    %v2608 = vpop.f32.mrb[0].mxu0
    %v2609 = vadd.f32 %v2320, %v2608
    %v2610 = vpop.f32.mrb[0].mxu0
    %v2611 = vpop.f32.mrb[0].mxu0
    %v2612 = vadd.f32 %v2323, %v2611
    %v2613 = vpop.f32.mrb[0].mxu0
    %2614 = vmatprep.mubr.bf16.mxu0 %v1207
    %2615 = vmatmul.mubr.bf16.gmra.mrb[0].mxu0 %v906
    %v2616 = vpop.f32.mrb[0].mxu0
    %v2617 = vadd.f32 %v2328, %v2616
    %v2618 = vpop.f32.mrb[0].mxu0
    %v2619 = vpop.f32.mrb[0].mxu0
    %v2620 = vadd.f32 %v2331, %v2619
    %v2621 = vpop.f32.mrb[0].mxu0
    %2622 = vmatprep.mubr.bf16.mxu0 %v1210
    %2623 = vmatmul.mubr.bf16.gmra.mrb[0].mxu0 %v918
    %v2624 = vpop.f32.mrb[0].mxu0
    %v2625 = vadd.f32 %v2336, %v2624
    %v2626 = vpop.f32.mrb[0].mxu0
    %v2627 = vpop.f32.mrb[0].mxu0
    %v2628 = vadd.f32 %v2339, %v2627
    %v2629 = vpop.f32.mrb[0].mxu0
    %2630 = vmatprep.mubr.bf16.mxu0 %v1213
    %2631 = vmatmul.mubr.bf16.gmra.mrb[0].mxu0 %v930
    %v2632 = vpop.f32.mrb[0].mxu0
    %v2633 = vadd.f32 %v2344, %v2632
    %v2634 = vpop.f32.mrb[0].mxu0
    %v2635 = vpop.f32.mrb[0].mxu0
    %v2636 = vadd.f32 %v2347, %v2635
    %v2637 = vpop.f32.mrb[0].mxu0
    %2638 = vmatprep.mubr.bf16.mxu0 %v1216
    %2639 = vmatmul.mubr.bf16.gmra.mrb[0].mxu0 %v942
    %v2640 = vpop.f32.mrb[0].mxu0
    %v2641 = vadd.f32 %v2352, %v2640
    %v2642 = vpop.f32.mrb[0].mxu0
    %v2643 = vpop.f32.mrb[0].mxu0
    %v2644 = vadd.f32 %v2355, %v2643
    %v2645 = vpop.f32.mrb[0].mxu0
    %2646 = vmatprep.mubr.bf16.mxu0 %v1219
    %2647 = vmatmul.mubr.bf16.gmra.mrb[0].mxu0 %v954
    %v2648 = vpop.f32.mrb[0].mxu0
    %v2649 = vadd.f32 %v2360, %v2648
    %v2650 = vpop.f32.mrb[0].mxu0
    %v2651 = vpop.f32.mrb[0].mxu0
    %v2652 = vadd.f32 %v2363, %v2651
    %v2653 = vpop.f32.mrb[0].mxu0
    %2654 = vmatprep.mubr.bf16.mxu0 %v1222
    %2655 = vmatmul.mubr.bf16.gmra.mrb[0].mxu0 %v966
    %v2656 = vpop.f32.mrb[0].mxu0
    %v2657 = vadd.f32 %v2368, %v2656
    %v2658 = vpop.f32.mrb[0].mxu0
    %v2659 = vpop.f32.mrb[0].mxu0
    %v2660 = vadd.f32 %v2371, %v2659
    %v2661 = vpop.f32.mrb[0].mxu0
    %2662 = vmatprep.mubr.bf16.mxu0 %v1225
    %2663 = vmatmul.mubr.bf16.gmra.mrb[0].mxu0 %v978
    %v2664 = vpop.f32.mrb[0].mxu0
    %v2665 = vadd.f32 %v2376, %v2664
    %v2666 = vpop.f32.mrb[0].mxu0
    %v2667 = vpop.f32.mrb[0].mxu0
    %v2668 = vadd.f32 %v2379, %v2667
    %v2669 = vpop.f32.mrb[0].mxu0
    %2670 = vmatprep.mubr.bf16.mxu0 %v1228
    %2671 = vmatmul.mubr.bf16.gmra.mrb[0].mxu0 %v990
    %v2672 = vpop.f32.mrb[0].mxu0
    %v2673 = vadd.f32 %v2384, %v2672
    %v2674 = vpop.f32.mrb[0].mxu0
    %v2675 = vpop.f32.mrb[0].mxu0
    %v2676 = vadd.f32 %v2387, %v2675
    %v2677 = vpop.f32.mrb[0].mxu0
    %2678 = vmatprep.mubr.bf16.mxu0 %v1231
    %2679 = vmatmul.mubr.bf16.gmra.mrb[0].mxu0 %v1002
    %v2680 = vpop.f32.mrb[0].mxu0
    %v2681 = vadd.f32 %v2392, %v2680
    %v2682 = vpop.f32.mrb[0].mxu0
    %v2683 = vpop.f32.mrb[0].mxu0
    %v2684 = vadd.f32 %v2395, %v2683
    %v2685 = vpop.f32.mrb[0].mxu0
    %2686 = vmatprep.mubr.bf16.mxu0 %v1234
    %2687 = vmatmul.mubr.bf16.gmra.mrb[0].mxu0 %v1014
    %v2688 = vpop.f32.mrb[0].mxu0
    %v2689 = vadd.f32 %v2400, %v2688
    %v2690 = vpop.f32.mrb[0].mxu0
    %v2691 = vpop.f32.mrb[0].mxu0
    %v2692 = vadd.f32 %v2403, %v2691
    %v2693 = vpop.f32.mrb[0].mxu0
    %2694 = vmatprep.mubr.bf16.mxu0 %v1237
    %2695 = vmatmul.mubr.bf16.gmra.mrb[0].mxu0 %v1026
    %v2696 = vpop.f32.mrb[0].mxu0
    %v2697 = vadd.f32 %v2408, %v2696
    %v2698 = vpop.f32.mrb[0].mxu0
    %v2699 = vpop.f32.mrb[0].mxu0
    %v2700 = vadd.f32 %v2411, %v2699
    %v2701 = vpop.f32.mrb[0].mxu0
    %2702 = vmatprep.mubr.bf16.mxu0 %v1240
    %2703 = vmatmul.mubr.bf16.gmra.mrb[0].mxu0 %v1038
    %v2704 = vpop.f32.mrb[0].mxu0
    %v2705 = vadd.f32 %v2416, %v2704
    %v2706 = vpop.f32.mrb[0].mxu0
    %v2707 = vpop.f32.mrb[0].mxu0
    %v2708 = vadd.f32 %v2419, %v2707
    %v2709 = vpop.f32.mrb[0].mxu0
    %2710 = vmatprep.mubr.bf16.mxu0 %v1243
    %2711 = vmatmul.mubr.bf16.gmra.mrb[0].mxu0 %v1050
    %v2712 = vpop.f32.mrb[0].mxu0
    %v2713 = vadd.f32 %v2424, %v2712
    %v2714 = vpop.f32.mrb[0].mxu0
    %v2715 = vpop.f32.mrb[0].mxu0
    %v2716 = vadd.f32 %v2427, %v2715
    %v2717 = vpop.f32.mrb[0].mxu0
    %2718 = vdwg.mxu0
    %2719 = vmatprep.subr.bf16.mxu0 0
    %2720 = vmatpush1.bf16.msra.mxu0 %v1756
    %2721 = vmatprep.subr.bf16.mxu0 0
    %2722 = vmatpush1.bf16.msra.mxu0 %v1757
    %2723 = vmatprep.subr.bf16.mxu0 0
    %2724 = vmatpush1.bf16.msra.mxu0 %v1758
    %2725 = vmatprep.subr.bf16.mxu0 0
    %2726 = vmatpush1.bf16.msra.mxu0 %v1759
    %2727 = vmatprep.subr.bf16.mxu0 0
    %2728 = vmatpush1.bf16.msra.mxu0 %v1760
    %2729 = vmatprep.subr.bf16.mxu0 0
    %2730 = vmatpush1.bf16.msra.mxu0 %v1761
    %2731 = vmatprep.subr.bf16.mxu0 0
    %2732 = vmatpush1.bf16.msra.mxu0 %v1762
    %2733 = vmatprep.subr.bf16.mxu0 0
    %2734 = vmatpush1.bf16.msra.mxu0 %v1763
    %2735 = vmatprep.subr.bf16.mxu0 0
    %2736 = vmatpush1.bf16.msra.mxu0 %v1764
    %2737 = vmatprep.subr.bf16.mxu0 0
    %2738 = vmatpush1.bf16.msra.mxu0 %v1765
    %2739 = vmatprep.subr.bf16.mxu0 0
    %2740 = vmatpush1.bf16.msra.mxu0 %v1766
    %2741 = vmatprep.subr.bf16.mxu0 0
    %2742 = vmatpush1.bf16.msra.mxu0 %v1767
    %2743 = vmatprep.subr.bf16.mxu0 0
    %2744 = vmatpush1.bf16.msra.mxu0 %v1768
    %2745 = vmatprep.subr.bf16.mxu0 0
    %2746 = vmatpush1.bf16.msra.mxu0 %v1769
    %2747 = vmatprep.subr.bf16.mxu0 0
    %2748 = vmatpush1.bf16.msra.mxu0 %v1770
    %2749 = vmatprep.subr.bf16.mxu0 0
    %2750 = vmatpush1.bf16.msra.mxu0 %v1771
    %2751 = vmatprep.mubr.bf16.mxu0 %v690
    %2752 = vmatmul.mubr.bf16.gmra.mrb[0].mxu0 %v603
    %v2753 = vpop.f32.mrb[0].mxu0
    %v2754 = vadd.f32 %v2465, %v2753
    %v2755 = vpop.f32.mrb[0].mxu0
    %v2756 = vpop.f32.mrb[0].mxu0
    %v2757 = vadd.f32 %v2468, %v2756
    %v2758 = vpop.f32.mrb[0].mxu0
    %2759 = vmatprep.mubr.bf16.mxu0 %v702
    %2760 = vmatmul.mubr.bf16.gmra.mrb[0].mxu0 %v604
    %v2761 = vpop.f32.mrb[0].mxu0
    %v2762 = vadd.f32 %v2473, %v2761
    %v2763 = vpop.f32.mrb[0].mxu0
    %v2764 = vpop.f32.mrb[0].mxu0
    %v2765 = vadd.f32 %v2476, %v2764
    %v2766 = vpop.f32.mrb[0].mxu0
    %2767 = vmatprep.mubr.bf16.mxu0 %v714
    %2768 = vmatmul.mubr.bf16.gmra.mrb[0].mxu0 %v605
    %v2769 = vpop.f32.mrb[0].mxu0
    %v2770 = vadd.f32 %v2481, %v2769
    %v2771 = vpop.f32.mrb[0].mxu0
    %v2772 = vpop.f32.mrb[0].mxu0
    %v2773 = vadd.f32 %v2484, %v2772
    %v2774 = vpop.f32.mrb[0].mxu0
    %2775 = vmatprep.mubr.bf16.mxu0 %v726
    %2776 = vmatmul.mubr.bf16.gmra.mrb[0].mxu0 %v606
    %v2777 = vpop.f32.mrb[0].mxu0
    %v2778 = vadd.f32 %v2489, %v2777
    %v2779 = vpop.f32.mrb[0].mxu0
    %v2780 = vpop.f32.mrb[0].mxu0
    %v2781 = vadd.f32 %v2492, %v2780
    %v2782 = vpop.f32.mrb[0].mxu0
    %2783 = vmatprep.mubr.bf16.mxu0 %v738
    %2784 = vmatmul.mubr.bf16.gmra.mrb[0].mxu0 %v607
    %v2785 = vpop.f32.mrb[0].mxu0
    %v2786 = vadd.f32 %v2497, %v2785
    %v2787 = vpop.f32.mrb[0].mxu0
    %v2788 = vpop.f32.mrb[0].mxu0
    %v2789 = vadd.f32 %v2500, %v2788
    %v2790 = vpop.f32.mrb[0].mxu0
    %2791 = vmatprep.mubr.bf16.mxu0 %v750
    %2792 = vmatmul.mubr.bf16.gmra.mrb[0].mxu0 %v608
    %v2793 = vpop.f32.mrb[0].mxu0
    %v2794 = vadd.f32 %v2505, %v2793
    %v2795 = vpop.f32.mrb[0].mxu0
    %v2796 = vpop.f32.mrb[0].mxu0
    %v2797 = vadd.f32 %v2508, %v2796
    %v2798 = vpop.f32.mrb[0].mxu0
    %2799 = vmatprep.mubr.bf16.mxu0 %v762
    %2800 = vmatmul.mubr.bf16.gmra.mrb[0].mxu0 %v609
    %v2801 = vpop.f32.mrb[0].mxu0
    %v2802 = vadd.f32 %v2513, %v2801
    %v2803 = vpop.f32.mrb[0].mxu0
    %v2804 = vpop.f32.mrb[0].mxu0
    %v2805 = vadd.f32 %v2516, %v2804
    %v2806 = vpop.f32.mrb[0].mxu0
    %2807 = vmatprep.mubr.bf16.mxu0 %v774
    %2808 = vmatmul.mubr.bf16.gmra.mrb[0].mxu0 %v610
    %v2809 = vpop.f32.mrb[0].mxu0
    %v2810 = vadd.f32 %v2521, %v2809
    %v2811 = vpop.f32.mrb[0].mxu0
    %v2812 = vpop.f32.mrb[0].mxu0
    %v2813 = vadd.f32 %v2524, %v2812
    %v2814 = vpop.f32.mrb[0].mxu0
    %2815 = vmatprep.mubr.bf16.mxu0 %v786
    %2816 = vmatmul.mubr.bf16.gmra.mrb[0].mxu0 %v611
    %v2817 = vpop.f32.mrb[0].mxu0
    %v2818 = vadd.f32 %v2529, %v2817
    %v2819 = vpop.f32.mrb[0].mxu0
    %v2820 = vpop.f32.mrb[0].mxu0
    %v2821 = vadd.f32 %v2532, %v2820
    %v2822 = vpop.f32.mrb[0].mxu0
    %2823 = vmatprep.mubr.bf16.mxu0 %v798
    %2824 = vmatmul.mubr.bf16.gmra.mrb[0].mxu0 %v612
    %v2825 = vpop.f32.mrb[0].mxu0
    %v2826 = vadd.f32 %v2537, %v2825
    %v2827 = vpop.f32.mrb[0].mxu0
    %v2828 = vpop.f32.mrb[0].mxu0
    %v2829 = vadd.f32 %v2540, %v2828
    %v2830 = vpop.f32.mrb[0].mxu0
    %2831 = vmatprep.mubr.bf16.mxu0 %v810
    %2832 = vmatmul.mubr.bf16.gmra.mrb[0].mxu0 %v613
    %v2833 = vpop.f32.mrb[0].mxu0
    %v2834 = vadd.f32 %v2545, %v2833
    %v2835 = vpop.f32.mrb[0].mxu0
    %v2836 = vpop.f32.mrb[0].mxu0
    %v2837 = vadd.f32 %v2548, %v2836
    %v2838 = vpop.f32.mrb[0].mxu0
    %2839 = vmatprep.mubr.bf16.mxu0 %v822
    %2840 = vmatmul.mubr.bf16.gmra.mrb[0].mxu0 %v614
    %v2841 = vpop.f32.mrb[0].mxu0
    %v2842 = vadd.f32 %v2553, %v2841
    %v2843 = vpop.f32.mrb[0].mxu0
    %v2844 = vpop.f32.mrb[0].mxu0
    %v2845 = vadd.f32 %v2556, %v2844
    %v2846 = vpop.f32.mrb[0].mxu0
    %2847 = vmatprep.mubr.bf16.mxu0 %v834
    %2848 = vmatmul.mubr.bf16.gmra.mrb[0].mxu0 %v615
    %v2849 = vpop.f32.mrb[0].mxu0
    %v2850 = vadd.f32 %v2561, %v2849
    %v2851 = vpop.f32.mrb[0].mxu0
    %v2852 = vpop.f32.mrb[0].mxu0
    %v2853 = vadd.f32 %v2564, %v2852
    %v2854 = vpop.f32.mrb[0].mxu0
    %2855 = vmatprep.mubr.bf16.mxu0 %v846
    %2856 = vmatmul.mubr.bf16.gmra.mrb[0].mxu0 %v616
    %v2857 = vpop.f32.mrb[0].mxu0
    %v2858 = vadd.f32 %v2569, %v2857
    %v2859 = vpop.f32.mrb[0].mxu0
    %v2860 = vpop.f32.mrb[0].mxu0
    %v2861 = vadd.f32 %v2572, %v2860
    %v2862 = vpop.f32.mrb[0].mxu0
    %2863 = vmatprep.mubr.bf16.mxu0 %v858
    %2864 = vmatmul.mubr.bf16.gmra.mrb[0].mxu0 %v617
    %v2865 = vpop.f32.mrb[0].mxu0
    %v2866 = vadd.f32 %v2577, %v2865
    %v2867 = vpop.f32.mrb[0].mxu0
    %v2868 = vpop.f32.mrb[0].mxu0
    %v2869 = vadd.f32 %v2580, %v2868
    %v2870 = vpop.f32.mrb[0].mxu0
    %2871 = vmatprep.mubr.bf16.mxu0 %v846
    %2872 = vmatmul.mubr.bf16.gmra.mrb[0].mxu0 %v616
    %v2873 = vpop.f32.mrb[0].mxu0
    %v2874 = vadd.f32 %v2585, %v2873
    %v2875 = vpop.f32.mrb[0].mxu0
    %v2876 = vpop.f32.mrb[0].mxu0
    %v2877 = vadd.f32 %v2588, %v2876
    %v2878 = vpop.f32.mrb[0].mxu0
    %2879 = vmatprep.mubr.bf16.mxu0 %v882
    %2880 = vmatmul.mubr.bf16.gmra.mrb[0].mxu0 %v619
    %v2881 = vpop.f32.mrb[0].mxu0
    %v2882 = vadd.f32 %v2593, %v2881
    %v2883 = vpop.f32.mrb[0].mxu0
    %v2884 = vpop.f32.mrb[0].mxu0
    %v2885 = vadd.f32 %v2596, %v2884
    %v2886 = vpop.f32.mrb[0].mxu0
    %2887 = vmatprep.mubr.bf16.mxu0 %v894
    %2888 = vmatmul.mubr.bf16.gmra.mrb[0].mxu0 %v620
    %v2889 = vpop.f32.mrb[0].mxu0
    %v2890 = vadd.f32 %v2601, %v2889
    %v2891 = vpop.f32.mrb[0].mxu0
    %v2892 = vpop.f32.mrb[0].mxu0
    %v2893 = vadd.f32 %v2604, %v2892
    %v2894 = vpop.f32.mrb[0].mxu0
    %2895 = vmatprep.mubr.bf16.mxu0 %v906
    %2896 = vmatmul.mubr.bf16.gmra.mrb[0].mxu0 %v621
    %v2897 = vpop.f32.mrb[0].mxu0
    %v2898 = vadd.f32 %v2609, %v2897
    %v2899 = vpop.f32.mrb[0].mxu0
    %v2900 = vpop.f32.mrb[0].mxu0
    %v2901 = vadd.f32 %v2612, %v2900
    %v2902 = vpop.f32.mrb[0].mxu0
    %2903 = vmatprep.mubr.bf16.mxu0 %v918
    %2904 = vmatmul.mubr.bf16.gmra.mrb[0].mxu0 %v622
    %v2905 = vpop.f32.mrb[0].mxu0
    %v2906 = vadd.f32 %v2617, %v2905
    %v2907 = vpop.f32.mrb[0].mxu0
    %v2908 = vpop.f32.mrb[0].mxu0
    %v2909 = vadd.f32 %v2620, %v2908
    %v2910 = vpop.f32.mrb[0].mxu0
    %2911 = vmatprep.mubr.bf16.mxu0 %v930
    %2912 = vmatmul.mubr.bf16.gmra.mrb[0].mxu0 %v623
    %v2913 = vpop.f32.mrb[0].mxu0
    %v2914 = vadd.f32 %v2625, %v2913
    %v2915 = vpop.f32.mrb[0].mxu0
    %v2916 = vpop.f32.mrb[0].mxu0
    %v2917 = vadd.f32 %v2628, %v2916
    %v2918 = vpop.f32.mrb[0].mxu0
    %2919 = vmatprep.mubr.bf16.mxu0 %v942
    %2920 = vmatmul.mubr.bf16.gmra.mrb[0].mxu0 %v624
    %v2921 = vpop.f32.mrb[0].mxu0
    %v2922 = vadd.f32 %v2633, %v2921
    %v2923 = vpop.f32.mrb[0].mxu0
    %v2924 = vpop.f32.mrb[0].mxu0
    %v2925 = vadd.f32 %v2636, %v2924
    %v2926 = vpop.f32.mrb[0].mxu0
    %2927 = vmatprep.mubr.bf16.mxu0 %v954
    %2928 = vmatmul.mubr.bf16.gmra.mrb[0].mxu0 %v625
    %v2929 = vpop.f32.mrb[0].mxu0
    %v2930 = vadd.f32 %v2641, %v2929
    %v2931 = vpop.f32.mrb[0].mxu0
    %v2932 = vpop.f32.mrb[0].mxu0
    %v2933 = vadd.f32 %v2644, %v2932
    %v2934 = vpop.f32.mrb[0].mxu0
    %2935 = vmatprep.mubr.bf16.mxu0 %v966
    %2936 = vmatmul.mubr.bf16.gmra.mrb[0].mxu0 %v626
    %v2937 = vpop.f32.mrb[0].mxu0
    %v2938 = vadd.f32 %v2649, %v2937
    %v2939 = vpop.f32.mrb[0].mxu0
    %v2940 = vpop.f32.mrb[0].mxu0
    %v2941 = vadd.f32 %v2652, %v2940
    %v2942 = vpop.f32.mrb[0].mxu0
    %2943 = vmatprep.mubr.bf16.mxu0 %v978
    %2944 = vmatmul.mubr.bf16.gmra.mrb[0].mxu0 %v627
    %v2945 = vpop.f32.mrb[0].mxu0
    %v2946 = vadd.f32 %v2657, %v2945
    %v2947 = vpop.f32.mrb[0].mxu0
    %v2948 = vpop.f32.mrb[0].mxu0
    %v2949 = vadd.f32 %v2660, %v2948
    %v2950 = vpop.f32.mrb[0].mxu0
    %2951 = vmatprep.mubr.bf16.mxu0 %v990
    %2952 = vmatmul.mubr.bf16.gmra.mrb[0].mxu0 %v628
    %v2953 = vpop.f32.mrb[0].mxu0
    %v2954 = vadd.f32 %v2665, %v2953
    %v2955 = vpop.f32.mrb[0].mxu0
    %v2956 = vpop.f32.mrb[0].mxu0
    %v2957 = vadd.f32 %v2668, %v2956
    %v2958 = vpop.f32.mrb[0].mxu0
    %2959 = vmatprep.mubr.bf16.mxu0 %v1002
    %2960 = vmatmul.mubr.bf16.gmra.mrb[0].mxu0 %v629
    %v2961 = vpop.f32.mrb[0].mxu0
    %v2962 = vadd.f32 %v2673, %v2961
    %v2963 = vpop.f32.mrb[0].mxu0
    %v2964 = vpop.f32.mrb[0].mxu0
    %v2965 = vadd.f32 %v2676, %v2964
    %v2966 = vpop.f32.mrb[0].mxu0
    %2967 = vmatprep.mubr.bf16.mxu0 %v1014
    %2968 = vmatmul.mubr.bf16.gmra.mrb[0].mxu0 %v630
    %v2969 = vpop.f32.mrb[0].mxu0
    %v2970 = vadd.f32 %v2681, %v2969
    %v2971 = vpop.f32.mrb[0].mxu0
    %v2972 = vpop.f32.mrb[0].mxu0
    %v2973 = vadd.f32 %v2684, %v2972
    %v2974 = vpop.f32.mrb[0].mxu0
    %2975 = vmatprep.mubr.bf16.mxu0 %v1026
    %2976 = vmatmul.mubr.bf16.gmra.mrb[0].mxu0 %v631
    %v2977 = vpop.f32.mrb[0].mxu0
    %v2978 = vadd.f32 %v2689, %v2977
    %v2979 = vpop.f32.mrb[0].mxu0
    %v2980 = vpop.f32.mrb[0].mxu0
    %v2981 = vadd.f32 %v2692, %v2980
    %v2982 = vpop.f32.mrb[0].mxu0
    %2983 = vmatprep.mubr.bf16.mxu0 %v1038
    %2984 = vmatmul.mubr.bf16.gmra.mrb[0].mxu0 %v632
    %v2985 = vpop.f32.mrb[0].mxu0
    %v2986 = vadd.f32 %v2697, %v2985
    %v2987 = vpop.f32.mrb[0].mxu0
    %v2988 = vpop.f32.mrb[0].mxu0
    %v2989 = vadd.f32 %v2700, %v2988
    %v2990 = vpop.f32.mrb[0].mxu0
    %2991 = vmatprep.mubr.bf16.mxu0 %v1050
    %2992 = vmatmul.mubr.bf16.gmra.mrb[0].mxu0 %v633
    %v2993 = vpop.f32.mrb[0].mxu0
    %v2994 = vadd.f32 %v2705, %v2993
    %v2995 = vpop.f32.mrb[0].mxu0
    %v2996 = vpop.f32.mrb[0].mxu0
    %v2997 = vadd.f32 %v2708, %v2996
    %v2998 = vpop.f32.mrb[0].mxu0
    %2999 = vmatprep.mubr.bf16.mxu0 %v1038
    %3000 = vmatmul.mubr.bf16.gmra.mrb[0].mxu0 %v632
    %v3001 = vpop.f32.mrb[0].mxu0
    %v3002 = vadd.f32 %v2713, %v3001
    %v3003 = vpop.f32.mrb[0].mxu0
    %v3004 = vpop.f32.mrb[0].mxu0
    %v3005 = vadd.f32 %v2716, %v3004
    %v3006 = vpop.f32.mrb[0].mxu0
    %3007 = vdwg.mxu0
    %3008 = vmatprep.subr.bf16.mxu0 0
    %3009 = vmatpush1.bf16.msra.mxu0 %v1772
    %3010 = vmatprep.subr.bf16.mxu0 0
    %3011 = vmatpush1.bf16.msra.mxu0 %v1773
    %3012 = vmatprep.subr.bf16.mxu0 0
    %3013 = vmatpush1.bf16.msra.mxu0 %v1774
    %3014 = vmatprep.subr.bf16.mxu0 0
    %3015 = vmatpush1.bf16.msra.mxu0 %v1775
    %3016 = vmatprep.subr.bf16.mxu0 0
    %3017 = vmatpush1.bf16.msra.mxu0 %v1776
    %3018 = vmatprep.subr.bf16.mxu0 0
    %3019 = vmatpush1.bf16.msra.mxu0 %v1777
    %3020 = vmatprep.subr.bf16.mxu0 0
    %3021 = vmatpush1.bf16.msra.mxu0 %v1778
    %3022 = vmatprep.subr.bf16.mxu0 0
    %3023 = vmatpush1.bf16.msra.mxu0 %v1779
    %3024 = vmatprep.subr.bf16.mxu0 0
    %3025 = vmatpush1.bf16.msra.mxu0 0
    %3026 = vmatprep.subr.bf16.mxu0 0
    %3027 = vmatpush1.bf16.msra.mxu0 0
    %3028 = vmatprep.subr.bf16.mxu0 0
    %3029 = vmatpush1.bf16.msra.mxu0 0
    %3030 = vmatprep.subr.bf16.mxu0 0
    %3031 = vmatpush1.bf16.msra.mxu0 0
    %3032 = vmatprep.subr.bf16.mxu0 0
    %3033 = vmatpush1.bf16.msra.mxu0 0
    %3034 = vmatprep.subr.bf16.mxu0 0
    %3035 = vmatpush1.bf16.msra.mxu0 0
    %3036 = vmatprep.subr.bf16.mxu0 0
    %3037 = vmatpush1.bf16.msra.mxu0 0
    %3038 = vmatprep.subr.bf16.mxu0 0
    %3039 = vmatpush1.bf16.msra.mxu0 0
    %3040 = vmatprep.mubr.bf16.mxu0 0
    %3041 = vmatmul.mubr.bf16.gmra.mrb[0].mxu0 %v1153
    %v3042 = vpop.f32.mrb[0].mxu0
    %v3043 = vadd.f32 %v2754, %v3042
    %v3044 = vpop.f32.mrb[0].mxu0
    %v3045 = vpop.f32.mrb[0].mxu0
    %v3046 = vadd.f32 %v2757, %v3045
    %v3047 = vpop.f32.mrb[0].mxu0
    %3048 = vmatprep.mubr.bf16.mxu0 0
    %3049 = vmatmul.mubr.bf16.gmra.mrb[0].mxu0 %v1156
    %v3050 = vpop.f32.mrb[0].mxu0
    %v3051 = vadd.f32 %v2762, %v3050
    %v3052 = vpop.f32.mrb[0].mxu0
    %v3053 = vpop.f32.mrb[0].mxu0
    %v3054 = vadd.f32 %v2765, %v3053
    %v3055 = vpop.f32.mrb[0].mxu0
    %3056 = vmatprep.mubr.bf16.mxu0 0
    %3057 = vmatmul.mubr.bf16.gmra.mrb[0].mxu0 %v1159
    %v3058 = vpop.f32.mrb[0].mxu0
    %v3059 = vadd.f32 %v2770, %v3058
    %v3060 = vpop.f32.mrb[0].mxu0
    %v3061 = vpop.f32.mrb[0].mxu0
    %v3062 = vadd.f32 %v2773, %v3061
    %v3063 = vpop.f32.mrb[0].mxu0
    %3064 = vmatprep.mubr.bf16.mxu0 0
    %3065 = vmatmul.mubr.bf16.gmra.mrb[0].mxu0 %v1162
    %v3066 = vpop.f32.mrb[0].mxu0
    %v3067 = vadd.f32 %v2778, %v3066
    %v3068 = vpop.f32.mrb[0].mxu0
    %v3069 = vpop.f32.mrb[0].mxu0
    %v3070 = vadd.f32 %v2781, %v3069
    %v3071 = vpop.f32.mrb[0].mxu0
    %3072 = vmatprep.mubr.bf16.mxu0 0
    %3073 = vmatmul.mubr.bf16.gmra.mrb[0].mxu0 %v1165
    %v3074 = vpop.f32.mrb[0].mxu0
    %v3075 = vadd.f32 %v2786, %v3074
    %v3076 = vpop.f32.mrb[0].mxu0
    %v3077 = vpop.f32.mrb[0].mxu0
    %v3078 = vadd.f32 %v2789, %v3077
    %v3079 = vpop.f32.mrb[0].mxu0
    %3080 = vmatprep.mubr.bf16.mxu0 0
    %3081 = vmatmul.mubr.bf16.gmra.mrb[0].mxu0 %v1168
    %v3082 = vpop.f32.mrb[0].mxu0
    %v3083 = vadd.f32 %v2794, %v3082
    %v3084 = vpop.f32.mrb[0].mxu0
    %v3085 = vpop.f32.mrb[0].mxu0
    %v3086 = vadd.f32 %v2797, %v3085
    %v3087 = vpop.f32.mrb[0].mxu0
    %3088 = vmatprep.mubr.bf16.mxu0 0
    %3089 = vmatmul.mubr.bf16.gmra.mrb[0].mxu0 %v1171
    %v3090 = vpop.f32.mrb[0].mxu0
    %v3091 = vadd.f32 %v2802, %v3090
    %v3092 = vpop.f32.mrb[0].mxu0
    %v3093 = vpop.f32.mrb[0].mxu0
    %v3094 = vadd.f32 %v2805, %v3093
    %v3095 = vpop.f32.mrb[0].mxu0
    %3096 = vmatprep.mubr.bf16.mxu0 0
    %3097 = vmatmul.mubr.bf16.gmra.mrb[0].mxu0 %v1174
    %v3098 = vpop.f32.mrb[0].mxu0
    %v3099 = vadd.f32 %v2810, %v3098
    %v3100 = vpop.f32.mrb[0].mxu0
    %v3101 = vpop.f32.mrb[0].mxu0
    %v3102 = vadd.f32 %v2813, %v3101
    %v3103 = vpop.f32.mrb[0].mxu0
    %3104 = vmatprep.mubr.bf16.mxu0 0
    %3105 = vmatmul.mubr.bf16.gmra.mrb[0].mxu0 %v1177
    %v3106 = vpop.f32.mrb[0].mxu0
    %v3107 = vadd.f32 %v2818, %v3106
    %v3108 = vpop.f32.mrb[0].mxu0
    %v3109 = vpop.f32.mrb[0].mxu0
    %v3110 = vadd.f32 %v2821, %v3109
    %v3111 = vpop.f32.mrb[0].mxu0
    %3112 = vmatprep.mubr.bf16.mxu0 0
    %3113 = vmatmul.mubr.bf16.gmra.mrb[0].mxu0 %v1180
    %v3114 = vpop.f32.mrb[0].mxu0
    %v3115 = vadd.f32 %v2826, %v3114
    %v3116 = vpop.f32.mrb[0].mxu0
    %v3117 = vpop.f32.mrb[0].mxu0
    %v3118 = vadd.f32 %v2829, %v3117
    %v3119 = vpop.f32.mrb[0].mxu0
    %3120 = vmatprep.mubr.bf16.mxu0 0
    %3121 = vmatmul.mubr.bf16.gmra.mrb[0].mxu0 %v1183
    %v3122 = vpop.f32.mrb[0].mxu0
    %v3123 = vadd.f32 %v2834, %v3122
    %v3124 = vpop.f32.mrb[0].mxu0
    %v3125 = vpop.f32.mrb[0].mxu0
    %v3126 = vadd.f32 %v2837, %v3125
    %v3127 = vpop.f32.mrb[0].mxu0
    %3128 = vmatprep.mubr.bf16.mxu0 0
    %3129 = vmatmul.mubr.bf16.gmra.mrb[0].mxu0 %v1186
    %v3130 = vpop.f32.mrb[0].mxu0
    %v3131 = vadd.f32 %v2842, %v3130
    %v3132 = vpop.f32.mrb[0].mxu0
    %v3133 = vpop.f32.mrb[0].mxu0
    %v3134 = vadd.f32 %v2845, %v3133
    %v3135 = vpop.f32.mrb[0].mxu0
    %3136 = vmatprep.mubr.bf16.mxu0 0
    %3137 = vmatmul.mubr.bf16.gmra.mrb[0].mxu0 %v1189
    %v3138 = vpop.f32.mrb[0].mxu0
    %v3139 = vadd.f32 %v2850, %v3138
    %v3140 = vpop.f32.mrb[0].mxu0
    %v3141 = vpop.f32.mrb[0].mxu0
    %v3142 = vadd.f32 %v2853, %v3141
    %v3143 = vpop.f32.mrb[0].mxu0
    %3144 = vmatprep.mubr.bf16.mxu0 0
    %3145 = vmatmul.mubr.bf16.gmra.mrb[0].mxu0 %v1192
    %v3146 = vpop.f32.mrb[0].mxu0
    %v3147 = vadd.f32 %v2858, %v3146
    %v3148 = vpop.f32.mrb[0].mxu0
    %v3149 = vpop.f32.mrb[0].mxu0
    %v3150 = vadd.f32 %v2861, %v3149
    %v3151 = vpop.f32.mrb[0].mxu0
    %3152 = vmatprep.mubr.bf16.mxu0 0
    %3153 = vmatmul.mubr.bf16.gmra.mrb[0].mxu0 %v1195
    %v3154 = vpop.f32.mrb[0].mxu0
    %v3155 = vadd.f32 %v2866, %v3154
    %v3156 = vpop.f32.mrb[0].mxu0
    %v3157 = vpop.f32.mrb[0].mxu0
    %v3158 = vadd.f32 %v2869, %v3157
    %v3159 = vpop.f32.mrb[0].mxu0
    %3160 = vmatprep.mubr.bf16.mxu0 0
    %3161 = vmatmul.mubr.bf16.gmra.mrb[0].mxu0 %v1192
    %v3162 = vpop.f32.mrb[0].mxu0
    %v3163 = vadd.f32 %v2874, %v3162
    %v3164 = vpop.f32.mrb[0].mxu0
    %v3165 = vpop.f32.mrb[0].mxu0
    %v3166 = vadd.f32 %v2877, %v3165
    %v3167 = vpop.f32.mrb[0].mxu0
    %3168 = vmatprep.mubr.bf16.mxu0 0
    %3169 = vmatmul.mubr.bf16.gmra.mrb[0].mxu0 %v1201
    %v3170 = vpop.f32.mrb[0].mxu0
    %v3171 = vadd.f32 %v2882, %v3170
    %v3172 = vpop.f32.mrb[0].mxu0
    %v3173 = vpop.f32.mrb[0].mxu0
    %v3174 = vadd.f32 %v2885, %v3173
    %v3175 = vpop.f32.mrb[0].mxu0
    %3176 = vmatprep.mubr.bf16.mxu0 0
    %3177 = vmatmul.mubr.bf16.gmra.mrb[0].mxu0 %v1204
    %v3178 = vpop.f32.mrb[0].mxu0
    %v3179 = vadd.f32 %v2890, %v3178
    %v3180 = vpop.f32.mrb[0].mxu0
    %v3181 = vpop.f32.mrb[0].mxu0
    %v3182 = vadd.f32 %v2893, %v3181
    %v3183 = vpop.f32.mrb[0].mxu0
    %3184 = vmatprep.mubr.bf16.mxu0 0
    %3185 = vmatmul.mubr.bf16.gmra.mrb[0].mxu0 %v1207
    %v3186 = vpop.f32.mrb[0].mxu0
    %v3187 = vadd.f32 %v2898, %v3186
    %v3188 = vpop.f32.mrb[0].mxu0
    %v3189 = vpop.f32.mrb[0].mxu0
    %v3190 = vadd.f32 %v2901, %v3189
    %v3191 = vpop.f32.mrb[0].mxu0
    %3192 = vmatprep.mubr.bf16.mxu0 0
    %3193 = vmatmul.mubr.bf16.gmra.mrb[0].mxu0 %v1210
    %v3194 = vpop.f32.mrb[0].mxu0
    %v3195 = vadd.f32 %v2906, %v3194
    %v3196 = vpop.f32.mrb[0].mxu0
    %v3197 = vpop.f32.mrb[0].mxu0
    %v3198 = vadd.f32 %v2909, %v3197
    %v3199 = vpop.f32.mrb[0].mxu0
    %3200 = vmatprep.mubr.bf16.mxu0 0
    %3201 = vmatmul.mubr.bf16.gmra.mrb[0].mxu0 %v1213
    %v3202 = vpop.f32.mrb[0].mxu0
    %v3203 = vadd.f32 %v2914, %v3202
    %v3204 = vpop.f32.mrb[0].mxu0
    %v3205 = vpop.f32.mrb[0].mxu0
    %v3206 = vadd.f32 %v2917, %v3205
    %v3207 = vpop.f32.mrb[0].mxu0
    %3208 = vmatprep.mubr.bf16.mxu0 0
    %3209 = vmatmul.mubr.bf16.gmra.mrb[0].mxu0 %v1216
    %v3210 = vpop.f32.mrb[0].mxu0
    %v3211 = vadd.f32 %v2922, %v3210
    %v3212 = vpop.f32.mrb[0].mxu0
    %v3213 = vpop.f32.mrb[0].mxu0
    %v3214 = vadd.f32 %v2925, %v3213
    %v3215 = vpop.f32.mrb[0].mxu0
    %3216 = vmatprep.mubr.bf16.mxu0 0
    %3217 = vmatmul.mubr.bf16.gmra.mrb[0].mxu0 %v1219
    %v3218 = vpop.f32.mrb[0].mxu0
    %v3219 = vadd.f32 %v2930, %v3218
    %v3220 = vpop.f32.mrb[0].mxu0
    %v3221 = vpop.f32.mrb[0].mxu0
    %v3222 = vadd.f32 %v2933, %v3221
    %v3223 = vpop.f32.mrb[0].mxu0
    %3224 = vmatprep.mubr.bf16.mxu0 0
    %3225 = vmatmul.mubr.bf16.gmra.mrb[0].mxu0 %v1222
    %v3226 = vpop.f32.mrb[0].mxu0
    %v3227 = vadd.f32 %v2938, %v3226
    %v3228 = vpop.f32.mrb[0].mxu0
    %v3229 = vpop.f32.mrb[0].mxu0
    %v3230 = vadd.f32 %v2941, %v3229
    %v3231 = vpop.f32.mrb[0].mxu0
    %3232 = vmatprep.mubr.bf16.mxu0 0
    %3233 = vmatmul.mubr.bf16.gmra.mrb[0].mxu0 %v1225
    %v3234 = vpop.f32.mrb[0].mxu0
    %v3235 = vadd.f32 %v2946, %v3234
    %v3236 = vpop.f32.mrb[0].mxu0
    %v3237 = vpop.f32.mrb[0].mxu0
    %v3238 = vadd.f32 %v2949, %v3237
    %v3239 = vpop.f32.mrb[0].mxu0
    %3240 = vmatprep.mubr.bf16.mxu0 0
    %3241 = vmatmul.mubr.bf16.gmra.mrb[0].mxu0 %v1228
    %v3242 = vpop.f32.mrb[0].mxu0
    %v3243 = vadd.f32 %v2954, %v3242
    %v3244 = vpop.f32.mrb[0].mxu0
    %v3245 = vpop.f32.mrb[0].mxu0
    %v3246 = vadd.f32 %v2957, %v3245
    %v3247 = vpop.f32.mrb[0].mxu0
    %3248 = vmatprep.mubr.bf16.mxu0 0
    %3249 = vmatmul.mubr.bf16.gmra.mrb[0].mxu0 %v1231
    %v3250 = vpop.f32.mrb[0].mxu0
    %v3251 = vadd.f32 %v2962, %v3250
    %v3252 = vpop.f32.mrb[0].mxu0
    %v3253 = vpop.f32.mrb[0].mxu0
    %v3254 = vadd.f32 %v2965, %v3253
    %v3255 = vpop.f32.mrb[0].mxu0
    %3256 = vmatprep.mubr.bf16.mxu0 0
    %3257 = vmatmul.mubr.bf16.gmra.mrb[0].mxu0 %v1234
    %v3258 = vpop.f32.mrb[0].mxu0
    %v3259 = vadd.f32 %v2970, %v3258
    %v3260 = vpop.f32.mrb[0].mxu0
    %v3261 = vpop.f32.mrb[0].mxu0
    %v3262 = vadd.f32 %v2973, %v3261
    %v3263 = vpop.f32.mrb[0].mxu0
    %3264 = vmatprep.mubr.bf16.mxu0 0
    %3265 = vmatmul.mubr.bf16.gmra.mrb[0].mxu0 %v1237
    %v3266 = vpop.f32.mrb[0].mxu0
    %v3267 = vadd.f32 %v2978, %v3266
    %v3268 = vpop.f32.mrb[0].mxu0
    %v3269 = vpop.f32.mrb[0].mxu0
    %v3270 = vadd.f32 %v2981, %v3269
    %v3271 = vpop.f32.mrb[0].mxu0
    %3272 = vmatprep.mubr.bf16.mxu0 0
    %3273 = vmatmul.mubr.bf16.gmra.mrb[0].mxu0 %v1240
    %v3274 = vpop.f32.mrb[0].mxu0
    %v3275 = vadd.f32 %v2986, %v3274
    %v3276 = vpop.f32.mrb[0].mxu0
    %v3277 = vpop.f32.mrb[0].mxu0
    %v3278 = vadd.f32 %v2989, %v3277
    %v3279 = vpop.f32.mrb[0].mxu0
    %3280 = vmatprep.mubr.bf16.mxu0 0
    %3281 = vmatmul.mubr.bf16.gmra.mrb[0].mxu0 %v1243
    %v3282 = vpop.f32.mrb[0].mxu0
    %v3283 = vadd.f32 %v2994, %v3282
    %v3284 = vpop.f32.mrb[0].mxu0
    %v3285 = vpop.f32.mrb[0].mxu0
    %v3286 = vadd.f32 %v2997, %v3285
    %v3287 = vpop.f32.mrb[0].mxu0
    %3288 = vmatprep.mubr.bf16.mxu0 0
    %3289 = vmatmul.mubr.bf16.gmra.mrb[0].mxu0 %v1240
    %v3290 = vpop.f32.mrb[0].mxu0
    %v3291 = vadd.f32 %v3002, %v3290
    %v3292 = vpop.f32.mrb[0].mxu0
    %v3293 = vpop.f32.mrb[0].mxu0
    %v3294 = vadd.f32 %v3005, %v3293
    %v3295 = vpop.f32.mrb[0].mxu0
    %3296 = vdwg.mxu0
    %v3297 = vadd.f32 %v3043, %v3046
    %v3298 = vadd.f32 %v3297, %v3051
    %v3299 = vadd.f32 %v3298, %v3054
    %v3300 = vadd.f32 %v3299, %v3059
    %v3301 = vadd.f32 %v3300, %v3062
    %v3302 = vadd.f32 %v3301, %v3067
    %v3303 = vadd.f32 %v3302, %v3070
    %v3304 = vadd.f32 %v3303, %v3075
    %v3305 = vadd.f32 %v3304, %v3078
    %v3306 = vadd.f32 %v3305, %v3083
    %v3307 = vadd.f32 %v3306, %v3086
    %v3308 = vadd.f32 %v3307, %v3091
    %v3309 = vadd.f32 %v3308, %v3094
    %v3310 = vadd.f32 %v3309, %v3099
    %v3311 = vadd.f32 %v3310, %v3102
    %v3312 = vadd.f32 %v3311, %v3107
    %v3313 = vadd.f32 %v3312, %v3110
    %v3314 = vadd.f32 %v3313, %v3115
    %v3315 = vadd.f32 %v3314, %v3118
    %v3316 = vadd.f32 %v3315, %v3123
    %v3317 = vadd.f32 %v3316, %v3126
    %v3318 = vadd.f32 %v3317, %v3131
    %v3319 = vadd.f32 %v3318, %v3134
    %v3320 = vadd.f32 %v3319, %v3139
    %v3321 = vadd.f32 %v3320, %v3142
    %v3322 = vadd.f32 %v3321, %v3147
    %v3323 = vadd.f32 %v3322, %v3150
    %v3324 = vadd.f32 %v3323, %v3155
    %v3325 = vadd.f32 %v3324, %v3158
    %v3326 = vadd.f32 %v3325, %v3163
    %v3327 = vadd.f32 %v3326, %v3166
    %v3328 = vrot.slane %v3327, 4
    %v3329 = vadd.f32 %v3327, %v3328
    %v3330 = vrot.slane %v3329, 2
    %v3331 = vadd.f32 %v3329, %v3330
    %v3332 = vrot.slane %v3331, 1
    %v3333 = vadd.f32 %v3331, %v3332
    %v3334 = vadd.f32 %v3171, %v3174
    %v3335 = vadd.f32 %v3334, %v3179
    %v3336 = vadd.f32 %v3335, %v3182
    %v3337 = vadd.f32 %v3336, %v3187
    %v3338 = vadd.f32 %v3337, %v3190
    %v3339 = vadd.f32 %v3338, %v3195
    %v3340 = vadd.f32 %v3339, %v3198
    %v3341 = vadd.f32 %v3340, %v3203
    %v3342 = vadd.f32 %v3341, %v3206
    %v3343 = vadd.f32 %v3342, %v3211
    %v3344 = vadd.f32 %v3343, %v3214
    %v3345 = vadd.f32 %v3344, %v3219
    %v3346 = vadd.f32 %v3345, %v3222
    %v3347 = vadd.f32 %v3346, %v3227
    %v3348 = vadd.f32 %v3347, %v3230
    %v3349 = vadd.f32 %v3348, %v3235
    %v3350 = vadd.f32 %v3349, %v3238
    %v3351 = vadd.f32 %v3350, %v3243
    %v3352 = vadd.f32 %v3351, %v3246
    %v3353 = vadd.f32 %v3352, %v3251
    %v3354 = vadd.f32 %v3353, %v3254
    %v3355 = vadd.f32 %v3354, %v3259
    %v3356 = vadd.f32 %v3355, %v3262
    %v3357 = vadd.f32 %v3356, %v3267
    %v3358 = vadd.f32 %v3357, %v3270
    %v3359 = vadd.f32 %v3358, %v3275
    %v3360 = vadd.f32 %v3359, %v3278
    %v3361 = vadd.f32 %v3360, %v3283
    %v3362 = vadd.f32 %v3361, %v3286
    %v3363 = vadd.f32 %v3362, %v3291
    %v3364 = vadd.f32 %v3363, %v3294
    %v3365 = vrot.slane %v3364, 4
    %v3366 = vadd.f32 %v3364, %v3365
    %v3367 = vrot.slane %v3366, 2
    %v3368 = vadd.f32 %v3366, %v3367
    %v3369 = vrot.slane %v3368, 1
    %v3370 = vadd.f32 %v3368, %v3369
    %v3371 = vmul.f32 %v3043, %v3043
    %v3372 = vmul.f32 %v3046, %v3046
    %v3373 = vmul.f32 %v3051, %v3051
    %v3374 = vmul.f32 %v3054, %v3054
    %v3375 = vmul.f32 %v3059, %v3059
    %v3376 = vmul.f32 %v3062, %v3062
    %v3377 = vmul.f32 %v3067, %v3067
    %v3378 = vmul.f32 %v3070, %v3070
    %v3379 = vmul.f32 %v3075, %v3075
    %v3380 = vmul.f32 %v3078, %v3078
    %v3381 = vmul.f32 %v3083, %v3083
    %v3382 = vmul.f32 %v3086, %v3086
    %v3383 = vmul.f32 %v3091, %v3091
    %v3384 = vmul.f32 %v3094, %v3094
    %v3385 = vmul.f32 %v3099, %v3099
    %v3386 = vmul.f32 %v3102, %v3102
    %v3387 = vmul.f32 %v3107, %v3107
    %v3388 = vmul.f32 %v3110, %v3110
    %v3389 = vmul.f32 %v3115, %v3115
    %v3390 = vmul.f32 %v3118, %v3118
    %v3391 = vmul.f32 %v3123, %v3123
    %v3392 = vmul.f32 %v3126, %v3126
    %v3393 = vmul.f32 %v3131, %v3131
    %v3394 = vmul.f32 %v3134, %v3134
    %v3395 = vmul.f32 %v3139, %v3139
    %v3396 = vmul.f32 %v3142, %v3142
    %v3397 = vmul.f32 %v3147, %v3147
    %v3398 = vmul.f32 %v3150, %v3150
    %v3399 = vmul.f32 %v3155, %v3155
    %v3400 = vmul.f32 %v3158, %v3158
    %v3401 = vmul.f32 %v3163, %v3163
    %v3402 = vmul.f32 %v3166, %v3166
    %v3403 = vmul.f32 %v3171, %v3171
    %v3404 = vmul.f32 %v3174, %v3174
    %v3405 = vmul.f32 %v3179, %v3179
    %v3406 = vmul.f32 %v3182, %v3182
    %v3407 = vmul.f32 %v3187, %v3187
    %v3408 = vmul.f32 %v3190, %v3190
    %v3409 = vmul.f32 %v3195, %v3195
    %v3410 = vmul.f32 %v3198, %v3198
    %v3411 = vmul.f32 %v3203, %v3203
    %v3412 = vmul.f32 %v3206, %v3206
    %v3413 = vmul.f32 %v3211, %v3211
    %v3414 = vmul.f32 %v3214, %v3214
    %v3415 = vmul.f32 %v3219, %v3219
    %v3416 = vmul.f32 %v3222, %v3222
    %v3417 = vmul.f32 %v3227, %v3227
    %v3418 = vmul.f32 %v3230, %v3230
    %v3419 = vmul.f32 %v3235, %v3235
    %v3420 = vmul.f32 %v3238, %v3238
    %v3421 = vmul.f32 %v3243, %v3243
    %v3422 = vmul.f32 %v3246, %v3246
    %v3423 = vmul.f32 %v3251, %v3251
    %v3424 = vmul.f32 %v3254, %v3254
    %v3425 = vmul.f32 %v3259, %v3259
    %v3426 = vmul.f32 %v3262, %v3262
    %v3427 = vmul.f32 %v3267, %v3267
    %v3428 = vmul.f32 %v3270, %v3270
    %v3429 = vmul.f32 %v3275, %v3275
    %v3430 = vmul.f32 %v3278, %v3278
    %v3431 = vmul.f32 %v3283, %v3283
    %v3432 = vmul.f32 %v3286, %v3286
    %v3433 = vmul.f32 %v3291, %v3291
    %v3434 = vmul.f32 %v3294, %v3294
    %v3435 = vadd.f32 %v3371, %v3372
    %v3436 = vadd.f32 %v3435, %v3373
    %v3437 = vadd.f32 %v3436, %v3374
    %v3438 = vadd.f32 %v3437, %v3375
    %v3439 = vadd.f32 %v3438, %v3376
    %v3440 = vadd.f32 %v3439, %v3377
    %v3441 = vadd.f32 %v3440, %v3378
    %v3442 = vadd.f32 %v3441, %v3379
    %v3443 = vadd.f32 %v3442, %v3380
    %v3444 = vadd.f32 %v3443, %v3381
    %v3445 = vadd.f32 %v3444, %v3382
    %v3446 = vadd.f32 %v3445, %v3383
    %v3447 = vadd.f32 %v3446, %v3384
    %v3448 = vadd.f32 %v3447, %v3385
    %v3449 = vadd.f32 %v3448, %v3386
    %v3450 = vadd.f32 %v3449, %v3387
    %v3451 = vadd.f32 %v3450, %v3388
    %v3452 = vadd.f32 %v3451, %v3389
    %v3453 = vadd.f32 %v3452, %v3390
    %v3454 = vadd.f32 %v3453, %v3391
    %v3455 = vadd.f32 %v3454, %v3392
    %v3456 = vadd.f32 %v3455, %v3393
    %v3457 = vadd.f32 %v3456, %v3394
    %v3458 = vadd.f32 %v3457, %v3395
    %v3459 = vadd.f32 %v3458, %v3396
    %v3460 = vadd.f32 %v3459, %v3397
    %v3461 = vadd.f32 %v3460, %v3398
    %v3462 = vadd.f32 %v3461, %v3399
    %v3463 = vadd.f32 %v3462, %v3400
    %v3464 = vadd.f32 %v3463, %v3401
    %v3465 = vadd.f32 %v3464, %v3402
    %v3466 = vrot.slane %v3465, 4
    %v3467 = vadd.f32 %v3465, %v3466
    %v3468 = vrot.slane %v3467, 2
    %v3469 = vadd.f32 %v3467, %v3468
    %v3470 = vrot.slane %v3469, 1
    %v3471 = vadd.f32 %v3469, %v3470
    %v3472 = vadd.f32 %v3403, %v3404
    %v3473 = vadd.f32 %v3472, %v3405
    %v3474 = vadd.f32 %v3473, %v3406
    %v3475 = vadd.f32 %v3474, %v3407
    %v3476 = vadd.f32 %v3475, %v3408
    %v3477 = vadd.f32 %v3476, %v3409
    %v3478 = vadd.f32 %v3477, %v3410
    %v3479 = vadd.f32 %v3478, %v3411
    %v3480 = vadd.f32 %v3479, %v3412
    %v3481 = vadd.f32 %v3480, %v3413
    %v3482 = vadd.f32 %v3481, %v3414
    %v3483 = vadd.f32 %v3482, %v3415
    %v3484 = vadd.f32 %v3483, %v3416
    %v3485 = vadd.f32 %v3484, %v3417
    %v3486 = vadd.f32 %v3485, %v3418
    %v3487 = vadd.f32 %v3486, %v3419
    %v3488 = vadd.f32 %v3487, %v3420
    %v3489 = vadd.f32 %v3488, %v3421
    %v3490 = vadd.f32 %v3489, %v3422
    %v3491 = vadd.f32 %v3490, %v3423
    %v3492 = vadd.f32 %v3491, %v3424
    %v3493 = vadd.f32 %v3492, %v3425
    %v3494 = vadd.f32 %v3493, %v3426
    %v3495 = vadd.f32 %v3494, %v3427
    %v3496 = vadd.f32 %v3495, %v3428
    %v3497 = vadd.f32 %v3496, %v3429
    %v3498 = vadd.f32 %v3497, %v3430
    %v3499 = vadd.f32 %v3498, %v3431
    %v3500 = vadd.f32 %v3499, %v3432
    %v3501 = vadd.f32 %v3500, %v3433
    %v3502 = vadd.f32 %v3501, %v3434
    %v3503 = vrot.slane %v3502, 4
    %v3504 = vadd.f32 %v3502, %v3503
    %v3505 = vrot.slane %v3504, 2
    %v3506 = vadd.f32 %v3504, %v3505
    %v3507 = vrot.slane %v3506, 1
    %v3508 = vadd.f32 %v3506, %v3507
    %v3509 = vmul.f32 %v3333, 0.00390625
    %v3510 = vmul.f32 %v3370, 0.00390625
    %v3511 = vmul.f32 %v3471, 0.00390625
    %v3512 = vmul.f32 %v3508, 0.00390625
    %v3513 = vmul.f32 %v3509, %v3509
    %v3514 = vmul.f32 %v3510, %v3510
    %v3515 = vsub.f32 %v3511, %v3513
    %v3516 = vsub.f32 %v3512, %v3514
    %v3517 = vmax.f32 %v3515, 0.0
    %v3518 = vmax.f32 %v3516, 0.0
    %v3519 = vadd.f32 %v3517, 1e-05
    %v3520 = vadd.f32 %v3518, 1e-05
    %v3521 = vrsqrt.pop %v3519
    %v3522 = vrsqrt.pop %v3520
    %v3523 = vmul.f32 %v211, %v3521
    %v3524 = vmul.f32 %v211, %v3522
    %v3525 = vmul.f32 %v3509, %v3523
    %v3526 = vmul.f32 %v3510, %v3524
    %v3527 = vsub.f32 %v212, %v3525
    %v3528 = vsub.f32 %v212, %v3526
    %v3531 = vlaneseq
    %v3532 = vshrl.u32 %v3531, 7
    %v3533 = vsub.s32 0, %v3532
    %v3534 = vrot.slane %v3523, %v3533
    %v3535 = vlaneseq
    %v3536 = vshrl.u32 %v3535, 7
    %v3537 = vsub.s32 0, %v3536
    %v3538 = vrot.slane %v3524, %v3537
    %v3541 = vmul.f32 %v3043, %v3534
    %v3542 = vmul.f32 %v3046, %v3534
    %v3543 = vmul.f32 %v3051, %v3534
    %v3544 = vmul.f32 %v3054, %v3534
    %v3545 = vmul.f32 %v3059, %v3534
    %v3546 = vmul.f32 %v3062, %v3534
    %v3547 = vmul.f32 %v3067, %v3534
    %v3548 = vmul.f32 %v3070, %v3534
    %v3549 = vmul.f32 %v3075, %v3534
    %v3550 = vmul.f32 %v3078, %v3534
    %v3551 = vmul.f32 %v3083, %v3534
    %v3552 = vmul.f32 %v3086, %v3534
    %v3553 = vmul.f32 %v3091, %v3534
    %v3554 = vmul.f32 %v3094, %v3534
    %v3555 = vmul.f32 %v3099, %v3534
    %v3556 = vmul.f32 %v3102, %v3534
    %v3557 = vmul.f32 %v3107, %v3534
    %v3558 = vmul.f32 %v3110, %v3534
    %v3559 = vmul.f32 %v3115, %v3534
    %v3560 = vmul.f32 %v3118, %v3534
    %v3561 = vmul.f32 %v3123, %v3534
    %v3562 = vmul.f32 %v3126, %v3534
    %v3563 = vmul.f32 %v3131, %v3534
    %v3564 = vmul.f32 %v3134, %v3534
    %v3565 = vmul.f32 %v3139, %v3534
    %v3566 = vmul.f32 %v3142, %v3534
    %v3567 = vmul.f32 %v3147, %v3534
    %v3568 = vmul.f32 %v3150, %v3534
    %v3569 = vmul.f32 %v3155, %v3534
    %v3570 = vmul.f32 %v3158, %v3534
    %v3571 = vmul.f32 %v3163, %v3534
    %v3572 = vmul.f32 %v3166, %v3534
    %v3573 = vmul.f32 %v3171, %v3538
    %v3574 = vmul.f32 %v3174, %v3538
    %v3575 = vmul.f32 %v3179, %v3538
    %v3576 = vmul.f32 %v3182, %v3538
    %v3577 = vmul.f32 %v3187, %v3538
    %v3578 = vmul.f32 %v3190, %v3538
    %v3579 = vmul.f32 %v3195, %v3538
    %v3580 = vmul.f32 %v3198, %v3538
    %v3581 = vmul.f32 %v3203, %v3538
    %v3582 = vmul.f32 %v3206, %v3538
    %v3583 = vmul.f32 %v3211, %v3538
    %v3584 = vmul.f32 %v3214, %v3538
    %v3585 = vmul.f32 %v3219, %v3538
    %v3586 = vmul.f32 %v3222, %v3538
    %v3587 = vmul.f32 %v3227, %v3538
    %v3588 = vmul.f32 %v3230, %v3538
    %v3589 = vmul.f32 %v3235, %v3538
    %v3590 = vmul.f32 %v3238, %v3538
    %v3591 = vmul.f32 %v3243, %v3538
    %v3592 = vmul.f32 %v3246, %v3538
    %v3593 = vmul.f32 %v3251, %v3538
    %v3594 = vmul.f32 %v3254, %v3538
    %v3595 = vmul.f32 %v3259, %v3538
    %v3596 = vmul.f32 %v3262, %v3538
    %v3597 = vmul.f32 %v3267, %v3538
    %v3598 = vmul.f32 %v3270, %v3538
    %v3599 = vmul.f32 %v3275, %v3538
    %v3600 = vmul.f32 %v3278, %v3538
    %v3601 = vmul.f32 %v3283, %v3538
    %v3602 = vmul.f32 %v3286, %v3538
    %v3603 = vmul.f32 %v3291, %v3538
    %v3604 = vmul.f32 %v3294, %v3538
    %v3607 = vlaneseq
    %v3608 = vshrl.u32 %v3607, 7
    %v3609 = vsub.s32 0, %v3608
    %v3610 = vrot.slane %v3527, %v3609
    %v3611 = vlaneseq
    %v3612 = vshrl.u32 %v3611, 7
    %v3613 = vsub.s32 0, %v3612
    %v3614 = vrot.slane %v3528, %v3613
    %v3617 = vadd.f32 %v3541, %v3610
    %v3618 = vadd.f32 %v3542, %v3610
    %v3619 = vadd.f32 %v3543, %v3610
    %v3620 = vadd.f32 %v3544, %v3610
    %v3621 = vadd.f32 %v3545, %v3610
    %v3622 = vadd.f32 %v3546, %v3610
    %v3623 = vadd.f32 %v3547, %v3610
    %v3624 = vadd.f32 %v3548, %v3610
    %v3625 = vadd.f32 %v3549, %v3610
    %v3626 = vadd.f32 %v3550, %v3610
    %v3627 = vadd.f32 %v3551, %v3610
    %v3628 = vadd.f32 %v3552, %v3610
    %v3629 = vadd.f32 %v3553, %v3610
    %v3630 = vadd.f32 %v3554, %v3610
    %v3631 = vadd.f32 %v3555, %v3610
    %v3632 = vadd.f32 %v3556, %v3610
    %v3633 = vadd.f32 %v3557, %v3610
    %v3634 = vadd.f32 %v3558, %v3610
    %v3635 = vadd.f32 %v3559, %v3610
    %v3636 = vadd.f32 %v3560, %v3610
    %v3637 = vadd.f32 %v3561, %v3610
    %v3638 = vadd.f32 %v3562, %v3610
    %v3639 = vadd.f32 %v3563, %v3610
    %v3640 = vadd.f32 %v3564, %v3610
    %v3641 = vadd.f32 %v3565, %v3610
    %v3642 = vadd.f32 %v3566, %v3610
    %v3643 = vadd.f32 %v3567, %v3610
    %v3644 = vadd.f32 %v3568, %v3610
    %v3645 = vadd.f32 %v3569, %v3610
    %v3646 = vadd.f32 %v3570, %v3610
    %v3647 = vadd.f32 %v3571, %v3610
    %v3648 = vadd.f32 %v3572, %v3610
    %v3649 = vadd.f32 %v3573, %v3614
    %v3650 = vadd.f32 %v3574, %v3614
    %v3651 = vadd.f32 %v3575, %v3614
    %v3652 = vadd.f32 %v3576, %v3614
    %v3653 = vadd.f32 %v3577, %v3614
    %v3654 = vadd.f32 %v3578, %v3614
    %v3655 = vadd.f32 %v3579, %v3614
    %v3656 = vadd.f32 %v3580, %v3614
    %v3657 = vadd.f32 %v3581, %v3614
    %v3658 = vadd.f32 %v3582, %v3614
    %v3659 = vadd.f32 %v3583, %v3614
    %v3660 = vadd.f32 %v3584, %v3614
    %v3661 = vadd.f32 %v3585, %v3614
    %v3662 = vadd.f32 %v3586, %v3614
    %v3663 = vadd.f32 %v3587, %v3614
    %v3664 = vadd.f32 %v3588, %v3614
    %v3665 = vadd.f32 %v3589, %v3614
    %v3666 = vadd.f32 %v3590, %v3614
    %v3667 = vadd.f32 %v3591, %v3614
    %v3668 = vadd.f32 %v3592, %v3614
    %v3669 = vadd.f32 %v3593, %v3614
    %v3670 = vadd.f32 %v3594, %v3614
    %v3671 = vadd.f32 %v3595, %v3614
    %v3672 = vadd.f32 %v3596, %v3614
    %v3673 = vadd.f32 %v3597, %v3614
    %v3674 = vadd.f32 %v3598, %v3614
    %v3675 = vadd.f32 %v3599, %v3614
    %v3676 = vadd.f32 %v3600, %v3614
    %v3677 = vadd.f32 %v3601, %v3614
    %v3678 = vadd.f32 %v3602, %v3614
    %v3679 = vadd.f32 %v3603, %v3614
    %v3680 = vadd.f32 %v3604, %v3614
    %v3681 = vmax.f32 %v3617, 0.0
    %v3682 = vmax.f32 %v3618, 0.0
    %v3683 = vmax.f32 %v3619, 0.0
    %v3684 = vmax.f32 %v3620, 0.0
    %v3685 = vmax.f32 %v3621, 0.0
    %v3686 = vmax.f32 %v3622, 0.0
    %v3687 = vmax.f32 %v3623, 0.0
    %v3688 = vmax.f32 %v3624, 0.0
    %v3689 = vmax.f32 %v3625, 0.0
    %v3690 = vmax.f32 %v3626, 0.0
    %v3691 = vmax.f32 %v3627, 0.0
    %v3692 = vmax.f32 %v3628, 0.0
    %v3693 = vmax.f32 %v3629, 0.0
    %v3694 = vmax.f32 %v3630, 0.0
    %v3695 = vmax.f32 %v3631, 0.0
    %v3696 = vmax.f32 %v3632, 0.0
    %v3697 = vmax.f32 %v3633, 0.0
    %v3698 = vmax.f32 %v3634, 0.0
    %v3699 = vmax.f32 %v3635, 0.0
    %v3700 = vmax.f32 %v3636, 0.0
    %v3701 = vmax.f32 %v3637, 0.0
    %v3702 = vmax.f32 %v3638, 0.0
    %v3703 = vmax.f32 %v3639, 0.0
    %v3704 = vmax.f32 %v3640, 0.0
    %v3705 = vmax.f32 %v3641, 0.0
    %v3706 = vmax.f32 %v3642, 0.0
    %v3707 = vmax.f32 %v3643, 0.0
    %v3708 = vmax.f32 %v3644, 0.0
    %v3709 = vmax.f32 %v3645, 0.0
    %v3710 = vmax.f32 %v3646, 0.0
    %v3711 = vmax.f32 %v3647, 0.0
    %v3712 = vmax.f32 %v3648, 0.0
    %v3713 = vmax.f32 %v3649, 0.0
    %v3714 = vmax.f32 %v3650, 0.0
    %v3715 = vmax.f32 %v3651, 0.0
    %v3716 = vmax.f32 %v3652, 0.0
    %v3717 = vmax.f32 %v3653, 0.0
    %v3718 = vmax.f32 %v3654, 0.0
    %v3719 = vmax.f32 %v3655, 0.0
    %v3720 = vmax.f32 %v3656, 0.0
    %v3721 = vmax.f32 %v3657, 0.0
    %v3722 = vmax.f32 %v3658, 0.0
    %v3723 = vmax.f32 %v3659, 0.0
    %v3724 = vmax.f32 %v3660, 0.0
    %v3725 = vmax.f32 %v3661, 0.0
    %v3726 = vmax.f32 %v3662, 0.0
    %v3727 = vmax.f32 %v3663, 0.0
    %v3728 = vmax.f32 %v3664, 0.0
    %v3729 = vmax.f32 %v3665, 0.0
    %v3730 = vmax.f32 %v3666, 0.0
    %v3731 = vmax.f32 %v3667, 0.0
    %v3732 = vmax.f32 %v3668, 0.0
    %v3733 = vmax.f32 %v3669, 0.0
    %v3734 = vmax.f32 %v3670, 0.0
    %v3735 = vmax.f32 %v3671, 0.0
    %v3736 = vmax.f32 %v3672, 0.0
    %v3737 = vmax.f32 %v3673, 0.0
    %v3738 = vmax.f32 %v3674, 0.0
    %v3739 = vmax.f32 %v3675, 0.0
    %v3740 = vmax.f32 %v3676, 0.0
    %v3741 = vmax.f32 %v3677, 0.0
    %v3742 = vmax.f32 %v3678, 0.0
    %v3743 = vmax.f32 %v3679, 0.0
    %v3744 = vmax.f32 %v3680, 0.0
    %v3745 = vpack.c.bf16 %v3682, %v3681
    %v3746 = vpack.c.bf16 %v3684, %v3683
    %v3747 = vpack.c.bf16 %v3686, %v3685
    %v3748 = vpack.c.bf16 %v3688, %v3687
    %v3749 = vpack.c.bf16 %v3690, %v3689
    %v3750 = vpack.c.bf16 %v3692, %v3691
    %v3751 = vpack.c.bf16 %v3694, %v3693
    %v3752 = vpack.c.bf16 %v3696, %v3695
    %v3753 = vpack.c.bf16 %v3698, %v3697
    %v3754 = vpack.c.bf16 %v3700, %v3699
    %v3755 = vpack.c.bf16 %v3702, %v3701
    %v3756 = vpack.c.bf16 %v3704, %v3703
    %v3757 = vpack.c.bf16 %v3706, %v3705
    %v3758 = vpack.c.bf16 %v3708, %v3707
    %v3759 = vpack.c.bf16 %v3710, %v3709
    %v3760 = vpack.c.bf16 %v3712, %v3711
    %v3761 = vpack.c.bf16 %v3714, %v3713
    %v3762 = vpack.c.bf16 %v3716, %v3715
    %v3763 = vpack.c.bf16 %v3718, %v3717
    %v3764 = vpack.c.bf16 %v3720, %v3719
    %v3765 = vpack.c.bf16 %v3722, %v3721
    %v3766 = vpack.c.bf16 %v3724, %v3723
    %v3767 = vpack.c.bf16 %v3726, %v3725
    %v3768 = vpack.c.bf16 %v3728, %v3727
    %v3769 = vpack.c.bf16 %v3730, %v3729
    %v3770 = vpack.c.bf16 %v3732, %v3731
    %v3771 = vpack.c.bf16 %v3734, %v3733
    %v3772 = vpack.c.bf16 %v3736, %v3735
    %v3773 = vpack.c.bf16 %v3738, %v3737
    %v3774 = vpack.c.bf16 %v3740, %v3739
    %v3775 = vpack.c.bf16 %v3742, %v3741
    %v3776 = vpack.c.bf16 %v3744, %v3743
    %v3778 = vshrl.u32 %v3745, 16
    %v3781 = vshrl.u32 %v3746, 16
    %v3784 = vshrl.u32 %v3747, 16
    %v3787 = vshrl.u32 %v3748, 16
    %v3790 = vshrl.u32 %v3749, 16
    %v3793 = vshrl.u32 %v3750, 16
    %v3796 = vshrl.u32 %v3751, 16
    %v3799 = vshrl.u32 %v3752, 16
    %v3802 = vshrl.u32 %v3753, 16
    %v3805 = vshrl.u32 %v3754, 16
    %v3808 = vshrl.u32 %v3755, 16
    %v3811 = vshrl.u32 %v3756, 16
    %v3814 = vshrl.u32 %v3757, 16
    %v3817 = vshrl.u32 %v3758, 16
    %v3820 = vshrl.u32 %v3759, 16
    %v3823 = vshrl.u32 %v3760, 16
    %v3826 = vshrl.u32 %v3761, 16
    %v3829 = vshrl.u32 %v3762, 16
    %v3832 = vshrl.u32 %v3763, 16
    %v3835 = vshrl.u32 %v3764, 16
    %v3838 = vshrl.u32 %v3765, 16
    %v3841 = vshrl.u32 %v3766, 16
    %v3844 = vshrl.u32 %v3767, 16
    %v3847 = vshrl.u32 %v3768, 16
    %v3850 = vshrl.u32 %v3769, 16
    %v3853 = vshrl.u32 %v3770, 16
    %v3856 = vshrl.u32 %v3771, 16
    %v3859 = vshrl.u32 %v3772, 16
    %v3862 = vshrl.u32 %v3773, 16
    %v3865 = vshrl.u32 %v3774, 16
    %v3868 = vshrl.u32 %v3775, 16
    %v3871 = vshrl.u32 %v3776, 16
    %v3905 = vrot.slane %v3778, 7
    %v3906 = vshll.u32 %v3745, 16
    %v3908 = vor.u32 %v3905, %v3906
    %v3909 = vrot.slane %v3781, 7
    %v3910 = vshll.u32 %v3746, 16
    %v3912 = vor.u32 %v3909, %v3910
    %v3913 = vrot.slane %v3784, 7
    %v3914 = vshll.u32 %v3747, 16
    %v3916 = vor.u32 %v3913, %v3914
    %v3917 = vrot.slane %v3787, 7
    %v3918 = vshll.u32 %v3748, 16
    %v3920 = vor.u32 %v3917, %v3918
    %v3921 = vrot.slane %v3790, 7
    %v3922 = vshll.u32 %v3749, 16
    %v3924 = vor.u32 %v3921, %v3922
    %v3925 = vrot.slane %v3793, 7
    %v3926 = vshll.u32 %v3750, 16
    %v3928 = vor.u32 %v3925, %v3926
    %v3929 = vrot.slane %v3796, 7
    %v3930 = vshll.u32 %v3751, 16
    %v3932 = vor.u32 %v3929, %v3930
    %v3933 = vrot.slane %v3799, 7
    %v3934 = vshll.u32 %v3752, 16
    %v3936 = vor.u32 %v3933, %v3934
    %v3937 = vrot.slane %v3802, 7
    %v3938 = vshll.u32 %v3753, 16
    %v3940 = vor.u32 %v3937, %v3938
    %v3941 = vrot.slane %v3805, 7
    %v3942 = vshll.u32 %v3754, 16
    %v3944 = vor.u32 %v3941, %v3942
    %v3945 = vrot.slane %v3808, 7
    %v3946 = vshll.u32 %v3755, 16
    %v3948 = vor.u32 %v3945, %v3946
    %v3949 = vrot.slane %v3811, 7
    %v3950 = vshll.u32 %v3756, 16
    %v3952 = vor.u32 %v3949, %v3950
    %v3953 = vrot.slane %v3814, 7
    %v3954 = vshll.u32 %v3757, 16
    %v3956 = vor.u32 %v3953, %v3954
    %v3957 = vrot.slane %v3817, 7
    %v3958 = vshll.u32 %v3758, 16
    %v3960 = vor.u32 %v3957, %v3958
    %v3961 = vrot.slane %v3820, 7
    %v3962 = vshll.u32 %v3759, 16
    %v3964 = vor.u32 %v3961, %v3962
    %v3965 = vrot.slane %v3823, 7
    %v3966 = vshll.u32 %v3760, 16
    %v3968 = vor.u32 %v3965, %v3966
    %v3969 = vrot.slane %v3826, 7
    %v3970 = vshll.u32 %v3761, 16
    %v3972 = vor.u32 %v3969, %v3970
    %v3973 = vrot.slane %v3829, 7
    %v3974 = vshll.u32 %v3762, 16
    %v3976 = vor.u32 %v3973, %v3974
    %v3977 = vrot.slane %v3832, 7
    %v3978 = vshll.u32 %v3763, 16
    %v3980 = vor.u32 %v3977, %v3978
    %v3981 = vrot.slane %v3835, 7
    %v3982 = vshll.u32 %v3764, 16
    %v3984 = vor.u32 %v3981, %v3982
    %v3985 = vrot.slane %v3838, 7
    %v3986 = vshll.u32 %v3765, 16
    %v3988 = vor.u32 %v3985, %v3986
    %v3989 = vrot.slane %v3841, 7
    %v3990 = vshll.u32 %v3766, 16
    %v3992 = vor.u32 %v3989, %v3990
    %v3993 = vrot.slane %v3844, 7
    %v3994 = vshll.u32 %v3767, 16
    %v3996 = vor.u32 %v3993, %v3994
    %v3997 = vrot.slane %v3847, 7
    %v3998 = vshll.u32 %v3768, 16
    %v4000 = vor.u32 %v3997, %v3998
    %v4001 = vrot.slane %v3850, 7
    %v4002 = vshll.u32 %v3769, 16
    %v4004 = vor.u32 %v4001, %v4002
    %v4005 = vrot.slane %v3853, 7
    %v4006 = vshll.u32 %v3770, 16
    %v4008 = vor.u32 %v4005, %v4006
    %v4009 = vrot.slane %v3856, 7
    %v4010 = vshll.u32 %v3771, 16
    %v4012 = vor.u32 %v4009, %v4010
    %v4013 = vrot.slane %v3859, 7
    %v4014 = vshll.u32 %v3772, 16
    %v4016 = vor.u32 %v4013, %v4014
    %v4017 = vrot.slane %v3862, 7
    %v4018 = vshll.u32 %v3773, 16
    %v4020 = vor.u32 %v4017, %v4018
    %v4021 = vrot.slane %v3865, 7
    %v4022 = vshll.u32 %v3774, 16
    %v4024 = vor.u32 %v4021, %v4022
    %v4025 = vrot.slane %v3868, 7
    %v4026 = vshll.u32 %v3775, 16
    %v4028 = vor.u32 %v4025, %v4026
    %v4029 = vrot.slane %v3871, 7
    %v4030 = vshll.u32 %v3776, 16
    %v4032 = vor.u32 %v4029, %v4030
    %v4097 = vrot.slane %v3906, 7
    %v4098 = vrot.slane %v3910, 7
    %v4099 = vrot.slane %v3914, 7
    %v4100 = vrot.slane %v3918, 7
    %v4101 = vrot.slane %v3922, 7
    %v4102 = vrot.slane %v3926, 7
    %v4103 = vrot.slane %v3930, 7
    %v4104 = vrot.slane %v3934, 7
    %v4105 = vrot.slane %v3938, 7
    %v4106 = vrot.slane %v3942, 7
    %v4107 = vrot.slane %v3946, 7
    %v4108 = vrot.slane %v3950, 7
    %v4109 = vrot.slane %v3954, 7
    %v4110 = vrot.slane %v3958, 7
    %v4111 = vrot.slane %v3962, 7
    %v4112 = vrot.slane %v3966, 7
    %v4113 = vrot.slane %v3970, 7
    %v4114 = vrot.slane %v3974, 7
    %v4115 = vrot.slane %v3978, 7
    %v4116 = vrot.slane %v3982, 7
    %v4117 = vrot.slane %v3986, 7
    %v4118 = vrot.slane %v3990, 7
    %v4119 = vrot.slane %v3994, 7
    %v4120 = vrot.slane %v3998, 7
    %v4121 = vrot.slane %v4002, 7
    %v4122 = vrot.slane %v4006, 7
    %v4123 = vrot.slane %v4010, 7
    %v4124 = vrot.slane %v4014, 7
    %v4125 = vrot.slane %v4018, 7
    %v4126 = vrot.slane %v4022, 7
    %v4127 = vrot.slane %v4026, 7
    %v4128 = vrot.slane %v4030, 7
    %v4161 = vsel %vm601, %v3778, %v3908
    %v4162 = vsel %vm601, %v3781, %v3912
    %v4163 = vsel %vm601, %v3784, %v3916
    %v4164 = vsel %vm601, %v3787, %v3920
    %v4165 = vsel %vm601, %v3790, %v3924
    %v4166 = vsel %vm601, %v3793, %v3928
    %v4167 = vsel %vm601, %v3796, %v3932
    %v4168 = vsel %vm601, %v3799, %v3936
    %v4169 = vsel %vm601, %v3802, %v3940
    %v4170 = vsel %vm601, %v3805, %v3944
    %v4171 = vsel %vm601, %v3808, %v3948
    %v4172 = vsel %vm601, %v3811, %v3952
    %v4173 = vsel %vm601, %v3814, %v3956
    %v4174 = vsel %vm601, %v3817, %v3960
    %v4175 = vsel %vm601, %v3820, %v3964
    %v4176 = vsel %vm601, %v3823, %v3968
    %v4177 = vsel %vm601, %v3826, %v3972
    %v4178 = vsel %vm601, %v3829, %v3976
    %v4179 = vsel %vm601, %v3832, %v3980
    %v4180 = vsel %vm601, %v3835, %v3984
    %v4181 = vsel %vm601, %v3838, %v3988
    %v4182 = vsel %vm601, %v3841, %v3992
    %v4183 = vsel %vm601, %v3844, %v3996
    %v4184 = vsel %vm601, %v3847, %v4000
    %v4185 = vsel %vm601, %v3850, %v4004
    %v4186 = vsel %vm601, %v3853, %v4008
    %v4187 = vsel %vm601, %v3856, %v4012
    %v4188 = vsel %vm601, %v3859, %v4016
    %v4189 = vsel %vm601, %v3862, %v4020
    %v4190 = vsel %vm601, %v3865, %v4024
    %v4191 = vsel %vm601, %v3868, %v4028
    %v4192 = vsel %vm601, %v3871, %v4032
    %v4193 = vsel %vm601, %v3905, %v4097
    %v4194 = vsel %vm601, %v3909, %v4098
    %v4195 = vsel %vm601, %v3913, %v4099
    %v4196 = vsel %vm601, %v3917, %v4100
    %v4197 = vsel %vm601, %v3921, %v4101
    %v4198 = vsel %vm601, %v3925, %v4102
    %v4199 = vsel %vm601, %v3929, %v4103
    %v4200 = vsel %vm601, %v3933, %v4104
    %v4201 = vsel %vm601, %v3937, %v4105
    %v4202 = vsel %vm601, %v3941, %v4106
    %v4203 = vsel %vm601, %v3945, %v4107
    %v4204 = vsel %vm601, %v3949, %v4108
    %v4205 = vsel %vm601, %v3953, %v4109
    %v4206 = vsel %vm601, %v3957, %v4110
    %v4207 = vsel %vm601, %v3961, %v4111
    %v4208 = vsel %vm601, %v3965, %v4112
    %v4209 = vsel %vm601, %v3969, %v4113
    %v4210 = vsel %vm601, %v3973, %v4114
    %v4211 = vsel %vm601, %v3977, %v4115
    %v4212 = vsel %vm601, %v3981, %v4116
    %v4213 = vsel %vm601, %v3985, %v4117
    %v4214 = vsel %vm601, %v3989, %v4118
    %v4215 = vsel %vm601, %v3993, %v4119
    %v4216 = vsel %vm601, %v3997, %v4120
    %v4217 = vsel %vm601, %v4001, %v4121
    %v4218 = vsel %vm601, %v4005, %v4122
    %v4219 = vsel %vm601, %v4009, %v4123
    %v4220 = vsel %vm601, %v4013, %v4124
    %v4221 = vsel %vm601, %v4017, %v4125
    %v4222 = vsel %vm601, %v4021, %v4126
    %v4223 = vsel %vm601, %v4025, %v4127
    %v4224 = vsel %vm601, %v4029, %v4128
    %v4226 = vshrl.u32 %v4161, 16
    %v4228 = vshll.u32 %v4161, 16
    %v4230 = vrot.slane %v4228, 1
    %v4231 = vor.u32 %v4226, %v4230
    %v4233 = vshll.u32 %v4193, 16
    %v4235 = vrot.slane %v4233, 1
    %v4236 = vsel %vm666, %v4231, %v4235
    %v4238 = vshrl.u32 %v4162, 16
    %v4240 = vshll.u32 %v4162, 16
    %v4242 = vrot.slane %v4240, 1
    %v4243 = vor.u32 %v4238, %v4242
    %v4245 = vshll.u32 %v4194, 16
    %v4247 = vrot.slane %v4245, 1
    %v4248 = vsel %vm666, %v4243, %v4247
    %v4250 = vshrl.u32 %v4163, 16
    %v4252 = vshll.u32 %v4163, 16
    %v4254 = vrot.slane %v4252, 1
    %v4255 = vor.u32 %v4250, %v4254
    %v4257 = vshll.u32 %v4195, 16
    %v4259 = vrot.slane %v4257, 1
    %v4260 = vsel %vm666, %v4255, %v4259
    %v4262 = vshrl.u32 %v4164, 16
    %v4264 = vshll.u32 %v4164, 16
    %v4266 = vrot.slane %v4264, 1
    %v4267 = vor.u32 %v4262, %v4266
    %v4269 = vshll.u32 %v4196, 16
    %v4271 = vrot.slane %v4269, 1
    %v4272 = vsel %vm666, %v4267, %v4271
    %v4274 = vshrl.u32 %v4165, 16
    %v4276 = vshll.u32 %v4165, 16
    %v4278 = vrot.slane %v4276, 1
    %v4279 = vor.u32 %v4274, %v4278
    %v4281 = vshll.u32 %v4197, 16
    %v4283 = vrot.slane %v4281, 1
    %v4284 = vsel %vm666, %v4279, %v4283
    %v4286 = vshrl.u32 %v4166, 16
    %v4288 = vshll.u32 %v4166, 16
    %v4290 = vrot.slane %v4288, 1
    %v4291 = vor.u32 %v4286, %v4290
    %v4293 = vshll.u32 %v4198, 16
    %v4295 = vrot.slane %v4293, 1
    %v4296 = vsel %vm666, %v4291, %v4295
    %v4298 = vshrl.u32 %v4167, 16
    %v4300 = vshll.u32 %v4167, 16
    %v4302 = vrot.slane %v4300, 1
    %v4303 = vor.u32 %v4298, %v4302
    %v4305 = vshll.u32 %v4199, 16
    %v4307 = vrot.slane %v4305, 1
    %v4308 = vsel %vm666, %v4303, %v4307
    %v4310 = vshrl.u32 %v4168, 16
    %v4312 = vshll.u32 %v4168, 16
    %v4314 = vrot.slane %v4312, 1
    %v4315 = vor.u32 %v4310, %v4314
    %v4317 = vshll.u32 %v4200, 16
    %v4319 = vrot.slane %v4317, 1
    %v4320 = vsel %vm666, %v4315, %v4319
    %v4322 = vshrl.u32 %v4169, 16
    %v4324 = vshll.u32 %v4169, 16
    %v4326 = vrot.slane %v4324, 1
    %v4327 = vor.u32 %v4322, %v4326
    %v4329 = vshll.u32 %v4201, 16
    %v4331 = vrot.slane %v4329, 1
    %v4332 = vsel %vm666, %v4327, %v4331
    %v4334 = vshrl.u32 %v4170, 16
    %v4336 = vshll.u32 %v4170, 16
    %v4338 = vrot.slane %v4336, 1
    %v4339 = vor.u32 %v4334, %v4338
    %v4341 = vshll.u32 %v4202, 16
    %v4343 = vrot.slane %v4341, 1
    %v4344 = vsel %vm666, %v4339, %v4343
    %v4346 = vshrl.u32 %v4171, 16
    %v4348 = vshll.u32 %v4171, 16
    %v4350 = vrot.slane %v4348, 1
    %v4351 = vor.u32 %v4346, %v4350
    %v4353 = vshll.u32 %v4203, 16
    %v4355 = vrot.slane %v4353, 1
    %v4356 = vsel %vm666, %v4351, %v4355
    %v4358 = vshrl.u32 %v4172, 16
    %v4360 = vshll.u32 %v4172, 16
    %v4362 = vrot.slane %v4360, 1
    %v4363 = vor.u32 %v4358, %v4362
    %v4365 = vshll.u32 %v4204, 16
    %v4367 = vrot.slane %v4365, 1
    %v4368 = vsel %vm666, %v4363, %v4367
    %v4370 = vshrl.u32 %v4173, 16
    %v4372 = vshll.u32 %v4173, 16
    %v4374 = vrot.slane %v4372, 1
    %v4375 = vor.u32 %v4370, %v4374
    %v4377 = vshll.u32 %v4205, 16
    %v4379 = vrot.slane %v4377, 1
    %v4380 = vsel %vm666, %v4375, %v4379
    %v4382 = vshrl.u32 %v4174, 16
    %v4384 = vshll.u32 %v4174, 16
    %v4386 = vrot.slane %v4384, 1
    %v4387 = vor.u32 %v4382, %v4386
    %v4389 = vshll.u32 %v4206, 16
    %v4391 = vrot.slane %v4389, 1
    %v4392 = vsel %vm666, %v4387, %v4391
    %v4394 = vshrl.u32 %v4175, 16
    %v4396 = vshll.u32 %v4175, 16
    %v4398 = vrot.slane %v4396, 1
    %v4399 = vor.u32 %v4394, %v4398
    %v4401 = vshll.u32 %v4207, 16
    %v4403 = vrot.slane %v4401, 1
    %v4404 = vsel %vm666, %v4399, %v4403
    %v4406 = vshrl.u32 %v4176, 16
    %v4408 = vshll.u32 %v4176, 16
    %v4410 = vrot.slane %v4408, 1
    %v4411 = vor.u32 %v4406, %v4410
    %v4413 = vshll.u32 %v4208, 16
    %v4415 = vrot.slane %v4413, 1
    %v4416 = vsel %vm666, %v4411, %v4415
    %v4418 = vshrl.u32 %v4177, 16
    %v4420 = vshll.u32 %v4177, 16
    %v4422 = vrot.slane %v4420, 1
    %v4423 = vor.u32 %v4418, %v4422
    %v4425 = vshll.u32 %v4209, 16
    %v4427 = vrot.slane %v4425, 1
    %v4428 = vsel %vm666, %v4423, %v4427
    %v4430 = vshrl.u32 %v4178, 16
    %v4432 = vshll.u32 %v4178, 16
    %v4434 = vrot.slane %v4432, 1
    %v4435 = vor.u32 %v4430, %v4434
    %v4437 = vshll.u32 %v4210, 16
    %v4439 = vrot.slane %v4437, 1
    %v4440 = vsel %vm666, %v4435, %v4439
    %v4442 = vshrl.u32 %v4179, 16
    %v4444 = vshll.u32 %v4179, 16
    %v4446 = vrot.slane %v4444, 1
    %v4447 = vor.u32 %v4442, %v4446
    %v4449 = vshll.u32 %v4211, 16
    %v4451 = vrot.slane %v4449, 1
    %v4452 = vsel %vm666, %v4447, %v4451
    %v4454 = vshrl.u32 %v4180, 16
    %v4456 = vshll.u32 %v4180, 16
    %v4458 = vrot.slane %v4456, 1
    %v4459 = vor.u32 %v4454, %v4458
    %v4461 = vshll.u32 %v4212, 16
    %v4463 = vrot.slane %v4461, 1
    %v4464 = vsel %vm666, %v4459, %v4463
    %v4466 = vshrl.u32 %v4181, 16
    %v4468 = vshll.u32 %v4181, 16
    %v4470 = vrot.slane %v4468, 1
    %v4471 = vor.u32 %v4466, %v4470
    %v4473 = vshll.u32 %v4213, 16
    %v4475 = vrot.slane %v4473, 1
    %v4476 = vsel %vm666, %v4471, %v4475
    %v4478 = vshrl.u32 %v4182, 16
    %v4480 = vshll.u32 %v4182, 16
    %v4482 = vrot.slane %v4480, 1
    %v4483 = vor.u32 %v4478, %v4482
    %v4485 = vshll.u32 %v4214, 16
    %v4487 = vrot.slane %v4485, 1
    %v4488 = vsel %vm666, %v4483, %v4487
    %v4490 = vshrl.u32 %v4183, 16
    %v4492 = vshll.u32 %v4183, 16
    %v4494 = vrot.slane %v4492, 1
    %v4495 = vor.u32 %v4490, %v4494
    %v4497 = vshll.u32 %v4215, 16
    %v4499 = vrot.slane %v4497, 1
    %v4500 = vsel %vm666, %v4495, %v4499
    %v4502 = vshrl.u32 %v4184, 16
    %v4504 = vshll.u32 %v4184, 16
    %v4506 = vrot.slane %v4504, 1
    %v4507 = vor.u32 %v4502, %v4506
    %v4509 = vshll.u32 %v4216, 16
    %v4511 = vrot.slane %v4509, 1
    %v4512 = vsel %vm666, %v4507, %v4511
    %v4514 = vshrl.u32 %v4185, 16
    %v4516 = vshll.u32 %v4185, 16
    %v4518 = vrot.slane %v4516, 1
    %v4519 = vor.u32 %v4514, %v4518
    %v4521 = vshll.u32 %v4217, 16
    %v4523 = vrot.slane %v4521, 1
    %v4524 = vsel %vm666, %v4519, %v4523
    %v4526 = vshrl.u32 %v4186, 16
    %v4528 = vshll.u32 %v4186, 16
    %v4530 = vrot.slane %v4528, 1
    %v4531 = vor.u32 %v4526, %v4530
    %v4533 = vshll.u32 %v4218, 16
    %v4535 = vrot.slane %v4533, 1
    %v4536 = vsel %vm666, %v4531, %v4535
    %v4538 = vshrl.u32 %v4187, 16
    %v4540 = vshll.u32 %v4187, 16
    %v4542 = vrot.slane %v4540, 1
    %v4543 = vor.u32 %v4538, %v4542
    %v4545 = vshll.u32 %v4219, 16
    %v4547 = vrot.slane %v4545, 1
    %v4548 = vsel %vm666, %v4543, %v4547
    %v4550 = vshrl.u32 %v4188, 16
    %v4552 = vshll.u32 %v4188, 16
    %v4554 = vrot.slane %v4552, 1
    %v4555 = vor.u32 %v4550, %v4554
    %v4557 = vshll.u32 %v4220, 16
    %v4559 = vrot.slane %v4557, 1
    %v4560 = vsel %vm666, %v4555, %v4559
    %v4562 = vshrl.u32 %v4189, 16
    %v4564 = vshll.u32 %v4189, 16
    %v4566 = vrot.slane %v4564, 1
    %v4567 = vor.u32 %v4562, %v4566
    %v4569 = vshll.u32 %v4221, 16
    %v4571 = vrot.slane %v4569, 1
    %v4572 = vsel %vm666, %v4567, %v4571
    %v4574 = vshrl.u32 %v4190, 16
    %v4576 = vshll.u32 %v4190, 16
    %v4578 = vrot.slane %v4576, 1
    %v4579 = vor.u32 %v4574, %v4578
    %v4581 = vshll.u32 %v4222, 16
    %v4583 = vrot.slane %v4581, 1
    %v4584 = vsel %vm666, %v4579, %v4583
    %v4586 = vshrl.u32 %v4191, 16
    %v4588 = vshll.u32 %v4191, 16
    %v4590 = vrot.slane %v4588, 1
    %v4591 = vor.u32 %v4586, %v4590
    %v4593 = vshll.u32 %v4223, 16
    %v4595 = vrot.slane %v4593, 1
    %v4596 = vsel %vm666, %v4591, %v4595
    %v4598 = vshrl.u32 %v4192, 16
    %v4600 = vshll.u32 %v4192, 16
    %v4602 = vrot.slane %v4600, 1
    %v4603 = vor.u32 %v4598, %v4602
    %v4605 = vshll.u32 %v4224, 16
    %v4607 = vrot.slane %v4605, 1
    %v4608 = vsel %vm666, %v4603, %v4607
    %v4705 = vrot.slane %v4161, 1
    %v4706 = vrot.slane %v4193, 1
    %v4707 = vsel %vm1147, %v4705, %v4706
    %v4708 = vrot.slane %v4162, 1
    %v4709 = vrot.slane %v4194, 1
    %v4710 = vsel %vm1147, %v4708, %v4709
    %v4711 = vrot.slane %v4163, 1
    %v4712 = vrot.slane %v4195, 1
    %v4713 = vsel %vm1147, %v4711, %v4712
    %v4714 = vrot.slane %v4164, 1
    %v4715 = vrot.slane %v4196, 1
    %v4716 = vsel %vm1147, %v4714, %v4715
    %v4717 = vrot.slane %v4165, 1
    %v4718 = vrot.slane %v4197, 1
    %v4719 = vsel %vm1147, %v4717, %v4718
    %v4720 = vrot.slane %v4166, 1
    %v4721 = vrot.slane %v4198, 1
    %v4722 = vsel %vm1147, %v4720, %v4721
    %v4723 = vrot.slane %v4167, 1
    %v4724 = vrot.slane %v4199, 1
    %v4725 = vsel %vm1147, %v4723, %v4724
    %v4726 = vrot.slane %v4168, 1
    %v4727 = vrot.slane %v4200, 1
    %v4728 = vsel %vm1147, %v4726, %v4727
    %v4729 = vrot.slane %v4169, 1
    %v4730 = vrot.slane %v4201, 1
    %v4731 = vsel %vm1147, %v4729, %v4730
    %v4732 = vrot.slane %v4170, 1
    %v4733 = vrot.slane %v4202, 1
    %v4734 = vsel %vm1147, %v4732, %v4733
    %v4735 = vrot.slane %v4171, 1
    %v4736 = vrot.slane %v4203, 1
    %v4737 = vsel %vm1147, %v4735, %v4736
    %v4738 = vrot.slane %v4172, 1
    %v4739 = vrot.slane %v4204, 1
    %v4740 = vsel %vm1147, %v4738, %v4739
    %v4741 = vrot.slane %v4173, 1
    %v4742 = vrot.slane %v4205, 1
    %v4743 = vsel %vm1147, %v4741, %v4742
    %v4744 = vrot.slane %v4174, 1
    %v4745 = vrot.slane %v4206, 1
    %v4746 = vsel %vm1147, %v4744, %v4745
    %v4747 = vrot.slane %v4175, 1
    %v4748 = vrot.slane %v4207, 1
    %v4749 = vsel %vm1147, %v4747, %v4748
    %v4750 = vrot.slane %v4176, 1
    %v4751 = vrot.slane %v4208, 1
    %v4752 = vsel %vm1147, %v4750, %v4751
    %v4753 = vrot.slane %v4177, 1
    %v4754 = vrot.slane %v4209, 1
    %v4755 = vsel %vm1147, %v4753, %v4754
    %v4756 = vrot.slane %v4178, 1
    %v4757 = vrot.slane %v4210, 1
    %v4758 = vsel %vm1147, %v4756, %v4757
    %v4759 = vrot.slane %v4179, 1
    %v4760 = vrot.slane %v4211, 1
    %v4761 = vsel %vm1147, %v4759, %v4760
    %v4762 = vrot.slane %v4180, 1
    %v4763 = vrot.slane %v4212, 1
    %v4764 = vsel %vm1147, %v4762, %v4763
    %v4765 = vrot.slane %v4181, 1
    %v4766 = vrot.slane %v4213, 1
    %v4767 = vsel %vm1147, %v4765, %v4766
    %v4768 = vrot.slane %v4182, 1
    %v4769 = vrot.slane %v4214, 1
    %v4770 = vsel %vm1147, %v4768, %v4769
    %v4771 = vrot.slane %v4183, 1
    %v4772 = vrot.slane %v4215, 1
    %v4773 = vsel %vm1147, %v4771, %v4772
    %v4774 = vrot.slane %v4184, 1
    %v4775 = vrot.slane %v4216, 1
    %v4776 = vsel %vm1147, %v4774, %v4775
    %v4777 = vrot.slane %v4185, 1
    %v4778 = vrot.slane %v4217, 1
    %v4779 = vsel %vm1147, %v4777, %v4778
    %v4780 = vrot.slane %v4186, 1
    %v4781 = vrot.slane %v4218, 1
    %v4782 = vsel %vm1147, %v4780, %v4781
    %v4783 = vrot.slane %v4187, 1
    %v4784 = vrot.slane %v4219, 1
    %v4785 = vsel %vm1147, %v4783, %v4784
    %v4786 = vrot.slane %v4188, 1
    %v4787 = vrot.slane %v4220, 1
    %v4788 = vsel %vm1147, %v4786, %v4787
    %v4789 = vrot.slane %v4189, 1
    %v4790 = vrot.slane %v4221, 1
    %v4791 = vsel %vm1147, %v4789, %v4790
    %v4792 = vrot.slane %v4190, 1
    %v4793 = vrot.slane %v4222, 1
    %v4794 = vsel %vm1147, %v4792, %v4793
    %v4795 = vrot.slane %v4191, 1
    %v4796 = vrot.slane %v4223, 1
    %v4797 = vsel %vm1147, %v4795, %v4796
    %v4798 = vrot.slane %v4192, 1
    %v4799 = vrot.slane %v4224, 1
    %v4800 = vsel %vm1147, %v4798, %v4799
    %v4833 = vld [vmem:[#allocation10] sm:$0xf]
    %v4834 = vld [vmem:[#allocation10 + $0x4] sm:$0xf]
    %v4835 = vld [vmem:[#allocation10 + $0x8] sm:$0xf]
    %v4836 = vld [vmem:[#allocation10 + $0xc] sm:$0xf]
    %v4837 = vld [vmem:[#allocation10 + $0x10] sm:$0xf]
    %v4838 = vld [vmem:[#allocation10 + $0x14] sm:$0xf]
    %v4839 = vld [vmem:[#allocation10 + $0x18] sm:$0xf]
    %v4840 = vld [vmem:[#allocation10 + $0x1c] sm:$0xf]
    %v4841 = vld [vmem:[#allocation10 + $0x20] sm:$0xf]
    %v4842 = vld [vmem:[#allocation10 + $0x24] sm:$0xf]
    %v4843 = vld [vmem:[#allocation10 + $0x28] sm:$0xf]
    %v4844 = vld [vmem:[#allocation10 + $0x2c] sm:$0xf]
    %v4845 = vld [vmem:[#allocation10 + $0x30] sm:$0xf]
    %v4846 = vld [vmem:[#allocation10 + $0x34] sm:$0xf]
    %v4847 = vld [vmem:[#allocation10 + $0x38] sm:$0xf]
    %v4848 = vld [vmem:[#allocation10 + $0x3c] sm:$0xf]
    %v4849 = vld [vmem:[#allocation10 + $0x40] sm:$0xf]
    %v4850 = vld [vmem:[#allocation10 + $0x44] sm:$0xf]
    %v4851 = vld [vmem:[#allocation10 + $0x48] sm:$0xf]
    %v4852 = vld [vmem:[#allocation10 + $0x4c] sm:$0xf]
    %v4853 = vld [vmem:[#allocation10 + $0x50] sm:$0xf]
    %v4854 = vld [vmem:[#allocation10 + $0x54] sm:$0xf]
    %v4855 = vld [vmem:[#allocation10 + $0x58] sm:$0xf]
    %v4856 = vld [vmem:[#allocation10 + $0x5c] sm:$0xf]
    %v4857 = vld [vmem:[#allocation10 + $0x60] sm:$0xf]
    %v4858 = vld [vmem:[#allocation10 + $0x64] sm:$0xf]
    %v4859 = vld [vmem:[#allocation10 + $0x68] sm:$0xf]
    %v4860 = vld [vmem:[#allocation10 + $0x6c] sm:$0xf]
    %v4861 = vld [vmem:[#allocation10 + $0x70] sm:$0xf]
    %v4862 = vld [vmem:[#allocation10 + $0x74] sm:$0xf]
    %v4863 = vld [vmem:[#allocation10 + $0x78] sm:$0xf]
    %v4864 = vld [vmem:[#allocation10 + $0x7c] sm:$0xf]
    %v4865 = vld [vmem:[#allocation10 + $0x80] sm:$0xf]
    %v4866 = vld [vmem:[#allocation10 + $0x84] sm:$0xf]
    %v4867 = vld [vmem:[#allocation10 + $0x88] sm:$0xf]
    %v4868 = vld [vmem:[#allocation10 + $0x8c] sm:$0xf]
    %v4869 = vld [vmem:[#allocation10 + $0x90] sm:$0xf]
    %v4870 = vld [vmem:[#allocation10 + $0x94] sm:$0xf]
    %v4871 = vld [vmem:[#allocation10 + $0x98] sm:$0xf]
    %v4872 = vld [vmem:[#allocation10 + $0x9c] sm:$0xf]
    %v4873 = vld [vmem:[#allocation10 + $0xa0] sm:$0xf]
    %v4874 = vld [vmem:[#allocation10 + $0xa4] sm:$0xf]
    %v4875 = vld [vmem:[#allocation10 + $0xa8] sm:$0xf]
    %v4876 = vld [vmem:[#allocation10 + $0xac] sm:$0xf]
    %v4877 = vld [vmem:[#allocation10 + $0xb0] sm:$0xf]
    %v4878 = vld [vmem:[#allocation10 + $0xb4] sm:$0xf]
    %v4879 = vld [vmem:[#allocation10 + $0xb8] sm:$0xf]
    %v4880 = vld [vmem:[#allocation10 + $0xbc] sm:$0xf]
    %v4881 = vld [vmem:[#allocation10 + $0xc0] sm:$0xf]
    %v4882 = vld [vmem:[#allocation10 + $0xc4] sm:$0xf]
    %v4883 = vld [vmem:[#allocation10 + $0xc8] sm:$0xf]
    %v4884 = vld [vmem:[#allocation10 + $0xcc] sm:$0xf]
    %v4885 = vld [vmem:[#allocation10 + $0xd0] sm:$0xf]
    %v4886 = vld [vmem:[#allocation10 + $0xd4] sm:$0xf]
    %v4887 = vld [vmem:[#allocation10 + $0xd8] sm:$0xf]
    %v4888 = vld [vmem:[#allocation10 + $0xdc] sm:$0xf]
    %v4889 = vld [vmem:[#allocation10 + $0xe0] sm:$0xf]
    %v4890 = vld [vmem:[#allocation10 + $0xe4] sm:$0xf]
    %v4891 = vld [vmem:[#allocation10 + $0xe8] sm:$0xf]
    %v4892 = vld [vmem:[#allocation10 + $0xec] sm:$0xf]
    %v4893 = vld [vmem:[#allocation10 + $0xf0] sm:$0xf]
    %v4894 = vld [vmem:[#allocation10 + $0xf4] sm:$0xf]
    %v4895 = vld [vmem:[#allocation10 + $0xf8] sm:$0xf]
    %v4896 = vld [vmem:[#allocation10 + $0xfc] sm:$0xf]
    %v4897 = vld [vmem:[#allocation10 + $0x100] sm:$0xf]
    %v4898 = vld [vmem:[#allocation10 + $0x104] sm:$0xf]
    %v4899 = vld [vmem:[#allocation10 + $0x108] sm:$0xf]
    %v4900 = vld [vmem:[#allocation10 + $0x10c] sm:$0xf]
    %v4901 = vld [vmem:[#allocation10 + $0x110] sm:$0xf]
    %v4902 = vld [vmem:[#allocation10 + $0x114] sm:$0xf]
    %v4903 = vld [vmem:[#allocation10 + $0x118] sm:$0xf]
    %v4904 = vld [vmem:[#allocation10 + $0x11c] sm:$0xf]
    %v4905 = vld [vmem:[#allocation10 + $0x120] sm:$0xf]
    %v4906 = vld [vmem:[#allocation10 + $0x124] sm:$0xf]
    %v4907 = vld [vmem:[#allocation10 + $0x128] sm:$0xf]
    %v4908 = vld [vmem:[#allocation10 + $0x12c] sm:$0xf]
    %v4909 = vld [vmem:[#allocation10 + $0x130] sm:$0xf]
    %v4910 = vld [vmem:[#allocation10 + $0x134] sm:$0xf]
    %v4911 = vld [vmem:[#allocation10 + $0x138] sm:$0xf]
    %v4912 = vld [vmem:[#allocation10 + $0x13c] sm:$0xf]
    %v4913 = vld [vmem:[#allocation10 + $0x140] sm:$0xf]
    %v4914 = vld [vmem:[#allocation10 + $0x144] sm:$0xf]
    %v4915 = vld [vmem:[#allocation10 + $0x148] sm:$0xf]
    %v4916 = vld [vmem:[#allocation10 + $0x14c] sm:$0xf]
    %v4917 = vld [vmem:[#allocation10 + $0x150] sm:$0xf]
    %v4918 = vld [vmem:[#allocation10 + $0x154] sm:$0xf]
    %v4919 = vld [vmem:[#allocation10 + $0x158] sm:$0xf]
    %v4920 = vld [vmem:[#allocation10 + $0x15c] sm:$0xf]
    %v4921 = vld [vmem:[#allocation10 + $0x160] sm:$0xf]
    %v4922 = vld [vmem:[#allocation10 + $0x164] sm:$0xf]
    %v4923 = vld [vmem:[#allocation10 + $0x168] sm:$0xf]
    %v4924 = vld [vmem:[#allocation10 + $0x16c] sm:$0xf]
    %v4925 = vld [vmem:[#allocation10 + $0x170] sm:$0xf]
    %v4926 = vld [vmem:[#allocation10 + $0x174] sm:$0xf]
    %v4927 = vld [vmem:[#allocation10 + $0x178] sm:$0xf]
    %v4928 = vld [vmem:[#allocation10 + $0x17c] sm:$0xf]
    %v4929 = vld [vmem:[#allocation10 + $0x180] sm:$0xf]
    %v4930 = vld [vmem:[#allocation10 + $0x184] sm:$0xf]
    %v4931 = vld [vmem:[#allocation10 + $0x188] sm:$0xf]
    %v4932 = vld [vmem:[#allocation10 + $0x18c] sm:$0xf]
    %v4933 = vld [vmem:[#allocation10 + $0x190] sm:$0xf]
    %v4934 = vld [vmem:[#allocation10 + $0x194] sm:$0xf]
    %v4935 = vld [vmem:[#allocation10 + $0x198] sm:$0xf]
    %v4936 = vld [vmem:[#allocation10 + $0x19c] sm:$0xf]
    %v4937 = vld [vmem:[#allocation10 + $0x1a0] sm:$0xf]
    %v4938 = vld [vmem:[#allocation10 + $0x1a4] sm:$0xf]
    %v4939 = vld [vmem:[#allocation10 + $0x1a8] sm:$0xf]
    %v4940 = vld [vmem:[#allocation10 + $0x1ac] sm:$0xf]
    %v4941 = vld [vmem:[#allocation10 + $0x1b0] sm:$0xf]
    %v4942 = vld [vmem:[#allocation10 + $0x1b4] sm:$0xf]
    %v4943 = vld [vmem:[#allocation10 + $0x1b8] sm:$0xf]
    %v4944 = vld [vmem:[#allocation10 + $0x1bc] sm:$0xf]
    %v4945 = vld [vmem:[#allocation10 + $0x1c0] sm:$0xf]
    %v4946 = vld [vmem:[#allocation10 + $0x1c4] sm:$0xf]
    %v4947 = vld [vmem:[#allocation10 + $0x1c8] sm:$0xf]
    %v4948 = vld [vmem:[#allocation10 + $0x1cc] sm:$0xf]
    %v4949 = vld [vmem:[#allocation10 + $0x1d0] sm:$0xf]
    %v4950 = vld [vmem:[#allocation10 + $0x1d4] sm:$0xf]
    %v4951 = vld [vmem:[#allocation10 + $0x1d8] sm:$0xf]
    %v4952 = vld [vmem:[#allocation10 + $0x1dc] sm:$0xf]
    %v4953 = vld [vmem:[#allocation10 + $0x1e0] sm:$0xf]
    %v4954 = vld [vmem:[#allocation10 + $0x1e4] sm:$0xf]
    %v4955 = vld [vmem:[#allocation10 + $0x1e8] sm:$0xf]
    %v4956 = vld [vmem:[#allocation10 + $0x1ec] sm:$0xf]
    %v4957 = vld [vmem:[#allocation10 + $0x1f0] sm:$0xf]
    %v4958 = vld [vmem:[#allocation10 + $0x1f4] sm:$0xf]
    %v4959 = vld [vmem:[#allocation10 + $0x1f8] sm:$0xf]
    %v4960 = vld [vmem:[#allocation10 + $0x1fc] sm:$0xf]
    %v4961 = vld [vmem:[#allocation10 + $0x200] sm:$0xf]
    %v4962 = vld [vmem:[#allocation10 + $0x204] sm:$0xf]
    %v4963 = vld [vmem:[#allocation10 + $0x208] sm:$0xf]
    %v4964 = vld [vmem:[#allocation10 + $0x20c] sm:$0xf]
    %v4965 = vld [vmem:[#allocation10 + $0x210] sm:$0xf]
    %v4966 = vld [vmem:[#allocation10 + $0x214] sm:$0xf]
    %v4967 = vld [vmem:[#allocation10 + $0x218] sm:$0xf]
    %v4968 = vld [vmem:[#allocation10 + $0x21c] sm:$0xf]
    %v4969 = vld [vmem:[#allocation10 + $0x220] sm:$0xf]
    %v4970 = vld [vmem:[#allocation10 + $0x224] sm:$0xf]
    %v4971 = vld [vmem:[#allocation10 + $0x228] sm:$0xf]
    %v4972 = vld [vmem:[#allocation10 + $0x22c] sm:$0xf]
    %v4973 = vld [vmem:[#allocation10 + $0x230] sm:$0xf]
    %v4974 = vld [vmem:[#allocation10 + $0x234] sm:$0xf]
    %v4975 = vld [vmem:[#allocation10 + $0x238] sm:$0xf]
    %v4976 = vld [vmem:[#allocation10 + $0x23c] sm:$0xf]
    %v5121 = vunpack.c.l.b16 %v4833
    %v5122 = vunpack.c.l.b16 %v4834
    %v5123 = vunpack.c.l.b16 %v4835
    %v5124 = vunpack.c.l.b16 %v4836
    %v5125 = vunpack.c.l.b16 %v4837
    %v5126 = vunpack.c.l.b16 %v4838
    %v5127 = vunpack.c.l.b16 %v4839
    %v5128 = vunpack.c.l.b16 %v4840
    %v5129 = vunpack.c.l.b16 %v4841
    %v5130 = vunpack.c.l.b16 %v4842
    %v5131 = vunpack.c.l.b16 %v4843
    %v5132 = vunpack.c.l.b16 %v4844
    %v5133 = vunpack.c.l.b16 %v4845
    %v5134 = vunpack.c.l.b16 %v4846
    %v5135 = vunpack.c.l.b16 %v4847
    %v5136 = vunpack.c.l.b16 %v4848
    %v5137 = vunpack.c.l.b16 %v4849
    %v5138 = vunpack.c.l.b16 %v4850
    %v5139 = vunpack.c.l.b16 %v4851
    %v5140 = vunpack.c.l.b16 %v4852
    %v5141 = vunpack.c.l.b16 %v4853
    %v5142 = vunpack.c.l.b16 %v4854
    %v5143 = vunpack.c.l.b16 %v4855
    %v5144 = vunpack.c.l.b16 %v4856
    %v5145 = vunpack.c.l.b16 %v4857
    %v5146 = vunpack.c.l.b16 %v4858
    %v5147 = vunpack.c.l.b16 %v4859
    %v5148 = vunpack.c.l.b16 %v4860
    %v5149 = vunpack.c.l.b16 %v4861
    %v5150 = vunpack.c.l.b16 %v4862
    %v5151 = vunpack.c.l.b16 %v4863
    %v5152 = vunpack.c.l.b16 %v4864
    %v5153 = vunpack.c.l.b16 %v4865
    %v5154 = vunpack.c.l.b16 %v4866
    %v5155 = vunpack.c.l.b16 %v4867
    %v5156 = vunpack.c.l.b16 %v4868
    %v5157 = vunpack.c.l.b16 %v4869
    %v5158 = vunpack.c.l.b16 %v4870
    %v5159 = vunpack.c.l.b16 %v4871
    %v5160 = vunpack.c.l.b16 %v4872
    %v5161 = vunpack.c.l.b16 %v4873
    %v5162 = vunpack.c.l.b16 %v4874
    %v5163 = vunpack.c.l.b16 %v4875
    %v5164 = vunpack.c.l.b16 %v4876
    %v5165 = vunpack.c.l.b16 %v4877
    %v5166 = vunpack.c.l.b16 %v4878
    %v5167 = vunpack.c.l.b16 %v4879
    %v5168 = vunpack.c.l.b16 %v4880
    %v5169 = vunpack.c.l.b16 %v4881
    %v5170 = vunpack.c.l.b16 %v4882
    %v5171 = vunpack.c.l.b16 %v4883
    %v5172 = vunpack.c.l.b16 %v4884
    %v5173 = vunpack.c.l.b16 %v4885
    %v5174 = vunpack.c.l.b16 %v4886
    %v5175 = vunpack.c.l.b16 %v4887
    %v5176 = vunpack.c.l.b16 %v4888
    %v5177 = vunpack.c.l.b16 %v4889
    %v5178 = vunpack.c.l.b16 %v4890
    %v5179 = vunpack.c.l.b16 %v4891
    %v5180 = vunpack.c.l.b16 %v4892
    %v5181 = vunpack.c.l.b16 %v4893
    %v5182 = vunpack.c.l.b16 %v4894
    %v5183 = vunpack.c.l.b16 %v4895
    %v5184 = vunpack.c.l.b16 %v4896
    %v5185 = vunpack.c.l.b16 %v4897
    %v5186 = vunpack.c.l.b16 %v4898
    %v5187 = vunpack.c.l.b16 %v4899
    %v5188 = vunpack.c.l.b16 %v4900
    %v5189 = vunpack.c.l.b16 %v4901
    %v5190 = vunpack.c.l.b16 %v4902
    %v5191 = vunpack.c.l.b16 %v4903
    %v5192 = vunpack.c.l.b16 %v4904
    %v5193 = vunpack.c.l.b16 %v4905
    %v5194 = vunpack.c.l.b16 %v4906
    %v5195 = vunpack.c.l.b16 %v4907
    %v5196 = vunpack.c.l.b16 %v4908
    %v5197 = vunpack.c.l.b16 %v4909
    %v5198 = vunpack.c.l.b16 %v4910
    %v5199 = vunpack.c.l.b16 %v4911
    %v5200 = vunpack.c.l.b16 %v4912
    %v5201 = vunpack.c.l.b16 %v4913
    %v5202 = vunpack.c.l.b16 %v4914
    %v5203 = vunpack.c.l.b16 %v4915
    %v5204 = vunpack.c.l.b16 %v4916
    %v5205 = vunpack.c.l.b16 %v4917
    %v5206 = vunpack.c.l.b16 %v4918
    %v5207 = vunpack.c.l.b16 %v4919
    %v5208 = vunpack.c.l.b16 %v4920
    %v5209 = vunpack.c.l.b16 %v4921
    %v5210 = vunpack.c.l.b16 %v4922
    %v5211 = vunpack.c.l.b16 %v4923
    %v5212 = vunpack.c.l.b16 %v4924
    %v5213 = vunpack.c.l.b16 %v4925
    %v5214 = vunpack.c.l.b16 %v4926
    %v5215 = vunpack.c.l.b16 %v4927
    %v5216 = vunpack.c.l.b16 %v4928
    %v5217 = vunpack.c.l.b16 %v4929
    %v5218 = vunpack.c.l.b16 %v4930
    %v5219 = vunpack.c.l.b16 %v4931
    %v5220 = vunpack.c.l.b16 %v4932
    %v5221 = vunpack.c.l.b16 %v4933
    %v5222 = vunpack.c.l.b16 %v4934
    %v5223 = vunpack.c.l.b16 %v4935
    %v5224 = vunpack.c.l.b16 %v4936
    %v5225 = vunpack.c.l.b16 %v4937
    %v5226 = vunpack.c.l.b16 %v4938
    %v5227 = vunpack.c.l.b16 %v4939
    %v5228 = vunpack.c.l.b16 %v4940
    %v5229 = vunpack.c.l.b16 %v4941
    %v5230 = vunpack.c.l.b16 %v4942
    %v5231 = vunpack.c.l.b16 %v4943
    %v5232 = vunpack.c.l.b16 %v4944
    %v5233 = vunpack.c.l.b16 %v4945
    %v5234 = vunpack.c.l.b16 %v4946
    %v5235 = vunpack.c.l.b16 %v4947
    %v5236 = vunpack.c.l.b16 %v4948
    %v5237 = vunpack.c.l.b16 %v4949
    %v5238 = vunpack.c.l.b16 %v4950
    %v5239 = vunpack.c.l.b16 %v4951
    %v5240 = vunpack.c.l.b16 %v4952
    %v5241 = vunpack.c.l.b16 %v4953
    %v5242 = vunpack.c.l.b16 %v4954
    %v5243 = vunpack.c.l.b16 %v4955
    %v5244 = vunpack.c.l.b16 %v4956
    %v5245 = vunpack.c.l.b16 %v4957
    %v5246 = vunpack.c.l.b16 %v4958
    %v5247 = vunpack.c.l.b16 %v4959
    %v5248 = vunpack.c.l.b16 %v4960
    %v5249 = vunpack.c.l.b16 %v4961
    %v5250 = vunpack.c.l.b16 %v4962
    %v5251 = vunpack.c.l.b16 %v4963
    %v5252 = vunpack.c.l.b16 %v4964
    %v5253 = vunpack.c.l.b16 %v4965
    %v5254 = vunpack.c.l.b16 %v4966
    %v5255 = vunpack.c.l.b16 %v4967
    %v5256 = vunpack.c.l.b16 %v4968
    %v5257 = vunpack.c.l.b16 %v4969
    %v5258 = vunpack.c.l.b16 %v4970
    %v5259 = vunpack.c.l.b16 %v4971
    %v5260 = vunpack.c.l.b16 %v4972
    %v5261 = vunpack.c.l.b16 %v4973
    %v5262 = vunpack.c.l.b16 %v4974
    %v5263 = vunpack.c.l.b16 %v4975
    %v5264 = vunpack.c.l.b16 %v4976
    %v5265 = vpack.c.b16 %v5122, %v5121
    %v5266 = vpack.c.b16 %v5124, %v5123
    %v5267 = vpack.c.b16 %v5126, %v5125
    %v5268 = vpack.c.b16 %v5128, %v5127
    %v5269 = vpack.c.b16 %v5130, %v5129
    %v5270 = vpack.c.b16 %v5132, %v5131
    %v5271 = vpack.c.b16 %v5134, %v5133
    %v5272 = vpack.c.b16 %v5136, %v5135
    %v5273 = vpack.c.b16 %v5138, %v5137
    %v5274 = vpack.c.b16 %v5140, %v5139
    %v5275 = vpack.c.b16 %v5142, %v5141
    %v5276 = vpack.c.b16 %v5144, %v5143
    %v5277 = vpack.c.b16 %v5146, %v5145
    %v5278 = vpack.c.b16 %v5148, %v5147
    %v5279 = vpack.c.b16 %v5150, %v5149
    %v5280 = vpack.c.b16 %v5152, %v5151
    %v5281 = vpack.c.b16 %v5154, %v5153
    %v5282 = vpack.c.b16 %v5156, %v5155
    %v5283 = vpack.c.b16 %v5158, %v5157
    %v5284 = vpack.c.b16 %v5160, %v5159
    %v5285 = vpack.c.b16 %v5162, %v5161
    %v5286 = vpack.c.b16 %v5164, %v5163
    %v5287 = vpack.c.b16 %v5166, %v5165
    %v5288 = vpack.c.b16 %v5168, %v5167
    %v5289 = vpack.c.b16 %v5170, %v5169
    %v5290 = vpack.c.b16 %v5172, %v5171
    %v5291 = vpack.c.b16 %v5174, %v5173
    %v5292 = vpack.c.b16 %v5176, %v5175
    %v5293 = vpack.c.b16 %v5178, %v5177
    %v5294 = vpack.c.b16 %v5180, %v5179
    %v5295 = vpack.c.b16 %v5182, %v5181
    %v5296 = vpack.c.b16 %v5184, %v5183
    %v5297 = vpack.c.b16 %v5186, %v5185
    %v5298 = vpack.c.b16 %v5188, %v5187
    %v5299 = vpack.c.b16 %v5190, %v5189
    %v5300 = vpack.c.b16 %v5192, %v5191
    %v5301 = vpack.c.b16 %v5194, %v5193
    %v5302 = vpack.c.b16 %v5196, %v5195
    %v5303 = vpack.c.b16 %v5198, %v5197
    %v5304 = vpack.c.b16 %v5200, %v5199
    %v5305 = vpack.c.b16 %v5202, %v5201
    %v5306 = vpack.c.b16 %v5204, %v5203
    %v5307 = vpack.c.b16 %v5206, %v5205
    %v5308 = vpack.c.b16 %v5208, %v5207
    %v5309 = vpack.c.b16 %v5210, %v5209
    %v5310 = vpack.c.b16 %v5212, %v5211
    %v5311 = vpack.c.b16 %v5214, %v5213
    %v5312 = vpack.c.b16 %v5216, %v5215
    %v5313 = vpack.c.b16 %v5218, %v5217
    %v5314 = vpack.c.b16 %v5220, %v5219
    %v5315 = vpack.c.b16 %v5222, %v5221
    %v5316 = vpack.c.b16 %v5224, %v5223
    %v5317 = vpack.c.b16 %v5226, %v5225
    %v5318 = vpack.c.b16 %v5228, %v5227
    %v5319 = vpack.c.b16 %v5230, %v5229
    %v5320 = vpack.c.b16 %v5232, %v5231
    %v5321 = vpack.c.b16 %v5234, %v5233
    %v5322 = vpack.c.b16 %v5236, %v5235
    %v5323 = vpack.c.b16 %v5238, %v5237
    %v5324 = vpack.c.b16 %v5240, %v5239
    %v5325 = vpack.c.b16 %v5242, %v5241
    %v5326 = vpack.c.b16 %v5244, %v5243
    %v5327 = vpack.c.b16 %v5246, %v5245
    %v5328 = vpack.c.b16 %v5248, %v5247
    %v5329 = vpack.c.b16 %v5250, %v5249
    %v5330 = vpack.c.b16 %v5252, %v5251
    %v5331 = vpack.c.b16 %v5254, %v5253
    %v5332 = vpack.c.b16 %v5256, %v5255
    %v5333 = vpack.c.b16 %v5258, %v5257
    %v5334 = vpack.c.b16 %v5260, %v5259
    %v5335 = vpack.c.b16 %v5262, %v5261
    %v5336 = vpack.c.b16 %v5264, %v5263
    %5409 = vmatprep.subr.bf16.mxu0 0
    %5410 = vmatpush1.bf16.msra.mxu0 %v5265
    %5411 = vmatprep.subr.bf16.mxu0 0
    %5412 = vmatpush1.bf16.msra.mxu0 %v5266
    %5413 = vmatprep.subr.bf16.mxu0 0
    %5414 = vmatpush1.bf16.msra.mxu0 %v5267
    %5415 = vmatprep.subr.bf16.mxu0 0
    %5416 = vmatpush1.bf16.msra.mxu0 %v5268
    %5417 = vmatprep.subr.bf16.mxu0 0
    %5418 = vmatpush1.bf16.msra.mxu0 %v5269
    %5419 = vmatprep.subr.bf16.mxu0 0
    %5420 = vmatpush1.bf16.msra.mxu0 %v5270
    %5421 = vmatprep.subr.bf16.mxu0 0
    %5422 = vmatpush1.bf16.msra.mxu0 %v5271
    %5423 = vmatprep.subr.bf16.mxu0 0
    %5424 = vmatpush1.bf16.msra.mxu0 %v5272
    %5425 = vmatprep.subr.bf16.mxu0 0
    %5426 = vmatpush1.bf16.msra.mxu0 %v5273
    %5427 = vmatprep.subr.bf16.mxu0 0
    %5428 = vmatpush1.bf16.msra.mxu0 %v5274
    %5429 = vmatprep.subr.bf16.mxu0 0
    %5430 = vmatpush1.bf16.msra.mxu0 %v5275
    %5431 = vmatprep.subr.bf16.mxu0 0
    %5432 = vmatpush1.bf16.msra.mxu0 %v5276
    %5433 = vmatprep.subr.bf16.mxu0 0
    %5434 = vmatpush1.bf16.msra.mxu0 %v5277
    %5435 = vmatprep.subr.bf16.mxu0 0
    %5436 = vmatpush1.bf16.msra.mxu0 %v5278
    %5437 = vmatprep.subr.bf16.mxu0 0
    %5438 = vmatpush1.bf16.msra.mxu0 %v5279
    %5439 = vmatprep.subr.bf16.mxu0 0
    %5440 = vmatpush1.bf16.msra.mxu0 %v5280
    %5441 = vmatprep.mubr.bf16.mxu0 %v4248
    %5442 = vmatmul.mubr.bf16.gmra.mrb[0].mxu0 %v4162
    %v5443 = vpop.f32.mrb[0].mxu0
    %v5444 = vadd.f32 0.0, %v5443
    %v5445 = vpop.f32.mrb[0].mxu0
    %v5446 = vpop.f32.mrb[0].mxu0
    %v5447 = vadd.f32 0.0, %v5446
    %v5448 = vpop.f32.mrb[0].mxu0
    %5449 = vmatprep.mubr.bf16.mxu0 %v4236
    %5450 = vmatmul.mubr.bf16.gmra.mrb[0].mxu0 %v4161
    %v5451 = vpop.f32.mrb[0].mxu0
    %v5452 = vadd.f32 0.0, %v5451
    %v5453 = vpop.f32.mrb[0].mxu0
    %v5454 = vpop.f32.mrb[0].mxu0
    %v5455 = vadd.f32 0.0, %v5454
    %v5456 = vpop.f32.mrb[0].mxu0
    %5457 = vmatprep.mubr.bf16.mxu0 %v4248
    %5458 = vmatmul.mubr.bf16.gmra.mrb[0].mxu0 %v4162
    %v5459 = vpop.f32.mrb[0].mxu0
    %v5460 = vadd.f32 0.0, %v5459
    %v5461 = vpop.f32.mrb[0].mxu0
    %v5462 = vpop.f32.mrb[0].mxu0
    %v5463 = vadd.f32 0.0, %v5462
    %v5464 = vpop.f32.mrb[0].mxu0
    %5465 = vmatprep.mubr.bf16.mxu0 %v4260
    %5466 = vmatmul.mubr.bf16.gmra.mrb[0].mxu0 %v4163
    %v5467 = vpop.f32.mrb[0].mxu0
    %v5468 = vadd.f32 0.0, %v5467
    %v5469 = vpop.f32.mrb[0].mxu0
    %v5470 = vpop.f32.mrb[0].mxu0
    %v5471 = vadd.f32 0.0, %v5470
    %v5472 = vpop.f32.mrb[0].mxu0
    %5473 = vmatprep.mubr.bf16.mxu0 %v4272
    %5474 = vmatmul.mubr.bf16.gmra.mrb[0].mxu0 %v4164
    %v5475 = vpop.f32.mrb[0].mxu0
    %v5476 = vadd.f32 0.0, %v5475
    %v5477 = vpop.f32.mrb[0].mxu0
    %v5478 = vpop.f32.mrb[0].mxu0
    %v5479 = vadd.f32 0.0, %v5478
    %v5480 = vpop.f32.mrb[0].mxu0
    %5481 = vmatprep.mubr.bf16.mxu0 %v4284
    %5482 = vmatmul.mubr.bf16.gmra.mrb[0].mxu0 %v4165
    %v5483 = vpop.f32.mrb[0].mxu0
    %v5484 = vadd.f32 0.0, %v5483
    %v5485 = vpop.f32.mrb[0].mxu0
    %v5486 = vpop.f32.mrb[0].mxu0
    %v5487 = vadd.f32 0.0, %v5486
    %v5488 = vpop.f32.mrb[0].mxu0
    %5489 = vmatprep.mubr.bf16.mxu0 %v4296
    %5490 = vmatmul.mubr.bf16.gmra.mrb[0].mxu0 %v4166
    %v5491 = vpop.f32.mrb[0].mxu0
    %v5492 = vadd.f32 0.0, %v5491
    %v5493 = vpop.f32.mrb[0].mxu0
    %v5494 = vpop.f32.mrb[0].mxu0
    %v5495 = vadd.f32 0.0, %v5494
    %v5496 = vpop.f32.mrb[0].mxu0
    %5497 = vmatprep.mubr.bf16.mxu0 %v4308
    %5498 = vmatmul.mubr.bf16.gmra.mrb[0].mxu0 %v4167
    %v5499 = vpop.f32.mrb[0].mxu0
    %v5500 = vadd.f32 0.0, %v5499
    %v5501 = vpop.f32.mrb[0].mxu0
    %v5502 = vpop.f32.mrb[0].mxu0
    %v5503 = vadd.f32 0.0, %v5502
    %v5504 = vpop.f32.mrb[0].mxu0
    %5505 = vmatprep.mubr.bf16.mxu0 %v4320
    %5506 = vmatmul.mubr.bf16.gmra.mrb[0].mxu0 %v4168
    %v5507 = vpop.f32.mrb[0].mxu0
    %v5508 = vadd.f32 0.0, %v5507
    %v5509 = vpop.f32.mrb[0].mxu0
    %v5510 = vpop.f32.mrb[0].mxu0
    %v5511 = vadd.f32 0.0, %v5510
    %v5512 = vpop.f32.mrb[0].mxu0
    %5513 = vmatprep.mubr.bf16.mxu0 %v4332
    %5514 = vmatmul.mubr.bf16.gmra.mrb[0].mxu0 %v4169
    %v5515 = vpop.f32.mrb[0].mxu0
    %v5516 = vadd.f32 0.0, %v5515
    %v5517 = vpop.f32.mrb[0].mxu0
    %v5518 = vpop.f32.mrb[0].mxu0
    %v5519 = vadd.f32 0.0, %v5518
    %v5520 = vpop.f32.mrb[0].mxu0
    %5521 = vmatprep.mubr.bf16.mxu0 %v4344
    %5522 = vmatmul.mubr.bf16.gmra.mrb[0].mxu0 %v4170
    %v5523 = vpop.f32.mrb[0].mxu0
    %v5524 = vadd.f32 0.0, %v5523
    %v5525 = vpop.f32.mrb[0].mxu0
    %v5526 = vpop.f32.mrb[0].mxu0
    %v5527 = vadd.f32 0.0, %v5526
    %v5528 = vpop.f32.mrb[0].mxu0
    %5529 = vmatprep.mubr.bf16.mxu0 %v4356
    %5530 = vmatmul.mubr.bf16.gmra.mrb[0].mxu0 %v4171
    %v5531 = vpop.f32.mrb[0].mxu0
    %v5532 = vadd.f32 0.0, %v5531
    %v5533 = vpop.f32.mrb[0].mxu0
    %v5534 = vpop.f32.mrb[0].mxu0
    %v5535 = vadd.f32 0.0, %v5534
    %v5536 = vpop.f32.mrb[0].mxu0
    %5537 = vmatprep.mubr.bf16.mxu0 %v4368
    %5538 = vmatmul.mubr.bf16.gmra.mrb[0].mxu0 %v4172
    %v5539 = vpop.f32.mrb[0].mxu0
    %v5540 = vadd.f32 0.0, %v5539
    %v5541 = vpop.f32.mrb[0].mxu0
    %v5542 = vpop.f32.mrb[0].mxu0
    %v5543 = vadd.f32 0.0, %v5542
    %v5544 = vpop.f32.mrb[0].mxu0
    %5545 = vmatprep.mubr.bf16.mxu0 %v4380
    %5546 = vmatmul.mubr.bf16.gmra.mrb[0].mxu0 %v4173
    %v5547 = vpop.f32.mrb[0].mxu0
    %v5548 = vadd.f32 0.0, %v5547
    %v5549 = vpop.f32.mrb[0].mxu0
    %v5550 = vpop.f32.mrb[0].mxu0
    %v5551 = vadd.f32 0.0, %v5550
    %v5552 = vpop.f32.mrb[0].mxu0
    %5553 = vmatprep.mubr.bf16.mxu0 %v4392
    %5554 = vmatmul.mubr.bf16.gmra.mrb[0].mxu0 %v4174
    %v5555 = vpop.f32.mrb[0].mxu0
    %v5556 = vadd.f32 0.0, %v5555
    %v5557 = vpop.f32.mrb[0].mxu0
    %v5558 = vpop.f32.mrb[0].mxu0
    %v5559 = vadd.f32 0.0, %v5558
    %v5560 = vpop.f32.mrb[0].mxu0
    %5561 = vmatprep.mubr.bf16.mxu0 %v4404
    %5562 = vmatmul.mubr.bf16.gmra.mrb[0].mxu0 %v4175
    %v5563 = vpop.f32.mrb[0].mxu0
    %v5564 = vadd.f32 0.0, %v5563
    %v5565 = vpop.f32.mrb[0].mxu0
    %v5566 = vpop.f32.mrb[0].mxu0
    %v5567 = vadd.f32 0.0, %v5566
    %v5568 = vpop.f32.mrb[0].mxu0
    %5569 = vmatprep.mubr.bf16.mxu0 %v4440
    %5570 = vmatmul.mubr.bf16.gmra.mrb[0].mxu0 %v4178
    %v5571 = vpop.f32.mrb[0].mxu0
    %v5572 = vadd.f32 0.0, %v5571
    %v5573 = vpop.f32.mrb[0].mxu0
    %v5574 = vpop.f32.mrb[0].mxu0
    %v5575 = vadd.f32 0.0, %v5574
    %v5576 = vpop.f32.mrb[0].mxu0
    %5577 = vmatprep.mubr.bf16.mxu0 %v4428
    %5578 = vmatmul.mubr.bf16.gmra.mrb[0].mxu0 %v4177
    %v5579 = vpop.f32.mrb[0].mxu0
    %v5580 = vadd.f32 0.0, %v5579
    %v5581 = vpop.f32.mrb[0].mxu0
    %v5582 = vpop.f32.mrb[0].mxu0
    %v5583 = vadd.f32 0.0, %v5582
    %v5584 = vpop.f32.mrb[0].mxu0
    %5585 = vmatprep.mubr.bf16.mxu0 %v4440
    %5586 = vmatmul.mubr.bf16.gmra.mrb[0].mxu0 %v4178
    %v5587 = vpop.f32.mrb[0].mxu0
    %v5588 = vadd.f32 0.0, %v5587
    %v5589 = vpop.f32.mrb[0].mxu0
    %v5590 = vpop.f32.mrb[0].mxu0
    %v5591 = vadd.f32 0.0, %v5590
    %v5592 = vpop.f32.mrb[0].mxu0
    %5593 = vmatprep.mubr.bf16.mxu0 %v4452
    %5594 = vmatmul.mubr.bf16.gmra.mrb[0].mxu0 %v4179
    %v5595 = vpop.f32.mrb[0].mxu0
    %v5596 = vadd.f32 0.0, %v5595
    %v5597 = vpop.f32.mrb[0].mxu0
    %v5598 = vpop.f32.mrb[0].mxu0
    %v5599 = vadd.f32 0.0, %v5598
    %v5600 = vpop.f32.mrb[0].mxu0
    %5601 = vmatprep.mubr.bf16.mxu0 %v4464
    %5602 = vmatmul.mubr.bf16.gmra.mrb[0].mxu0 %v4180
    %v5603 = vpop.f32.mrb[0].mxu0
    %v5604 = vadd.f32 0.0, %v5603
    %v5605 = vpop.f32.mrb[0].mxu0
    %v5606 = vpop.f32.mrb[0].mxu0
    %v5607 = vadd.f32 0.0, %v5606
    %v5608 = vpop.f32.mrb[0].mxu0
    %5609 = vmatprep.mubr.bf16.mxu0 %v4476
    %5610 = vmatmul.mubr.bf16.gmra.mrb[0].mxu0 %v4181
    %v5611 = vpop.f32.mrb[0].mxu0
    %v5612 = vadd.f32 0.0, %v5611
    %v5613 = vpop.f32.mrb[0].mxu0
    %v5614 = vpop.f32.mrb[0].mxu0
    %v5615 = vadd.f32 0.0, %v5614
    %v5616 = vpop.f32.mrb[0].mxu0
    %5617 = vmatprep.mubr.bf16.mxu0 %v4488
    %5618 = vmatmul.mubr.bf16.gmra.mrb[0].mxu0 %v4182
    %v5619 = vpop.f32.mrb[0].mxu0
    %v5620 = vadd.f32 0.0, %v5619
    %v5621 = vpop.f32.mrb[0].mxu0
    %v5622 = vpop.f32.mrb[0].mxu0
    %v5623 = vadd.f32 0.0, %v5622
    %v5624 = vpop.f32.mrb[0].mxu0
    %5625 = vmatprep.mubr.bf16.mxu0 %v4500
    %5626 = vmatmul.mubr.bf16.gmra.mrb[0].mxu0 %v4183
    %v5627 = vpop.f32.mrb[0].mxu0
    %v5628 = vadd.f32 0.0, %v5627
    %v5629 = vpop.f32.mrb[0].mxu0
    %v5630 = vpop.f32.mrb[0].mxu0
    %v5631 = vadd.f32 0.0, %v5630
    %v5632 = vpop.f32.mrb[0].mxu0
    %5633 = vmatprep.mubr.bf16.mxu0 %v4512
    %5634 = vmatmul.mubr.bf16.gmra.mrb[0].mxu0 %v4184
    %v5635 = vpop.f32.mrb[0].mxu0
    %v5636 = vadd.f32 0.0, %v5635
    %v5637 = vpop.f32.mrb[0].mxu0
    %v5638 = vpop.f32.mrb[0].mxu0
    %v5639 = vadd.f32 0.0, %v5638
    %v5640 = vpop.f32.mrb[0].mxu0
    %5641 = vmatprep.mubr.bf16.mxu0 %v4524
    %5642 = vmatmul.mubr.bf16.gmra.mrb[0].mxu0 %v4185
    %v5643 = vpop.f32.mrb[0].mxu0
    %v5644 = vadd.f32 0.0, %v5643
    %v5645 = vpop.f32.mrb[0].mxu0
    %v5646 = vpop.f32.mrb[0].mxu0
    %v5647 = vadd.f32 0.0, %v5646
    %v5648 = vpop.f32.mrb[0].mxu0
    %5649 = vmatprep.mubr.bf16.mxu0 %v4536
    %5650 = vmatmul.mubr.bf16.gmra.mrb[0].mxu0 %v4186
    %v5651 = vpop.f32.mrb[0].mxu0
    %v5652 = vadd.f32 0.0, %v5651
    %v5653 = vpop.f32.mrb[0].mxu0
    %v5654 = vpop.f32.mrb[0].mxu0
    %v5655 = vadd.f32 0.0, %v5654
    %v5656 = vpop.f32.mrb[0].mxu0
    %5657 = vmatprep.mubr.bf16.mxu0 %v4548
    %5658 = vmatmul.mubr.bf16.gmra.mrb[0].mxu0 %v4187
    %v5659 = vpop.f32.mrb[0].mxu0
    %v5660 = vadd.f32 0.0, %v5659
    %v5661 = vpop.f32.mrb[0].mxu0
    %v5662 = vpop.f32.mrb[0].mxu0
    %v5663 = vadd.f32 0.0, %v5662
    %v5664 = vpop.f32.mrb[0].mxu0
    %5665 = vmatprep.mubr.bf16.mxu0 %v4560
    %5666 = vmatmul.mubr.bf16.gmra.mrb[0].mxu0 %v4188
    %v5667 = vpop.f32.mrb[0].mxu0
    %v5668 = vadd.f32 0.0, %v5667
    %v5669 = vpop.f32.mrb[0].mxu0
    %v5670 = vpop.f32.mrb[0].mxu0
    %v5671 = vadd.f32 0.0, %v5670
    %v5672 = vpop.f32.mrb[0].mxu0
    %5673 = vmatprep.mubr.bf16.mxu0 %v4572
    %5674 = vmatmul.mubr.bf16.gmra.mrb[0].mxu0 %v4189
    %v5675 = vpop.f32.mrb[0].mxu0
    %v5676 = vadd.f32 0.0, %v5675
    %v5677 = vpop.f32.mrb[0].mxu0
    %v5678 = vpop.f32.mrb[0].mxu0
    %v5679 = vadd.f32 0.0, %v5678
    %v5680 = vpop.f32.mrb[0].mxu0
    %5681 = vmatprep.mubr.bf16.mxu0 %v4584
    %5682 = vmatmul.mubr.bf16.gmra.mrb[0].mxu0 %v4190
    %v5683 = vpop.f32.mrb[0].mxu0
    %v5684 = vadd.f32 0.0, %v5683
    %v5685 = vpop.f32.mrb[0].mxu0
    %v5686 = vpop.f32.mrb[0].mxu0
    %v5687 = vadd.f32 0.0, %v5686
    %v5688 = vpop.f32.mrb[0].mxu0
    %5689 = vmatprep.mubr.bf16.mxu0 %v4596
    %5690 = vmatmul.mubr.bf16.gmra.mrb[0].mxu0 %v4191
    %v5691 = vpop.f32.mrb[0].mxu0
    %v5692 = vadd.f32 0.0, %v5691
    %v5693 = vpop.f32.mrb[0].mxu0
    %v5694 = vpop.f32.mrb[0].mxu0
    %v5695 = vadd.f32 0.0, %v5694
    %v5696 = vpop.f32.mrb[0].mxu0
    %5697 = vdwg.mxu0
    %5698 = vmatprep.subr.bf16.mxu0 0
    %5699 = vmatpush1.bf16.msra.mxu0 %v5281
    %5700 = vmatprep.subr.bf16.mxu0 0
    %5701 = vmatpush1.bf16.msra.mxu0 %v5282
    %5702 = vmatprep.subr.bf16.mxu0 0
    %5703 = vmatpush1.bf16.msra.mxu0 %v5283
    %5704 = vmatprep.subr.bf16.mxu0 0
    %5705 = vmatpush1.bf16.msra.mxu0 %v5284
    %5706 = vmatprep.subr.bf16.mxu0 0
    %5707 = vmatpush1.bf16.msra.mxu0 %v5285
    %5708 = vmatprep.subr.bf16.mxu0 0
    %5709 = vmatpush1.bf16.msra.mxu0 %v5286
    %5710 = vmatprep.subr.bf16.mxu0 0
    %5711 = vmatpush1.bf16.msra.mxu0 %v5287
    %5712 = vmatprep.subr.bf16.mxu0 0
    %5713 = vmatpush1.bf16.msra.mxu0 %v5288
    %5714 = vmatprep.subr.bf16.mxu0 0
    %5715 = vmatpush1.bf16.msra.mxu0 %v5289
    %5716 = vmatprep.subr.bf16.mxu0 0
    %5717 = vmatpush1.bf16.msra.mxu0 %v5290
    %5718 = vmatprep.subr.bf16.mxu0 0
    %5719 = vmatpush1.bf16.msra.mxu0 %v5291
    %5720 = vmatprep.subr.bf16.mxu0 0
    %5721 = vmatpush1.bf16.msra.mxu0 %v5292
    %5722 = vmatprep.subr.bf16.mxu0 0
    %5723 = vmatpush1.bf16.msra.mxu0 %v5293
    %5724 = vmatprep.subr.bf16.mxu0 0
    %5725 = vmatpush1.bf16.msra.mxu0 %v5294
    %5726 = vmatprep.subr.bf16.mxu0 0
    %5727 = vmatpush1.bf16.msra.mxu0 %v5295
    %5728 = vmatprep.subr.bf16.mxu0 0
    %5729 = vmatpush1.bf16.msra.mxu0 %v5296
    %5730 = vmatprep.mubr.bf16.mxu0 %v4161
    %5731 = vmatmul.mubr.bf16.gmra.mrb[0].mxu0 %v4710
    %v5732 = vpop.f32.mrb[0].mxu0
    %v5733 = vadd.f32 %v5444, %v5732
    %v5734 = vpop.f32.mrb[0].mxu0
    %v5735 = vpop.f32.mrb[0].mxu0
    %v5736 = vadd.f32 %v5447, %v5735
    %v5737 = vpop.f32.mrb[0].mxu0
    %5738 = vmatprep.mubr.bf16.mxu0 %v4162
    %5739 = vmatmul.mubr.bf16.gmra.mrb[0].mxu0 %v4707
    %v5740 = vpop.f32.mrb[0].mxu0
    %v5741 = vadd.f32 %v5452, %v5740
    %v5742 = vpop.f32.mrb[0].mxu0
    %v5743 = vpop.f32.mrb[0].mxu0
    %v5744 = vadd.f32 %v5455, %v5743
    %v5745 = vpop.f32.mrb[0].mxu0
    %5746 = vmatprep.mubr.bf16.mxu0 %v4163
    %5747 = vmatmul.mubr.bf16.gmra.mrb[0].mxu0 %v4710
    %v5748 = vpop.f32.mrb[0].mxu0
    %v5749 = vadd.f32 %v5460, %v5748
    %v5750 = vpop.f32.mrb[0].mxu0
    %v5751 = vpop.f32.mrb[0].mxu0
    %v5752 = vadd.f32 %v5463, %v5751
    %v5753 = vpop.f32.mrb[0].mxu0
    %5754 = vmatprep.mubr.bf16.mxu0 %v4164
    %5755 = vmatmul.mubr.bf16.gmra.mrb[0].mxu0 %v4713
    %v5756 = vpop.f32.mrb[0].mxu0
    %v5757 = vadd.f32 %v5468, %v5756
    %v5758 = vpop.f32.mrb[0].mxu0
    %v5759 = vpop.f32.mrb[0].mxu0
    %v5760 = vadd.f32 %v5471, %v5759
    %v5761 = vpop.f32.mrb[0].mxu0
    %5762 = vmatprep.mubr.bf16.mxu0 %v4165
    %5763 = vmatmul.mubr.bf16.gmra.mrb[0].mxu0 %v4716
    %v5764 = vpop.f32.mrb[0].mxu0
    %v5765 = vadd.f32 %v5476, %v5764
    %v5766 = vpop.f32.mrb[0].mxu0
    %v5767 = vpop.f32.mrb[0].mxu0
    %v5768 = vadd.f32 %v5479, %v5767
    %v5769 = vpop.f32.mrb[0].mxu0
    %5770 = vmatprep.mubr.bf16.mxu0 %v4166
    %5771 = vmatmul.mubr.bf16.gmra.mrb[0].mxu0 %v4719
    %v5772 = vpop.f32.mrb[0].mxu0
    %v5773 = vadd.f32 %v5484, %v5772
    %v5774 = vpop.f32.mrb[0].mxu0
    %v5775 = vpop.f32.mrb[0].mxu0
    %v5776 = vadd.f32 %v5487, %v5775
    %v5777 = vpop.f32.mrb[0].mxu0
    %5778 = vmatprep.mubr.bf16.mxu0 %v4167
    %5779 = vmatmul.mubr.bf16.gmra.mrb[0].mxu0 %v4722
    %v5780 = vpop.f32.mrb[0].mxu0
    %v5781 = vadd.f32 %v5492, %v5780
    %v5782 = vpop.f32.mrb[0].mxu0
    %v5783 = vpop.f32.mrb[0].mxu0
    %v5784 = vadd.f32 %v5495, %v5783
    %v5785 = vpop.f32.mrb[0].mxu0
    %5786 = vmatprep.mubr.bf16.mxu0 %v4168
    %5787 = vmatmul.mubr.bf16.gmra.mrb[0].mxu0 %v4725
    %v5788 = vpop.f32.mrb[0].mxu0
    %v5789 = vadd.f32 %v5500, %v5788
    %v5790 = vpop.f32.mrb[0].mxu0
    %v5791 = vpop.f32.mrb[0].mxu0
    %v5792 = vadd.f32 %v5503, %v5791
    %v5793 = vpop.f32.mrb[0].mxu0
    %5794 = vmatprep.mubr.bf16.mxu0 %v4169
    %5795 = vmatmul.mubr.bf16.gmra.mrb[0].mxu0 %v4728
    %v5796 = vpop.f32.mrb[0].mxu0
    %v5797 = vadd.f32 %v5508, %v5796
    %v5798 = vpop.f32.mrb[0].mxu0
    %v5799 = vpop.f32.mrb[0].mxu0
    %v5800 = vadd.f32 %v5511, %v5799
    %v5801 = vpop.f32.mrb[0].mxu0
    %5802 = vmatprep.mubr.bf16.mxu0 %v4170
    %5803 = vmatmul.mubr.bf16.gmra.mrb[0].mxu0 %v4731
    %v5804 = vpop.f32.mrb[0].mxu0
    %v5805 = vadd.f32 %v5516, %v5804
    %v5806 = vpop.f32.mrb[0].mxu0
    %v5807 = vpop.f32.mrb[0].mxu0
    %v5808 = vadd.f32 %v5519, %v5807
    %v5809 = vpop.f32.mrb[0].mxu0
    %5810 = vmatprep.mubr.bf16.mxu0 %v4171
    %5811 = vmatmul.mubr.bf16.gmra.mrb[0].mxu0 %v4734
    %v5812 = vpop.f32.mrb[0].mxu0
    %v5813 = vadd.f32 %v5524, %v5812
    %v5814 = vpop.f32.mrb[0].mxu0
    %v5815 = vpop.f32.mrb[0].mxu0
    %v5816 = vadd.f32 %v5527, %v5815
    %v5817 = vpop.f32.mrb[0].mxu0
    %5818 = vmatprep.mubr.bf16.mxu0 %v4172
    %5819 = vmatmul.mubr.bf16.gmra.mrb[0].mxu0 %v4737
    %v5820 = vpop.f32.mrb[0].mxu0
    %v5821 = vadd.f32 %v5532, %v5820
    %v5822 = vpop.f32.mrb[0].mxu0
    %v5823 = vpop.f32.mrb[0].mxu0
    %v5824 = vadd.f32 %v5535, %v5823
    %v5825 = vpop.f32.mrb[0].mxu0
    %5826 = vmatprep.mubr.bf16.mxu0 %v4173
    %5827 = vmatmul.mubr.bf16.gmra.mrb[0].mxu0 %v4740
    %v5828 = vpop.f32.mrb[0].mxu0
    %v5829 = vadd.f32 %v5540, %v5828
    %v5830 = vpop.f32.mrb[0].mxu0
    %v5831 = vpop.f32.mrb[0].mxu0
    %v5832 = vadd.f32 %v5543, %v5831
    %v5833 = vpop.f32.mrb[0].mxu0
    %5834 = vmatprep.mubr.bf16.mxu0 %v4174
    %5835 = vmatmul.mubr.bf16.gmra.mrb[0].mxu0 %v4743
    %v5836 = vpop.f32.mrb[0].mxu0
    %v5837 = vadd.f32 %v5548, %v5836
    %v5838 = vpop.f32.mrb[0].mxu0
    %v5839 = vpop.f32.mrb[0].mxu0
    %v5840 = vadd.f32 %v5551, %v5839
    %v5841 = vpop.f32.mrb[0].mxu0
    %5842 = vmatprep.mubr.bf16.mxu0 %v4175
    %5843 = vmatmul.mubr.bf16.gmra.mrb[0].mxu0 %v4746
    %v5844 = vpop.f32.mrb[0].mxu0
    %v5845 = vadd.f32 %v5556, %v5844
    %v5846 = vpop.f32.mrb[0].mxu0
    %v5847 = vpop.f32.mrb[0].mxu0
    %v5848 = vadd.f32 %v5559, %v5847
    %v5849 = vpop.f32.mrb[0].mxu0
    %5850 = vmatprep.mubr.bf16.mxu0 %v4176
    %5851 = vmatmul.mubr.bf16.gmra.mrb[0].mxu0 %v4749
    %v5852 = vpop.f32.mrb[0].mxu0
    %v5853 = vadd.f32 %v5564, %v5852
    %v5854 = vpop.f32.mrb[0].mxu0
    %v5855 = vpop.f32.mrb[0].mxu0
    %v5856 = vadd.f32 %v5567, %v5855
    %v5857 = vpop.f32.mrb[0].mxu0
    %5858 = vmatprep.mubr.bf16.mxu0 %v4177
    %5859 = vmatmul.mubr.bf16.gmra.mrb[0].mxu0 %v4758
    %v5860 = vpop.f32.mrb[0].mxu0
    %v5861 = vadd.f32 %v5572, %v5860
    %v5862 = vpop.f32.mrb[0].mxu0
    %v5863 = vpop.f32.mrb[0].mxu0
    %v5864 = vadd.f32 %v5575, %v5863
    %v5865 = vpop.f32.mrb[0].mxu0
    %5866 = vmatprep.mubr.bf16.mxu0 %v4178
    %5867 = vmatmul.mubr.bf16.gmra.mrb[0].mxu0 %v4755
    %v5868 = vpop.f32.mrb[0].mxu0
    %v5869 = vadd.f32 %v5580, %v5868
    %v5870 = vpop.f32.mrb[0].mxu0
    %v5871 = vpop.f32.mrb[0].mxu0
    %v5872 = vadd.f32 %v5583, %v5871
    %v5873 = vpop.f32.mrb[0].mxu0
    %5874 = vmatprep.mubr.bf16.mxu0 %v4179
    %5875 = vmatmul.mubr.bf16.gmra.mrb[0].mxu0 %v4758
    %v5876 = vpop.f32.mrb[0].mxu0
    %v5877 = vadd.f32 %v5588, %v5876
    %v5878 = vpop.f32.mrb[0].mxu0
    %v5879 = vpop.f32.mrb[0].mxu0
    %v5880 = vadd.f32 %v5591, %v5879
    %v5881 = vpop.f32.mrb[0].mxu0
    %5882 = vmatprep.mubr.bf16.mxu0 %v4180
    %5883 = vmatmul.mubr.bf16.gmra.mrb[0].mxu0 %v4761
    %v5884 = vpop.f32.mrb[0].mxu0
    %v5885 = vadd.f32 %v5596, %v5884
    %v5886 = vpop.f32.mrb[0].mxu0
    %v5887 = vpop.f32.mrb[0].mxu0
    %v5888 = vadd.f32 %v5599, %v5887
    %v5889 = vpop.f32.mrb[0].mxu0
    %5890 = vmatprep.mubr.bf16.mxu0 %v4181
    %5891 = vmatmul.mubr.bf16.gmra.mrb[0].mxu0 %v4764
    %v5892 = vpop.f32.mrb[0].mxu0
    %v5893 = vadd.f32 %v5604, %v5892
    %v5894 = vpop.f32.mrb[0].mxu0
    %v5895 = vpop.f32.mrb[0].mxu0
    %v5896 = vadd.f32 %v5607, %v5895
    %v5897 = vpop.f32.mrb[0].mxu0
    %5898 = vmatprep.mubr.bf16.mxu0 %v4182
    %5899 = vmatmul.mubr.bf16.gmra.mrb[0].mxu0 %v4767
    %v5900 = vpop.f32.mrb[0].mxu0
    %v5901 = vadd.f32 %v5612, %v5900
    %v5902 = vpop.f32.mrb[0].mxu0
    %v5903 = vpop.f32.mrb[0].mxu0
    %v5904 = vadd.f32 %v5615, %v5903
    %v5905 = vpop.f32.mrb[0].mxu0
    %5906 = vmatprep.mubr.bf16.mxu0 %v4183
    %5907 = vmatmul.mubr.bf16.gmra.mrb[0].mxu0 %v4770
    %v5908 = vpop.f32.mrb[0].mxu0
    %v5909 = vadd.f32 %v5620, %v5908
    %v5910 = vpop.f32.mrb[0].mxu0
    %v5911 = vpop.f32.mrb[0].mxu0
    %v5912 = vadd.f32 %v5623, %v5911
    %v5913 = vpop.f32.mrb[0].mxu0
    %5914 = vmatprep.mubr.bf16.mxu0 %v4184
    %5915 = vmatmul.mubr.bf16.gmra.mrb[0].mxu0 %v4773
    %v5916 = vpop.f32.mrb[0].mxu0
    %v5917 = vadd.f32 %v5628, %v5916
    %v5918 = vpop.f32.mrb[0].mxu0
    %v5919 = vpop.f32.mrb[0].mxu0
    %v5920 = vadd.f32 %v5631, %v5919
    %v5921 = vpop.f32.mrb[0].mxu0
    %5922 = vmatprep.mubr.bf16.mxu0 %v4185
    %5923 = vmatmul.mubr.bf16.gmra.mrb[0].mxu0 %v4776
    %v5924 = vpop.f32.mrb[0].mxu0
    %v5925 = vadd.f32 %v5636, %v5924
    %v5926 = vpop.f32.mrb[0].mxu0
    %v5927 = vpop.f32.mrb[0].mxu0
    %v5928 = vadd.f32 %v5639, %v5927
    %v5929 = vpop.f32.mrb[0].mxu0
    %5930 = vmatprep.mubr.bf16.mxu0 %v4186
    %5931 = vmatmul.mubr.bf16.gmra.mrb[0].mxu0 %v4779
    %v5932 = vpop.f32.mrb[0].mxu0
    %v5933 = vadd.f32 %v5644, %v5932
    %v5934 = vpop.f32.mrb[0].mxu0
    %v5935 = vpop.f32.mrb[0].mxu0
    %v5936 = vadd.f32 %v5647, %v5935
    %v5937 = vpop.f32.mrb[0].mxu0
    %5938 = vmatprep.mubr.bf16.mxu0 %v4187
    %5939 = vmatmul.mubr.bf16.gmra.mrb[0].mxu0 %v4782
    %v5940 = vpop.f32.mrb[0].mxu0
    %v5941 = vadd.f32 %v5652, %v5940
    %v5942 = vpop.f32.mrb[0].mxu0
    %v5943 = vpop.f32.mrb[0].mxu0
    %v5944 = vadd.f32 %v5655, %v5943
    %v5945 = vpop.f32.mrb[0].mxu0
    %5946 = vmatprep.mubr.bf16.mxu0 %v4188
    %5947 = vmatmul.mubr.bf16.gmra.mrb[0].mxu0 %v4785
    %v5948 = vpop.f32.mrb[0].mxu0
    %v5949 = vadd.f32 %v5660, %v5948
    %v5950 = vpop.f32.mrb[0].mxu0
    %v5951 = vpop.f32.mrb[0].mxu0
    %v5952 = vadd.f32 %v5663, %v5951
    %v5953 = vpop.f32.mrb[0].mxu0
    %5954 = vmatprep.mubr.bf16.mxu0 %v4189
    %5955 = vmatmul.mubr.bf16.gmra.mrb[0].mxu0 %v4788
    %v5956 = vpop.f32.mrb[0].mxu0
    %v5957 = vadd.f32 %v5668, %v5956
    %v5958 = vpop.f32.mrb[0].mxu0
    %v5959 = vpop.f32.mrb[0].mxu0
    %v5960 = vadd.f32 %v5671, %v5959
    %v5961 = vpop.f32.mrb[0].mxu0
    %5962 = vmatprep.mubr.bf16.mxu0 %v4190
    %5963 = vmatmul.mubr.bf16.gmra.mrb[0].mxu0 %v4791
    %v5964 = vpop.f32.mrb[0].mxu0
    %v5965 = vadd.f32 %v5676, %v5964
    %v5966 = vpop.f32.mrb[0].mxu0
    %v5967 = vpop.f32.mrb[0].mxu0
    %v5968 = vadd.f32 %v5679, %v5967
    %v5969 = vpop.f32.mrb[0].mxu0
    %5970 = vmatprep.mubr.bf16.mxu0 %v4191
    %5971 = vmatmul.mubr.bf16.gmra.mrb[0].mxu0 %v4794
    %v5972 = vpop.f32.mrb[0].mxu0
    %v5973 = vadd.f32 %v5684, %v5972
    %v5974 = vpop.f32.mrb[0].mxu0
    %v5975 = vpop.f32.mrb[0].mxu0
    %v5976 = vadd.f32 %v5687, %v5975
    %v5977 = vpop.f32.mrb[0].mxu0
    %5978 = vmatprep.mubr.bf16.mxu0 %v4192
    %5979 = vmatmul.mubr.bf16.gmra.mrb[0].mxu0 %v4797
    %v5980 = vpop.f32.mrb[0].mxu0
    %v5981 = vadd.f32 %v5692, %v5980
    %v5982 = vpop.f32.mrb[0].mxu0
    %v5983 = vpop.f32.mrb[0].mxu0
    %v5984 = vadd.f32 %v5695, %v5983
    %v5985 = vpop.f32.mrb[0].mxu0
    %5986 = vdwg.mxu0
    %5987 = vmatprep.subr.bf16.mxu0 0
    %5988 = vmatpush1.bf16.msra.mxu0 %v5297
    %5989 = vmatprep.subr.bf16.mxu0 0
    %5990 = vmatpush1.bf16.msra.mxu0 %v5298
    %5991 = vmatprep.subr.bf16.mxu0 0
    %5992 = vmatpush1.bf16.msra.mxu0 %v5299
    %5993 = vmatprep.subr.bf16.mxu0 0
    %5994 = vmatpush1.bf16.msra.mxu0 %v5300
    %5995 = vmatprep.subr.bf16.mxu0 0
    %5996 = vmatpush1.bf16.msra.mxu0 %v5301
    %5997 = vmatprep.subr.bf16.mxu0 0
    %5998 = vmatpush1.bf16.msra.mxu0 %v5302
    %5999 = vmatprep.subr.bf16.mxu0 0
    %6000 = vmatpush1.bf16.msra.mxu0 %v5303
    %6001 = vmatprep.subr.bf16.mxu0 0
    %6002 = vmatpush1.bf16.msra.mxu0 %v5304
    %6003 = vmatprep.subr.bf16.mxu0 0
    %6004 = vmatpush1.bf16.msra.mxu0 %v5305
    %6005 = vmatprep.subr.bf16.mxu0 0
    %6006 = vmatpush1.bf16.msra.mxu0 %v5306
    %6007 = vmatprep.subr.bf16.mxu0 0
    %6008 = vmatpush1.bf16.msra.mxu0 %v5307
    %6009 = vmatprep.subr.bf16.mxu0 0
    %6010 = vmatpush1.bf16.msra.mxu0 %v5308
    %6011 = vmatprep.subr.bf16.mxu0 0
    %6012 = vmatpush1.bf16.msra.mxu0 %v5309
    %6013 = vmatprep.subr.bf16.mxu0 0
    %6014 = vmatpush1.bf16.msra.mxu0 %v5310
    %6015 = vmatprep.subr.bf16.mxu0 0
    %6016 = vmatpush1.bf16.msra.mxu0 %v5311
    %6017 = vmatprep.subr.bf16.mxu0 0
    %6018 = vmatpush1.bf16.msra.mxu0 %v5312
    %6019 = vmatprep.mubr.bf16.mxu0 %v4707
    %6020 = vmatmul.mubr.bf16.gmra.mrb[0].mxu0 %v4236
    %v6021 = vpop.f32.mrb[0].mxu0
    %v6022 = vadd.f32 %v5733, %v6021
    %v6023 = vpop.f32.mrb[0].mxu0
    %v6024 = vpop.f32.mrb[0].mxu0
    %v6025 = vadd.f32 %v5736, %v6024
    %v6026 = vpop.f32.mrb[0].mxu0
    %6027 = vmatprep.mubr.bf16.mxu0 %v4710
    %6028 = vmatmul.mubr.bf16.gmra.mrb[0].mxu0 %v4248
    %v6029 = vpop.f32.mrb[0].mxu0
    %v6030 = vadd.f32 %v5741, %v6029
    %v6031 = vpop.f32.mrb[0].mxu0
    %v6032 = vpop.f32.mrb[0].mxu0
    %v6033 = vadd.f32 %v5744, %v6032
    %v6034 = vpop.f32.mrb[0].mxu0
    %6035 = vmatprep.mubr.bf16.mxu0 %v4713
    %6036 = vmatmul.mubr.bf16.gmra.mrb[0].mxu0 %v4260
    %v6037 = vpop.f32.mrb[0].mxu0
    %v6038 = vadd.f32 %v5749, %v6037
    %v6039 = vpop.f32.mrb[0].mxu0
    %v6040 = vpop.f32.mrb[0].mxu0
    %v6041 = vadd.f32 %v5752, %v6040
    %v6042 = vpop.f32.mrb[0].mxu0
    %6043 = vmatprep.mubr.bf16.mxu0 %v4716
    %6044 = vmatmul.mubr.bf16.gmra.mrb[0].mxu0 %v4272
    %v6045 = vpop.f32.mrb[0].mxu0
    %v6046 = vadd.f32 %v5757, %v6045
    %v6047 = vpop.f32.mrb[0].mxu0
    %v6048 = vpop.f32.mrb[0].mxu0
    %v6049 = vadd.f32 %v5760, %v6048
    %v6050 = vpop.f32.mrb[0].mxu0
    %6051 = vmatprep.mubr.bf16.mxu0 %v4719
    %6052 = vmatmul.mubr.bf16.gmra.mrb[0].mxu0 %v4284
    %v6053 = vpop.f32.mrb[0].mxu0
    %v6054 = vadd.f32 %v5765, %v6053
    %v6055 = vpop.f32.mrb[0].mxu0
    %v6056 = vpop.f32.mrb[0].mxu0
    %v6057 = vadd.f32 %v5768, %v6056
    %v6058 = vpop.f32.mrb[0].mxu0
    %6059 = vmatprep.mubr.bf16.mxu0 %v4722
    %6060 = vmatmul.mubr.bf16.gmra.mrb[0].mxu0 %v4296
    %v6061 = vpop.f32.mrb[0].mxu0
    %v6062 = vadd.f32 %v5773, %v6061
    %v6063 = vpop.f32.mrb[0].mxu0
    %v6064 = vpop.f32.mrb[0].mxu0
    %v6065 = vadd.f32 %v5776, %v6064
    %v6066 = vpop.f32.mrb[0].mxu0
    %6067 = vmatprep.mubr.bf16.mxu0 %v4725
    %6068 = vmatmul.mubr.bf16.gmra.mrb[0].mxu0 %v4308
    %v6069 = vpop.f32.mrb[0].mxu0
    %v6070 = vadd.f32 %v5781, %v6069
    %v6071 = vpop.f32.mrb[0].mxu0
    %v6072 = vpop.f32.mrb[0].mxu0
    %v6073 = vadd.f32 %v5784, %v6072
    %v6074 = vpop.f32.mrb[0].mxu0
    %6075 = vmatprep.mubr.bf16.mxu0 %v4728
    %6076 = vmatmul.mubr.bf16.gmra.mrb[0].mxu0 %v4320
    %v6077 = vpop.f32.mrb[0].mxu0
    %v6078 = vadd.f32 %v5789, %v6077
    %v6079 = vpop.f32.mrb[0].mxu0
    %v6080 = vpop.f32.mrb[0].mxu0
    %v6081 = vadd.f32 %v5792, %v6080
    %v6082 = vpop.f32.mrb[0].mxu0
    %6083 = vmatprep.mubr.bf16.mxu0 %v4731
    %6084 = vmatmul.mubr.bf16.gmra.mrb[0].mxu0 %v4332
    %v6085 = vpop.f32.mrb[0].mxu0
    %v6086 = vadd.f32 %v5797, %v6085
    %v6087 = vpop.f32.mrb[0].mxu0
    %v6088 = vpop.f32.mrb[0].mxu0
    %v6089 = vadd.f32 %v5800, %v6088
    %v6090 = vpop.f32.mrb[0].mxu0
    %6091 = vmatprep.mubr.bf16.mxu0 %v4734
    %6092 = vmatmul.mubr.bf16.gmra.mrb[0].mxu0 %v4344
    %v6093 = vpop.f32.mrb[0].mxu0
    %v6094 = vadd.f32 %v5805, %v6093
    %v6095 = vpop.f32.mrb[0].mxu0
    %v6096 = vpop.f32.mrb[0].mxu0
    %v6097 = vadd.f32 %v5808, %v6096
    %v6098 = vpop.f32.mrb[0].mxu0
    %6099 = vmatprep.mubr.bf16.mxu0 %v4737
    %6100 = vmatmul.mubr.bf16.gmra.mrb[0].mxu0 %v4356
    %v6101 = vpop.f32.mrb[0].mxu0
    %v6102 = vadd.f32 %v5813, %v6101
    %v6103 = vpop.f32.mrb[0].mxu0
    %v6104 = vpop.f32.mrb[0].mxu0
    %v6105 = vadd.f32 %v5816, %v6104
    %v6106 = vpop.f32.mrb[0].mxu0
    %6107 = vmatprep.mubr.bf16.mxu0 %v4740
    %6108 = vmatmul.mubr.bf16.gmra.mrb[0].mxu0 %v4368
    %v6109 = vpop.f32.mrb[0].mxu0
    %v6110 = vadd.f32 %v5821, %v6109
    %v6111 = vpop.f32.mrb[0].mxu0
    %v6112 = vpop.f32.mrb[0].mxu0
    %v6113 = vadd.f32 %v5824, %v6112
    %v6114 = vpop.f32.mrb[0].mxu0
    %6115 = vmatprep.mubr.bf16.mxu0 %v4743
    %6116 = vmatmul.mubr.bf16.gmra.mrb[0].mxu0 %v4380
    %v6117 = vpop.f32.mrb[0].mxu0
    %v6118 = vadd.f32 %v5829, %v6117
    %v6119 = vpop.f32.mrb[0].mxu0
    %v6120 = vpop.f32.mrb[0].mxu0
    %v6121 = vadd.f32 %v5832, %v6120
    %v6122 = vpop.f32.mrb[0].mxu0
    %6123 = vmatprep.mubr.bf16.mxu0 %v4746
    %6124 = vmatmul.mubr.bf16.gmra.mrb[0].mxu0 %v4392
    %v6125 = vpop.f32.mrb[0].mxu0
    %v6126 = vadd.f32 %v5837, %v6125
    %v6127 = vpop.f32.mrb[0].mxu0
    %v6128 = vpop.f32.mrb[0].mxu0
    %v6129 = vadd.f32 %v5840, %v6128
    %v6130 = vpop.f32.mrb[0].mxu0
    %6131 = vmatprep.mubr.bf16.mxu0 %v4749
    %6132 = vmatmul.mubr.bf16.gmra.mrb[0].mxu0 %v4404
    %v6133 = vpop.f32.mrb[0].mxu0
    %v6134 = vadd.f32 %v5845, %v6133
    %v6135 = vpop.f32.mrb[0].mxu0
    %v6136 = vpop.f32.mrb[0].mxu0
    %v6137 = vadd.f32 %v5848, %v6136
    %v6138 = vpop.f32.mrb[0].mxu0
    %6139 = vmatprep.mubr.bf16.mxu0 %v4752
    %6140 = vmatmul.mubr.bf16.gmra.mrb[0].mxu0 %v4416
    %v6141 = vpop.f32.mrb[0].mxu0
    %v6142 = vadd.f32 %v5853, %v6141
    %v6143 = vpop.f32.mrb[0].mxu0
    %v6144 = vpop.f32.mrb[0].mxu0
    %v6145 = vadd.f32 %v5856, %v6144
    %v6146 = vpop.f32.mrb[0].mxu0
    %6147 = vmatprep.mubr.bf16.mxu0 %v4755
    %6148 = vmatmul.mubr.bf16.gmra.mrb[0].mxu0 %v4428
    %v6149 = vpop.f32.mrb[0].mxu0
    %v6150 = vadd.f32 %v5861, %v6149
    %v6151 = vpop.f32.mrb[0].mxu0
    %v6152 = vpop.f32.mrb[0].mxu0
    %v6153 = vadd.f32 %v5864, %v6152
    %v6154 = vpop.f32.mrb[0].mxu0
    %6155 = vmatprep.mubr.bf16.mxu0 %v4758
    %6156 = vmatmul.mubr.bf16.gmra.mrb[0].mxu0 %v4440
    %v6157 = vpop.f32.mrb[0].mxu0
    %v6158 = vadd.f32 %v5869, %v6157
    %v6159 = vpop.f32.mrb[0].mxu0
    %v6160 = vpop.f32.mrb[0].mxu0
    %v6161 = vadd.f32 %v5872, %v6160
    %v6162 = vpop.f32.mrb[0].mxu0
    %6163 = vmatprep.mubr.bf16.mxu0 %v4761
    %6164 = vmatmul.mubr.bf16.gmra.mrb[0].mxu0 %v4452
    %v6165 = vpop.f32.mrb[0].mxu0
    %v6166 = vadd.f32 %v5877, %v6165
    %v6167 = vpop.f32.mrb[0].mxu0
    %v6168 = vpop.f32.mrb[0].mxu0
    %v6169 = vadd.f32 %v5880, %v6168
    %v6170 = vpop.f32.mrb[0].mxu0
    %6171 = vmatprep.mubr.bf16.mxu0 %v4764
    %6172 = vmatmul.mubr.bf16.gmra.mrb[0].mxu0 %v4464
    %v6173 = vpop.f32.mrb[0].mxu0
    %v6174 = vadd.f32 %v5885, %v6173
    %v6175 = vpop.f32.mrb[0].mxu0
    %v6176 = vpop.f32.mrb[0].mxu0
    %v6177 = vadd.f32 %v5888, %v6176
    %v6178 = vpop.f32.mrb[0].mxu0
    %6179 = vmatprep.mubr.bf16.mxu0 %v4767
    %6180 = vmatmul.mubr.bf16.gmra.mrb[0].mxu0 %v4476
    %v6181 = vpop.f32.mrb[0].mxu0
    %v6182 = vadd.f32 %v5893, %v6181
    %v6183 = vpop.f32.mrb[0].mxu0
    %v6184 = vpop.f32.mrb[0].mxu0
    %v6185 = vadd.f32 %v5896, %v6184
    %v6186 = vpop.f32.mrb[0].mxu0
    %6187 = vmatprep.mubr.bf16.mxu0 %v4770
    %6188 = vmatmul.mubr.bf16.gmra.mrb[0].mxu0 %v4488
    %v6189 = vpop.f32.mrb[0].mxu0
    %v6190 = vadd.f32 %v5901, %v6189
    %v6191 = vpop.f32.mrb[0].mxu0
    %v6192 = vpop.f32.mrb[0].mxu0
    %v6193 = vadd.f32 %v5904, %v6192
    %v6194 = vpop.f32.mrb[0].mxu0
    %6195 = vmatprep.mubr.bf16.mxu0 %v4773
    %6196 = vmatmul.mubr.bf16.gmra.mrb[0].mxu0 %v4500
    %v6197 = vpop.f32.mrb[0].mxu0
    %v6198 = vadd.f32 %v5909, %v6197
    %v6199 = vpop.f32.mrb[0].mxu0
    %v6200 = vpop.f32.mrb[0].mxu0
    %v6201 = vadd.f32 %v5912, %v6200
    %v6202 = vpop.f32.mrb[0].mxu0
    %6203 = vmatprep.mubr.bf16.mxu0 %v4776
    %6204 = vmatmul.mubr.bf16.gmra.mrb[0].mxu0 %v4512
    %v6205 = vpop.f32.mrb[0].mxu0
    %v6206 = vadd.f32 %v5917, %v6205
    %v6207 = vpop.f32.mrb[0].mxu0
    %v6208 = vpop.f32.mrb[0].mxu0
    %v6209 = vadd.f32 %v5920, %v6208
    %v6210 = vpop.f32.mrb[0].mxu0
    %6211 = vmatprep.mubr.bf16.mxu0 %v4779
    %6212 = vmatmul.mubr.bf16.gmra.mrb[0].mxu0 %v4524
    %v6213 = vpop.f32.mrb[0].mxu0
    %v6214 = vadd.f32 %v5925, %v6213
    %v6215 = vpop.f32.mrb[0].mxu0
    %v6216 = vpop.f32.mrb[0].mxu0
    %v6217 = vadd.f32 %v5928, %v6216
    %v6218 = vpop.f32.mrb[0].mxu0
    %6219 = vmatprep.mubr.bf16.mxu0 %v4782
    %6220 = vmatmul.mubr.bf16.gmra.mrb[0].mxu0 %v4536
    %v6221 = vpop.f32.mrb[0].mxu0
    %v6222 = vadd.f32 %v5933, %v6221
    %v6223 = vpop.f32.mrb[0].mxu0
    %v6224 = vpop.f32.mrb[0].mxu0
    %v6225 = vadd.f32 %v5936, %v6224
    %v6226 = vpop.f32.mrb[0].mxu0
    %6227 = vmatprep.mubr.bf16.mxu0 %v4785
    %6228 = vmatmul.mubr.bf16.gmra.mrb[0].mxu0 %v4548
    %v6229 = vpop.f32.mrb[0].mxu0
    %v6230 = vadd.f32 %v5941, %v6229
    %v6231 = vpop.f32.mrb[0].mxu0
    %v6232 = vpop.f32.mrb[0].mxu0
    %v6233 = vadd.f32 %v5944, %v6232
    %v6234 = vpop.f32.mrb[0].mxu0
    %6235 = vmatprep.mubr.bf16.mxu0 %v4788
    %6236 = vmatmul.mubr.bf16.gmra.mrb[0].mxu0 %v4560
    %v6237 = vpop.f32.mrb[0].mxu0
    %v6238 = vadd.f32 %v5949, %v6237
    %v6239 = vpop.f32.mrb[0].mxu0
    %v6240 = vpop.f32.mrb[0].mxu0
    %v6241 = vadd.f32 %v5952, %v6240
    %v6242 = vpop.f32.mrb[0].mxu0
    %6243 = vmatprep.mubr.bf16.mxu0 %v4791
    %6244 = vmatmul.mubr.bf16.gmra.mrb[0].mxu0 %v4572
    %v6245 = vpop.f32.mrb[0].mxu0
    %v6246 = vadd.f32 %v5957, %v6245
    %v6247 = vpop.f32.mrb[0].mxu0
    %v6248 = vpop.f32.mrb[0].mxu0
    %v6249 = vadd.f32 %v5960, %v6248
    %v6250 = vpop.f32.mrb[0].mxu0
    %6251 = vmatprep.mubr.bf16.mxu0 %v4794
    %6252 = vmatmul.mubr.bf16.gmra.mrb[0].mxu0 %v4584
    %v6253 = vpop.f32.mrb[0].mxu0
    %v6254 = vadd.f32 %v5965, %v6253
    %v6255 = vpop.f32.mrb[0].mxu0
    %v6256 = vpop.f32.mrb[0].mxu0
    %v6257 = vadd.f32 %v5968, %v6256
    %v6258 = vpop.f32.mrb[0].mxu0
    %6259 = vmatprep.mubr.bf16.mxu0 %v4797
    %6260 = vmatmul.mubr.bf16.gmra.mrb[0].mxu0 %v4596
    %v6261 = vpop.f32.mrb[0].mxu0
    %v6262 = vadd.f32 %v5973, %v6261
    %v6263 = vpop.f32.mrb[0].mxu0
    %v6264 = vpop.f32.mrb[0].mxu0
    %v6265 = vadd.f32 %v5976, %v6264
    %v6266 = vpop.f32.mrb[0].mxu0
    %6267 = vmatprep.mubr.bf16.mxu0 %v4800
    %6268 = vmatmul.mubr.bf16.gmra.mrb[0].mxu0 %v4608
    %v6269 = vpop.f32.mrb[0].mxu0
    %v6270 = vadd.f32 %v5981, %v6269
    %v6271 = vpop.f32.mrb[0].mxu0
    %v6272 = vpop.f32.mrb[0].mxu0
    %v6273 = vadd.f32 %v5984, %v6272
    %v6274 = vpop.f32.mrb[0].mxu0
    %6275 = vdwg.mxu0
    %6276 = vmatprep.subr.bf16.mxu0 0
    %6277 = vmatpush1.bf16.msra.mxu0 %v5313
    %6278 = vmatprep.subr.bf16.mxu0 0
    %6279 = vmatpush1.bf16.msra.mxu0 %v5314
    %6280 = vmatprep.subr.bf16.mxu0 0
    %6281 = vmatpush1.bf16.msra.mxu0 %v5315
    %6282 = vmatprep.subr.bf16.mxu0 0
    %6283 = vmatpush1.bf16.msra.mxu0 %v5316
    %6284 = vmatprep.subr.bf16.mxu0 0
    %6285 = vmatpush1.bf16.msra.mxu0 %v5317
    %6286 = vmatprep.subr.bf16.mxu0 0
    %6287 = vmatpush1.bf16.msra.mxu0 %v5318
    %6288 = vmatprep.subr.bf16.mxu0 0
    %6289 = vmatpush1.bf16.msra.mxu0 %v5319
    %6290 = vmatprep.subr.bf16.mxu0 0
    %6291 = vmatpush1.bf16.msra.mxu0 %v5320
    %6292 = vmatprep.subr.bf16.mxu0 0
    %6293 = vmatpush1.bf16.msra.mxu0 %v5321
    %6294 = vmatprep.subr.bf16.mxu0 0
    %6295 = vmatpush1.bf16.msra.mxu0 %v5322
    %6296 = vmatprep.subr.bf16.mxu0 0
    %6297 = vmatpush1.bf16.msra.mxu0 %v5323
    %6298 = vmatprep.subr.bf16.mxu0 0
    %6299 = vmatpush1.bf16.msra.mxu0 %v5324
    %6300 = vmatprep.subr.bf16.mxu0 0
    %6301 = vmatpush1.bf16.msra.mxu0 %v5325
    %6302 = vmatprep.subr.bf16.mxu0 0
    %6303 = vmatpush1.bf16.msra.mxu0 %v5326
    %6304 = vmatprep.subr.bf16.mxu0 0
    %6305 = vmatpush1.bf16.msra.mxu0 %v5327
    %6306 = vmatprep.subr.bf16.mxu0 0
    %6307 = vmatpush1.bf16.msra.mxu0 %v5328
    %6308 = vmatprep.mubr.bf16.mxu0 %v4248
    %6309 = vmatmul.mubr.bf16.gmra.mrb[0].mxu0 %v4162
    %v6310 = vpop.f32.mrb[0].mxu0
    %v6311 = vadd.f32 %v6022, %v6310
    %v6312 = vpop.f32.mrb[0].mxu0
    %v6313 = vpop.f32.mrb[0].mxu0
    %v6314 = vadd.f32 %v6025, %v6313
    %v6315 = vpop.f32.mrb[0].mxu0
    %6316 = vmatprep.mubr.bf16.mxu0 %v4260
    %6317 = vmatmul.mubr.bf16.gmra.mrb[0].mxu0 %v4163
    %v6318 = vpop.f32.mrb[0].mxu0
    %v6319 = vadd.f32 %v6030, %v6318
    %v6320 = vpop.f32.mrb[0].mxu0
    %v6321 = vpop.f32.mrb[0].mxu0
    %v6322 = vadd.f32 %v6033, %v6321
    %v6323 = vpop.f32.mrb[0].mxu0
    %6324 = vmatprep.mubr.bf16.mxu0 %v4272
    %6325 = vmatmul.mubr.bf16.gmra.mrb[0].mxu0 %v4164
    %v6326 = vpop.f32.mrb[0].mxu0
    %v6327 = vadd.f32 %v6038, %v6326
    %v6328 = vpop.f32.mrb[0].mxu0
    %v6329 = vpop.f32.mrb[0].mxu0
    %v6330 = vadd.f32 %v6041, %v6329
    %v6331 = vpop.f32.mrb[0].mxu0
    %6332 = vmatprep.mubr.bf16.mxu0 %v4284
    %6333 = vmatmul.mubr.bf16.gmra.mrb[0].mxu0 %v4165
    %v6334 = vpop.f32.mrb[0].mxu0
    %v6335 = vadd.f32 %v6046, %v6334
    %v6336 = vpop.f32.mrb[0].mxu0
    %v6337 = vpop.f32.mrb[0].mxu0
    %v6338 = vadd.f32 %v6049, %v6337
    %v6339 = vpop.f32.mrb[0].mxu0
    %6340 = vmatprep.mubr.bf16.mxu0 %v4296
    %6341 = vmatmul.mubr.bf16.gmra.mrb[0].mxu0 %v4166
    %v6342 = vpop.f32.mrb[0].mxu0
    %v6343 = vadd.f32 %v6054, %v6342
    %v6344 = vpop.f32.mrb[0].mxu0
    %v6345 = vpop.f32.mrb[0].mxu0
    %v6346 = vadd.f32 %v6057, %v6345
    %v6347 = vpop.f32.mrb[0].mxu0
    %6348 = vmatprep.mubr.bf16.mxu0 %v4308
    %6349 = vmatmul.mubr.bf16.gmra.mrb[0].mxu0 %v4167
    %v6350 = vpop.f32.mrb[0].mxu0
    %v6351 = vadd.f32 %v6062, %v6350
    %v6352 = vpop.f32.mrb[0].mxu0
    %v6353 = vpop.f32.mrb[0].mxu0
    %v6354 = vadd.f32 %v6065, %v6353
    %v6355 = vpop.f32.mrb[0].mxu0
    %6356 = vmatprep.mubr.bf16.mxu0 %v4320
    %6357 = vmatmul.mubr.bf16.gmra.mrb[0].mxu0 %v4168
    %v6358 = vpop.f32.mrb[0].mxu0
    %v6359 = vadd.f32 %v6070, %v6358
    %v6360 = vpop.f32.mrb[0].mxu0
    %v6361 = vpop.f32.mrb[0].mxu0
    %v6362 = vadd.f32 %v6073, %v6361
    %v6363 = vpop.f32.mrb[0].mxu0
    %6364 = vmatprep.mubr.bf16.mxu0 %v4332
    %6365 = vmatmul.mubr.bf16.gmra.mrb[0].mxu0 %v4169
    %v6366 = vpop.f32.mrb[0].mxu0
    %v6367 = vadd.f32 %v6078, %v6366
    %v6368 = vpop.f32.mrb[0].mxu0
    %v6369 = vpop.f32.mrb[0].mxu0
    %v6370 = vadd.f32 %v6081, %v6369
    %v6371 = vpop.f32.mrb[0].mxu0
    %6372 = vmatprep.mubr.bf16.mxu0 %v4344
    %6373 = vmatmul.mubr.bf16.gmra.mrb[0].mxu0 %v4170
    %v6374 = vpop.f32.mrb[0].mxu0
    %v6375 = vadd.f32 %v6086, %v6374
    %v6376 = vpop.f32.mrb[0].mxu0
    %v6377 = vpop.f32.mrb[0].mxu0
    %v6378 = vadd.f32 %v6089, %v6377
    %v6379 = vpop.f32.mrb[0].mxu0
    %6380 = vmatprep.mubr.bf16.mxu0 %v4356
    %6381 = vmatmul.mubr.bf16.gmra.mrb[0].mxu0 %v4171
    %v6382 = vpop.f32.mrb[0].mxu0
    %v6383 = vadd.f32 %v6094, %v6382
    %v6384 = vpop.f32.mrb[0].mxu0
    %v6385 = vpop.f32.mrb[0].mxu0
    %v6386 = vadd.f32 %v6097, %v6385
    %v6387 = vpop.f32.mrb[0].mxu0
    %6388 = vmatprep.mubr.bf16.mxu0 %v4368
    %6389 = vmatmul.mubr.bf16.gmra.mrb[0].mxu0 %v4172
    %v6390 = vpop.f32.mrb[0].mxu0
    %v6391 = vadd.f32 %v6102, %v6390
    %v6392 = vpop.f32.mrb[0].mxu0
    %v6393 = vpop.f32.mrb[0].mxu0
    %v6394 = vadd.f32 %v6105, %v6393
    %v6395 = vpop.f32.mrb[0].mxu0
    %6396 = vmatprep.mubr.bf16.mxu0 %v4380
    %6397 = vmatmul.mubr.bf16.gmra.mrb[0].mxu0 %v4173
    %v6398 = vpop.f32.mrb[0].mxu0
    %v6399 = vadd.f32 %v6110, %v6398
    %v6400 = vpop.f32.mrb[0].mxu0
    %v6401 = vpop.f32.mrb[0].mxu0
    %v6402 = vadd.f32 %v6113, %v6401
    %v6403 = vpop.f32.mrb[0].mxu0
    %6404 = vmatprep.mubr.bf16.mxu0 %v4392
    %6405 = vmatmul.mubr.bf16.gmra.mrb[0].mxu0 %v4174
    %v6406 = vpop.f32.mrb[0].mxu0
    %v6407 = vadd.f32 %v6118, %v6406
    %v6408 = vpop.f32.mrb[0].mxu0
    %v6409 = vpop.f32.mrb[0].mxu0
    %v6410 = vadd.f32 %v6121, %v6409
    %v6411 = vpop.f32.mrb[0].mxu0
    %6412 = vmatprep.mubr.bf16.mxu0 %v4404
    %6413 = vmatmul.mubr.bf16.gmra.mrb[0].mxu0 %v4175
    %v6414 = vpop.f32.mrb[0].mxu0
    %v6415 = vadd.f32 %v6126, %v6414
    %v6416 = vpop.f32.mrb[0].mxu0
    %v6417 = vpop.f32.mrb[0].mxu0
    %v6418 = vadd.f32 %v6129, %v6417
    %v6419 = vpop.f32.mrb[0].mxu0
    %6420 = vmatprep.mubr.bf16.mxu0 %v4416
    %6421 = vmatmul.mubr.bf16.gmra.mrb[0].mxu0 %v4176
    %v6422 = vpop.f32.mrb[0].mxu0
    %v6423 = vadd.f32 %v6134, %v6422
    %v6424 = vpop.f32.mrb[0].mxu0
    %v6425 = vpop.f32.mrb[0].mxu0
    %v6426 = vadd.f32 %v6137, %v6425
    %v6427 = vpop.f32.mrb[0].mxu0
    %6428 = vmatprep.mubr.bf16.mxu0 %v4404
    %6429 = vmatmul.mubr.bf16.gmra.mrb[0].mxu0 %v4175
    %v6430 = vpop.f32.mrb[0].mxu0
    %v6431 = vadd.f32 %v6142, %v6430
    %v6432 = vpop.f32.mrb[0].mxu0
    %v6433 = vpop.f32.mrb[0].mxu0
    %v6434 = vadd.f32 %v6145, %v6433
    %v6435 = vpop.f32.mrb[0].mxu0
    %6436 = vmatprep.mubr.bf16.mxu0 %v4440
    %6437 = vmatmul.mubr.bf16.gmra.mrb[0].mxu0 %v4178
    %v6438 = vpop.f32.mrb[0].mxu0
    %v6439 = vadd.f32 %v6150, %v6438
    %v6440 = vpop.f32.mrb[0].mxu0
    %v6441 = vpop.f32.mrb[0].mxu0
    %v6442 = vadd.f32 %v6153, %v6441
    %v6443 = vpop.f32.mrb[0].mxu0
    %6444 = vmatprep.mubr.bf16.mxu0 %v4452
    %6445 = vmatmul.mubr.bf16.gmra.mrb[0].mxu0 %v4179
    %v6446 = vpop.f32.mrb[0].mxu0
    %v6447 = vadd.f32 %v6158, %v6446
    %v6448 = vpop.f32.mrb[0].mxu0
    %v6449 = vpop.f32.mrb[0].mxu0
    %v6450 = vadd.f32 %v6161, %v6449
    %v6451 = vpop.f32.mrb[0].mxu0
    %6452 = vmatprep.mubr.bf16.mxu0 %v4464
    %6453 = vmatmul.mubr.bf16.gmra.mrb[0].mxu0 %v4180
    %v6454 = vpop.f32.mrb[0].mxu0
    %v6455 = vadd.f32 %v6166, %v6454
    %v6456 = vpop.f32.mrb[0].mxu0
    %v6457 = vpop.f32.mrb[0].mxu0
    %v6458 = vadd.f32 %v6169, %v6457
    %v6459 = vpop.f32.mrb[0].mxu0
    %6460 = vmatprep.mubr.bf16.mxu0 %v4476
    %6461 = vmatmul.mubr.bf16.gmra.mrb[0].mxu0 %v4181
    %v6462 = vpop.f32.mrb[0].mxu0
    %v6463 = vadd.f32 %v6174, %v6462
    %v6464 = vpop.f32.mrb[0].mxu0
    %v6465 = vpop.f32.mrb[0].mxu0
    %v6466 = vadd.f32 %v6177, %v6465
    %v6467 = vpop.f32.mrb[0].mxu0
    %6468 = vmatprep.mubr.bf16.mxu0 %v4488
    %6469 = vmatmul.mubr.bf16.gmra.mrb[0].mxu0 %v4182
    %v6470 = vpop.f32.mrb[0].mxu0
    %v6471 = vadd.f32 %v6182, %v6470
    %v6472 = vpop.f32.mrb[0].mxu0
    %v6473 = vpop.f32.mrb[0].mxu0
    %v6474 = vadd.f32 %v6185, %v6473
    %v6475 = vpop.f32.mrb[0].mxu0
    %6476 = vmatprep.mubr.bf16.mxu0 %v4500
    %6477 = vmatmul.mubr.bf16.gmra.mrb[0].mxu0 %v4183
    %v6478 = vpop.f32.mrb[0].mxu0
    %v6479 = vadd.f32 %v6190, %v6478
    %v6480 = vpop.f32.mrb[0].mxu0
    %v6481 = vpop.f32.mrb[0].mxu0
    %v6482 = vadd.f32 %v6193, %v6481
    %v6483 = vpop.f32.mrb[0].mxu0
    %6484 = vmatprep.mubr.bf16.mxu0 %v4512
    %6485 = vmatmul.mubr.bf16.gmra.mrb[0].mxu0 %v4184
    %v6486 = vpop.f32.mrb[0].mxu0
    %v6487 = vadd.f32 %v6198, %v6486
    %v6488 = vpop.f32.mrb[0].mxu0
    %v6489 = vpop.f32.mrb[0].mxu0
    %v6490 = vadd.f32 %v6201, %v6489
    %v6491 = vpop.f32.mrb[0].mxu0
    %6492 = vmatprep.mubr.bf16.mxu0 %v4524
    %6493 = vmatmul.mubr.bf16.gmra.mrb[0].mxu0 %v4185
    %v6494 = vpop.f32.mrb[0].mxu0
    %v6495 = vadd.f32 %v6206, %v6494
    %v6496 = vpop.f32.mrb[0].mxu0
    %v6497 = vpop.f32.mrb[0].mxu0
    %v6498 = vadd.f32 %v6209, %v6497
    %v6499 = vpop.f32.mrb[0].mxu0
    %6500 = vmatprep.mubr.bf16.mxu0 %v4536
    %6501 = vmatmul.mubr.bf16.gmra.mrb[0].mxu0 %v4186
    %v6502 = vpop.f32.mrb[0].mxu0
    %v6503 = vadd.f32 %v6214, %v6502
    %v6504 = vpop.f32.mrb[0].mxu0
    %v6505 = vpop.f32.mrb[0].mxu0
    %v6506 = vadd.f32 %v6217, %v6505
    %v6507 = vpop.f32.mrb[0].mxu0
    %6508 = vmatprep.mubr.bf16.mxu0 %v4548
    %6509 = vmatmul.mubr.bf16.gmra.mrb[0].mxu0 %v4187
    %v6510 = vpop.f32.mrb[0].mxu0
    %v6511 = vadd.f32 %v6222, %v6510
    %v6512 = vpop.f32.mrb[0].mxu0
    %v6513 = vpop.f32.mrb[0].mxu0
    %v6514 = vadd.f32 %v6225, %v6513
    %v6515 = vpop.f32.mrb[0].mxu0
    %6516 = vmatprep.mubr.bf16.mxu0 %v4560
    %6517 = vmatmul.mubr.bf16.gmra.mrb[0].mxu0 %v4188
    %v6518 = vpop.f32.mrb[0].mxu0
    %v6519 = vadd.f32 %v6230, %v6518
    %v6520 = vpop.f32.mrb[0].mxu0
    %v6521 = vpop.f32.mrb[0].mxu0
    %v6522 = vadd.f32 %v6233, %v6521
    %v6523 = vpop.f32.mrb[0].mxu0
    %6524 = vmatprep.mubr.bf16.mxu0 %v4572
    %6525 = vmatmul.mubr.bf16.gmra.mrb[0].mxu0 %v4189
    %v6526 = vpop.f32.mrb[0].mxu0
    %v6527 = vadd.f32 %v6238, %v6526
    %v6528 = vpop.f32.mrb[0].mxu0
    %v6529 = vpop.f32.mrb[0].mxu0
    %v6530 = vadd.f32 %v6241, %v6529
    %v6531 = vpop.f32.mrb[0].mxu0
    %6532 = vmatprep.mubr.bf16.mxu0 %v4584
    %6533 = vmatmul.mubr.bf16.gmra.mrb[0].mxu0 %v4190
    %v6534 = vpop.f32.mrb[0].mxu0
    %v6535 = vadd.f32 %v6246, %v6534
    %v6536 = vpop.f32.mrb[0].mxu0
    %v6537 = vpop.f32.mrb[0].mxu0
    %v6538 = vadd.f32 %v6249, %v6537
    %v6539 = vpop.f32.mrb[0].mxu0
    %6540 = vmatprep.mubr.bf16.mxu0 %v4596
    %6541 = vmatmul.mubr.bf16.gmra.mrb[0].mxu0 %v4191
    %v6542 = vpop.f32.mrb[0].mxu0
    %v6543 = vadd.f32 %v6254, %v6542
    %v6544 = vpop.f32.mrb[0].mxu0
    %v6545 = vpop.f32.mrb[0].mxu0
    %v6546 = vadd.f32 %v6257, %v6545
    %v6547 = vpop.f32.mrb[0].mxu0
    %6548 = vmatprep.mubr.bf16.mxu0 %v4608
    %6549 = vmatmul.mubr.bf16.gmra.mrb[0].mxu0 %v4192
    %v6550 = vpop.f32.mrb[0].mxu0
    %v6551 = vadd.f32 %v6262, %v6550
    %v6552 = vpop.f32.mrb[0].mxu0
    %v6553 = vpop.f32.mrb[0].mxu0
    %v6554 = vadd.f32 %v6265, %v6553
    %v6555 = vpop.f32.mrb[0].mxu0
    %6556 = vmatprep.mubr.bf16.mxu0 %v4596
    %6557 = vmatmul.mubr.bf16.gmra.mrb[0].mxu0 %v4191
    %v6558 = vpop.f32.mrb[0].mxu0
    %v6559 = vadd.f32 %v6270, %v6558
    %v6560 = vpop.f32.mrb[0].mxu0
    %v6561 = vpop.f32.mrb[0].mxu0
    %v6562 = vadd.f32 %v6273, %v6561
    %v6563 = vpop.f32.mrb[0].mxu0
    %6564 = vdwg.mxu0
    %6565 = vmatprep.subr.bf16.mxu0 0
    %6566 = vmatpush1.bf16.msra.mxu0 %v5329
    %6567 = vmatprep.subr.bf16.mxu0 0
    %6568 = vmatpush1.bf16.msra.mxu0 %v5330
    %6569 = vmatprep.subr.bf16.mxu0 0
    %6570 = vmatpush1.bf16.msra.mxu0 %v5331
    %6571 = vmatprep.subr.bf16.mxu0 0
    %6572 = vmatpush1.bf16.msra.mxu0 %v5332
    %6573 = vmatprep.subr.bf16.mxu0 0
    %6574 = vmatpush1.bf16.msra.mxu0 %v5333
    %6575 = vmatprep.subr.bf16.mxu0 0
    %6576 = vmatpush1.bf16.msra.mxu0 %v5334
    %6577 = vmatprep.subr.bf16.mxu0 0
    %6578 = vmatpush1.bf16.msra.mxu0 %v5335
    %6579 = vmatprep.subr.bf16.mxu0 0
    %6580 = vmatpush1.bf16.msra.mxu0 %v5336
    %6581 = vmatprep.subr.bf16.mxu0 0
    %6582 = vmatpush1.bf16.msra.mxu0 0
    %6583 = vmatprep.subr.bf16.mxu0 0
    %6584 = vmatpush1.bf16.msra.mxu0 0
    %6585 = vmatprep.subr.bf16.mxu0 0
    %6586 = vmatpush1.bf16.msra.mxu0 0
    %6587 = vmatprep.subr.bf16.mxu0 0
    %6588 = vmatpush1.bf16.msra.mxu0 0
    %6589 = vmatprep.subr.bf16.mxu0 0
    %6590 = vmatpush1.bf16.msra.mxu0 0
    %6591 = vmatprep.subr.bf16.mxu0 0
    %6592 = vmatpush1.bf16.msra.mxu0 0
    %6593 = vmatprep.subr.bf16.mxu0 0
    %6594 = vmatpush1.bf16.msra.mxu0 0
    %6595 = vmatprep.subr.bf16.mxu0 0
    %6596 = vmatpush1.bf16.msra.mxu0 0
    %6597 = vmatprep.mubr.bf16.mxu0 0
    %6598 = vmatmul.mubr.bf16.gmra.mrb[0].mxu0 %v4710
    %v6599 = vpop.f32.mrb[0].mxu0
    %v6600 = vadd.f32 %v6311, %v6599
    %v6601 = vpop.f32.mrb[0].mxu0
    %v6602 = vpop.f32.mrb[0].mxu0
    %v6603 = vadd.f32 %v6314, %v6602
    %v6604 = vpop.f32.mrb[0].mxu0
    %6605 = vmatprep.mubr.bf16.mxu0 0
    %6606 = vmatmul.mubr.bf16.gmra.mrb[0].mxu0 %v4713
    %v6607 = vpop.f32.mrb[0].mxu0
    %v6608 = vadd.f32 %v6319, %v6607
    %v6609 = vpop.f32.mrb[0].mxu0
    %v6610 = vpop.f32.mrb[0].mxu0
    %v6611 = vadd.f32 %v6322, %v6610
    %v6612 = vpop.f32.mrb[0].mxu0
    %6613 = vmatprep.mubr.bf16.mxu0 0
    %6614 = vmatmul.mubr.bf16.gmra.mrb[0].mxu0 %v4716
    %v6615 = vpop.f32.mrb[0].mxu0
    %v6616 = vadd.f32 %v6327, %v6615
    %v6617 = vpop.f32.mrb[0].mxu0
    %v6618 = vpop.f32.mrb[0].mxu0
    %v6619 = vadd.f32 %v6330, %v6618
    %v6620 = vpop.f32.mrb[0].mxu0
    %6621 = vmatprep.mubr.bf16.mxu0 0
    %6622 = vmatmul.mubr.bf16.gmra.mrb[0].mxu0 %v4719
    %v6623 = vpop.f32.mrb[0].mxu0
    %v6624 = vadd.f32 %v6335, %v6623
    %v6625 = vpop.f32.mrb[0].mxu0
    %v6626 = vpop.f32.mrb[0].mxu0
    %v6627 = vadd.f32 %v6338, %v6626
    %v6628 = vpop.f32.mrb[0].mxu0
    %6629 = vmatprep.mubr.bf16.mxu0 0
    %6630 = vmatmul.mubr.bf16.gmra.mrb[0].mxu0 %v4722
    %v6631 = vpop.f32.mrb[0].mxu0
    %v6632 = vadd.f32 %v6343, %v6631
    %v6633 = vpop.f32.mrb[0].mxu0
    %v6634 = vpop.f32.mrb[0].mxu0
    %v6635 = vadd.f32 %v6346, %v6634
    %v6636 = vpop.f32.mrb[0].mxu0
    %6637 = vmatprep.mubr.bf16.mxu0 0
    %6638 = vmatmul.mubr.bf16.gmra.mrb[0].mxu0 %v4725
    %v6639 = vpop.f32.mrb[0].mxu0
    %v6640 = vadd.f32 %v6351, %v6639
    %v6641 = vpop.f32.mrb[0].mxu0
    %v6642 = vpop.f32.mrb[0].mxu0
    %v6643 = vadd.f32 %v6354, %v6642
    %v6644 = vpop.f32.mrb[0].mxu0
    %6645 = vmatprep.mubr.bf16.mxu0 0
    %6646 = vmatmul.mubr.bf16.gmra.mrb[0].mxu0 %v4728
    %v6647 = vpop.f32.mrb[0].mxu0
    %v6648 = vadd.f32 %v6359, %v6647
    %v6649 = vpop.f32.mrb[0].mxu0
    %v6650 = vpop.f32.mrb[0].mxu0
    %v6651 = vadd.f32 %v6362, %v6650
    %v6652 = vpop.f32.mrb[0].mxu0
    %6653 = vmatprep.mubr.bf16.mxu0 0
    %6654 = vmatmul.mubr.bf16.gmra.mrb[0].mxu0 %v4731
    %v6655 = vpop.f32.mrb[0].mxu0
    %v6656 = vadd.f32 %v6367, %v6655
    %v6657 = vpop.f32.mrb[0].mxu0
    %v6658 = vpop.f32.mrb[0].mxu0
    %v6659 = vadd.f32 %v6370, %v6658
    %v6660 = vpop.f32.mrb[0].mxu0
    %6661 = vmatprep.mubr.bf16.mxu0 0
    %6662 = vmatmul.mubr.bf16.gmra.mrb[0].mxu0 %v4734
    %v6663 = vpop.f32.mrb[0].mxu0
    %v6664 = vadd.f32 %v6375, %v6663
    %v6665 = vpop.f32.mrb[0].mxu0
    %v6666 = vpop.f32.mrb[0].mxu0
    %v6667 = vadd.f32 %v6378, %v6666
    %v6668 = vpop.f32.mrb[0].mxu0
    %6669 = vmatprep.mubr.bf16.mxu0 0
    %6670 = vmatmul.mubr.bf16.gmra.mrb[0].mxu0 %v4737
    %v6671 = vpop.f32.mrb[0].mxu0
    %v6672 = vadd.f32 %v6383, %v6671
    %v6673 = vpop.f32.mrb[0].mxu0
    %v6674 = vpop.f32.mrb[0].mxu0
    %v6675 = vadd.f32 %v6386, %v6674
    %v6676 = vpop.f32.mrb[0].mxu0
    %6677 = vmatprep.mubr.bf16.mxu0 0
    %6678 = vmatmul.mubr.bf16.gmra.mrb[0].mxu0 %v4740
    %v6679 = vpop.f32.mrb[0].mxu0
    %v6680 = vadd.f32 %v6391, %v6679
    %v6681 = vpop.f32.mrb[0].mxu0
    %v6682 = vpop.f32.mrb[0].mxu0
    %v6683 = vadd.f32 %v6394, %v6682
    %v6684 = vpop.f32.mrb[0].mxu0
    %6685 = vmatprep.mubr.bf16.mxu0 0
    %6686 = vmatmul.mubr.bf16.gmra.mrb[0].mxu0 %v4743
    %v6687 = vpop.f32.mrb[0].mxu0
    %v6688 = vadd.f32 %v6399, %v6687
    %v6689 = vpop.f32.mrb[0].mxu0
    %v6690 = vpop.f32.mrb[0].mxu0
    %v6691 = vadd.f32 %v6402, %v6690
    %v6692 = vpop.f32.mrb[0].mxu0
    %6693 = vmatprep.mubr.bf16.mxu0 0
    %6694 = vmatmul.mubr.bf16.gmra.mrb[0].mxu0 %v4746
    %v6695 = vpop.f32.mrb[0].mxu0
    %v6696 = vadd.f32 %v6407, %v6695
    %v6697 = vpop.f32.mrb[0].mxu0
    %v6698 = vpop.f32.mrb[0].mxu0
    %v6699 = vadd.f32 %v6410, %v6698
    %v6700 = vpop.f32.mrb[0].mxu0
    %6701 = vmatprep.mubr.bf16.mxu0 0
    %6702 = vmatmul.mubr.bf16.gmra.mrb[0].mxu0 %v4749
    %v6703 = vpop.f32.mrb[0].mxu0
    %v6704 = vadd.f32 %v6415, %v6703
    %v6705 = vpop.f32.mrb[0].mxu0
    %v6706 = vpop.f32.mrb[0].mxu0
    %v6707 = vadd.f32 %v6418, %v6706
    %v6708 = vpop.f32.mrb[0].mxu0
    %6709 = vmatprep.mubr.bf16.mxu0 0
    %6710 = vmatmul.mubr.bf16.gmra.mrb[0].mxu0 %v4752
    %v6711 = vpop.f32.mrb[0].mxu0
    %v6712 = vadd.f32 %v6423, %v6711
    %v6713 = vpop.f32.mrb[0].mxu0
    %v6714 = vpop.f32.mrb[0].mxu0
    %v6715 = vadd.f32 %v6426, %v6714
    %v6716 = vpop.f32.mrb[0].mxu0
    %6717 = vmatprep.mubr.bf16.mxu0 0
    %6718 = vmatmul.mubr.bf16.gmra.mrb[0].mxu0 %v4749
    %v6719 = vpop.f32.mrb[0].mxu0
    %v6720 = vadd.f32 %v6431, %v6719
    %v6721 = vpop.f32.mrb[0].mxu0
    %v6722 = vpop.f32.mrb[0].mxu0
    %v6723 = vadd.f32 %v6434, %v6722
    %v6724 = vpop.f32.mrb[0].mxu0
    %6725 = vmatprep.mubr.bf16.mxu0 0
    %6726 = vmatmul.mubr.bf16.gmra.mrb[0].mxu0 %v4758
    %v6727 = vpop.f32.mrb[0].mxu0
    %v6728 = vadd.f32 %v6439, %v6727
    %v6729 = vpop.f32.mrb[0].mxu0
    %v6730 = vpop.f32.mrb[0].mxu0
    %v6731 = vadd.f32 %v6442, %v6730
    %v6732 = vpop.f32.mrb[0].mxu0
    %6733 = vmatprep.mubr.bf16.mxu0 0
    %6734 = vmatmul.mubr.bf16.gmra.mrb[0].mxu0 %v4761
    %v6735 = vpop.f32.mrb[0].mxu0
    %v6736 = vadd.f32 %v6447, %v6735
    %v6737 = vpop.f32.mrb[0].mxu0
    %v6738 = vpop.f32.mrb[0].mxu0
    %v6739 = vadd.f32 %v6450, %v6738
    %v6740 = vpop.f32.mrb[0].mxu0
    %6741 = vmatprep.mubr.bf16.mxu0 0
    %6742 = vmatmul.mubr.bf16.gmra.mrb[0].mxu0 %v4764
    %v6743 = vpop.f32.mrb[0].mxu0
    %v6744 = vadd.f32 %v6455, %v6743
    %v6745 = vpop.f32.mrb[0].mxu0
    %v6746 = vpop.f32.mrb[0].mxu0
    %v6747 = vadd.f32 %v6458, %v6746
    %v6748 = vpop.f32.mrb[0].mxu0
    %6749 = vmatprep.mubr.bf16.mxu0 0
    %6750 = vmatmul.mubr.bf16.gmra.mrb[0].mxu0 %v4767
    %v6751 = vpop.f32.mrb[0].mxu0
    %v6752 = vadd.f32 %v6463, %v6751
    %v6753 = vpop.f32.mrb[0].mxu0
    %v6754 = vpop.f32.mrb[0].mxu0
    %v6755 = vadd.f32 %v6466, %v6754
    %v6756 = vpop.f32.mrb[0].mxu0
    %6757 = vmatprep.mubr.bf16.mxu0 0
    %6758 = vmatmul.mubr.bf16.gmra.mrb[0].mxu0 %v4770
    %v6759 = vpop.f32.mrb[0].mxu0
    %v6760 = vadd.f32 %v6471, %v6759
    %v6761 = vpop.f32.mrb[0].mxu0
    %v6762 = vpop.f32.mrb[0].mxu0
    %v6763 = vadd.f32 %v6474, %v6762
    %v6764 = vpop.f32.mrb[0].mxu0
    %6765 = vmatprep.mubr.bf16.mxu0 0
    %6766 = vmatmul.mubr.bf16.gmra.mrb[0].mxu0 %v4773
    %v6767 = vpop.f32.mrb[0].mxu0
    %v6768 = vadd.f32 %v6479, %v6767
    %v6769 = vpop.f32.mrb[0].mxu0
    %v6770 = vpop.f32.mrb[0].mxu0
    %v6771 = vadd.f32 %v6482, %v6770
    %v6772 = vpop.f32.mrb[0].mxu0
    %6773 = vmatprep.mubr.bf16.mxu0 0
    %6774 = vmatmul.mubr.bf16.gmra.mrb[0].mxu0 %v4776
    %v6775 = vpop.f32.mrb[0].mxu0
    %v6776 = vadd.f32 %v6487, %v6775
    %v6777 = vpop.f32.mrb[0].mxu0
    %v6778 = vpop.f32.mrb[0].mxu0
    %v6779 = vadd.f32 %v6490, %v6778
    %v6780 = vpop.f32.mrb[0].mxu0
    %6781 = vmatprep.mubr.bf16.mxu0 0
    %6782 = vmatmul.mubr.bf16.gmra.mrb[0].mxu0 %v4779
    %v6783 = vpop.f32.mrb[0].mxu0
    %v6784 = vadd.f32 %v6495, %v6783
    %v6785 = vpop.f32.mrb[0].mxu0
    %v6786 = vpop.f32.mrb[0].mxu0
    %v6787 = vadd.f32 %v6498, %v6786
    %v6788 = vpop.f32.mrb[0].mxu0
    %6789 = vmatprep.mubr.bf16.mxu0 0
    %6790 = vmatmul.mubr.bf16.gmra.mrb[0].mxu0 %v4782
    %v6791 = vpop.f32.mrb[0].mxu0
    %v6792 = vadd.f32 %v6503, %v6791
    %v6793 = vpop.f32.mrb[0].mxu0
    %v6794 = vpop.f32.mrb[0].mxu0
    %v6795 = vadd.f32 %v6506, %v6794
    %v6796 = vpop.f32.mrb[0].mxu0
    %6797 = vmatprep.mubr.bf16.mxu0 0
    %6798 = vmatmul.mubr.bf16.gmra.mrb[0].mxu0 %v4785
    %v6799 = vpop.f32.mrb[0].mxu0
    %v6800 = vadd.f32 %v6511, %v6799
    %v6801 = vpop.f32.mrb[0].mxu0
    %v6802 = vpop.f32.mrb[0].mxu0
    %v6803 = vadd.f32 %v6514, %v6802
    %v6804 = vpop.f32.mrb[0].mxu0
    %6805 = vmatprep.mubr.bf16.mxu0 0
    %6806 = vmatmul.mubr.bf16.gmra.mrb[0].mxu0 %v4788
    %v6807 = vpop.f32.mrb[0].mxu0
    %v6808 = vadd.f32 %v6519, %v6807
    %v6809 = vpop.f32.mrb[0].mxu0
    %v6810 = vpop.f32.mrb[0].mxu0
    %v6811 = vadd.f32 %v6522, %v6810
    %v6812 = vpop.f32.mrb[0].mxu0
    %6813 = vmatprep.mubr.bf16.mxu0 0
    %6814 = vmatmul.mubr.bf16.gmra.mrb[0].mxu0 %v4791
    %v6815 = vpop.f32.mrb[0].mxu0
    %v6816 = vadd.f32 %v6527, %v6815
    %v6817 = vpop.f32.mrb[0].mxu0
    %v6818 = vpop.f32.mrb[0].mxu0
    %v6819 = vadd.f32 %v6530, %v6818
    %v6820 = vpop.f32.mrb[0].mxu0
    %6821 = vmatprep.mubr.bf16.mxu0 0
    %6822 = vmatmul.mubr.bf16.gmra.mrb[0].mxu0 %v4794
    %v6823 = vpop.f32.mrb[0].mxu0
    %v6824 = vadd.f32 %v6535, %v6823
    %v6825 = vpop.f32.mrb[0].mxu0
    %v6826 = vpop.f32.mrb[0].mxu0
    %v6827 = vadd.f32 %v6538, %v6826
    %v6828 = vpop.f32.mrb[0].mxu0
    %6829 = vmatprep.mubr.bf16.mxu0 0
    %6830 = vmatmul.mubr.bf16.gmra.mrb[0].mxu0 %v4797
    %v6831 = vpop.f32.mrb[0].mxu0
    %v6832 = vadd.f32 %v6543, %v6831
    %v6833 = vpop.f32.mrb[0].mxu0
    %v6834 = vpop.f32.mrb[0].mxu0
    %v6835 = vadd.f32 %v6546, %v6834
    %v6836 = vpop.f32.mrb[0].mxu0
    %6837 = vmatprep.mubr.bf16.mxu0 0
    %6838 = vmatmul.mubr.bf16.gmra.mrb[0].mxu0 %v4800
    %v6839 = vpop.f32.mrb[0].mxu0
    %v6840 = vadd.f32 %v6551, %v6839
    %v6841 = vpop.f32.mrb[0].mxu0
    %v6842 = vpop.f32.mrb[0].mxu0
    %v6843 = vadd.f32 %v6554, %v6842
    %v6844 = vpop.f32.mrb[0].mxu0
    %6845 = vmatprep.mubr.bf16.mxu0 0
    %6846 = vmatmul.mubr.bf16.gmra.mrb[0].mxu0 %v4797
    %v6847 = vpop.f32.mrb[0].mxu0
    %v6848 = vadd.f32 %v6559, %v6847
    %v6849 = vpop.f32.mrb[0].mxu0
    %v6850 = vpop.f32.mrb[0].mxu0
    %v6851 = vadd.f32 %v6562, %v6850
    %v6852 = vpop.f32.mrb[0].mxu0
    %6853 = vdwg.mxu0
    %v6854 = vadd.f32 %v6600, %v6603
    %v6855 = vadd.f32 %v6854, %v6608
    %v6856 = vadd.f32 %v6855, %v6611
    %v6857 = vadd.f32 %v6856, %v6616
    %v6858 = vadd.f32 %v6857, %v6619
    %v6859 = vadd.f32 %v6858, %v6624
    %v6860 = vadd.f32 %v6859, %v6627
    %v6861 = vadd.f32 %v6860, %v6632
    %v6862 = vadd.f32 %v6861, %v6635
    %v6863 = vadd.f32 %v6862, %v6640
    %v6864 = vadd.f32 %v6863, %v6643
    %v6865 = vadd.f32 %v6864, %v6648
    %v6866 = vadd.f32 %v6865, %v6651
    %v6867 = vadd.f32 %v6866, %v6656
    %v6868 = vadd.f32 %v6867, %v6659
    %v6869 = vadd.f32 %v6868, %v6664
    %v6870 = vadd.f32 %v6869, %v6667
    %v6871 = vadd.f32 %v6870, %v6672
    %v6872 = vadd.f32 %v6871, %v6675
    %v6873 = vadd.f32 %v6872, %v6680
    %v6874 = vadd.f32 %v6873, %v6683
    %v6875 = vadd.f32 %v6874, %v6688
    %v6876 = vadd.f32 %v6875, %v6691
    %v6877 = vadd.f32 %v6876, %v6696
    %v6878 = vadd.f32 %v6877, %v6699
    %v6879 = vadd.f32 %v6878, %v6704
    %v6880 = vadd.f32 %v6879, %v6707
    %v6881 = vadd.f32 %v6880, %v6712
    %v6882 = vadd.f32 %v6881, %v6715
    %v6883 = vadd.f32 %v6882, %v6720
    %v6884 = vadd.f32 %v6883, %v6723
    %v6885 = vrot.slane %v6884, 4
    %v6886 = vadd.f32 %v6884, %v6885
    %v6887 = vrot.slane %v6886, 2
    %v6888 = vadd.f32 %v6886, %v6887
    %v6889 = vrot.slane %v6888, 1
    %v6890 = vadd.f32 %v6888, %v6889
    %v6891 = vadd.f32 %v6728, %v6731
    %v6892 = vadd.f32 %v6891, %v6736
    %v6893 = vadd.f32 %v6892, %v6739
    %v6894 = vadd.f32 %v6893, %v6744
    %v6895 = vadd.f32 %v6894, %v6747
    %v6896 = vadd.f32 %v6895, %v6752
    %v6897 = vadd.f32 %v6896, %v6755
    %v6898 = vadd.f32 %v6897, %v6760
    %v6899 = vadd.f32 %v6898, %v6763
    %v6900 = vadd.f32 %v6899, %v6768
    %v6901 = vadd.f32 %v6900, %v6771
    %v6902 = vadd.f32 %v6901, %v6776
    %v6903 = vadd.f32 %v6902, %v6779
    %v6904 = vadd.f32 %v6903, %v6784
    %v6905 = vadd.f32 %v6904, %v6787
    %v6906 = vadd.f32 %v6905, %v6792
    %v6907 = vadd.f32 %v6906, %v6795
    %v6908 = vadd.f32 %v6907, %v6800
    %v6909 = vadd.f32 %v6908, %v6803
    %v6910 = vadd.f32 %v6909, %v6808
    %v6911 = vadd.f32 %v6910, %v6811
    %v6912 = vadd.f32 %v6911, %v6816
    %v6913 = vadd.f32 %v6912, %v6819
    %v6914 = vadd.f32 %v6913, %v6824
    %v6915 = vadd.f32 %v6914, %v6827
    %v6916 = vadd.f32 %v6915, %v6832
    %v6917 = vadd.f32 %v6916, %v6835
    %v6918 = vadd.f32 %v6917, %v6840
    %v6919 = vadd.f32 %v6918, %v6843
    %v6920 = vadd.f32 %v6919, %v6848
    %v6921 = vadd.f32 %v6920, %v6851
    %v6922 = vrot.slane %v6921, 4
    %v6923 = vadd.f32 %v6921, %v6922
    %v6924 = vrot.slane %v6923, 2
    %v6925 = vadd.f32 %v6923, %v6924
    %v6926 = vrot.slane %v6925, 1
    %v6927 = vadd.f32 %v6925, %v6926
    %v6928 = vmul.f32 %v6600, %v6600
    %v6929 = vmul.f32 %v6603, %v6603
    %v6930 = vmul.f32 %v6608, %v6608
    %v6931 = vmul.f32 %v6611, %v6611
    %v6932 = vmul.f32 %v6616, %v6616
    %v6933 = vmul.f32 %v6619, %v6619
    %v6934 = vmul.f32 %v6624, %v6624
    %v6935 = vmul.f32 %v6627, %v6627
    %v6936 = vmul.f32 %v6632, %v6632
    %v6937 = vmul.f32 %v6635, %v6635
    %v6938 = vmul.f32 %v6640, %v6640
    %v6939 = vmul.f32 %v6643, %v6643
    %v6940 = vmul.f32 %v6648, %v6648
    %v6941 = vmul.f32 %v6651, %v6651
    %v6942 = vmul.f32 %v6656, %v6656
    %v6943 = vmul.f32 %v6659, %v6659
    %v6944 = vmul.f32 %v6664, %v6664
    %v6945 = vmul.f32 %v6667, %v6667
    %v6946 = vmul.f32 %v6672, %v6672
    %v6947 = vmul.f32 %v6675, %v6675
    %v6948 = vmul.f32 %v6680, %v6680
    %v6949 = vmul.f32 %v6683, %v6683
    %v6950 = vmul.f32 %v6688, %v6688
    %v6951 = vmul.f32 %v6691, %v6691
    %v6952 = vmul.f32 %v6696, %v6696
    %v6953 = vmul.f32 %v6699, %v6699
    %v6954 = vmul.f32 %v6704, %v6704
    %v6955 = vmul.f32 %v6707, %v6707
    %v6956 = vmul.f32 %v6712, %v6712
    %v6957 = vmul.f32 %v6715, %v6715
    %v6958 = vmul.f32 %v6720, %v6720
    %v6959 = vmul.f32 %v6723, %v6723
    %v6960 = vmul.f32 %v6728, %v6728
    %v6961 = vmul.f32 %v6731, %v6731
    %v6962 = vmul.f32 %v6736, %v6736
    %v6963 = vmul.f32 %v6739, %v6739
    %v6964 = vmul.f32 %v6744, %v6744
    %v6965 = vmul.f32 %v6747, %v6747
    %v6966 = vmul.f32 %v6752, %v6752
    %v6967 = vmul.f32 %v6755, %v6755
    %v6968 = vmul.f32 %v6760, %v6760
    %v6969 = vmul.f32 %v6763, %v6763
    %v6970 = vmul.f32 %v6768, %v6768
    %v6971 = vmul.f32 %v6771, %v6771
    %v6972 = vmul.f32 %v6776, %v6776
    %v6973 = vmul.f32 %v6779, %v6779
    %v6974 = vmul.f32 %v6784, %v6784
    %v6975 = vmul.f32 %v6787, %v6787
    %v6976 = vmul.f32 %v6792, %v6792
    %v6977 = vmul.f32 %v6795, %v6795
    %v6978 = vmul.f32 %v6800, %v6800
    %v6979 = vmul.f32 %v6803, %v6803
    %v6980 = vmul.f32 %v6808, %v6808
    %v6981 = vmul.f32 %v6811, %v6811
    %v6982 = vmul.f32 %v6816, %v6816
    %v6983 = vmul.f32 %v6819, %v6819
    %v6984 = vmul.f32 %v6824, %v6824
    %v6985 = vmul.f32 %v6827, %v6827
    %v6986 = vmul.f32 %v6832, %v6832
    %v6987 = vmul.f32 %v6835, %v6835
    %v6988 = vmul.f32 %v6840, %v6840
    %v6989 = vmul.f32 %v6843, %v6843
    %v6990 = vmul.f32 %v6848, %v6848
    %v6991 = vmul.f32 %v6851, %v6851
    %v6992 = vadd.f32 %v6928, %v6929
    %v6993 = vadd.f32 %v6992, %v6930
    %v6994 = vadd.f32 %v6993, %v6931
    %v6995 = vadd.f32 %v6994, %v6932
    %v6996 = vadd.f32 %v6995, %v6933
    %v6997 = vadd.f32 %v6996, %v6934
    %v6998 = vadd.f32 %v6997, %v6935
    %v6999 = vadd.f32 %v6998, %v6936
    %v7000 = vadd.f32 %v6999, %v6937
    %v7001 = vadd.f32 %v7000, %v6938
    %v7002 = vadd.f32 %v7001, %v6939
    %v7003 = vadd.f32 %v7002, %v6940
    %v7004 = vadd.f32 %v7003, %v6941
    %v7005 = vadd.f32 %v7004, %v6942
    %v7006 = vadd.f32 %v7005, %v6943
    %v7007 = vadd.f32 %v7006, %v6944
    %v7008 = vadd.f32 %v7007, %v6945
    %v7009 = vadd.f32 %v7008, %v6946
    %v7010 = vadd.f32 %v7009, %v6947
    %v7011 = vadd.f32 %v7010, %v6948
    %v7012 = vadd.f32 %v7011, %v6949
    %v7013 = vadd.f32 %v7012, %v6950
    %v7014 = vadd.f32 %v7013, %v6951
    %v7015 = vadd.f32 %v7014, %v6952
    %v7016 = vadd.f32 %v7015, %v6953
    %v7017 = vadd.f32 %v7016, %v6954
    %v7018 = vadd.f32 %v7017, %v6955
    %v7019 = vadd.f32 %v7018, %v6956
    %v7020 = vadd.f32 %v7019, %v6957
    %v7021 = vadd.f32 %v7020, %v6958
    %v7022 = vadd.f32 %v7021, %v6959
    %v7023 = vrot.slane %v7022, 4
    %v7024 = vadd.f32 %v7022, %v7023
    %v7025 = vrot.slane %v7024, 2
    %v7026 = vadd.f32 %v7024, %v7025
    %v7027 = vrot.slane %v7026, 1
    %v7028 = vadd.f32 %v7026, %v7027
    %v7029 = vadd.f32 %v6960, %v6961
    %v7030 = vadd.f32 %v7029, %v6962
    %v7031 = vadd.f32 %v7030, %v6963
    %v7032 = vadd.f32 %v7031, %v6964
    %v7033 = vadd.f32 %v7032, %v6965
    %v7034 = vadd.f32 %v7033, %v6966
    %v7035 = vadd.f32 %v7034, %v6967
    %v7036 = vadd.f32 %v7035, %v6968
    %v7037 = vadd.f32 %v7036, %v6969
    %v7038 = vadd.f32 %v7037, %v6970
    %v7039 = vadd.f32 %v7038, %v6971
    %v7040 = vadd.f32 %v7039, %v6972
    %v7041 = vadd.f32 %v7040, %v6973
    %v7042 = vadd.f32 %v7041, %v6974
    %v7043 = vadd.f32 %v7042, %v6975
    %v7044 = vadd.f32 %v7043, %v6976
    %v7045 = vadd.f32 %v7044, %v6977
    %v7046 = vadd.f32 %v7045, %v6978
    %v7047 = vadd.f32 %v7046, %v6979
    %v7048 = vadd.f32 %v7047, %v6980
    %v7049 = vadd.f32 %v7048, %v6981
    %v7050 = vadd.f32 %v7049, %v6982
    %v7051 = vadd.f32 %v7050, %v6983
    %v7052 = vadd.f32 %v7051, %v6984
    %v7053 = vadd.f32 %v7052, %v6985
    %v7054 = vadd.f32 %v7053, %v6986
    %v7055 = vadd.f32 %v7054, %v6987
    %v7056 = vadd.f32 %v7055, %v6988
    %v7057 = vadd.f32 %v7056, %v6989
    %v7058 = vadd.f32 %v7057, %v6990
    %v7059 = vadd.f32 %v7058, %v6991
    %v7060 = vrot.slane %v7059, 4
    %v7061 = vadd.f32 %v7059, %v7060
    %v7062 = vrot.slane %v7061, 2
    %v7063 = vadd.f32 %v7061, %v7062
    %v7064 = vrot.slane %v7063, 1
    %v7065 = vadd.f32 %v7063, %v7064
    %v7066 = vmul.f32 %v6890, 0.00390625
    %v7067 = vmul.f32 %v6927, 0.00390625
    %v7068 = vmul.f32 %v7028, 0.00390625
    %v7069 = vmul.f32 %v7065, 0.00390625
    %v7070 = vmul.f32 %v7066, %v7066
    %v7071 = vmul.f32 %v7067, %v7067
    %v7072 = vsub.f32 %v7068, %v7070
    %v7073 = vsub.f32 %v7069, %v7071
    %v7074 = vmax.f32 %v7072, 0.0
    %v7075 = vmax.f32 %v7073, 0.0
    %v7076 = vadd.f32 %v7074, 1e-05
    %v7077 = vadd.f32 %v7075, 1e-05
    %v7078 = vrsqrt.pop %v7076
    %v7079 = vrsqrt.pop %v7077
    %v7080 = vmul.f32 %v213, %v7078
    %v7081 = vmul.f32 %v213, %v7079
    %v7082 = vmul.f32 %v7066, %v7080
    %v7083 = vmul.f32 %v7067, %v7081
    %v7084 = vsub.f32 %v214, %v7082
    %v7085 = vsub.f32 %v214, %v7083
    %v7088 = vlaneseq
    %v7089 = vshrl.u32 %v7088, 7
    %v7090 = vsub.s32 0, %v7089
    %v7091 = vrot.slane %v7080, %v7090
    %v7092 = vlaneseq
    %v7093 = vshrl.u32 %v7092, 7
    %v7094 = vsub.s32 0, %v7093
    %v7095 = vrot.slane %v7081, %v7094
    %v7098 = vmul.f32 %v6600, %v7091
    %v7099 = vmul.f32 %v6603, %v7091
    %v7100 = vmul.f32 %v6608, %v7091
    %v7101 = vmul.f32 %v6611, %v7091
    %v7102 = vmul.f32 %v6616, %v7091
    %v7103 = vmul.f32 %v6619, %v7091
    %v7104 = vmul.f32 %v6624, %v7091
    %v7105 = vmul.f32 %v6627, %v7091
    %v7106 = vmul.f32 %v6632, %v7091
    %v7107 = vmul.f32 %v6635, %v7091
    %v7108 = vmul.f32 %v6640, %v7091
    %v7109 = vmul.f32 %v6643, %v7091
    %v7110 = vmul.f32 %v6648, %v7091
    %v7111 = vmul.f32 %v6651, %v7091
    %v7112 = vmul.f32 %v6656, %v7091
    %v7113 = vmul.f32 %v6659, %v7091
    %v7114 = vmul.f32 %v6664, %v7091
    %v7115 = vmul.f32 %v6667, %v7091
    %v7116 = vmul.f32 %v6672, %v7091
    %v7117 = vmul.f32 %v6675, %v7091
    %v7118 = vmul.f32 %v6680, %v7091
    %v7119 = vmul.f32 %v6683, %v7091
    %v7120 = vmul.f32 %v6688, %v7091
    %v7121 = vmul.f32 %v6691, %v7091
    %v7122 = vmul.f32 %v6696, %v7091
    %v7123 = vmul.f32 %v6699, %v7091
    %v7124 = vmul.f32 %v6704, %v7091
    %v7125 = vmul.f32 %v6707, %v7091
    %v7126 = vmul.f32 %v6712, %v7091
    %v7127 = vmul.f32 %v6715, %v7091
    %v7128 = vmul.f32 %v6720, %v7091
    %v7129 = vmul.f32 %v6723, %v7091
    %v7130 = vmul.f32 %v6728, %v7095
    %v7131 = vmul.f32 %v6731, %v7095
    %v7132 = vmul.f32 %v6736, %v7095
    %v7133 = vmul.f32 %v6739, %v7095
    %v7134 = vmul.f32 %v6744, %v7095
    %v7135 = vmul.f32 %v6747, %v7095
    %v7136 = vmul.f32 %v6752, %v7095
    %v7137 = vmul.f32 %v6755, %v7095
    %v7138 = vmul.f32 %v6760, %v7095
    %v7139 = vmul.f32 %v6763, %v7095
    %v7140 = vmul.f32 %v6768, %v7095
    %v7141 = vmul.f32 %v6771, %v7095
    %v7142 = vmul.f32 %v6776, %v7095
    %v7143 = vmul.f32 %v6779, %v7095
    %v7144 = vmul.f32 %v6784, %v7095
    %v7145 = vmul.f32 %v6787, %v7095
    %v7146 = vmul.f32 %v6792, %v7095
    %v7147 = vmul.f32 %v6795, %v7095
    %v7148 = vmul.f32 %v6800, %v7095
    %v7149 = vmul.f32 %v6803, %v7095
    %v7150 = vmul.f32 %v6808, %v7095
    %v7151 = vmul.f32 %v6811, %v7095
    %v7152 = vmul.f32 %v6816, %v7095
    %v7153 = vmul.f32 %v6819, %v7095
    %v7154 = vmul.f32 %v6824, %v7095
    %v7155 = vmul.f32 %v6827, %v7095
    %v7156 = vmul.f32 %v6832, %v7095
    %v7157 = vmul.f32 %v6835, %v7095
    %v7158 = vmul.f32 %v6840, %v7095
    %v7159 = vmul.f32 %v6843, %v7095
    %v7160 = vmul.f32 %v6848, %v7095
    %v7161 = vmul.f32 %v6851, %v7095
    %v7164 = vlaneseq
    %v7165 = vshrl.u32 %v7164, 7
    %v7166 = vsub.s32 0, %v7165
    %v7167 = vrot.slane %v7084, %v7166
    %v7168 = vlaneseq
    %v7169 = vshrl.u32 %v7168, 7
    %v7170 = vsub.s32 0, %v7169
    %v7171 = vrot.slane %v7085, %v7170
    %v7174 = vadd.f32 %v7098, %v7167
    %v7175 = vadd.f32 %v7099, %v7167
    %v7176 = vadd.f32 %v7100, %v7167
    %v7177 = vadd.f32 %v7101, %v7167
    %v7178 = vadd.f32 %v7102, %v7167
    %v7179 = vadd.f32 %v7103, %v7167
    %v7180 = vadd.f32 %v7104, %v7167
    %v7181 = vadd.f32 %v7105, %v7167
    %v7182 = vadd.f32 %v7106, %v7167
    %v7183 = vadd.f32 %v7107, %v7167
    %v7184 = vadd.f32 %v7108, %v7167
    %v7185 = vadd.f32 %v7109, %v7167
    %v7186 = vadd.f32 %v7110, %v7167
    %v7187 = vadd.f32 %v7111, %v7167
    %v7188 = vadd.f32 %v7112, %v7167
    %v7189 = vadd.f32 %v7113, %v7167
    %v7190 = vadd.f32 %v7114, %v7167
    %v7191 = vadd.f32 %v7115, %v7167
    %v7192 = vadd.f32 %v7116, %v7167
    %v7193 = vadd.f32 %v7117, %v7167
    %v7194 = vadd.f32 %v7118, %v7167
    %v7195 = vadd.f32 %v7119, %v7167
    %v7196 = vadd.f32 %v7120, %v7167
    %v7197 = vadd.f32 %v7121, %v7167
    %v7198 = vadd.f32 %v7122, %v7167
    %v7199 = vadd.f32 %v7123, %v7167
    %v7200 = vadd.f32 %v7124, %v7167
    %v7201 = vadd.f32 %v7125, %v7167
    %v7202 = vadd.f32 %v7126, %v7167
    %v7203 = vadd.f32 %v7127, %v7167
    %v7204 = vadd.f32 %v7128, %v7167
    %v7205 = vadd.f32 %v7129, %v7167
    %v7206 = vadd.f32 %v7130, %v7171
    %v7207 = vadd.f32 %v7131, %v7171
    %v7208 = vadd.f32 %v7132, %v7171
    %v7209 = vadd.f32 %v7133, %v7171
    %v7210 = vadd.f32 %v7134, %v7171
    %v7211 = vadd.f32 %v7135, %v7171
    %v7212 = vadd.f32 %v7136, %v7171
    %v7213 = vadd.f32 %v7137, %v7171
    %v7214 = vadd.f32 %v7138, %v7171
    %v7215 = vadd.f32 %v7139, %v7171
    %v7216 = vadd.f32 %v7140, %v7171
    %v7217 = vadd.f32 %v7141, %v7171
    %v7218 = vadd.f32 %v7142, %v7171
    %v7219 = vadd.f32 %v7143, %v7171
    %v7220 = vadd.f32 %v7144, %v7171
    %v7221 = vadd.f32 %v7145, %v7171
    %v7222 = vadd.f32 %v7146, %v7171
    %v7223 = vadd.f32 %v7147, %v7171
    %v7224 = vadd.f32 %v7148, %v7171
    %v7225 = vadd.f32 %v7149, %v7171
    %v7226 = vadd.f32 %v7150, %v7171
    %v7227 = vadd.f32 %v7151, %v7171
    %v7228 = vadd.f32 %v7152, %v7171
    %v7229 = vadd.f32 %v7153, %v7171
    %v7230 = vadd.f32 %v7154, %v7171
    %v7231 = vadd.f32 %v7155, %v7171
    %v7232 = vadd.f32 %v7156, %v7171
    %v7233 = vadd.f32 %v7157, %v7171
    %v7234 = vadd.f32 %v7158, %v7171
    %v7235 = vadd.f32 %v7159, %v7171
    %v7236 = vadd.f32 %v7160, %v7171
    %v7237 = vadd.f32 %v7161, %v7171
    %v7238 = vadd.f32 %v7174, %v115
    %v7239 = vadd.f32 %v7175, %v116
    %v7240 = vadd.f32 %v7176, %v117
    %v7241 = vadd.f32 %v7177, %v118
    %v7242 = vadd.f32 %v7178, %v119
    %v7243 = vadd.f32 %v7179, %v120
    %v7244 = vadd.f32 %v7180, %v121
    %v7245 = vadd.f32 %v7181, %v122
    %v7246 = vadd.f32 %v7182, %v123
    %v7247 = vadd.f32 %v7183, %v124
    %v7248 = vadd.f32 %v7184, %v125
    %v7249 = vadd.f32 %v7185, %v126
    %v7250 = vadd.f32 %v7186, %v127
    %v7251 = vadd.f32 %v7187, %v128
    %v7252 = vadd.f32 %v7188, %v129
    %v7253 = vadd.f32 %v7189, %v130
    %v7254 = vadd.f32 %v7190, %v131
    %v7255 = vadd.f32 %v7191, %v132
    %v7256 = vadd.f32 %v7192, %v133
    %v7257 = vadd.f32 %v7193, %v134
    %v7258 = vadd.f32 %v7194, %v135
    %v7259 = vadd.f32 %v7195, %v136
    %v7260 = vadd.f32 %v7196, %v137
    %v7261 = vadd.f32 %v7197, %v138
    %v7262 = vadd.f32 %v7198, %v139
    %v7263 = vadd.f32 %v7199, %v140
    %v7264 = vadd.f32 %v7200, %v141
    %v7265 = vadd.f32 %v7201, %v142
    %v7266 = vadd.f32 %v7202, %v143
    %v7267 = vadd.f32 %v7203, %v144
    %v7268 = vadd.f32 %v7204, %v145
    %v7269 = vadd.f32 %v7205, %v146
    %v7270 = vadd.f32 %v7206, %v147
    %v7271 = vadd.f32 %v7207, %v148
    %v7272 = vadd.f32 %v7208, %v149
    %v7273 = vadd.f32 %v7209, %v150
    %v7274 = vadd.f32 %v7210, %v151
    %v7275 = vadd.f32 %v7211, %v152
    %v7276 = vadd.f32 %v7212, %v153
    %v7277 = vadd.f32 %v7213, %v154
    %v7278 = vadd.f32 %v7214, %v155
    %v7279 = vadd.f32 %v7215, %v156
    %v7280 = vadd.f32 %v7216, %v157
    %v7281 = vadd.f32 %v7217, %v158
    %v7282 = vadd.f32 %v7218, %v159
    %v7283 = vadd.f32 %v7219, %v160
    %v7284 = vadd.f32 %v7220, %v161
    %v7285 = vadd.f32 %v7221, %v162
    %v7286 = vadd.f32 %v7222, %v163
    %v7287 = vadd.f32 %v7223, %v164
    %v7288 = vadd.f32 %v7224, %v165
    %v7289 = vadd.f32 %v7225, %v166
    %v7290 = vadd.f32 %v7226, %v167
    %v7291 = vadd.f32 %v7227, %v168
    %v7292 = vadd.f32 %v7228, %v169
    %v7293 = vadd.f32 %v7229, %v170
    %v7294 = vadd.f32 %v7230, %v171
    %v7295 = vadd.f32 %v7231, %v172
    %v7296 = vadd.f32 %v7232, %v173
    %v7297 = vadd.f32 %v7233, %v174
    %v7298 = vadd.f32 %v7234, %v175
    %v7299 = vadd.f32 %v7235, %v176
    %v7300 = vadd.f32 %v7236, %v177
    %v7301 = vadd.f32 %v7237, %v178
    %7302 = vst [vmem:[#allocation14] sm:$0xff] %v7238
    %7303 = vst [vmem:[#allocation14 + $0x8] sm:$0xff] %v7239
    %7304 = vst [vmem:[#allocation14 + $0x10] sm:$0xff] %v7240
    %7305 = vst [vmem:[#allocation14 + $0x18] sm:$0xff] %v7241
    %7306 = vst [vmem:[#allocation14 + $0x20] sm:$0xff] %v7242
    %7307 = vst [vmem:[#allocation14 + $0x28] sm:$0xff] %v7243
    %7308 = vst [vmem:[#allocation14 + $0x30] sm:$0xff] %v7244
    %7309 = vst [vmem:[#allocation14 + $0x38] sm:$0xff] %v7245
    %7310 = vst [vmem:[#allocation14 + $0x40] sm:$0xff] %v7246
    %7311 = vst [vmem:[#allocation14 + $0x48] sm:$0xff] %v7247
    %7312 = vst [vmem:[#allocation14 + $0x50] sm:$0xff] %v7248
    %7313 = vst [vmem:[#allocation14 + $0x58] sm:$0xff] %v7249
    %7314 = vst [vmem:[#allocation14 + $0x60] sm:$0xff] %v7250
    %7315 = vst [vmem:[#allocation14 + $0x68] sm:$0xff] %v7251
    %7316 = vst [vmem:[#allocation14 + $0x70] sm:$0xff] %v7252
    %7317 = vst [vmem:[#allocation14 + $0x78] sm:$0xff] %v7253
    %7318 = vst [vmem:[#allocation14 + $0x80] sm:$0xff] %v7254
    %7319 = vst [vmem:[#allocation14 + $0x88] sm:$0xff] %v7255
    %7320 = vst [vmem:[#allocation14 + $0x90] sm:$0xff] %v7256
    %7321 = vst [vmem:[#allocation14 + $0x98] sm:$0xff] %v7257
    %7322 = vst [vmem:[#allocation14 + $0xa0] sm:$0xff] %v7258
    %7323 = vst [vmem:[#allocation14 + $0xa8] sm:$0xff] %v7259
    %7324 = vst [vmem:[#allocation14 + $0xb0] sm:$0xff] %v7260
    %7325 = vst [vmem:[#allocation14 + $0xb8] sm:$0xff] %v7261
    %7326 = vst [vmem:[#allocation14 + $0xc0] sm:$0xff] %v7262
    %7327 = vst [vmem:[#allocation14 + $0xc8] sm:$0xff] %v7263
    %7328 = vst [vmem:[#allocation14 + $0xd0] sm:$0xff] %v7264
    %7329 = vst [vmem:[#allocation14 + $0xd8] sm:$0xff] %v7265
    %7330 = vst [vmem:[#allocation14 + $0xe0] sm:$0xff] %v7266
    %7331 = vst [vmem:[#allocation14 + $0xe8] sm:$0xff] %v7267
    %7332 = vst [vmem:[#allocation14 + $0xf0] sm:$0xff] %v7268
    %7333 = vst [vmem:[#allocation14 + $0xf8] sm:$0xff] %v7269
    %7334 = vst [vmem:[#allocation14 + $0x100] sm:$0xff] %v7270
    %7335 = vst [vmem:[#allocation14 + $0x108] sm:$0xff] %v7271
    %7336 = vst [vmem:[#allocation14 + $0x110] sm:$0xff] %v7272
    %7337 = vst [vmem:[#allocation14 + $0x118] sm:$0xff] %v7273
    %7338 = vst [vmem:[#allocation14 + $0x120] sm:$0xff] %v7274
    %7339 = vst [vmem:[#allocation14 + $0x128] sm:$0xff] %v7275
    %7340 = vst [vmem:[#allocation14 + $0x130] sm:$0xff] %v7276
    %7341 = vst [vmem:[#allocation14 + $0x138] sm:$0xff] %v7277
    %7342 = vst [vmem:[#allocation14 + $0x140] sm:$0xff] %v7278
    %7343 = vst [vmem:[#allocation14 + $0x148] sm:$0xff] %v7279
    %7344 = vst [vmem:[#allocation14 + $0x150] sm:$0xff] %v7280
    %7345 = vst [vmem:[#allocation14 + $0x158] sm:$0xff] %v7281
    %7346 = vst [vmem:[#allocation14 + $0x160] sm:$0xff] %v7282
    %7347 = vst [vmem:[#allocation14 + $0x168] sm:$0xff] %v7283
    %7348 = vst [vmem:[#allocation14 + $0x170] sm:$0xff] %v7284
    %7349 = vst [vmem:[#allocation14 + $0x178] sm:$0xff] %v7285
    %7350 = vst [vmem:[#allocation14 + $0x180] sm:$0xff] %v7286
    %7351 = vst [vmem:[#allocation14 + $0x188] sm:$0xff] %v7287
    %7352 = vst [vmem:[#allocation14 + $0x190] sm:$0xff] %v7288
    %7353 = vst [vmem:[#allocation14 + $0x198] sm:$0xff] %v7289
    %7354 = vst [vmem:[#allocation14 + $0x1a0] sm:$0xff] %v7290
    %7355 = vst [vmem:[#allocation14 + $0x1a8] sm:$0xff] %v7291
    %7356 = vst [vmem:[#allocation14 + $0x1b0] sm:$0xff] %v7292
    %7357 = vst [vmem:[#allocation14 + $0x1b8] sm:$0xff] %v7293
    %7358 = vst [vmem:[#allocation14 + $0x1c0] sm:$0xff] %v7294
    %7359 = vst [vmem:[#allocation14 + $0x1c8] sm:$0xff] %v7295
    %7360 = vst [vmem:[#allocation14 + $0x1d0] sm:$0xff] %v7296
    %7361 = vst [vmem:[#allocation14 + $0x1d8] sm:$0xff] %v7297
    %7362 = vst [vmem:[#allocation14 + $0x1e0] sm:$0xff] %v7298
    %7363 = vst [vmem:[#allocation14 + $0x1e8] sm:$0xff] %v7299
    %7364 = vst [vmem:[#allocation14 + $0x1f0] sm:$0xff] %v7300
    %7365 = vst [vmem:[#allocation14 + $0x1f8] sm:$0xff] %v7301
    // Predicated region
    $region58: #{residual_layer_pallas_nhwc.1} parent=1 // pred_check
      _
    $region59: #{residual_layer_pallas_nhwc.1} parent=1 // pred_check_branch
      %7367 = sbr.rel (0) target = $region61
    $region60: #{residual_layer_pallas_nhwc.1} parent=1 // pred_region
      %s7369 = ssub.s32 8192, 8192
      %7370 = vsyncadd [#allocation4], %s7369
      %s7371 = sshll.u32 [#allocation14], 4
      %s7372 = int_to_ptr.vmem [resolvable:$true] %s7371
      %7377 = dma.vmem_to_hbm [thread:$0]  %s7372, 8192, %s7, [#allocation4], 128, 128, 8
    $region61: #{residual_layer_pallas_nhwc.1} parent=1 // pred_fallthru
      _
    // Predicated region
    $region62: #{residual_layer_pallas_nhwc.1} parent=1 // pred_check
      _
    $region63: #{residual_layer_pallas_nhwc.1} parent=1 // pred_check_branch
      %7379 = sbr.rel (0) target = $region65
    $region64: #{residual_layer_pallas_nhwc.1} parent=1 // pred_region
      %7380 = dma.done [#allocation4], 8192
    $region65: #{residual_layer_pallas_nhwc.1} parent=1 // pred_fallthru
      _
    %7381 = vsyncpa [#allocation3], 1
    %7382 = vsyncpa [#allocation6], 1
    %7383 = vsyncpa [#allocation9], 1
    %7384 = vsyncpa [#allocation12], 1
    %7385 = vsyncpa [#allocation4], 1

</llo_original>
